<compile_context>
chip_gen: v6e
topology: v6e:2x2x1
jax: 0.10.0
libtpu: 0.0.40
codegen_flags: <defaults>
</compile_context>

<pallas_src>
import functools
import math

import jax
import jax.numpy as jnp
from jax import lax
from jax.experimental import pallas as pl
from jax.experimental.pallas import tpu as pltpu


def _transformer_kernel(x_ref, wq_ref, bq_ref, wv_ref, bv_ref, wk_ref, he_ref,
                        out_ref, a1_ref, a2_ref, *, B, T, H, repeat):
    """Fully fused Transformer.forward (repeat x [mask, layer1, layer2])."""
    BT, D = x_ref.shape
    scale = 1.0 / math.sqrt(D)
    # MXU reduction vector for the L1 distance (replaces an XLU lane-sum).
    neg_ones = jnp.full((D, 1), -scale, dtype=jnp.float32)
    # Feature-index iota for the in-kernel masking (hoisted out of the loop).
    col = lax.broadcasted_iota(jnp.int32, (BT, D), 1)

    def apply_block(x2d, layer):
        """One ResidualAttentionBlock applied to the whole (B*T, D) slab."""
        wq_t = wq_ref[layer]              # (D, H*D)
        wv_t = wv_ref[layer]              # (D, H*D)
        bq = bq_ref[layer]                # (1, H*D)
        bv = bv_ref[layer]                # (1, H*D)
        wk = wk_ref[layer]                # (H, D)   gated-key weights
        he = he_ref[layer]                # (1, H*D) head_enabled broadcast over D

        # Batch-collapsed fused projections (one MXU matmul each for q and v).
        q_all = jnp.dot(x2d, wq_t, preferred_element_type=jnp.float32) + bq
        v_all = (jnp.dot(x2d, wv_t, preferred_element_type=jnp.float32) + bv) * he

        outs = []
        attn_b0 = None
        for b in range(B):                      # B, H static & tiny -> unroll
            x_b = x2d[b * T:(b + 1) * T, :]     # (T, D)
            a_heads, v_heads = [], []
            for h in range(H):
                q_bh = q_all[b * T:(b + 1) * T, h * D:(h + 1) * D]    # (T, D)
                k_bh = x_b * wk[h:h + 1, :]                            # (T, D)
                # L1 attention scores: -(1/sqrt(D)) * sum_d |q - k|, on the MXU.
                diff = jnp.abs(q_bh[:, None, :] - k_bh[None, :, :])    # (T, T, D)
                s = jnp.dot(diff.reshape(T * T, D), neg_ones,
                            preferred_element_type=jnp.float32).reshape(T, T)
                # softmax over the key axis (dim=3 in the torch code).
                s = s - jnp.max(s, axis=-1, keepdims=True)
                p = jnp.exp(s)
                a_heads.append(p / jnp.sum(p, axis=-1, keepdims=True))
                v_heads.append(v_all[b * T:(b + 1) * T, h * D:(h + 1) * D])
            # einsum('bhts,bshd->bthd') + sum over heads == one concatenated matmul.
            a_cat = jnp.concatenate(a_heads, axis=1)     # (T, H*T)
            v_cat = jnp.concatenate(v_heads, axis=0)     # (H*T, D)
            outs.append(jnp.dot(a_cat, v_cat, preferred_element_type=jnp.float32))
            if b == 0:
                attn_b0 = a_heads
        acc = jnp.concatenate(outs, axis=0)              # (B*T, D)
        gelu = acc * jax.nn.sigmoid(1.702 * acc)         # QuickGELU
        return x2d + gelu, attn_b0                       # residual

    x2d = x_ref[...]
    a1_heads = a2_heads = None
    for i in range(repeat):                              # static unroll
        # x[:, :, D-repeat:D] = 0.0 ; x[:, :, D-i-1] = 1.0
        x2d = jnp.where(col >= D - repeat, 0.0, x2d)
        x2d = jnp.where(col == D - i - 1, 1.0, x2d)
        x2d, a1_heads = apply_block(x2d, 0)              # layer1 (layer index 0)
        x2d, a2_heads = apply_block(x2d, 1)              # layer2 (layer index 1)

    out_ref[...] = x2d
    # Only the final iteration's batch-0 maps are consumed by the caller.
    for h in range(H):
        a1_ref[h] = a1_heads[h]
        a2_ref[h] = a2_heads[h]


@functools.partial(jax.jit, static_argnames=("repeat",))
def transformer_forward(x, params1, params2, repeat):
    """Transformer.forward as a single fused Pallas kernel call."""
    B, T, D = x.shape
    H = params1["wk"].shape[0]

    def stack(name):
        return jnp.stack([params1[name], params2[name]], axis=0)

    wq_t, wv_t = stack("wq_t"), stack("wv_t")            # (2, D, H*D)
    bq, bv = stack("bq"), stack("bv")                    # (2, 1, H*D)
    wk, he = stack("wk"), stack("he")                    # (2, H, D), (2, 1, H*D)

    x2d = x.reshape(B * T, D)

    kernel = functools.partial(_transformer_kernel, B=B, T=T, H=H, repeat=repeat)
    full2 = lambda i: (0, 0)
    full3 = lambda i: (0, 0, 0)

    out2d, a1, a2 = pl.pallas_call(
        kernel,
        grid=(1,),
        in_specs=[
            pl.BlockSpec((B * T, D), full2),             # x (flattened batch*tokens)
            pl.BlockSpec((2, D, H * D), full3),          # Wq^T per layer
            pl.BlockSpec((2, 1, H * D), full3),          # bq per layer
            pl.BlockSpec((2, D, H * D), full3),          # Wv^T per layer
            pl.BlockSpec((2, 1, H * D), full3),          # bv per layer
            pl.BlockSpec((2, H, D), full3),              # wk per layer
            pl.BlockSpec((2, 1, H * D), full3),          # head_enabled per layer
        ],
        out_specs=[
            pl.BlockSpec((B * T, D), full2),             # output activations
            pl.BlockSpec((H, T, T), full3),              # layer1 attn maps (batch 0)
            pl.BlockSpec((H, T, T), full3),              # layer2 attn maps (batch 0)
        ],
        out_shape=[
            jax.ShapeDtypeStruct((B * T, D), jnp.float32),
            jax.ShapeDtypeStruct((H, T, T), jnp.float32),
            jax.ShapeDtypeStruct((H, T, T), jnp.float32),
        ],
        compiler_params=pltpu.CompilerParams(dimension_semantics=("arbitrary",)),
    )(x2d, wq_t, bq, wv_t, bv, wk, he)

    ap1 = jnp.squeeze(a1)                                # matches a[0].squeeze()
    ap2 = jnp.squeeze(a2)
    return out2d.reshape(B, T, D), ap1, ap2, params1["wqkv_w"], params2["wqkv_w"]


def make_block_params(key, d_model, n_head, n, layer):
    """Deterministic synthetic parameters for one ResidualAttentionBlock.

    NOTE: the PyTorch module zero-initializes wqkv (degenerate forward); we use
    small deterministic random values so the kernel exercises real compute.
    wk / head_enabled exactly mirror the module's head-initialization side
    effect for the given (n, layer).
    """
    D, H = d_model, n_head
    kw, kb = jax.random.split(key)
    wqkv_w = 0.1 * jax.random.normal(kw, (H * 2 * D, D), jnp.float32)
    wqkv_b = 0.1 * jax.random.normal(kb, (H * 2 * D,), jnp.float32)

    wk = jnp.zeros((H, D), jnp.float32)
    head_enabled = [0.0] * H
    init_head = n // 1000
    if n % 1000 == layer * 500 and init_head < 3 - layer:
        wk = wk.at[init_head, :].set(1.0)
        head_enabled[init_head] = 1.0

    # Split the torch-interleaved [q_h | v_h] output features into separate
    # all-q / all-v projections (kernel never slices y at 2*h*D lane offsets).
    w3 = wqkv_w.reshape(H, 2 * D, D)
    wq_t = jnp.transpose(w3[:, :D, :].reshape(H * D, D))      # (D, H*D)
    wv_t = jnp.transpose(w3[:, D:, :].reshape(H * D, D))      # (D, H*D)
    b2 = wqkv_b.reshape(H, 2 * D)
    bq = b2[:, :D].reshape(1, H * D)
    bv = b2[:, D:].reshape(1, H * D)

    he_flat = jnp.repeat(jnp.asarray(head_enabled, jnp.float32), D).reshape(1, H * D)

    return {
        "wqkv_w": wqkv_w,          # (2*H*D, D) -- returned like torch's wqkv.weight
        "wq_t": wq_t,              # (D, H*D)
        "wv_t": wv_t,              # (D, H*D)
        "bq": bq,                  # (1, H*D)
        "bv": bv,                  # (1, H*D)
        "wk": wk,                  # (H, D)
        "he": he_flat,             # (1, H*D)
    }


if __name__ == "__main__":
    d_model = 32
    n_head = 2
    repeat = 2
    B, T = 2, 8
    n = 0   # -> head 0 of layer1 gets initialized (wk row 1.0, head enabled)

    key = jax.random.PRNGKey(0)
    kx, k1, k2 = jax.random.split(key, 3)
    x = jax.random.normal(kx, (B, T, d_model), dtype=jnp.float32)

    params1 = make_block_params(k1, d_model, n_head, n, layer=0)
    params2 = make_block_params(k2, d_model, n_head, n, layer=1)

    out, a1, a2, w1, w2 = transformer_forward(x, params1, params2, repeat=repeat)
    jax.block_until_ready((out, a1, a2))

    assert out.shape == (B, T, d_model)
    assert a1.shape == (n_head, T, T) and a2.shape == (n_head, T, T)
    assert w1.shape == (n_head * 2 * d_model, d_model)
    assert w2.shape == (n_head * 2 * d_model, d_model)
    print("KERNEL_OK")
</pallas_src>

<mosaic_0001>
module attributes {stable_mosaic.version = 11 : i64} {
  func.func @_transformer_kernel(%arg0: i32, %arg1: memref<16x32xf32, #tpu.memory_space<vmem>>, %arg2: memref<2x32x64xf32, #tpu.memory_space<vmem>>, %arg3: memref<2x1x64xf32, #tpu.memory_space<vmem>>, %arg4: memref<2x32x64xf32, #tpu.memory_space<vmem>>, %arg5: memref<2x1x64xf32, #tpu.memory_space<vmem>>, %arg6: memref<2x2x32xf32, #tpu.memory_space<vmem>>, %arg7: memref<2x1x64xf32, #tpu.memory_space<vmem>>, %arg8: memref<16x32xf32, #tpu.memory_space<vmem>>, %arg9: memref<2x8x8xf32, #tpu.memory_space<vmem>>, %arg10: memref<2x8x8xf32, #tpu.memory_space<vmem>>) attributes {dimension_semantics = [#tpu.dimension_semantics<arbitrary>], iteration_bounds = array<i64: 1>, scalar_prefetch = 0 : i64, scratch_operands = 0 : i64, tpu.core_type = #tpu.core_type<tc>, window_params = [{pipeline_mode = #tpu.pipeline_mode<synchronous>, transform_indices = @transform_0, window_bounds = array<i64: 16, 32>}, {pipeline_mode = #tpu.pipeline_mode<synchronous>, transform_indices = @transform_1, window_bounds = array<i64: 2, 32, 64>}, {pipeline_mode = #tpu.pipeline_mode<synchronous>, transform_indices = @transform_2, window_bounds = array<i64: 2, 1, 64>}, {pipeline_mode = #tpu.pipeline_mode<synchronous>, transform_indices = @transform_3, window_bounds = array<i64: 2, 32, 64>}, {pipeline_mode = #tpu.pipeline_mode<synchronous>, transform_indices = @transform_4, window_bounds = array<i64: 2, 1, 64>}, {pipeline_mode = #tpu.pipeline_mode<synchronous>, transform_indices = @transform_5, window_bounds = array<i64: 2, 2, 32>}, {pipeline_mode = #tpu.pipeline_mode<synchronous>, transform_indices = @transform_6, window_bounds = array<i64: 2, 1, 64>}, {pipeline_mode = #tpu.pipeline_mode<synchronous>, transform_indices = @transform_7, window_bounds = array<i64: 16, 32>}, {pipeline_mode = #tpu.pipeline_mode<synchronous>, transform_indices = @transform_8, window_bounds = array<i64: 2, 8, 8>}, {pipeline_mode = #tpu.pipeline_mode<synchronous>, transform_indices = @transform_9, window_bounds = array<i64: 2, 8, 8>}]} {
    %cst = arith.constant -0.176776692 : f32
    %0 = vector.broadcast %cst : f32 to vector<32x1xf32>
    %1 = tpu.iota {dimensions = array<i32: 1>} : vector<16x32xi32>
    %c0 = arith.constant 0 : index
    %c0_0 = arith.constant 0 : index
    %2 = vector.load %arg1[%c0, %c0_0] : memref<16x32xf32, #tpu.memory_space<vmem>>, vector<16x32xf32>
    %c30_i32 = arith.constant 30 : i32
    %3 = vector.broadcast %c30_i32 : i32 to vector<16x32xi32>
    %4 = arith.cmpi sge, %1, %3 : vector<16x32xi32>
    %cst_1 = arith.constant 0.000000e+00 : f32
    %5 = vector.broadcast %cst_1 : f32 to vector<16x32xf32>
    %6 = arith.select %4, %5, %2 : vector<16x32xi1>, vector<16x32xf32>
    %c31_i32 = arith.constant 31 : i32
    %7 = vector.broadcast %c31_i32 : i32 to vector<16x32xi32>
    %8 = arith.cmpi eq, %1, %7 : vector<16x32xi32>
    %cst_2 = arith.constant 1.000000e+00 : f32
    %9 = vector.broadcast %cst_2 : f32 to vector<16x32xf32>
    %10 = arith.select %8, %9, %6 : vector<16x32xi1>, vector<16x32xf32>
    %c0_3 = arith.constant 0 : index
    %c0_4 = arith.constant 0 : index
    %c0_5 = arith.constant 0 : index
    %11 = vector.load %arg2[%c0_3, %c0_4, %c0_5] : memref<2x32x64xf32, #tpu.memory_space<vmem>>, vector<1x32x64xf32>
    %12 = vector.shape_cast %11 : vector<1x32x64xf32> to vector<32x64xf32>
    %c0_6 = arith.constant 0 : index
    %c0_7 = arith.constant 0 : index
    %c0_8 = arith.constant 0 : index
    %13 = vector.load %arg4[%c0_6, %c0_7, %c0_8] : memref<2x32x64xf32, #tpu.memory_space<vmem>>, vector<1x32x64xf32>
    %14 = vector.shape_cast %13 : vector<1x32x64xf32> to vector<32x64xf32>
    %c0_9 = arith.constant 0 : index
    %c0_10 = arith.constant 0 : index
    %c0_11 = arith.constant 0 : index
    %15 = vector.load %arg3[%c0_9, %c0_10, %c0_11] : memref<2x1x64xf32, #tpu.memory_space<vmem>>, vector<1x1x64xf32>
    %16 = vector.shape_cast %15 : vector<1x1x64xf32> to vector<1x64xf32>
    %c0_12 = arith.constant 0 : index
    %c0_13 = arith.constant 0 : index
    %c0_14 = arith.constant 0 : index
    %17 = vector.load %arg5[%c0_12, %c0_13, %c0_14] : memref<2x1x64xf32, #tpu.memory_space<vmem>>, vector<1x1x64xf32>
    %18 = vector.shape_cast %17 : vector<1x1x64xf32> to vector<1x64xf32>
    %c0_15 = arith.constant 0 : index
    %c0_16 = arith.constant 0 : index
    %c0_17 = arith.constant 0 : index
    %19 = vector.load %arg6[%c0_15, %c0_16, %c0_17] : memref<2x2x32xf32, #tpu.memory_space<vmem>>, vector<1x2x32xf32>
    %20 = vector.shape_cast %19 : vector<1x2x32xf32> to vector<2x32xf32>
    %c0_18 = arith.constant 0 : index
    %c0_19 = arith.constant 0 : index
    %c0_20 = arith.constant 0 : index
    %21 = vector.load %arg7[%c0_18, %c0_19, %c0_20] : memref<2x1x64xf32, #tpu.memory_space<vmem>>, vector<1x1x64xf32>
    %22 = vector.shape_cast %21 : vector<1x1x64xf32> to vector<1x64xf32>
    %cst_21 = arith.constant dense<0.000000e+00> : vector<16x64xf32>
    %23 = tpu.matmul %10, %12, %cst_21 {dimension_numbers = #tpu.dot_dimension_numbers<[1], [0], [0], [1], [0, 0, 1, 1], [], []>} : vector<16x32xf32>, vector<32x64xf32>, vector<16x64xf32> -> vector<16x64xf32>
    %24 = vector.broadcast %16 : vector<1x64xf32> to vector<16x64xf32>
    %25 = arith.addf %23, %24 : vector<16x64xf32>
    %cst_22 = arith.constant dense<0.000000e+00> : vector<16x64xf32>
    %26 = tpu.matmul %10, %14, %cst_22 {dimension_numbers = #tpu.dot_dimension_numbers<[1], [0], [0], [1], [0, 0, 1, 1], [], []>} : vector<16x32xf32>, vector<32x64xf32>, vector<16x64xf32> -> vector<16x64xf32>
    %27 = vector.broadcast %18 : vector<1x64xf32> to vector<16x64xf32>
    %28 = arith.addf %26, %27 : vector<16x64xf32>
    %29 = vector.broadcast %22 : vector<1x64xf32> to vector<16x64xf32>
    %30 = arith.mulf %28, %29 : vector<16x64xf32>
    %31 = vector.extract_strided_slice %10 {offsets = [0, 0], sizes = [8, 32], strides = [1, 1]} : vector<16x32xf32> to vector<8x32xf32>
    %32 = vector.extract_strided_slice %25 {offsets = [0, 0], sizes = [8, 32], strides = [1, 1]} : vector<16x64xf32> to vector<8x32xf32>
    %33 = vector.extract_strided_slice %20 {offsets = [0, 0], sizes = [1, 32], strides = [1, 1]} : vector<2x32xf32> to vector<1x32xf32>
    %34 = vector.broadcast %33 : vector<1x32xf32> to vector<8x32xf32>
    %35 = arith.mulf %31, %34 : vector<8x32xf32>
    %36 = vector.shape_cast %32 : vector<8x32xf32> to vector<8x1x32xf32>
    %37 = vector.shape_cast %35 : vector<8x32xf32> to vector<1x8x32xf32>
    %38 = vector.broadcast %36 : vector<8x1x32xf32> to vector<8x8x32xf32>
    %39 = vector.broadcast %37 : vector<1x8x32xf32> to vector<8x8x32xf32>
    %40 = arith.subf %38, %39 : vector<8x8x32xf32>
    %41 = math.absf %40 : vector<8x8x32xf32>
    %42 = vector.shape_cast %41 : vector<8x8x32xf32> to vector<64x32xf32>
    %cst_23 = arith.constant dense<0.000000e+00> : vector<64x1xf32>
    %43 = tpu.matmul %42, %0, %cst_23 {dimension_numbers = #tpu.dot_dimension_numbers<[1], [0], [0], [1], [0, 0, 1, 1], [], []>} : vector<64x32xf32>, vector<32x1xf32>, vector<64x1xf32> -> vector<64x1xf32>
    %44 = vector.shape_cast %43 : vector<64x1xf32> to vector<8x8xf32>
    %cst_24 = arith.constant dense<0xFF800000> : vector<8xf32>
    %45 = vector.multi_reduction <maximumf>, %44, %cst_24 [1] : vector<8x8xf32> to vector<8xf32>
    %46 = vector.shape_cast %45 : vector<8xf32> to vector<8x1xf32>
    %47 = vector.broadcast %46 : vector<8x1xf32> to vector<8x8xf32>
    %48 = arith.subf %44, %47 : vector<8x8xf32>
    %49 = math.exp %48 : vector<8x8xf32>
    %cst_25 = arith.constant dense<0.000000e+00> : vector<8xf32>
    %50 = vector.multi_reduction <add>, %49, %cst_25 [1] : vector<8x8xf32> to vector<8xf32>
    %51 = vector.shape_cast %50 : vector<8xf32> to vector<8x1xf32>
    %52 = vector.broadcast %51 : vector<8x1xf32> to vector<8x8xf32>
    %53 = arith.divf %49, %52 : vector<8x8xf32>
    %54 = vector.extract_strided_slice %30 {offsets = [0, 0], sizes = [8, 32], strides = [1, 1]} : vector<16x64xf32> to vector<8x32xf32>
    %55 = vector.extract_strided_slice %25 {offsets = [0, 32], sizes = [8, 32], strides = [1, 1]} : vector<16x64xf32> to vector<8x32xf32>
    %56 = vector.extract_strided_slice %20 {offsets = [1, 0], sizes = [1, 32], strides = [1, 1]} : vector<2x32xf32> to vector<1x32xf32>
    %57 = vector.broadcast %56 : vector<1x32xf32> to vector<8x32xf32>
    %58 = arith.mulf %31, %57 : vector<8x32xf32>
    %59 = vector.shape_cast %55 : vector<8x32xf32> to vector<8x1x32xf32>
    %60 = vector.shape_cast %58 : vector<8x32xf32> to vector<1x8x32xf32>
    %61 = vector.broadcast %59 : vector<8x1x32xf32> to vector<8x8x32xf32>
    %62 = vector.broadcast %60 : vector<1x8x32xf32> to vector<8x8x32xf32>
    %63 = arith.subf %61, %62 : vector<8x8x32xf32>
    %64 = math.absf %63 : vector<8x8x32xf32>
    %65 = vector.shape_cast %64 : vector<8x8x32xf32> to vector<64x32xf32>
    %cst_26 = arith.constant dense<0.000000e+00> : vector<64x1xf32>
    %66 = tpu.matmul %65, %0, %cst_26 {dimension_numbers = #tpu.dot_dimension_numbers<[1], [0], [0], [1], [0, 0, 1, 1], [], []>} : vector<64x32xf32>, vector<32x1xf32>, vector<64x1xf32> -> vector<64x1xf32>
    %67 = vector.shape_cast %66 : vector<64x1xf32> to vector<8x8xf32>
    %cst_27 = arith.constant dense<0xFF800000> : vector<8xf32>
    %68 = vector.multi_reduction <maximumf>, %67, %cst_27 [1] : vector<8x8xf32> to vector<8xf32>
    %69 = vector.shape_cast %68 : vector<8xf32> to vector<8x1xf32>
    %70 = vector.broadcast %69 : vector<8x1xf32> to vector<8x8xf32>
    %71 = arith.subf %67, %70 : vector<8x8xf32>
    %72 = math.exp %71 : vector<8x8xf32>
    %cst_28 = arith.constant dense<0.000000e+00> : vector<8xf32>
    %73 = vector.multi_reduction <add>, %72, %cst_28 [1] : vector<8x8xf32> to vector<8xf32>
    %74 = vector.shape_cast %73 : vector<8xf32> to vector<8x1xf32>
    %75 = vector.broadcast %74 : vector<8x1xf32> to vector<8x8xf32>
    %76 = arith.divf %72, %75 : vector<8x8xf32>
    %77 = vector.extract_strided_slice %30 {offsets = [0, 32], sizes = [8, 32], strides = [1, 1]} : vector<16x64xf32> to vector<8x32xf32>
    %78 = tpu.concatenate %53, %76 in 1 : vector<8x8xf32>, vector<8x8xf32> -> vector<8x16xf32>
    %79 = tpu.concatenate %54, %77 in 0 : vector<8x32xf32>, vector<8x32xf32> -> vector<16x32xf32>
    %cst_29 = arith.constant dense<0.000000e+00> : vector<8x32xf32>
    %80 = tpu.matmul %78, %79, %cst_29 {dimension_numbers = #tpu.dot_dimension_numbers<[1], [0], [0], [1], [0, 0, 1, 1], [], []>} : vector<8x16xf32>, vector<16x32xf32>, vector<8x32xf32> -> vector<8x32xf32>
    %81 = vector.extract_strided_slice %10 {offsets = [8, 0], sizes = [8, 32], strides = [1, 1]} : vector<16x32xf32> to vector<8x32xf32>
    %82 = vector.extract_strided_slice %25 {offsets = [8, 0], sizes = [8, 32], strides = [1, 1]} : vector<16x64xf32> to vector<8x32xf32>
    %83 = vector.extract_strided_slice %20 {offsets = [0, 0], sizes = [1, 32], strides = [1, 1]} : vector<2x32xf32> to vector<1x32xf32>
    %84 = vector.broadcast %83 : vector<1x32xf32> to vector<8x32xf32>
    %85 = arith.mulf %81, %84 : vector<8x32xf32>
    %86 = vector.shape_cast %82 : vector<8x32xf32> to vector<8x1x32xf32>
    %87 = vector.shape_cast %85 : vector<8x32xf32> to vector<1x8x32xf32>
    %88 = vector.broadcast %86 : vector<8x1x32xf32> to vector<8x8x32xf32>
    %89 = vector.broadcast %87 : vector<1x8x32xf32> to vector<8x8x32xf32>
    %90 = arith.subf %88, %89 : vector<8x8x32xf32>
    %91 = math.absf %90 : vector<8x8x32xf32>
    %92 = vector.shape_cast %91 : vector<8x8x32xf32> to vector<64x32xf32>
    %cst_30 = arith.constant dense<0.000000e+00> : vector<64x1xf32>
    %93 = tpu.matmul %92, %0, %cst_30 {dimension_numbers = #tpu.dot_dimension_numbers<[1], [0], [0], [1], [0, 0, 1, 1], [], []>} : vector<64x32xf32>, vector<32x1xf32>, vector<64x1xf32> -> vector<64x1xf32>
    %94 = vector.shape_cast %93 : vector<64x1xf32> to vector<8x8xf32>
    %cst_31 = arith.constant dense<0xFF800000> : vector<8xf32>
    %95 = vector.multi_reduction <maximumf>, %94, %cst_31 [1] : vector<8x8xf32> to vector<8xf32>
    %96 = vector.shape_cast %95 : vector<8xf32> to vector<8x1xf32>
    %97 = vector.broadcast %96 : vector<8x1xf32> to vector<8x8xf32>
    %98 = arith.subf %94, %97 : vector<8x8xf32>
    %99 = math.exp %98 : vector<8x8xf32>
    %cst_32 = arith.constant dense<0.000000e+00> : vector<8xf32>
    %100 = vector.multi_reduction <add>, %99, %cst_32 [1] : vector<8x8xf32> to vector<8xf32>
    %101 = vector.shape_cast %100 : vector<8xf32> to vector<8x1xf32>
    %102 = vector.broadcast %101 : vector<8x1xf32> to vector<8x8xf32>
    %103 = arith.divf %99, %102 : vector<8x8xf32>
    %104 = vector.extract_strided_slice %30 {offsets = [8, 0], sizes = [8, 32], strides = [1, 1]} : vector<16x64xf32> to vector<8x32xf32>
    %105 = vector.extract_strided_slice %25 {offsets = [8, 32], sizes = [8, 32], strides = [1, 1]} : vector<16x64xf32> to vector<8x32xf32>
    %106 = vector.extract_strided_slice %20 {offsets = [1, 0], sizes = [1, 32], strides = [1, 1]} : vector<2x32xf32> to vector<1x32xf32>
    %107 = vector.broadcast %106 : vector<1x32xf32> to vector<8x32xf32>
    %108 = arith.mulf %81, %107 : vector<8x32xf32>
    %109 = vector.shape_cast %105 : vector<8x32xf32> to vector<8x1x32xf32>
    %110 = vector.shape_cast %108 : vector<8x32xf32> to vector<1x8x32xf32>
    %111 = vector.broadcast %109 : vector<8x1x32xf32> to vector<8x8x32xf32>
    %112 = vector.broadcast %110 : vector<1x8x32xf32> to vector<8x8x32xf32>
    %113 = arith.subf %111, %112 : vector<8x8x32xf32>
    %114 = math.absf %113 : vector<8x8x32xf32>
    %115 = vector.shape_cast %114 : vector<8x8x32xf32> to vector<64x32xf32>
    %cst_33 = arith.constant dense<0.000000e+00> : vector<64x1xf32>
    %116 = tpu.matmul %115, %0, %cst_33 {dimension_numbers = #tpu.dot_dimension_numbers<[1], [0], [0], [1], [0, 0, 1, 1], [], []>} : vector<64x32xf32>, vector<32x1xf32>, vector<64x1xf32> -> vector<64x1xf32>
    %117 = vector.shape_cast %116 : vector<64x1xf32> to vector<8x8xf32>
    %cst_34 = arith.constant dense<0xFF800000> : vector<8xf32>
    %118 = vector.multi_reduction <maximumf>, %117, %cst_34 [1] : vector<8x8xf32> to vector<8xf32>
    %119 = vector.shape_cast %118 : vector<8xf32> to vector<8x1xf32>
    %120 = vector.broadcast %119 : vector<8x1xf32> to vector<8x8xf32>
    %121 = arith.subf %117, %120 : vector<8x8xf32>
    %122 = math.exp %121 : vector<8x8xf32>
    %cst_35 = arith.constant dense<0.000000e+00> : vector<8xf32>
    %123 = vector.multi_reduction <add>, %122, %cst_35 [1] : vector<8x8xf32> to vector<8xf32>
    %124 = vector.shape_cast %123 : vector<8xf32> to vector<8x1xf32>
    %125 = vector.broadcast %124 : vector<8x1xf32> to vector<8x8xf32>
    %126 = arith.divf %122, %125 : vector<8x8xf32>
    %127 = vector.extract_strided_slice %30 {offsets = [8, 32], sizes = [8, 32], strides = [1, 1]} : vector<16x64xf32> to vector<8x32xf32>
    %128 = tpu.concatenate %103, %126 in 1 : vector<8x8xf32>, vector<8x8xf32> -> vector<8x16xf32>
    %129 = tpu.concatenate %104, %127 in 0 : vector<8x32xf32>, vector<8x32xf32> -> vector<16x32xf32>
    %cst_36 = arith.constant dense<0.000000e+00> : vector<8x32xf32>
    %130 = tpu.matmul %128, %129, %cst_36 {dimension_numbers = #tpu.dot_dimension_numbers<[1], [0], [0], [1], [0, 0, 1, 1], [], []>} : vector<8x16xf32>, vector<16x32xf32>, vector<8x32xf32> -> vector<8x32xf32>
    %131 = tpu.concatenate %80, %130 in 0 : vector<8x32xf32>, vector<8x32xf32> -> vector<16x32xf32>
    %cst_37 = arith.constant 1.702000e+00 : f32
    %132 = vector.broadcast %cst_37 : f32 to vector<16x32xf32>
    %133 = arith.mulf %132, %131 : vector<16x32xf32>
    %134 = arith.negf %133 : vector<16x32xf32>
    %135 = math.exp %134 : vector<16x32xf32>
    %cst_38 = arith.constant 1.000000e+00 : f32
    %136 = vector.broadcast %cst_38 : f32 to vector<16x32xf32>
    %137 = arith.addf %136, %135 : vector<16x32xf32>
    %138 = arith.divf %136, %137 : vector<16x32xf32>
    %139 = arith.mulf %131, %138 : vector<16x32xf32>
    %140 = arith.addf %10, %139 : vector<16x32xf32>
    %c1 = arith.constant 1 : index
    %c0_39 = arith.constant 0 : index
    %c0_40 = arith.constant 0 : index
    %141 = vector.load %arg2[%c1, %c0_39, %c0_40] : memref<2x32x64xf32, #tpu.memory_space<vmem>>, vector<1x32x64xf32>
    %142 = vector.shape_cast %141 : vector<1x32x64xf32> to vector<32x64xf32>
    %c1_41 = arith.constant 1 : index
    %c0_42 = arith.constant 0 : index
    %c0_43 = arith.constant 0 : index
    %143 = vector.load %arg4[%c1_41, %c0_42, %c0_43] : memref<2x32x64xf32, #tpu.memory_space<vmem>>, vector<1x32x64xf32>
    %144 = vector.shape_cast %143 : vector<1x32x64xf32> to vector<32x64xf32>
    %c1_44 = arith.constant 1 : index
    %c0_45 = arith.constant 0 : index
    %c0_46 = arith.constant 0 : index
    %145 = vector.load %arg3[%c1_44, %c0_45, %c0_46] : memref<2x1x64xf32, #tpu.memory_space<vmem>>, vector<1x1x64xf32>
    %146 = vector.shape_cast %145 : vector<1x1x64xf32> to vector<1x64xf32>
    %c1_47 = arith.constant 1 : index
    %c0_48 = arith.constant 0 : index
    %c0_49 = arith.constant 0 : index
    %147 = vector.load %arg5[%c1_47, %c0_48, %c0_49] : memref<2x1x64xf32, #tpu.memory_space<vmem>>, vector<1x1x64xf32>
    %148 = vector.shape_cast %147 : vector<1x1x64xf32> to vector<1x64xf32>
    %c1_50 = arith.constant 1 : index
    %c0_51 = arith.constant 0 : index
    %c0_52 = arith.constant 0 : index
    %149 = vector.load %arg6[%c1_50, %c0_51, %c0_52] : memref<2x2x32xf32, #tpu.memory_space<vmem>>, vector<1x2x32xf32>
    %150 = vector.shape_cast %149 : vector<1x2x32xf32> to vector<2x32xf32>
    %c1_53 = arith.constant 1 : index
    %c0_54 = arith.constant 0 : index
    %c0_55 = arith.constant 0 : index
    %151 = vector.load %arg7[%c1_53, %c0_54, %c0_55] : memref<2x1x64xf32, #tpu.memory_space<vmem>>, vector<1x1x64xf32>
    %152 = vector.shape_cast %151 : vector<1x1x64xf32> to vector<1x64xf32>
    %cst_56 = arith.constant dense<0.000000e+00> : vector<16x64xf32>
    %153 = tpu.matmul %140, %142, %cst_56 {dimension_numbers = #tpu.dot_dimension_numbers<[1], [0], [0], [1], [0, 0, 1, 1], [], []>} : vector<16x32xf32>, vector<32x64xf32>, vector<16x64xf32> -> vector<16x64xf32>
    %154 = vector.broadcast %146 : vector<1x64xf32> to vector<16x64xf32>
    %155 = arith.addf %153, %154 : vector<16x64xf32>
    %cst_57 = arith.constant dense<0.000000e+00> : vector<16x64xf32>
    %156 = tpu.matmul %140, %144, %cst_57 {dimension_numbers = #tpu.dot_dimension_numbers<[1], [0], [0], [1], [0, 0, 1, 1], [], []>} : vector<16x32xf32>, vector<32x64xf32>, vector<16x64xf32> -> vector<16x64xf32>
    %157 = vector.broadcast %148 : vector<1x64xf32> to vector<16x64xf32>
    %158 = arith.addf %156, %157 : vector<16x64xf32>
    %159 = vector.broadcast %152 : vector<1x64xf32> to vector<16x64xf32>
    %160 = arith.mulf %158, %159 : vector<16x64xf32>
    %161 = vector.extract_strided_slice %140 {offsets = [0, 0], sizes = [8, 32], strides = [1, 1]} : vector<16x32xf32> to vector<8x32xf32>
    %162 = vector.extract_strided_slice %155 {offsets = [0, 0], sizes = [8, 32], strides = [1, 1]} : vector<16x64xf32> to vector<8x32xf32>
    %163 = vector.extract_strided_slice %150 {offsets = [0, 0], sizes = [1, 32], strides = [1, 1]} : vector<2x32xf32> to vector<1x32xf32>
    %164 = vector.broadcast %163 : vector<1x32xf32> to vector<8x32xf32>
    %165 = arith.mulf %161, %164 : vector<8x32xf32>
    %166 = vector.shape_cast %162 : vector<8x32xf32> to vector<8x1x32xf32>
    %167 = vector.shape_cast %165 : vector<8x32xf32> to vector<1x8x32xf32>
    %168 = vector.broadcast %166 : vector<8x1x32xf32> to vector<8x8x32xf32>
    %169 = vector.broadcast %167 : vector<1x8x32xf32> to vector<8x8x32xf32>
    %170 = arith.subf %168, %169 : vector<8x8x32xf32>
    %171 = math.absf %170 : vector<8x8x32xf32>
    %172 = vector.shape_cast %171 : vector<8x8x32xf32> to vector<64x32xf32>
    %cst_58 = arith.constant dense<0.000000e+00> : vector<64x1xf32>
    %173 = tpu.matmul %172, %0, %cst_58 {dimension_numbers = #tpu.dot_dimension_numbers<[1], [0], [0], [1], [0, 0, 1, 1], [], []>} : vector<64x32xf32>, vector<32x1xf32>, vector<64x1xf32> -> vector<64x1xf32>
    %174 = vector.shape_cast %173 : vector<64x1xf32> to vector<8x8xf32>
    %cst_59 = arith.constant dense<0xFF800000> : vector<8xf32>
    %175 = vector.multi_reduction <maximumf>, %174, %cst_59 [1] : vector<8x8xf32> to vector<8xf32>
    %176 = vector.shape_cast %175 : vector<8xf32> to vector<8x1xf32>
    %177 = vector.broadcast %176 : vector<8x1xf32> to vector<8x8xf32>
    %178 = arith.subf %174, %177 : vector<8x8xf32>
    %179 = math.exp %178 : vector<8x8xf32>
    %cst_60 = arith.constant dense<0.000000e+00> : vector<8xf32>
    %180 = vector.multi_reduction <add>, %179, %cst_60 [1] : vector<8x8xf32> to vector<8xf32>
    %181 = vector.shape_cast %180 : vector<8xf32> to vector<8x1xf32>
    %182 = vector.broadcast %181 : vector<8x1xf32> to vector<8x8xf32>
    %183 = arith.divf %179, %182 : vector<8x8xf32>
    %184 = vector.extract_strided_slice %160 {offsets = [0, 0], sizes = [8, 32], strides = [1, 1]} : vector<16x64xf32> to vector<8x32xf32>
    %185 = vector.extract_strided_slice %155 {offsets = [0, 32], sizes = [8, 32], strides = [1, 1]} : vector<16x64xf32> to vector<8x32xf32>
    %186 = vector.extract_strided_slice %150 {offsets = [1, 0], sizes = [1, 32], strides = [1, 1]} : vector<2x32xf32> to vector<1x32xf32>
    %187 = vector.broadcast %186 : vector<1x32xf32> to vector<8x32xf32>
    %188 = arith.mulf %161, %187 : vector<8x32xf32>
    %189 = vector.shape_cast %185 : vector<8x32xf32> to vector<8x1x32xf32>
    %190 = vector.shape_cast %188 : vector<8x32xf32> to vector<1x8x32xf32>
    %191 = vector.broadcast %189 : vector<8x1x32xf32> to vector<8x8x32xf32>
    %192 = vector.broadcast %190 : vector<1x8x32xf32> to vector<8x8x32xf32>
    %193 = arith.subf %191, %192 : vector<8x8x32xf32>
    %194 = math.absf %193 : vector<8x8x32xf32>
    %195 = vector.shape_cast %194 : vector<8x8x32xf32> to vector<64x32xf32>
    %cst_61 = arith.constant dense<0.000000e+00> : vector<64x1xf32>
    %196 = tpu.matmul %195, %0, %cst_61 {dimension_numbers = #tpu.dot_dimension_numbers<[1], [0], [0], [1], [0, 0, 1, 1], [], []>} : vector<64x32xf32>, vector<32x1xf32>, vector<64x1xf32> -> vector<64x1xf32>
    %197 = vector.shape_cast %196 : vector<64x1xf32> to vector<8x8xf32>
    %cst_62 = arith.constant dense<0xFF800000> : vector<8xf32>
    %198 = vector.multi_reduction <maximumf>, %197, %cst_62 [1] : vector<8x8xf32> to vector<8xf32>
    %199 = vector.shape_cast %198 : vector<8xf32> to vector<8x1xf32>
    %200 = vector.broadcast %199 : vector<8x1xf32> to vector<8x8xf32>
    %201 = arith.subf %197, %200 : vector<8x8xf32>
    %202 = math.exp %201 : vector<8x8xf32>
    %cst_63 = arith.constant dense<0.000000e+00> : vector<8xf32>
    %203 = vector.multi_reduction <add>, %202, %cst_63 [1] : vector<8x8xf32> to vector<8xf32>
    %204 = vector.shape_cast %203 : vector<8xf32> to vector<8x1xf32>
    %205 = vector.broadcast %204 : vector<8x1xf32> to vector<8x8xf32>
    %206 = arith.divf %202, %205 : vector<8x8xf32>
    %207 = vector.extract_strided_slice %160 {offsets = [0, 32], sizes = [8, 32], strides = [1, 1]} : vector<16x64xf32> to vector<8x32xf32>
    %208 = tpu.concatenate %183, %206 in 1 : vector<8x8xf32>, vector<8x8xf32> -> vector<8x16xf32>
    %209 = tpu.concatenate %184, %207 in 0 : vector<8x32xf32>, vector<8x32xf32> -> vector<16x32xf32>
    %cst_64 = arith.constant dense<0.000000e+00> : vector<8x32xf32>
    %210 = tpu.matmul %208, %209, %cst_64 {dimension_numbers = #tpu.dot_dimension_numbers<[1], [0], [0], [1], [0, 0, 1, 1], [], []>} : vector<8x16xf32>, vector<16x32xf32>, vector<8x32xf32> -> vector<8x32xf32>
    %211 = vector.extract_strided_slice %140 {offsets = [8, 0], sizes = [8, 32], strides = [1, 1]} : vector<16x32xf32> to vector<8x32xf32>
    %212 = vector.extract_strided_slice %155 {offsets = [8, 0], sizes = [8, 32], strides = [1, 1]} : vector<16x64xf32> to vector<8x32xf32>
    %213 = vector.extract_strided_slice %150 {offsets = [0, 0], sizes = [1, 32], strides = [1, 1]} : vector<2x32xf32> to vector<1x32xf32>
    %214 = vector.broadcast %213 : vector<1x32xf32> to vector<8x32xf32>
    %215 = arith.mulf %211, %214 : vector<8x32xf32>
    %216 = vector.shape_cast %212 : vector<8x32xf32> to vector<8x1x32xf32>
    %217 = vector.shape_cast %215 : vector<8x32xf32> to vector<1x8x32xf32>
    %218 = vector.broadcast %216 : vector<8x1x32xf32> to vector<8x8x32xf32>
    %219 = vector.broadcast %217 : vector<1x8x32xf32> to vector<8x8x32xf32>
    %220 = arith.subf %218, %219 : vector<8x8x32xf32>
    %221 = math.absf %220 : vector<8x8x32xf32>
    %222 = vector.shape_cast %221 : vector<8x8x32xf32> to vector<64x32xf32>
    %cst_65 = arith.constant dense<0.000000e+00> : vector<64x1xf32>
    %223 = tpu.matmul %222, %0, %cst_65 {dimension_numbers = #tpu.dot_dimension_numbers<[1], [0], [0], [1], [0, 0, 1, 1], [], []>} : vector<64x32xf32>, vector<32x1xf32>, vector<64x1xf32> -> vector<64x1xf32>
    %224 = vector.shape_cast %223 : vector<64x1xf32> to vector<8x8xf32>
    %cst_66 = arith.constant dense<0xFF800000> : vector<8xf32>
    %225 = vector.multi_reduction <maximumf>, %224, %cst_66 [1] : vector<8x8xf32> to vector<8xf32>
    %226 = vector.shape_cast %225 : vector<8xf32> to vector<8x1xf32>
    %227 = vector.broadcast %226 : vector<8x1xf32> to vector<8x8xf32>
    %228 = arith.subf %224, %227 : vector<8x8xf32>
    %229 = math.exp %228 : vector<8x8xf32>
    %cst_67 = arith.constant dense<0.000000e+00> : vector<8xf32>
    %230 = vector.multi_reduction <add>, %229, %cst_67 [1] : vector<8x8xf32> to vector<8xf32>
    %231 = vector.shape_cast %230 : vector<8xf32> to vector<8x1xf32>
    %232 = vector.broadcast %231 : vector<8x1xf32> to vector<8x8xf32>
    %233 = arith.divf %229, %232 : vector<8x8xf32>
    %234 = vector.extract_strided_slice %160 {offsets = [8, 0], sizes = [8, 32], strides = [1, 1]} : vector<16x64xf32> to vector<8x32xf32>
    %235 = vector.extract_strided_slice %155 {offsets = [8, 32], sizes = [8, 32], strides = [1, 1]} : vector<16x64xf32> to vector<8x32xf32>
    %236 = vector.extract_strided_slice %150 {offsets = [1, 0], sizes = [1, 32], strides = [1, 1]} : vector<2x32xf32> to vector<1x32xf32>
    %237 = vector.broadcast %236 : vector<1x32xf32> to vector<8x32xf32>
    %238 = arith.mulf %211, %237 : vector<8x32xf32>
    %239 = vector.shape_cast %235 : vector<8x32xf32> to vector<8x1x32xf32>
    %240 = vector.shape_cast %238 : vector<8x32xf32> to vector<1x8x32xf32>
    %241 = vector.broadcast %239 : vector<8x1x32xf32> to vector<8x8x32xf32>
    %242 = vector.broadcast %240 : vector<1x8x32xf32> to vector<8x8x32xf32>
    %243 = arith.subf %241, %242 : vector<8x8x32xf32>
    %244 = math.absf %243 : vector<8x8x32xf32>
    %245 = vector.shape_cast %244 : vector<8x8x32xf32> to vector<64x32xf32>
    %cst_68 = arith.constant dense<0.000000e+00> : vector<64x1xf32>
    %246 = tpu.matmul %245, %0, %cst_68 {dimension_numbers = #tpu.dot_dimension_numbers<[1], [0], [0], [1], [0, 0, 1, 1], [], []>} : vector<64x32xf32>, vector<32x1xf32>, vector<64x1xf32> -> vector<64x1xf32>
    %247 = vector.shape_cast %246 : vector<64x1xf32> to vector<8x8xf32>
    %cst_69 = arith.constant dense<0xFF800000> : vector<8xf32>
    %248 = vector.multi_reduction <maximumf>, %247, %cst_69 [1] : vector<8x8xf32> to vector<8xf32>
    %249 = vector.shape_cast %248 : vector<8xf32> to vector<8x1xf32>
    %250 = vector.broadcast %249 : vector<8x1xf32> to vector<8x8xf32>
    %251 = arith.subf %247, %250 : vector<8x8xf32>
    %252 = math.exp %251 : vector<8x8xf32>
    %cst_70 = arith.constant dense<0.000000e+00> : vector<8xf32>
    %253 = vector.multi_reduction <add>, %252, %cst_70 [1] : vector<8x8xf32> to vector<8xf32>
    %254 = vector.shape_cast %253 : vector<8xf32> to vector<8x1xf32>
    %255 = vector.broadcast %254 : vector<8x1xf32> to vector<8x8xf32>
    %256 = arith.divf %252, %255 : vector<8x8xf32>
    %257 = vector.extract_strided_slice %160 {offsets = [8, 32], sizes = [8, 32], strides = [1, 1]} : vector<16x64xf32> to vector<8x32xf32>
    %258 = tpu.concatenate %233, %256 in 1 : vector<8x8xf32>, vector<8x8xf32> -> vector<8x16xf32>
    %259 = tpu.concatenate %234, %257 in 0 : vector<8x32xf32>, vector<8x32xf32> -> vector<16x32xf32>
    %cst_71 = arith.constant dense<0.000000e+00> : vector<8x32xf32>
    %260 = tpu.matmul %258, %259, %cst_71 {dimension_numbers = #tpu.dot_dimension_numbers<[1], [0], [0], [1], [0, 0, 1, 1], [], []>} : vector<8x16xf32>, vector<16x32xf32>, vector<8x32xf32> -> vector<8x32xf32>
    %261 = tpu.concatenate %210, %260 in 0 : vector<8x32xf32>, vector<8x32xf32> -> vector<16x32xf32>
    %cst_72 = arith.constant 1.702000e+00 : f32
    %262 = vector.broadcast %cst_72 : f32 to vector<16x32xf32>
    %263 = arith.mulf %262, %261 : vector<16x32xf32>
    %264 = arith.negf %263 : vector<16x32xf32>
    %265 = math.exp %264 : vector<16x32xf32>
    %cst_73 = arith.constant 1.000000e+00 : f32
    %266 = vector.broadcast %cst_73 : f32 to vector<16x32xf32>
    %267 = arith.addf %266, %265 : vector<16x32xf32>
    %268 = arith.divf %266, %267 : vector<16x32xf32>
    %269 = arith.mulf %261, %268 : vector<16x32xf32>
    %270 = arith.addf %140, %269 : vector<16x32xf32>
    %c30_i32_74 = arith.constant 30 : i32
    %271 = vector.broadcast %c30_i32_74 : i32 to vector<16x32xi32>
    %272 = arith.cmpi sge, %1, %271 : vector<16x32xi32>
    %cst_75 = arith.constant 0.000000e+00 : f32
    %273 = vector.broadcast %cst_75 : f32 to vector<16x32xf32>
    %274 = arith.select %272, %273, %270 : vector<16x32xi1>, vector<16x32xf32>
    %c30_i32_76 = arith.constant 30 : i32
    %275 = vector.broadcast %c30_i32_76 : i32 to vector<16x32xi32>
    %276 = arith.cmpi eq, %1, %275 : vector<16x32xi32>
    %cst_77 = arith.constant 1.000000e+00 : f32
    %277 = vector.broadcast %cst_77 : f32 to vector<16x32xf32>
    %278 = arith.select %276, %277, %274 : vector<16x32xi1>, vector<16x32xf32>
    %c0_78 = arith.constant 0 : index
    %c0_79 = arith.constant 0 : index
    %c0_80 = arith.constant 0 : index
    %279 = vector.load %arg2[%c0_78, %c0_79, %c0_80] : memref<2x32x64xf32, #tpu.memory_space<vmem>>, vector<1x32x64xf32>
    %280 = vector.shape_cast %279 : vector<1x32x64xf32> to vector<32x64xf32>
    %c0_81 = arith.constant 0 : index
    %c0_82 = arith.constant 0 : index
    %c0_83 = arith.constant 0 : index
    %281 = vector.load %arg4[%c0_81, %c0_82, %c0_83] : memref<2x32x64xf32, #tpu.memory_space<vmem>>, vector<1x32x64xf32>
    %282 = vector.shape_cast %281 : vector<1x32x64xf32> to vector<32x64xf32>
    %c0_84 = arith.constant 0 : index
    %c0_85 = arith.constant 0 : index
    %c0_86 = arith.constant 0 : index
    %283 = vector.load %arg3[%c0_84, %c0_85, %c0_86] : memref<2x1x64xf32, #tpu.memory_space<vmem>>, vector<1x1x64xf32>
    %284 = vector.shape_cast %283 : vector<1x1x64xf32> to vector<1x64xf32>
    %c0_87 = arith.constant 0 : index
    %c0_88 = arith.constant 0 : index
    %c0_89 = arith.constant 0 : index
    %285 = vector.load %arg5[%c0_87, %c0_88, %c0_89] : memref<2x1x64xf32, #tpu.memory_space<vmem>>, vector<1x1x64xf32>
    %286 = vector.shape_cast %285 : vector<1x1x64xf32> to vector<1x64xf32>
    %c0_90 = arith.constant 0 : index
    %c0_91 = arith.constant 0 : index
    %c0_92 = arith.constant 0 : index
    %287 = vector.load %arg6[%c0_90, %c0_91, %c0_92] : memref<2x2x32xf32, #tpu.memory_space<vmem>>, vector<1x2x32xf32>
    %288 = vector.shape_cast %287 : vector<1x2x32xf32> to vector<2x32xf32>
    %c0_93 = arith.constant 0 : index
    %c0_94 = arith.constant 0 : index
    %c0_95 = arith.constant 0 : index
    %289 = vector.load %arg7[%c0_93, %c0_94, %c0_95] : memref<2x1x64xf32, #tpu.memory_space<vmem>>, vector<1x1x64xf32>
    %290 = vector.shape_cast %289 : vector<1x1x64xf32> to vector<1x64xf32>
    %cst_96 = arith.constant dense<0.000000e+00> : vector<16x64xf32>
    %291 = tpu.matmul %278, %280, %cst_96 {dimension_numbers = #tpu.dot_dimension_numbers<[1], [0], [0], [1], [0, 0, 1, 1], [], []>} : vector<16x32xf32>, vector<32x64xf32>, vector<16x64xf32> -> vector<16x64xf32>
    %292 = vector.broadcast %284 : vector<1x64xf32> to vector<16x64xf32>
    %293 = arith.addf %291, %292 : vector<16x64xf32>
    %cst_97 = arith.constant dense<0.000000e+00> : vector<16x64xf32>
    %294 = tpu.matmul %278, %282, %cst_97 {dimension_numbers = #tpu.dot_dimension_numbers<[1], [0], [0], [1], [0, 0, 1, 1], [], []>} : vector<16x32xf32>, vector<32x64xf32>, vector<16x64xf32> -> vector<16x64xf32>
    %295 = vector.broadcast %286 : vector<1x64xf32> to vector<16x64xf32>
    %296 = arith.addf %294, %295 : vector<16x64xf32>
    %297 = vector.broadcast %290 : vector<1x64xf32> to vector<16x64xf32>
    %298 = arith.mulf %296, %297 : vector<16x64xf32>
    %299 = vector.extract_strided_slice %278 {offsets = [0, 0], sizes = [8, 32], strides = [1, 1]} : vector<16x32xf32> to vector<8x32xf32>
    %300 = vector.extract_strided_slice %293 {offsets = [0, 0], sizes = [8, 32], strides = [1, 1]} : vector<16x64xf32> to vector<8x32xf32>
    %301 = vector.extract_strided_slice %288 {offsets = [0, 0], sizes = [1, 32], strides = [1, 1]} : vector<2x32xf32> to vector<1x32xf32>
    %302 = vector.broadcast %301 : vector<1x32xf32> to vector<8x32xf32>
    %303 = arith.mulf %299, %302 : vector<8x32xf32>
    %304 = vector.shape_cast %300 : vector<8x32xf32> to vector<8x1x32xf32>
    %305 = vector.shape_cast %303 : vector<8x32xf32> to vector<1x8x32xf32>
    %306 = vector.broadcast %304 : vector<8x1x32xf32> to vector<8x8x32xf32>
    %307 = vector.broadcast %305 : vector<1x8x32xf32> to vector<8x8x32xf32>
    %308 = arith.subf %306, %307 : vector<8x8x32xf32>
    %309 = math.absf %308 : vector<8x8x32xf32>
    %310 = vector.shape_cast %309 : vector<8x8x32xf32> to vector<64x32xf32>
    %cst_98 = arith.constant dense<0.000000e+00> : vector<64x1xf32>
    %311 = tpu.matmul %310, %0, %cst_98 {dimension_numbers = #tpu.dot_dimension_numbers<[1], [0], [0], [1], [0, 0, 1, 1], [], []>} : vector<64x32xf32>, vector<32x1xf32>, vector<64x1xf32> -> vector<64x1xf32>
    %312 = vector.shape_cast %311 : vector<64x1xf32> to vector<8x8xf32>
    %cst_99 = arith.constant dense<0xFF800000> : vector<8xf32>
    %313 = vector.multi_reduction <maximumf>, %312, %cst_99 [1] : vector<8x8xf32> to vector<8xf32>
    %314 = vector.shape_cast %313 : vector<8xf32> to vector<8x1xf32>
    %315 = vector.broadcast %314 : vector<8x1xf32> to vector<8x8xf32>
    %316 = arith.subf %312, %315 : vector<8x8xf32>
    %317 = math.exp %316 : vector<8x8xf32>
    %cst_100 = arith.constant dense<0.000000e+00> : vector<8xf32>
    %318 = vector.multi_reduction <add>, %317, %cst_100 [1] : vector<8x8xf32> to vector<8xf32>
    %319 = vector.shape_cast %318 : vector<8xf32> to vector<8x1xf32>
    %320 = vector.broadcast %319 : vector<8x1xf32> to vector<8x8xf32>
    %321 = arith.divf %317, %320 : vector<8x8xf32>
    %322 = vector.extract_strided_slice %298 {offsets = [0, 0], sizes = [8, 32], strides = [1, 1]} : vector<16x64xf32> to vector<8x32xf32>
    %323 = vector.extract_strided_slice %293 {offsets = [0, 32], sizes = [8, 32], strides = [1, 1]} : vector<16x64xf32> to vector<8x32xf32>
    %324 = vector.extract_strided_slice %288 {offsets = [1, 0], sizes = [1, 32], strides = [1, 1]} : vector<2x32xf32> to vector<1x32xf32>
    %325 = vector.broadcast %324 : vector<1x32xf32> to vector<8x32xf32>
    %326 = arith.mulf %299, %325 : vector<8x32xf32>
    %327 = vector.shape_cast %323 : vector<8x32xf32> to vector<8x1x32xf32>
    %328 = vector.shape_cast %326 : vector<8x32xf32> to vector<1x8x32xf32>
    %329 = vector.broadcast %327 : vector<8x1x32xf32> to vector<8x8x32xf32>
    %330 = vector.broadcast %328 : vector<1x8x32xf32> to vector<8x8x32xf32>
    %331 = arith.subf %329, %330 : vector<8x8x32xf32>
    %332 = math.absf %331 : vector<8x8x32xf32>
    %333 = vector.shape_cast %332 : vector<8x8x32xf32> to vector<64x32xf32>
    %cst_101 = arith.constant dense<0.000000e+00> : vector<64x1xf32>
    %334 = tpu.matmul %333, %0, %cst_101 {dimension_numbers = #tpu.dot_dimension_numbers<[1], [0], [0], [1], [0, 0, 1, 1], [], []>} : vector<64x32xf32>, vector<32x1xf32>, vector<64x1xf32> -> vector<64x1xf32>
    %335 = vector.shape_cast %334 : vector<64x1xf32> to vector<8x8xf32>
    %cst_102 = arith.constant dense<0xFF800000> : vector<8xf32>
    %336 = vector.multi_reduction <maximumf>, %335, %cst_102 [1] : vector<8x8xf32> to vector<8xf32>
    %337 = vector.shape_cast %336 : vector<8xf32> to vector<8x1xf32>
    %338 = vector.broadcast %337 : vector<8x1xf32> to vector<8x8xf32>
    %339 = arith.subf %335, %338 : vector<8x8xf32>
    %340 = math.exp %339 : vector<8x8xf32>
    %cst_103 = arith.constant dense<0.000000e+00> : vector<8xf32>
    %341 = vector.multi_reduction <add>, %340, %cst_103 [1] : vector<8x8xf32> to vector<8xf32>
    %342 = vector.shape_cast %341 : vector<8xf32> to vector<8x1xf32>
    %343 = vector.broadcast %342 : vector<8x1xf32> to vector<8x8xf32>
    %344 = arith.divf %340, %343 : vector<8x8xf32>
    %345 = vector.extract_strided_slice %298 {offsets = [0, 32], sizes = [8, 32], strides = [1, 1]} : vector<16x64xf32> to vector<8x32xf32>
    %346 = tpu.concatenate %321, %344 in 1 : vector<8x8xf32>, vector<8x8xf32> -> vector<8x16xf32>
    %347 = tpu.concatenate %322, %345 in 0 : vector<8x32xf32>, vector<8x32xf32> -> vector<16x32xf32>
    %cst_104 = arith.constant dense<0.000000e+00> : vector<8x32xf32>
    %348 = tpu.matmul %346, %347, %cst_104 {dimension_numbers = #tpu.dot_dimension_numbers<[1], [0], [0], [1], [0, 0, 1, 1], [], []>} : vector<8x16xf32>, vector<16x32xf32>, vector<8x32xf32> -> vector<8x32xf32>
    %349 = vector.extract_strided_slice %278 {offsets = [8, 0], sizes = [8, 32], strides = [1, 1]} : vector<16x32xf32> to vector<8x32xf32>
    %350 = vector.extract_strided_slice %293 {offsets = [8, 0], sizes = [8, 32], strides = [1, 1]} : vector<16x64xf32> to vector<8x32xf32>
    %351 = vector.extract_strided_slice %288 {offsets = [0, 0], sizes = [1, 32], strides = [1, 1]} : vector<2x32xf32> to vector<1x32xf32>
    %352 = vector.broadcast %351 : vector<1x32xf32> to vector<8x32xf32>
    %353 = arith.mulf %349, %352 : vector<8x32xf32>
    %354 = vector.shape_cast %350 : vector<8x32xf32> to vector<8x1x32xf32>
    %355 = vector.shape_cast %353 : vector<8x32xf32> to vector<1x8x32xf32>
    %356 = vector.broadcast %354 : vector<8x1x32xf32> to vector<8x8x32xf32>
    %357 = vector.broadcast %355 : vector<1x8x32xf32> to vector<8x8x32xf32>
    %358 = arith.subf %356, %357 : vector<8x8x32xf32>
    %359 = math.absf %358 : vector<8x8x32xf32>
    %360 = vector.shape_cast %359 : vector<8x8x32xf32> to vector<64x32xf32>
    %cst_105 = arith.constant dense<0.000000e+00> : vector<64x1xf32>
    %361 = tpu.matmul %360, %0, %cst_105 {dimension_numbers = #tpu.dot_dimension_numbers<[1], [0], [0], [1], [0, 0, 1, 1], [], []>} : vector<64x32xf32>, vector<32x1xf32>, vector<64x1xf32> -> vector<64x1xf32>
    %362 = vector.shape_cast %361 : vector<64x1xf32> to vector<8x8xf32>
    %cst_106 = arith.constant dense<0xFF800000> : vector<8xf32>
    %363 = vector.multi_reduction <maximumf>, %362, %cst_106 [1] : vector<8x8xf32> to vector<8xf32>
    %364 = vector.shape_cast %363 : vector<8xf32> to vector<8x1xf32>
    %365 = vector.broadcast %364 : vector<8x1xf32> to vector<8x8xf32>
    %366 = arith.subf %362, %365 : vector<8x8xf32>
    %367 = math.exp %366 : vector<8x8xf32>
    %cst_107 = arith.constant dense<0.000000e+00> : vector<8xf32>
    %368 = vector.multi_reduction <add>, %367, %cst_107 [1] : vector<8x8xf32> to vector<8xf32>
    %369 = vector.shape_cast %368 : vector<8xf32> to vector<8x1xf32>
    %370 = vector.broadcast %369 : vector<8x1xf32> to vector<8x8xf32>
    %371 = arith.divf %367, %370 : vector<8x8xf32>
    %372 = vector.extract_strided_slice %298 {offsets = [8, 0], sizes = [8, 32], strides = [1, 1]} : vector<16x64xf32> to vector<8x32xf32>
    %373 = vector.extract_strided_slice %293 {offsets = [8, 32], sizes = [8, 32], strides = [1, 1]} : vector<16x64xf32> to vector<8x32xf32>
    %374 = vector.extract_strided_slice %288 {offsets = [1, 0], sizes = [1, 32], strides = [1, 1]} : vector<2x32xf32> to vector<1x32xf32>
    %375 = vector.broadcast %374 : vector<1x32xf32> to vector<8x32xf32>
    %376 = arith.mulf %349, %375 : vector<8x32xf32>
    %377 = vector.shape_cast %373 : vector<8x32xf32> to vector<8x1x32xf32>
    %378 = vector.shape_cast %376 : vector<8x32xf32> to vector<1x8x32xf32>
    %379 = vector.broadcast %377 : vector<8x1x32xf32> to vector<8x8x32xf32>
    %380 = vector.broadcast %378 : vector<1x8x32xf32> to vector<8x8x32xf32>
    %381 = arith.subf %379, %380 : vector<8x8x32xf32>
    %382 = math.absf %381 : vector<8x8x32xf32>
    %383 = vector.shape_cast %382 : vector<8x8x32xf32> to vector<64x32xf32>
    %cst_108 = arith.constant dense<0.000000e+00> : vector<64x1xf32>
    %384 = tpu.matmul %383, %0, %cst_108 {dimension_numbers = #tpu.dot_dimension_numbers<[1], [0], [0], [1], [0, 0, 1, 1], [], []>} : vector<64x32xf32>, vector<32x1xf32>, vector<64x1xf32> -> vector<64x1xf32>
    %385 = vector.shape_cast %384 : vector<64x1xf32> to vector<8x8xf32>
    %cst_109 = arith.constant dense<0xFF800000> : vector<8xf32>
    %386 = vector.multi_reduction <maximumf>, %385, %cst_109 [1] : vector<8x8xf32> to vector<8xf32>
    %387 = vector.shape_cast %386 : vector<8xf32> to vector<8x1xf32>
    %388 = vector.broadcast %387 : vector<8x1xf32> to vector<8x8xf32>
    %389 = arith.subf %385, %388 : vector<8x8xf32>
    %390 = math.exp %389 : vector<8x8xf32>
    %cst_110 = arith.constant dense<0.000000e+00> : vector<8xf32>
    %391 = vector.multi_reduction <add>, %390, %cst_110 [1] : vector<8x8xf32> to vector<8xf32>
    %392 = vector.shape_cast %391 : vector<8xf32> to vector<8x1xf32>
    %393 = vector.broadcast %392 : vector<8x1xf32> to vector<8x8xf32>
    %394 = arith.divf %390, %393 : vector<8x8xf32>
    %395 = vector.extract_strided_slice %298 {offsets = [8, 32], sizes = [8, 32], strides = [1, 1]} : vector<16x64xf32> to vector<8x32xf32>
    %396 = tpu.concatenate %371, %394 in 1 : vector<8x8xf32>, vector<8x8xf32> -> vector<8x16xf32>
    %397 = tpu.concatenate %372, %395 in 0 : vector<8x32xf32>, vector<8x32xf32> -> vector<16x32xf32>
    %cst_111 = arith.constant dense<0.000000e+00> : vector<8x32xf32>
    %398 = tpu.matmul %396, %397, %cst_111 {dimension_numbers = #tpu.dot_dimension_numbers<[1], [0], [0], [1], [0, 0, 1, 1], [], []>} : vector<8x16xf32>, vector<16x32xf32>, vector<8x32xf32> -> vector<8x32xf32>
    %399 = tpu.concatenate %348, %398 in 0 : vector<8x32xf32>, vector<8x32xf32> -> vector<16x32xf32>
    %cst_112 = arith.constant 1.702000e+00 : f32
    %400 = vector.broadcast %cst_112 : f32 to vector<16x32xf32>
    %401 = arith.mulf %400, %399 : vector<16x32xf32>
    %402 = arith.negf %401 : vector<16x32xf32>
    %403 = math.exp %402 : vector<16x32xf32>
    %cst_113 = arith.constant 1.000000e+00 : f32
    %404 = vector.broadcast %cst_113 : f32 to vector<16x32xf32>
    %405 = arith.addf %404, %403 : vector<16x32xf32>
    %406 = arith.divf %404, %405 : vector<16x32xf32>
    %407 = arith.mulf %399, %406 : vector<16x32xf32>
    %408 = arith.addf %278, %407 : vector<16x32xf32>
    %c1_114 = arith.constant 1 : index
    %c0_115 = arith.constant 0 : index
    %c0_116 = arith.constant 0 : index
    %409 = vector.load %arg2[%c1_114, %c0_115, %c0_116] : memref<2x32x64xf32, #tpu.memory_space<vmem>>, vector<1x32x64xf32>
    %410 = vector.shape_cast %409 : vector<1x32x64xf32> to vector<32x64xf32>
    %c1_117 = arith.constant 1 : index
    %c0_118 = arith.constant 0 : index
    %c0_119 = arith.constant 0 : index
    %411 = vector.load %arg4[%c1_117, %c0_118, %c0_119] : memref<2x32x64xf32, #tpu.memory_space<vmem>>, vector<1x32x64xf32>
    %412 = vector.shape_cast %411 : vector<1x32x64xf32> to vector<32x64xf32>
    %c1_120 = arith.constant 1 : index
    %c0_121 = arith.constant 0 : index
    %c0_122 = arith.constant 0 : index
    %413 = vector.load %arg3[%c1_120, %c0_121, %c0_122] : memref<2x1x64xf32, #tpu.memory_space<vmem>>, vector<1x1x64xf32>
    %414 = vector.shape_cast %413 : vector<1x1x64xf32> to vector<1x64xf32>
    %c1_123 = arith.constant 1 : index
    %c0_124 = arith.constant 0 : index
    %c0_125 = arith.constant 0 : index
    %415 = vector.load %arg5[%c1_123, %c0_124, %c0_125] : memref<2x1x64xf32, #tpu.memory_space<vmem>>, vector<1x1x64xf32>
    %416 = vector.shape_cast %415 : vector<1x1x64xf32> to vector<1x64xf32>
    %c1_126 = arith.constant 1 : index
    %c0_127 = arith.constant 0 : index
    %c0_128 = arith.constant 0 : index
    %417 = vector.load %arg6[%c1_126, %c0_127, %c0_128] : memref<2x2x32xf32, #tpu.memory_space<vmem>>, vector<1x2x32xf32>
    %418 = vector.shape_cast %417 : vector<1x2x32xf32> to vector<2x32xf32>
    %c1_129 = arith.constant 1 : index
    %c0_130 = arith.constant 0 : index
    %c0_131 = arith.constant 0 : index
    %419 = vector.load %arg7[%c1_129, %c0_130, %c0_131] : memref<2x1x64xf32, #tpu.memory_space<vmem>>, vector<1x1x64xf32>
    %420 = vector.shape_cast %419 : vector<1x1x64xf32> to vector<1x64xf32>
    %cst_132 = arith.constant dense<0.000000e+00> : vector<16x64xf32>
    %421 = tpu.matmul %408, %410, %cst_132 {dimension_numbers = #tpu.dot_dimension_numbers<[1], [0], [0], [1], [0, 0, 1, 1], [], []>} : vector<16x32xf32>, vector<32x64xf32>, vector<16x64xf32> -> vector<16x64xf32>
    %422 = vector.broadcast %414 : vector<1x64xf32> to vector<16x64xf32>
    %423 = arith.addf %421, %422 : vector<16x64xf32>
    %cst_133 = arith.constant dense<0.000000e+00> : vector<16x64xf32>
    %424 = tpu.matmul %408, %412, %cst_133 {dimension_numbers = #tpu.dot_dimension_numbers<[1], [0], [0], [1], [0, 0, 1, 1], [], []>} : vector<16x32xf32>, vector<32x64xf32>, vector<16x64xf32> -> vector<16x64xf32>
    %425 = vector.broadcast %416 : vector<1x64xf32> to vector<16x64xf32>
    %426 = arith.addf %424, %425 : vector<16x64xf32>
    %427 = vector.broadcast %420 : vector<1x64xf32> to vector<16x64xf32>
    %428 = arith.mulf %426, %427 : vector<16x64xf32>
    %429 = vector.extract_strided_slice %408 {offsets = [0, 0], sizes = [8, 32], strides = [1, 1]} : vector<16x32xf32> to vector<8x32xf32>
    %430 = vector.extract_strided_slice %423 {offsets = [0, 0], sizes = [8, 32], strides = [1, 1]} : vector<16x64xf32> to vector<8x32xf32>
    %431 = vector.extract_strided_slice %418 {offsets = [0, 0], sizes = [1, 32], strides = [1, 1]} : vector<2x32xf32> to vector<1x32xf32>
    %432 = vector.broadcast %431 : vector<1x32xf32> to vector<8x32xf32>
    %433 = arith.mulf %429, %432 : vector<8x32xf32>
    %434 = vector.shape_cast %430 : vector<8x32xf32> to vector<8x1x32xf32>
    %435 = vector.shape_cast %433 : vector<8x32xf32> to vector<1x8x32xf32>
    %436 = vector.broadcast %434 : vector<8x1x32xf32> to vector<8x8x32xf32>
    %437 = vector.broadcast %435 : vector<1x8x32xf32> to vector<8x8x32xf32>
    %438 = arith.subf %436, %437 : vector<8x8x32xf32>
    %439 = math.absf %438 : vector<8x8x32xf32>
    %440 = vector.shape_cast %439 : vector<8x8x32xf32> to vector<64x32xf32>
    %cst_134 = arith.constant dense<0.000000e+00> : vector<64x1xf32>
    %441 = tpu.matmul %440, %0, %cst_134 {dimension_numbers = #tpu.dot_dimension_numbers<[1], [0], [0], [1], [0, 0, 1, 1], [], []>} : vector<64x32xf32>, vector<32x1xf32>, vector<64x1xf32> -> vector<64x1xf32>
    %442 = vector.shape_cast %441 : vector<64x1xf32> to vector<8x8xf32>
    %cst_135 = arith.constant dense<0xFF800000> : vector<8xf32>
    %443 = vector.multi_reduction <maximumf>, %442, %cst_135 [1] : vector<8x8xf32> to vector<8xf32>
    %444 = vector.shape_cast %443 : vector<8xf32> to vector<8x1xf32>
    %445 = vector.broadcast %444 : vector<8x1xf32> to vector<8x8xf32>
    %446 = arith.subf %442, %445 : vector<8x8xf32>
    %447 = math.exp %446 : vector<8x8xf32>
    %cst_136 = arith.constant dense<0.000000e+00> : vector<8xf32>
    %448 = vector.multi_reduction <add>, %447, %cst_136 [1] : vector<8x8xf32> to vector<8xf32>
    %449 = vector.shape_cast %448 : vector<8xf32> to vector<8x1xf32>
    %450 = vector.broadcast %449 : vector<8x1xf32> to vector<8x8xf32>
    %451 = arith.divf %447, %450 : vector<8x8xf32>
    %452 = vector.extract_strided_slice %428 {offsets = [0, 0], sizes = [8, 32], strides = [1, 1]} : vector<16x64xf32> to vector<8x32xf32>
    %453 = vector.extract_strided_slice %423 {offsets = [0, 32], sizes = [8, 32], strides = [1, 1]} : vector<16x64xf32> to vector<8x32xf32>
    %454 = vector.extract_strided_slice %418 {offsets = [1, 0], sizes = [1, 32], strides = [1, 1]} : vector<2x32xf32> to vector<1x32xf32>
    %455 = vector.broadcast %454 : vector<1x32xf32> to vector<8x32xf32>
    %456 = arith.mulf %429, %455 : vector<8x32xf32>
    %457 = vector.shape_cast %453 : vector<8x32xf32> to vector<8x1x32xf32>
    %458 = vector.shape_cast %456 : vector<8x32xf32> to vector<1x8x32xf32>
    %459 = vector.broadcast %457 : vector<8x1x32xf32> to vector<8x8x32xf32>
    %460 = vector.broadcast %458 : vector<1x8x32xf32> to vector<8x8x32xf32>
    %461 = arith.subf %459, %460 : vector<8x8x32xf32>
    %462 = math.absf %461 : vector<8x8x32xf32>
    %463 = vector.shape_cast %462 : vector<8x8x32xf32> to vector<64x32xf32>
    %cst_137 = arith.constant dense<0.000000e+00> : vector<64x1xf32>
    %464 = tpu.matmul %463, %0, %cst_137 {dimension_numbers = #tpu.dot_dimension_numbers<[1], [0], [0], [1], [0, 0, 1, 1], [], []>} : vector<64x32xf32>, vector<32x1xf32>, vector<64x1xf32> -> vector<64x1xf32>
    %465 = vector.shape_cast %464 : vector<64x1xf32> to vector<8x8xf32>
    %cst_138 = arith.constant dense<0xFF800000> : vector<8xf32>
    %466 = vector.multi_reduction <maximumf>, %465, %cst_138 [1] : vector<8x8xf32> to vector<8xf32>
    %467 = vector.shape_cast %466 : vector<8xf32> to vector<8x1xf32>
    %468 = vector.broadcast %467 : vector<8x1xf32> to vector<8x8xf32>
    %469 = arith.subf %465, %468 : vector<8x8xf32>
    %470 = math.exp %469 : vector<8x8xf32>
    %cst_139 = arith.constant dense<0.000000e+00> : vector<8xf32>
    %471 = vector.multi_reduction <add>, %470, %cst_139 [1] : vector<8x8xf32> to vector<8xf32>
    %472 = vector.shape_cast %471 : vector<8xf32> to vector<8x1xf32>
    %473 = vector.broadcast %472 : vector<8x1xf32> to vector<8x8xf32>
    %474 = arith.divf %470, %473 : vector<8x8xf32>
    %475 = vector.extract_strided_slice %428 {offsets = [0, 32], sizes = [8, 32], strides = [1, 1]} : vector<16x64xf32> to vector<8x32xf32>
    %476 = tpu.concatenate %451, %474 in 1 : vector<8x8xf32>, vector<8x8xf32> -> vector<8x16xf32>
    %477 = tpu.concatenate %452, %475 in 0 : vector<8x32xf32>, vector<8x32xf32> -> vector<16x32xf32>
    %cst_140 = arith.constant dense<0.000000e+00> : vector<8x32xf32>
    %478 = tpu.matmul %476, %477, %cst_140 {dimension_numbers = #tpu.dot_dimension_numbers<[1], [0], [0], [1], [0, 0, 1, 1], [], []>} : vector<8x16xf32>, vector<16x32xf32>, vector<8x32xf32> -> vector<8x32xf32>
    %479 = vector.extract_strided_slice %408 {offsets = [8, 0], sizes = [8, 32], strides = [1, 1]} : vector<16x32xf32> to vector<8x32xf32>
    %480 = vector.extract_strided_slice %423 {offsets = [8, 0], sizes = [8, 32], strides = [1, 1]} : vector<16x64xf32> to vector<8x32xf32>
    %481 = vector.extract_strided_slice %418 {offsets = [0, 0], sizes = [1, 32], strides = [1, 1]} : vector<2x32xf32> to vector<1x32xf32>
    %482 = vector.broadcast %481 : vector<1x32xf32> to vector<8x32xf32>
    %483 = arith.mulf %479, %482 : vector<8x32xf32>
    %484 = vector.shape_cast %480 : vector<8x32xf32> to vector<8x1x32xf32>
    %485 = vector.shape_cast %483 : vector<8x32xf32> to vector<1x8x32xf32>
    %486 = vector.broadcast %484 : vector<8x1x32xf32> to vector<8x8x32xf32>
    %487 = vector.broadcast %485 : vector<1x8x32xf32> to vector<8x8x32xf32>
    %488 = arith.subf %486, %487 : vector<8x8x32xf32>
    %489 = math.absf %488 : vector<8x8x32xf32>
    %490 = vector.shape_cast %489 : vector<8x8x32xf32> to vector<64x32xf32>
    %cst_141 = arith.constant dense<0.000000e+00> : vector<64x1xf32>
    %491 = tpu.matmul %490, %0, %cst_141 {dimension_numbers = #tpu.dot_dimension_numbers<[1], [0], [0], [1], [0, 0, 1, 1], [], []>} : vector<64x32xf32>, vector<32x1xf32>, vector<64x1xf32> -> vector<64x1xf32>
    %492 = vector.shape_cast %491 : vector<64x1xf32> to vector<8x8xf32>
    %cst_142 = arith.constant dense<0xFF800000> : vector<8xf32>
    %493 = vector.multi_reduction <maximumf>, %492, %cst_142 [1] : vector<8x8xf32> to vector<8xf32>
    %494 = vector.shape_cast %493 : vector<8xf32> to vector<8x1xf32>
    %495 = vector.broadcast %494 : vector<8x1xf32> to vector<8x8xf32>
    %496 = arith.subf %492, %495 : vector<8x8xf32>
    %497 = math.exp %496 : vector<8x8xf32>
    %cst_143 = arith.constant dense<0.000000e+00> : vector<8xf32>
    %498 = vector.multi_reduction <add>, %497, %cst_143 [1] : vector<8x8xf32> to vector<8xf32>
    %499 = vector.shape_cast %498 : vector<8xf32> to vector<8x1xf32>
    %500 = vector.broadcast %499 : vector<8x1xf32> to vector<8x8xf32>
    %501 = arith.divf %497, %500 : vector<8x8xf32>
    %502 = vector.extract_strided_slice %428 {offsets = [8, 0], sizes = [8, 32], strides = [1, 1]} : vector<16x64xf32> to vector<8x32xf32>
    %503 = vector.extract_strided_slice %423 {offsets = [8, 32], sizes = [8, 32], strides = [1, 1]} : vector<16x64xf32> to vector<8x32xf32>
    %504 = vector.extract_strided_slice %418 {offsets = [1, 0], sizes = [1, 32], strides = [1, 1]} : vector<2x32xf32> to vector<1x32xf32>
    %505 = vector.broadcast %504 : vector<1x32xf32> to vector<8x32xf32>
    %506 = arith.mulf %479, %505 : vector<8x32xf32>
    %507 = vector.shape_cast %503 : vector<8x32xf32> to vector<8x1x32xf32>
    %508 = vector.shape_cast %506 : vector<8x32xf32> to vector<1x8x32xf32>
    %509 = vector.broadcast %507 : vector<8x1x32xf32> to vector<8x8x32xf32>
    %510 = vector.broadcast %508 : vector<1x8x32xf32> to vector<8x8x32xf32>
    %511 = arith.subf %509, %510 : vector<8x8x32xf32>
    %512 = math.absf %511 : vector<8x8x32xf32>
    %513 = vector.shape_cast %512 : vector<8x8x32xf32> to vector<64x32xf32>
    %cst_144 = arith.constant dense<0.000000e+00> : vector<64x1xf32>
    %514 = tpu.matmul %513, %0, %cst_144 {dimension_numbers = #tpu.dot_dimension_numbers<[1], [0], [0], [1], [0, 0, 1, 1], [], []>} : vector<64x32xf32>, vector<32x1xf32>, vector<64x1xf32> -> vector<64x1xf32>
    %515 = vector.shape_cast %514 : vector<64x1xf32> to vector<8x8xf32>
    %cst_145 = arith.constant dense<0xFF800000> : vector<8xf32>
    %516 = vector.multi_reduction <maximumf>, %515, %cst_145 [1] : vector<8x8xf32> to vector<8xf32>
    %517 = vector.shape_cast %516 : vector<8xf32> to vector<8x1xf32>
    %518 = vector.broadcast %517 : vector<8x1xf32> to vector<8x8xf32>
    %519 = arith.subf %515, %518 : vector<8x8xf32>
    %520 = math.exp %519 : vector<8x8xf32>
    %cst_146 = arith.constant dense<0.000000e+00> : vector<8xf32>
    %521 = vector.multi_reduction <add>, %520, %cst_146 [1] : vector<8x8xf32> to vector<8xf32>
    %522 = vector.shape_cast %521 : vector<8xf32> to vector<8x1xf32>
    %523 = vector.broadcast %522 : vector<8x1xf32> to vector<8x8xf32>
    %524 = arith.divf %520, %523 : vector<8x8xf32>
    %525 = vector.extract_strided_slice %428 {offsets = [8, 32], sizes = [8, 32], strides = [1, 1]} : vector<16x64xf32> to vector<8x32xf32>
    %526 = tpu.concatenate %501, %524 in 1 : vector<8x8xf32>, vector<8x8xf32> -> vector<8x16xf32>
    %527 = tpu.concatenate %502, %525 in 0 : vector<8x32xf32>, vector<8x32xf32> -> vector<16x32xf32>
    %cst_147 = arith.constant dense<0.000000e+00> : vector<8x32xf32>
    %528 = tpu.matmul %526, %527, %cst_147 {dimension_numbers = #tpu.dot_dimension_numbers<[1], [0], [0], [1], [0, 0, 1, 1], [], []>} : vector<8x16xf32>, vector<16x32xf32>, vector<8x32xf32> -> vector<8x32xf32>
    %529 = tpu.concatenate %478, %528 in 0 : vector<8x32xf32>, vector<8x32xf32> -> vector<16x32xf32>
    %cst_148 = arith.constant 1.702000e+00 : f32
    %530 = vector.broadcast %cst_148 : f32 to vector<16x32xf32>
    %531 = arith.mulf %530, %529 : vector<16x32xf32>
    %532 = arith.negf %531 : vector<16x32xf32>
    %533 = math.exp %532 : vector<16x32xf32>
    %cst_149 = arith.constant 1.000000e+00 : f32
    %534 = vector.broadcast %cst_149 : f32 to vector<16x32xf32>
    %535 = arith.addf %534, %533 : vector<16x32xf32>
    %536 = arith.divf %534, %535 : vector<16x32xf32>
    %537 = arith.mulf %529, %536 : vector<16x32xf32>
    %538 = arith.addf %408, %537 : vector<16x32xf32>
    %c0_150 = arith.constant 0 : index
    %c0_151 = arith.constant 0 : index
    %539 = vector.load %arg8[%c0_150, %c0_151] : memref<16x32xf32, #tpu.memory_space<vmem>>, vector<16x32xf32>
    tpu.vector_store %arg8[%c0_150, %c0_151], %538 {strides = array<i32>} : memref<16x32xf32, #tpu.memory_space<vmem>>, vector<16x32xf32>,
    %c0_152 = arith.constant 0 : index
    %c0_153 = arith.constant 0 : index
    %c0_154 = arith.constant 0 : index
    %540 = vector.load %arg9[%c0_152, %c0_153, %c0_154] : memref<2x8x8xf32, #tpu.memory_space<vmem>>, vector<1x8x8xf32>
    %541 = vector.shape_cast %540 : vector<1x8x8xf32> to vector<8x8xf32>
    %542 = vector.shape_cast %321 : vector<8x8xf32> to vector<1x8x8xf32>
    tpu.vector_store %arg9[%c0_152, %c0_153, %c0_154], %542 {strides = array<i32>} : memref<2x8x8xf32, #tpu.memory_space<vmem>>, vector<1x8x8xf32>,
    %c0_155 = arith.constant 0 : index
    %c0_156 = arith.constant 0 : index
    %c0_157 = arith.constant 0 : index
    %543 = vector.load %arg10[%c0_155, %c0_156, %c0_157] : memref<2x8x8xf32, #tpu.memory_space<vmem>>, vector<1x8x8xf32>
    %544 = vector.shape_cast %543 : vector<1x8x8xf32> to vector<8x8xf32>
    %545 = vector.shape_cast %451 : vector<8x8xf32> to vector<1x8x8xf32>
    tpu.vector_store %arg10[%c0_155, %c0_156, %c0_157], %545 {strides = array<i32>} : memref<2x8x8xf32, #tpu.memory_space<vmem>>, vector<1x8x8xf32>,
    %c1_158 = arith.constant 1 : index
    %c0_159 = arith.constant 0 : index
    %c0_160 = arith.constant 0 : index
    %546 = vector.load %arg9[%c1_158, %c0_159, %c0_160] : memref<2x8x8xf32, #tpu.memory_space<vmem>>, vector<1x8x8xf32>
    %547 = vector.shape_cast %546 : vector<1x8x8xf32> to vector<8x8xf32>
    %548 = vector.shape_cast %344 : vector<8x8xf32> to vector<1x8x8xf32>
    tpu.vector_store %arg9[%c1_158, %c0_159, %c0_160], %548 {strides = array<i32>} : memref<2x8x8xf32, #tpu.memory_space<vmem>>, vector<1x8x8xf32>,
    %c1_161 = arith.constant 1 : index
    %c0_162 = arith.constant 0 : index
    %c0_163 = arith.constant 0 : index
    %549 = vector.load %arg10[%c1_161, %c0_162, %c0_163] : memref<2x8x8xf32, #tpu.memory_space<vmem>>, vector<1x8x8xf32>
    %550 = vector.shape_cast %549 : vector<1x8x8xf32> to vector<8x8xf32>
    %551 = vector.shape_cast %474 : vector<8x8xf32> to vector<1x8x8xf32>
    tpu.vector_store %arg10[%c1_161, %c0_162, %c0_163], %551 {strides = array<i32>} : memref<2x8x8xf32, #tpu.memory_space<vmem>>, vector<1x8x8xf32>,
    return
  }
  func.func @transform_0(%arg0: i32) -> (i32, i32) {
    %c0_i32 = arith.constant 0 : i32
    %c0_i32_0 = arith.constant 0 : i32
    %c0_i32_1 = arith.constant 0 : i32
    return %c0_i32, %c0_i32_0 : i32, i32
  }
  func.func @transform_1(%arg0: i32) -> (i32, i32, i32) {
    %c0_i32 = arith.constant 0 : i32
    %c0_i32_0 = arith.constant 0 : i32
    %c0_i32_1 = arith.constant 0 : i32
    %c0_i32_2 = arith.constant 0 : i32
    return %c0_i32, %c0_i32_0, %c0_i32_1 : i32, i32, i32
  }
  func.func @transform_2(%arg0: i32) -> (i32, i32, i32) {
    %c0_i32 = arith.constant 0 : i32
    %c0_i32_0 = arith.constant 0 : i32
    %c0_i32_1 = arith.constant 0 : i32
    %c0_i32_2 = arith.constant 0 : i32
    return %c0_i32, %c0_i32_0, %c0_i32_1 : i32, i32, i32
  }
  func.func @transform_3(%arg0: i32) -> (i32, i32, i32) {
    %c0_i32 = arith.constant 0 : i32
    %c0_i32_0 = arith.constant 0 : i32
    %c0_i32_1 = arith.constant 0 : i32
    %c0_i32_2 = arith.constant 0 : i32
    return %c0_i32, %c0_i32_0, %c0_i32_1 : i32, i32, i32
  }
  func.func @transform_4(%arg0: i32) -> (i32, i32, i32) {
    %c0_i32 = arith.constant 0 : i32
    %c0_i32_0 = arith.constant 0 : i32
    %c0_i32_1 = arith.constant 0 : i32
    %c0_i32_2 = arith.constant 0 : i32
    return %c0_i32, %c0_i32_0, %c0_i32_1 : i32, i32, i32
  }
  func.func @transform_5(%arg0: i32) -> (i32, i32, i32) {
    %c0_i32 = arith.constant 0 : i32
    %c0_i32_0 = arith.constant 0 : i32
    %c0_i32_1 = arith.constant 0 : i32
    %c0_i32_2 = arith.constant 0 : i32
    return %c0_i32, %c0_i32_0, %c0_i32_1 : i32, i32, i32
  }
  func.func @transform_6(%arg0: i32) -> (i32, i32, i32) {
    %c0_i32 = arith.constant 0 : i32
    %c0_i32_0 = arith.constant 0 : i32
    %c0_i32_1 = arith.constant 0 : i32
    %c0_i32_2 = arith.constant 0 : i32
    return %c0_i32, %c0_i32_0, %c0_i32_1 : i32, i32, i32
  }
  func.func @transform_7(%arg0: i32) -> (i32, i32) {
    %c0_i32 = arith.constant 0 : i32
    %c0_i32_0 = arith.constant 0 : i32
    %c0_i32_1 = arith.constant 0 : i32
    return %c0_i32, %c0_i32_0 : i32, i32
  }
  func.func @transform_8(%arg0: i32) -> (i32, i32, i32) {
    %c0_i32 = arith.constant 0 : i32
    %c0_i32_0 = arith.constant 0 : i32
    %c0_i32_1 = arith.constant 0 : i32
    %c0_i32_2 = arith.constant 0 : i32
    return %c0_i32, %c0_i32_0, %c0_i32_1 : i32, i32, i32
  }
  func.func @transform_9(%arg0: i32) -> (i32, i32, i32) {
    %c0_i32 = arith.constant 0 : i32
    %c0_i32_0 = arith.constant 0 : i32
    %c0_i32_1 = arith.constant 0 : i32
    %c0_i32_2 = arith.constant 0 : i32
    return %c0_i32, %c0_i32_0, %c0_i32_1 : i32, i32, i32
  }
}

</mosaic_0001>

<llo_original>
// kernel: transformer_forward.1
$region0: #{transformer_forward.1}
  #allocation0 [shape = 'u32[]', space=smem, size = 0x4, offset = 0x4, fixed_abs, tag = 'smem constant byte address 0x4 - core index']
  #allocation1 [shape = 'u32[144,128]{1,0:T(1,128)}', space=vmem, size = 0x12000, scoped, tag = 'internal scratch']
  %s0 = inlined_call_operand.vmem [shape: f32[16,32], index: 0, kind: input, shape index: {}]
  %s1 = inlined_call_operand.vmem [shape: f32[2,32,64], index: 1, kind: input, shape index: {}]
  %s2 = inlined_call_operand.vmem [shape: f32[2,1,64], index: 2, kind: input, shape index: {}]
  %s3 = inlined_call_operand.vmem [shape: f32[2,32,64], index: 3, kind: input, shape index: {}]
  %s4 = inlined_call_operand.vmem [shape: f32[2,1,64], index: 4, kind: input, shape index: {}]
  %s5 = inlined_call_operand.vmem [shape: f32[2,2,32], index: 5, kind: input, shape index: {}]
  %s6 = inlined_call_operand.vmem [shape: f32[2,1,64], index: 6, kind: input, shape index: {}]
  %s7 = inlined_call_operand.hbm [shape: f32[16,32], index: 7, kind: output, shape index: {0}]
  %s8 = inlined_call_operand.hbm [shape: f32[2,8,8], index: 8, kind: output, shape index: {1}]
  %s9 = inlined_call_operand.hbm [shape: f32[2,8,8], index: 9, kind: output, shape index: {2}]
  %10 = xla_tuple %s7, %s8, %s9
  %s11 = sld [smem:[#allocation0]]
  $region54: #{transformer_forward.1} parent=0
    _
  %s13 = ssub.s32 1, %s11
  %s14 = scalar_select 0, %s13, %s11
  $region1: #{transformer_forward.1} parent=0
    #allocation2 [shape = 'u8[8192]{0}', space=vmem, size = 0x2000, scoped, tag = 'output window, operand 0, single buffered']
    #allocation3 [shape = 's32[1]{0}', space=sflag, size = 0x4, scoped, tag = 'scoped memory for transformer_forward.1']
    #allocation4 [shape = 'u8[8192]{0}', space=vmem, size = 0x2000, scoped, tag = 'output window, operand 1, single buffered']
    #allocation5 [shape = 's32[1]{0}', space=sflag, size = 0x4, scoped, tag = 'scoped memory for transformer_forward.1']
    #allocation6 [shape = 'u8[8192]{0}', space=vmem, size = 0x2000, scoped, tag = 'output window, operand 2, single buffered']
    %15 = vsyncpa [#allocation3], 0
    %16 = vsyncpa [#allocation5], 0
    // Predicated region
    $region2: #{transformer_forward.1} parent=1 // pred_check
      _
    $region3: #{transformer_forward.1} parent=1 // pred_check_branch
      %18 = sbr.rel (0) target = $region5
    $region4: #{transformer_forward.1} parent=1 // pred_region
      _
    $region5: #{transformer_forward.1} parent=1 // pred_fallthru
      _
    // Predicated region
    $region6: #{transformer_forward.1} parent=1 // pred_check
      _
    $region7: #{transformer_forward.1} parent=1 // pred_check_branch
      %20 = sbr.rel (0) target = $region9
    $region8: #{transformer_forward.1} parent=1 // pred_region
      _
    $region9: #{transformer_forward.1} parent=1 // pred_fallthru
      _
    // Predicated region
    $region10: #{transformer_forward.1} parent=1 // pred_check
      _
    $region11: #{transformer_forward.1} parent=1 // pred_check_branch
      %22 = sbr.rel (0) target = $region13
    $region12: #{transformer_forward.1} parent=1 // pred_region
      _
    $region13: #{transformer_forward.1} parent=1 // pred_fallthru
      _
    // Predicated region
    $region14: #{transformer_forward.1} parent=1 // pred_check
      _
    $region15: #{transformer_forward.1} parent=1 // pred_check_branch
      %24 = sbr.rel (0) target = $region17
    $region16: #{transformer_forward.1} parent=1 // pred_region
      _
    $region17: #{transformer_forward.1} parent=1 // pred_fallthru
      _
    // Predicated region
    $region18: #{transformer_forward.1} parent=1 // pred_check
      _
    $region19: #{transformer_forward.1} parent=1 // pred_check_branch
      %26 = sbr.rel (0) target = $region21
    $region20: #{transformer_forward.1} parent=1 // pred_region
      _
    $region21: #{transformer_forward.1} parent=1 // pred_fallthru
      _
    // Predicated region
    $region22: #{transformer_forward.1} parent=1 // pred_check
      _
    $region23: #{transformer_forward.1} parent=1 // pred_check_branch
      %28 = sbr.rel (0) target = $region25
    $region24: #{transformer_forward.1} parent=1 // pred_region
      _
    $region25: #{transformer_forward.1} parent=1 // pred_fallthru
      _
    // Predicated region
    $region26: #{transformer_forward.1} parent=1 // pred_check
      _
    $region27: #{transformer_forward.1} parent=1 // pred_check_branch
      %30 = sbr.rel (0) target = $region29
    $region28: #{transformer_forward.1} parent=1 // pred_region
      _
    $region29: #{transformer_forward.1} parent=1 // pred_fallthru
      _
    %v31 = vlaneseq
    %v32 = vand.u32 %v31, 127
    %v33 = vld [vmem:[%s0] sm:$0xff]
    %v34 = vld [vmem:[%s0 + $0x8] sm:$0xff]
    %vm35 = vcmp.ge.s32.totalorder %v32, 30
    %v36 = vsel %vm35, 0.0, %v33
    %v37 = vsel %vm35, 0.0, %v34
    %vm38 = vcmp.eq.s32.totalorder %v32, 31
    %v39 = vsel %vm38, 1.0, %v36
    %v40 = vsel %vm38, 1.0, %v37
    %v41 = vld [vmem:[%s1] sm:$0xff]
    %v42 = vld [vmem:[%s1 + $0x8] sm:$0xff]
    %v43 = vld [vmem:[%s1 + $0x10] sm:$0xff]
    %v44 = vld [vmem:[%s1 + $0x18] sm:$0xff]
    %v45 = vld [vmem:[%s3] sm:$0xff]
    %v46 = vld [vmem:[%s3 + $0x8] sm:$0xff]
    %v47 = vld [vmem:[%s3 + $0x10] sm:$0xff]
    %v48 = vld [vmem:[%s3 + $0x18] sm:$0xff]
    %v49 = vld [vmem:[%s2] sm:$0x1]
    %v50 = vld [vmem:[%s4] sm:$0x1]
    %v51 = vld [vmem:[%s5] sm:$0x3]
    %v52 = vld [vmem:[%s6] sm:$0x1]
    %v54 = vlaneseq
    %v55 = vshrl.u32 %v54, 7
    %v56 = vsub.s32 0, %v55
    %v57 = vrot.slane %v49, %v56
    %vm59 = vcmask 261120
    %v61 = vsel %vm59, %v39, 0
    %v64 = vsel %vm59, %v40, 0
    %66 = vmatprep.subr.mxu0 0.0
    %67 = vmatpush1.msra.mxu0 0.0
    %68 = vmatprep.subr.mxu0 0.0
    %69 = vmatpush1.msra.mxu0 0.0
    %70 = vmatprep.subr.mxu0 0.0
    %71 = vmatpush1.msra.mxu0 0.0
    %72 = vmatprep.subr.mxu0 0.0
    %73 = vmatpush1.msra.mxu0 0.0
    %74 = vmatprep.subr.mxu0 0.0
    %75 = vmatpush1.msra.mxu0 0.0
    %76 = vmatprep.subr.mxu0 0.0
    %77 = vmatpush1.msra.mxu0 0.0
    %78 = vmatprep.subr.mxu0 0.0
    %79 = vmatpush1.msra.mxu0 0.0
    %80 = vmatprep.subr.mxu0 0.0
    %81 = vmatpush1.msra.mxu0 0.0
    %82 = vmatprep.subr.mxu0 0.0
    %83 = vmatpush1.msra.mxu0 0.0
    %84 = vmatprep.subr.mxu0 0.0
    %85 = vmatpush1.msra.mxu0 0.0
    %86 = vmatprep.subr.mxu0 0.0
    %87 = vmatpush1.msra.mxu0 0.0
    %88 = vmatprep.subr.mxu0 0.0
    %89 = vmatpush1.msra.mxu0 0.0
    %90 = vmatprep.subr.mxu0 0.0
    %91 = vmatpush1.msra.mxu0 %v44
    %92 = vmatprep.subr.mxu0 0.0
    %93 = vmatpush1.msra.mxu0 %v43
    %94 = vmatprep.subr.mxu0 0.0
    %95 = vmatpush1.msra.mxu0 %v42
    %96 = vmatprep.subr.mxu0 0.0
    %97 = vmatpush1.msra.mxu0 %v41
    %98 = vmatprep.subr.mxu0 0.0
    %99 = vmatpush2.msra.mxu0 0.0
    %100 = vmatprep.subr.mxu0 0.0
    %101 = vmatpush2.msra.mxu0 0.0
    %102 = vmatprep.subr.mxu0 0.0
    %103 = vmatpush2.msra.mxu0 0.0
    %104 = vmatprep.subr.mxu0 0.0
    %105 = vmatpush2.msra.mxu0 0.0
    %106 = vmatprep.subr.mxu0 0.0
    %107 = vmatpush2.msra.mxu0 0.0
    %108 = vmatprep.subr.mxu0 0.0
    %109 = vmatpush2.msra.mxu0 0.0
    %110 = vmatprep.subr.mxu0 0.0
    %111 = vmatpush2.msra.mxu0 0.0
    %112 = vmatprep.subr.mxu0 0.0
    %113 = vmatpush2.msra.mxu0 0.0
    %114 = vmatprep.subr.mxu0 0.0
    %115 = vmatpush2.msra.mxu0 0.0
    %116 = vmatprep.subr.mxu0 0.0
    %117 = vmatpush2.msra.mxu0 0.0
    %118 = vmatprep.subr.mxu0 0.0
    %119 = vmatpush2.msra.mxu0 0.0
    %120 = vmatprep.subr.mxu0 0.0
    %121 = vmatpush2.msra.mxu0 0.0
    %122 = vmatprep.subr.mxu0 0.0
    %123 = vmatpush2.msra.mxu0 0.0
    %124 = vmatprep.subr.mxu0 0.0
    %125 = vmatpush2.msra.mxu0 0.0
    %126 = vmatprep.subr.mxu0 0.0
    %127 = vmatpush2.msra.mxu0 0.0
    %128 = vmatprep.subr.mxu0 0.0
    %129 = vmatpush2.msra.mxu0 0.0
    %130 = vmatprep.mubr.f32.mxu0 0.0
    %131 = vmatmul.mubr.f32.gmra.mxu0 %v61
    %v132 = vpop.f32.mrf.mxu0
    %v133 = vadd.f32 %v57, %v132
    %v134 = vpop.f32.mrf.mxu0
    %135 = vmatprep.mubr.f32.mxu0 0.0
    %136 = vmatmul.mubr.f32.gmra.mxu0 %v64
    %v137 = vpop.f32.mrf.mxu0
    %v138 = vadd.f32 %v57, %v137
    %v139 = vpop.f32.mrf.mxu0
    %140 = vdwg.mxu0
    %v142 = vlaneseq
    %v143 = vshrl.u32 %v142, 7
    %v144 = vsub.s32 0, %v143
    %v145 = vrot.slane %v50, %v144
    %147 = vmatprep.subr.mxu0 0.0
    %148 = vmatpush1.msra.mxu0 0.0
    %149 = vmatprep.subr.mxu0 0.0
    %150 = vmatpush1.msra.mxu0 0.0
    %151 = vmatprep.subr.mxu0 0.0
    %152 = vmatpush1.msra.mxu0 0.0
    %153 = vmatprep.subr.mxu0 0.0
    %154 = vmatpush1.msra.mxu0 0.0
    %155 = vmatprep.subr.mxu0 0.0
    %156 = vmatpush1.msra.mxu0 0.0
    %157 = vmatprep.subr.mxu0 0.0
    %158 = vmatpush1.msra.mxu0 0.0
    %159 = vmatprep.subr.mxu0 0.0
    %160 = vmatpush1.msra.mxu0 0.0
    %161 = vmatprep.subr.mxu0 0.0
    %162 = vmatpush1.msra.mxu0 0.0
    %163 = vmatprep.subr.mxu0 0.0
    %164 = vmatpush1.msra.mxu0 0.0
    %165 = vmatprep.subr.mxu0 0.0
    %166 = vmatpush1.msra.mxu0 0.0
    %167 = vmatprep.subr.mxu0 0.0
    %168 = vmatpush1.msra.mxu0 0.0
    %169 = vmatprep.subr.mxu0 0.0
    %170 = vmatpush1.msra.mxu0 0.0
    %171 = vmatprep.subr.mxu0 0.0
    %172 = vmatpush1.msra.mxu0 %v48
    %173 = vmatprep.subr.mxu0 0.0
    %174 = vmatpush1.msra.mxu0 %v47
    %175 = vmatprep.subr.mxu0 0.0
    %176 = vmatpush1.msra.mxu0 %v46
    %177 = vmatprep.subr.mxu0 0.0
    %178 = vmatpush1.msra.mxu0 %v45
    %179 = vmatprep.subr.mxu0 0.0
    %180 = vmatpush2.msra.mxu0 0.0
    %181 = vmatprep.subr.mxu0 0.0
    %182 = vmatpush2.msra.mxu0 0.0
    %183 = vmatprep.subr.mxu0 0.0
    %184 = vmatpush2.msra.mxu0 0.0
    %185 = vmatprep.subr.mxu0 0.0
    %186 = vmatpush2.msra.mxu0 0.0
    %187 = vmatprep.subr.mxu0 0.0
    %188 = vmatpush2.msra.mxu0 0.0
    %189 = vmatprep.subr.mxu0 0.0
    %190 = vmatpush2.msra.mxu0 0.0
    %191 = vmatprep.subr.mxu0 0.0
    %192 = vmatpush2.msra.mxu0 0.0
    %193 = vmatprep.subr.mxu0 0.0
    %194 = vmatpush2.msra.mxu0 0.0
    %195 = vmatprep.subr.mxu0 0.0
    %196 = vmatpush2.msra.mxu0 0.0
    %197 = vmatprep.subr.mxu0 0.0
    %198 = vmatpush2.msra.mxu0 0.0
    %199 = vmatprep.subr.mxu0 0.0
    %200 = vmatpush2.msra.mxu0 0.0
    %201 = vmatprep.subr.mxu0 0.0
    %202 = vmatpush2.msra.mxu0 0.0
    %203 = vmatprep.subr.mxu0 0.0
    %204 = vmatpush2.msra.mxu0 0.0
    %205 = vmatprep.subr.mxu0 0.0
    %206 = vmatpush2.msra.mxu0 0.0
    %207 = vmatprep.subr.mxu0 0.0
    %208 = vmatpush2.msra.mxu0 0.0
    %209 = vmatprep.subr.mxu0 0.0
    %210 = vmatpush2.msra.mxu0 0.0
    %211 = vmatprep.mubr.f32.mxu0 0.0
    %212 = vmatmul.mubr.f32.gmra.mxu0 %v61
    %v213 = vpop.f32.mrf.mxu0
    %v214 = vadd.f32 %v145, %v213
    %v215 = vpop.f32.mrf.mxu0
    %216 = vmatprep.mubr.f32.mxu0 0.0
    %217 = vmatmul.mubr.f32.gmra.mxu0 %v64
    %v218 = vpop.f32.mrf.mxu0
    %v219 = vadd.f32 %v145, %v218
    %v220 = vpop.f32.mrf.mxu0
    %221 = vdwg.mxu0
    %v223 = vlaneseq
    %v224 = vshrl.u32 %v223, 7
    %v225 = vsub.s32 0, %v224
    %v226 = vrot.slane %v52, %v225
    %v228 = vmul.f32 %v214, %v226
    %v229 = vmul.f32 %v219, %v226
    %v230 = vlaneseq
    %v231 = vshrl.u32 %v230, 7
    %v232 = vsub.s32 0, %v231
    %v233 = vrot.slane %v51, %v232
    %v234 = vmul.f32 %v39, %v233
    %v236 = vcombine.high %v133, %v133
    %v238 = vunpack.c.l.s4 1966171168
    %v239 = vunpack.c.0.s8 %v238
    %v240 = vlaneseq
    %v241 = vshrl.u32 %v240, 7
    %v242 = vsub.s32 %v239, %v241
    %v243 = vrot.slane %v133, %v242
    %v245 = vunpack.c.l.s4 1966171168
    %v246 = vunpack.c.0.s8 %v245
    %v247 = vlaneseq
    %v248 = vshrl.u32 %v247, 7
    %v249 = vsub.s32 %v246, %v248
    %v250 = vrot.slane %v236, %v249
    %v251 = vcombine.high %v243, %v243
    %v252 = vcombine.high %v250, %v250
    %v254 = vunpack.c.l.s4 1966171168
    %v255 = vunpack.c.0.s8 %v254
    %v256 = vlaneseq
    %v257 = vshrl.u32 %v256, 7
    %v258 = vsub.s32 %v255, %v257
    %v259 = vrot.slane %v243, %v258
    %v261 = vunpack.c.l.s4 1966171168
    %v262 = vunpack.c.0.s8 %v261
    %v263 = vlaneseq
    %v264 = vshrl.u32 %v263, 7
    %v265 = vsub.s32 %v262, %v264
    %v266 = vrot.slane %v250, %v265
    %v268 = vunpack.c.l.s4 1966171168
    %v269 = vunpack.c.0.s8 %v268
    %v270 = vlaneseq
    %v271 = vshrl.u32 %v270, 7
    %v272 = vsub.s32 %v269, %v271
    %v273 = vrot.slane %v251, %v272
    %v275 = vunpack.c.l.s4 1966171168
    %v276 = vunpack.c.0.s8 %v275
    %v277 = vlaneseq
    %v278 = vshrl.u32 %v277, 7
    %v279 = vsub.s32 %v276, %v278
    %v280 = vrot.slane %v252, %v279
    %v281 = vcombine.high %v259, %v259
    %v282 = vcombine.high %v266, %v266
    %v283 = vcombine.high %v273, %v273
    %v284 = vcombine.high %v280, %v280
    %v285 = vlaneseq
    %v286 = vshrl.u32 %v285, 7
    %v287 = vsub.s32 0, %v286
    %v288 = vrot.slane %v259, %v287
    %v289 = vlaneseq
    %v290 = vshrl.u32 %v289, 7
    %v291 = vsub.s32 0, %v290
    %v292 = vrot.slane %v273, %v291
    %v293 = vlaneseq
    %v294 = vshrl.u32 %v293, 7
    %v295 = vsub.s32 0, %v294
    %v296 = vrot.slane %v281, %v295
    %v297 = vlaneseq
    %v298 = vshrl.u32 %v297, 7
    %v299 = vsub.s32 0, %v298
    %v300 = vrot.slane %v283, %v299
    %v301 = vlaneseq
    %v302 = vshrl.u32 %v301, 7
    %v303 = vsub.s32 0, %v302
    %v304 = vrot.slane %v266, %v303
    %v305 = vlaneseq
    %v306 = vshrl.u32 %v305, 7
    %v307 = vsub.s32 0, %v306
    %v308 = vrot.slane %v280, %v307
    %v309 = vlaneseq
    %v310 = vshrl.u32 %v309, 7
    %v311 = vsub.s32 0, %v310
    %v312 = vrot.slane %v282, %v311
    %v313 = vlaneseq
    %v314 = vshrl.u32 %v313, 7
    %v315 = vsub.s32 0, %v314
    %v316 = vrot.slane %v284, %v315
    %v325 = vsub.f32 %v288, %v234
    %v326 = vsub.f32 %v292, %v234
    %v327 = vsub.f32 %v296, %v234
    %v328 = vsub.f32 %v300, %v234
    %v329 = vsub.f32 %v304, %v234
    %v330 = vsub.f32 %v308, %v234
    %v331 = vsub.f32 %v312, %v234
    %v332 = vsub.f32 %v316, %v234
    %v333 = vand.u32 2147483647, %v325
    %v334 = vand.u32 2147483647, %v326
    %v335 = vand.u32 2147483647, %v327
    %v336 = vand.u32 2147483647, %v328
    %v337 = vand.u32 2147483647, %v329
    %v338 = vand.u32 2147483647, %v330
    %v339 = vand.u32 2147483647, %v331
    %v340 = vand.u32 2147483647, %v332
    %v342 = vsel %vm59, %v333, 0
    %v345 = vsel %vm59, %v334, 0
    %v348 = vsel %vm59, %v335, 0
    %v351 = vsel %vm59, %v336, 0
    %v354 = vsel %vm59, %v337, 0
    %v357 = vsel %vm59, %v338, 0
    %v360 = vsel %vm59, %v339, 0
    %v363 = vsel %vm59, %v340, 0
    %365 = vmatprep.subr.mxu0 0.0
    %366 = vmatpush1.msra.mxu0 0.0
    %367 = vmatprep.subr.mxu0 0.0
    %368 = vmatpush1.msra.mxu0 0.0
    %369 = vmatprep.subr.mxu0 0.0
    %370 = vmatpush1.msra.mxu0 0.0
    %371 = vmatprep.subr.mxu0 0.0
    %372 = vmatpush1.msra.mxu0 0.0
    %373 = vmatprep.subr.mxu0 0.0
    %374 = vmatpush1.msra.mxu0 0.0
    %375 = vmatprep.subr.mxu0 0.0
    %376 = vmatpush1.msra.mxu0 0.0
    %377 = vmatprep.subr.mxu0 0.0
    %378 = vmatpush1.msra.mxu0 0.0
    %379 = vmatprep.subr.mxu0 0.0
    %380 = vmatpush1.msra.mxu0 0.0
    %381 = vmatprep.subr.mxu0 0.0
    %382 = vmatpush1.msra.mxu0 0.0
    %383 = vmatprep.subr.mxu0 0.0
    %384 = vmatpush1.msra.mxu0 0.0
    %385 = vmatprep.subr.mxu0 0.0
    %386 = vmatpush1.msra.mxu0 0.0
    %387 = vmatprep.subr.mxu0 0.0
    %388 = vmatpush1.msra.mxu0 0.0
    %389 = vmatprep.subr.mxu0 0.0
    %390 = vmatpush1.msra.mxu0 -0.17677669
    %391 = vmatprep.subr.mxu0 0.0
    %392 = vmatpush1.msra.mxu0 -0.17677669
    %393 = vmatprep.subr.mxu0 0.0
    %394 = vmatpush1.msra.mxu0 -0.17677669
    %395 = vmatprep.subr.mxu0 0.0
    %396 = vmatpush1.msra.mxu0 -0.17677669
    %397 = vmatprep.subr.mxu0 0.0
    %398 = vmatpush2.msra.mxu0 0.0
    %399 = vmatprep.subr.mxu0 0.0
    %400 = vmatpush2.msra.mxu0 0.0
    %401 = vmatprep.subr.mxu0 0.0
    %402 = vmatpush2.msra.mxu0 0.0
    %403 = vmatprep.subr.mxu0 0.0
    %404 = vmatpush2.msra.mxu0 0.0
    %405 = vmatprep.subr.mxu0 0.0
    %406 = vmatpush2.msra.mxu0 0.0
    %407 = vmatprep.subr.mxu0 0.0
    %408 = vmatpush2.msra.mxu0 0.0
    %409 = vmatprep.subr.mxu0 0.0
    %410 = vmatpush2.msra.mxu0 0.0
    %411 = vmatprep.subr.mxu0 0.0
    %412 = vmatpush2.msra.mxu0 0.0
    %413 = vmatprep.subr.mxu0 0.0
    %414 = vmatpush2.msra.mxu0 0.0
    %415 = vmatprep.subr.mxu0 0.0
    %416 = vmatpush2.msra.mxu0 0.0
    %417 = vmatprep.subr.mxu0 0.0
    %418 = vmatpush2.msra.mxu0 0.0
    %419 = vmatprep.subr.mxu0 0.0
    %420 = vmatpush2.msra.mxu0 0.0
    %421 = vmatprep.subr.mxu0 0.0
    %422 = vmatpush2.msra.mxu0 0.0
    %423 = vmatprep.subr.mxu0 0.0
    %424 = vmatpush2.msra.mxu0 0.0
    %425 = vmatprep.subr.mxu0 0.0
    %426 = vmatpush2.msra.mxu0 0.0
    %427 = vmatprep.subr.mxu0 0.0
    %428 = vmatpush2.msra.mxu0 0.0
    %429 = vmatprep.mubr.f32.mxu0 0.0
    %430 = vmatmul.mubr.f32.gmra.mxu0 %v342
    %v431 = vpop.f32.mrf.mxu0
    %v432 = vadd.f32 0.0, %v431
    %v433 = vpop.f32.mrf.mxu0
    %434 = vmatprep.mubr.f32.mxu0 0.0
    %435 = vmatmul.mubr.f32.gmra.mxu0 %v345
    %v436 = vpop.f32.mrf.mxu0
    %v437 = vadd.f32 0.0, %v436
    %v438 = vpop.f32.mrf.mxu0
    %439 = vmatprep.mubr.f32.mxu0 0.0
    %440 = vmatmul.mubr.f32.gmra.mxu0 %v348
    %v441 = vpop.f32.mrf.mxu0
    %v442 = vadd.f32 0.0, %v441
    %v443 = vpop.f32.mrf.mxu0
    %444 = vmatprep.mubr.f32.mxu0 0.0
    %445 = vmatmul.mubr.f32.gmra.mxu0 %v351
    %v446 = vpop.f32.mrf.mxu0
    %v447 = vadd.f32 0.0, %v446
    %v448 = vpop.f32.mrf.mxu0
    %449 = vmatprep.mubr.f32.mxu0 0.0
    %450 = vmatmul.mubr.f32.gmra.mxu0 %v354
    %v451 = vpop.f32.mrf.mxu0
    %v452 = vadd.f32 0.0, %v451
    %v453 = vpop.f32.mrf.mxu0
    %454 = vmatprep.mubr.f32.mxu0 0.0
    %455 = vmatmul.mubr.f32.gmra.mxu0 %v357
    %v456 = vpop.f32.mrf.mxu0
    %v457 = vadd.f32 0.0, %v456
    %v458 = vpop.f32.mrf.mxu0
    %459 = vmatprep.mubr.f32.mxu0 0.0
    %460 = vmatmul.mubr.f32.gmra.mxu0 %v360
    %v461 = vpop.f32.mrf.mxu0
    %v462 = vadd.f32 0.0, %v461
    %v463 = vpop.f32.mrf.mxu0
    %464 = vmatprep.mubr.f32.mxu0 0.0
    %465 = vmatmul.mubr.f32.gmra.mxu0 %v363
    %v466 = vpop.f32.mrf.mxu0
    %v467 = vadd.f32 0.0, %v466
    %v468 = vpop.f32.mrf.mxu0
    %469 = vdwg.mxu0
    %478 = vset.pattern.permute.xlu0 0
    %479 = vperm.xlu0 %478, %v432
    %v480 = vpop.permute.xlu0 %479
    %481 = vset.pattern.permute.xlu0 0
    %482 = vperm.xlu0 %481, %v437
    %v483 = vpop.permute.xlu0 %482
    %484 = vset.pattern.permute.xlu0 0
    %485 = vperm.xlu0 %484, %v442
    %v486 = vpop.permute.xlu0 %485
    %487 = vset.pattern.permute.xlu0 0
    %488 = vperm.xlu0 %487, %v447
    %v489 = vpop.permute.xlu0 %488
    %490 = vset.pattern.permute.xlu0 0
    %491 = vperm.xlu0 %490, %v452
    %v492 = vpop.permute.xlu0 %491
    %493 = vset.pattern.permute.xlu0 0
    %494 = vperm.xlu0 %493, %v457
    %v495 = vpop.permute.xlu0 %494
    %496 = vset.pattern.permute.xlu0 0
    %497 = vperm.xlu0 %496, %v462
    %v498 = vpop.permute.xlu0 %497
    %499 = vset.pattern.permute.xlu0 0
    %500 = vperm.xlu0 %499, %v467
    %v501 = vpop.permute.xlu0 %500
    %v502 = vlaneseq
    %v503 = vshrl.u32 %v502, 7
    %v504 = vsub.s32 %v32, %v503
    %v505 = vrot.slane %v480, %v504
    %v506 = vlaneseq
    %v507 = vshrl.u32 %v506, 7
    %v508 = vsub.s32 %v32, %v507
    %v509 = vrot.slane %v483, %v508
    %v510 = vlaneseq
    %v511 = vshrl.u32 %v510, 7
    %v512 = vsub.s32 %v32, %v511
    %v513 = vrot.slane %v486, %v512
    %v514 = vlaneseq
    %v515 = vshrl.u32 %v514, 7
    %v516 = vsub.s32 %v32, %v515
    %v517 = vrot.slane %v489, %v516
    %v518 = vlaneseq
    %v519 = vshrl.u32 %v518, 7
    %v520 = vsub.s32 %v32, %v519
    %v521 = vrot.slane %v492, %v520
    %v522 = vlaneseq
    %v523 = vshrl.u32 %v522, 7
    %v524 = vsub.s32 %v32, %v523
    %v525 = vrot.slane %v495, %v524
    %v526 = vlaneseq
    %v527 = vshrl.u32 %v526, 7
    %v528 = vsub.s32 %v32, %v527
    %v529 = vrot.slane %v498, %v528
    %v530 = vlaneseq
    %v531 = vshrl.u32 %v530, 7
    %v532 = vsub.s32 %v32, %v531
    %v533 = vrot.slane %v501, %v532
    %vm534 = vcmask 1041409
    %v535 = vsel %vm534, %v509, %v505
    %vm536 = vcmask 1042434
    %v537 = vsel %vm536, %v513, %v535
    %vm538 = vcmask 1043459
    %v539 = vsel %vm538, %v517, %v537
    %vm540 = vcmask 1044484
    %v541 = vsel %vm540, %v521, %v539
    %vm542 = vcmask 1045509
    %v543 = vsel %vm542, %v525, %v541
    %vm544 = vcmask 1046534
    %v545 = vsel %vm544, %v529, %v543
    %vm546 = vcmask 1047559
    %v547 = vsel %vm546, %v533, %v545
    %vm549 = vcmask 64512
    %v550 = vsel %vm549, %v547, -inf
    %551 = vmax.xlane.f32.xlu0 %v550
    %v552 = vpop.xlane.xlu0 %551
    %v554 = vlaneseq
    %v555 = vshrl.u32 %v554, 7
    %v556 = vsub.s32 0, %v555
    %v557 = vrot.slane %v552, %v556
    %v558 = vlaneseq
    %v559 = vshrl.u32 %v558, 7
    %v560 = vsub.s32 1, %v559
    %v561 = vrot.slane %v552, %v560
    %v562 = vlaneseq
    %v563 = vshrl.u32 %v562, 7
    %v564 = vsub.s32 2, %v563
    %v565 = vrot.slane %v552, %v564
    %v566 = vlaneseq
    %v567 = vshrl.u32 %v566, 7
    %v568 = vsub.s32 3, %v567
    %v569 = vrot.slane %v552, %v568
    %v570 = vlaneseq
    %v571 = vshrl.u32 %v570, 7
    %v572 = vsub.s32 4, %v571
    %v573 = vrot.slane %v552, %v572
    %v574 = vlaneseq
    %v575 = vshrl.u32 %v574, 7
    %v576 = vsub.s32 5, %v575
    %v577 = vrot.slane %v552, %v576
    %v578 = vlaneseq
    %v579 = vshrl.u32 %v578, 7
    %v580 = vsub.s32 6, %v579
    %v581 = vrot.slane %v552, %v580
    %v582 = vlaneseq
    %v583 = vshrl.u32 %v582, 7
    %v584 = vsub.s32 7, %v583
    %v585 = vrot.slane %v552, %v584
    %v594 = vsub.f32 %v432, %v557
    %v595 = vsub.f32 %v437, %v561
    %v596 = vsub.f32 %v442, %v565
    %v597 = vsub.f32 %v447, %v569
    %v598 = vsub.f32 %v452, %v573
    %v599 = vsub.f32 %v457, %v577
    %v600 = vsub.f32 %v462, %v581
    %v601 = vsub.f32 %v467, %v585
    %v602 = vmul.f32 %v594, 1.442695
    %v603 = vpow.pop %v602
    %v604 = vmul.f32 %v595, 1.442695
    %v605 = vpow.pop %v604
    %v606 = vmul.f32 %v596, 1.442695
    %v607 = vpow.pop %v606
    %v608 = vmul.f32 %v597, 1.442695
    %v609 = vpow.pop %v608
    %v610 = vmul.f32 %v598, 1.442695
    %v611 = vpow.pop %v610
    %v612 = vmul.f32 %v599, 1.442695
    %v613 = vpow.pop %v612
    %v614 = vmul.f32 %v600, 1.442695
    %v615 = vpow.pop %v614
    %v616 = vmul.f32 %v601, 1.442695
    %v617 = vpow.pop %v616
    %626 = vset.pattern.permute.xlu0 0
    %627 = vperm.xlu0 %626, %v603
    %v628 = vpop.permute.xlu0 %627
    %629 = vset.pattern.permute.xlu0 0
    %630 = vperm.xlu0 %629, %v605
    %v631 = vpop.permute.xlu0 %630
    %632 = vset.pattern.permute.xlu0 0
    %633 = vperm.xlu0 %632, %v607
    %v634 = vpop.permute.xlu0 %633
    %635 = vset.pattern.permute.xlu0 0
    %636 = vperm.xlu0 %635, %v609
    %v637 = vpop.permute.xlu0 %636
    %638 = vset.pattern.permute.xlu0 0
    %639 = vperm.xlu0 %638, %v611
    %v640 = vpop.permute.xlu0 %639
    %641 = vset.pattern.permute.xlu0 0
    %642 = vperm.xlu0 %641, %v613
    %v643 = vpop.permute.xlu0 %642
    %644 = vset.pattern.permute.xlu0 0
    %645 = vperm.xlu0 %644, %v615
    %v646 = vpop.permute.xlu0 %645
    %647 = vset.pattern.permute.xlu0 0
    %648 = vperm.xlu0 %647, %v617
    %v649 = vpop.permute.xlu0 %648
    %v650 = vlaneseq
    %v651 = vshrl.u32 %v650, 7
    %v652 = vsub.s32 %v32, %v651
    %v653 = vrot.slane %v628, %v652
    %v654 = vlaneseq
    %v655 = vshrl.u32 %v654, 7
    %v656 = vsub.s32 %v32, %v655
    %v657 = vrot.slane %v631, %v656
    %v658 = vlaneseq
    %v659 = vshrl.u32 %v658, 7
    %v660 = vsub.s32 %v32, %v659
    %v661 = vrot.slane %v634, %v660
    %v662 = vlaneseq
    %v663 = vshrl.u32 %v662, 7
    %v664 = vsub.s32 %v32, %v663
    %v665 = vrot.slane %v637, %v664
    %v666 = vlaneseq
    %v667 = vshrl.u32 %v666, 7
    %v668 = vsub.s32 %v32, %v667
    %v669 = vrot.slane %v640, %v668
    %v670 = vlaneseq
    %v671 = vshrl.u32 %v670, 7
    %v672 = vsub.s32 %v32, %v671
    %v673 = vrot.slane %v643, %v672
    %v674 = vlaneseq
    %v675 = vshrl.u32 %v674, 7
    %v676 = vsub.s32 %v32, %v675
    %v677 = vrot.slane %v646, %v676
    %v678 = vlaneseq
    %v679 = vshrl.u32 %v678, 7
    %v680 = vsub.s32 %v32, %v679
    %v681 = vrot.slane %v649, %v680
    %v682 = vsel %vm534, %v657, %v653
    %v683 = vsel %vm536, %v661, %v682
    %v684 = vsel %vm538, %v665, %v683
    %v685 = vsel %vm540, %v669, %v684
    %v686 = vsel %vm542, %v673, %v685
    %v687 = vsel %vm544, %v677, %v686
    %v688 = vsel %vm546, %v681, %v687
    %v690 = vsel %vm549, %v688, 0.0
    %691 = vadd.xlane.f32.xlu0 %v690
    %v692 = vpop.xlane.xlu0 %691
    %v694 = vlaneseq
    %v695 = vshrl.u32 %v694, 7
    %v696 = vsub.s32 0, %v695
    %v697 = vrot.slane %v692, %v696
    %v698 = vlaneseq
    %v699 = vshrl.u32 %v698, 7
    %v700 = vsub.s32 1, %v699
    %v701 = vrot.slane %v692, %v700
    %v702 = vlaneseq
    %v703 = vshrl.u32 %v702, 7
    %v704 = vsub.s32 2, %v703
    %v705 = vrot.slane %v692, %v704
    %v706 = vlaneseq
    %v707 = vshrl.u32 %v706, 7
    %v708 = vsub.s32 3, %v707
    %v709 = vrot.slane %v692, %v708
    %v710 = vlaneseq
    %v711 = vshrl.u32 %v710, 7
    %v712 = vsub.s32 4, %v711
    %v713 = vrot.slane %v692, %v712
    %v714 = vlaneseq
    %v715 = vshrl.u32 %v714, 7
    %v716 = vsub.s32 5, %v715
    %v717 = vrot.slane %v692, %v716
    %v718 = vlaneseq
    %v719 = vshrl.u32 %v718, 7
    %v720 = vsub.s32 6, %v719
    %v721 = vrot.slane %v692, %v720
    %v722 = vlaneseq
    %v723 = vshrl.u32 %v722, 7
    %v724 = vsub.s32 7, %v723
    %v725 = vrot.slane %v692, %v724
    %v734 = vrcp.pop %v697
    %v735 = vmul.f32 %v603, %v734
    %v736 = vrcp.pop %v701
    %v737 = vmul.f32 %v605, %v736
    %v738 = vrcp.pop %v705
    %v739 = vmul.f32 %v607, %v738
    %v740 = vrcp.pop %v709
    %v741 = vmul.f32 %v609, %v740
    %v742 = vrcp.pop %v713
    %v743 = vmul.f32 %v611, %v742
    %v744 = vrcp.pop %v717
    %v745 = vmul.f32 %v613, %v744
    %v746 = vrcp.pop %v721
    %v747 = vmul.f32 %v615, %v746
    %v748 = vrcp.pop %v725
    %v749 = vmul.f32 %v617, %v748
    %v750 = vlaneseq
    %v751 = vshrl.u32 %v750, 7
    %v752 = vsub.s32 1, %v751
    %v753 = vrot.slane %v51, %v752
    %v754 = vmul.f32 %v39, %v753
    %756 = vrot.lane.b32.xlu0 %v754, 32
    %v757 = vpop.permute.xlu0 %756
    %v759 = vsub.f32 %v288, %v757
    %v760 = vsub.f32 %v292, %v757
    %v761 = vsub.f32 %v296, %v757
    %v762 = vsub.f32 %v300, %v757
    %v763 = vsub.f32 %v304, %v757
    %v764 = vsub.f32 %v308, %v757
    %v765 = vsub.f32 %v312, %v757
    %v766 = vsub.f32 %v316, %v757
    %v767 = vand.u32 2147483647, %v759
    %v768 = vand.u32 2147483647, %v760
    %v769 = vand.u32 2147483647, %v761
    %v770 = vand.u32 2147483647, %v762
    %v771 = vand.u32 2147483647, %v763
    %v772 = vand.u32 2147483647, %v764
    %v773 = vand.u32 2147483647, %v765
    %v774 = vand.u32 2147483647, %v766
    %783 = vrot.lane.b32.xlu0 %v767, 96
    %v784 = vpop.permute.xlu0 %783
    %785 = vrot.lane.b32.xlu0 %v768, 96
    %v786 = vpop.permute.xlu0 %785
    %787 = vrot.lane.b32.xlu0 %v769, 96
    %v788 = vpop.permute.xlu0 %787
    %789 = vrot.lane.b32.xlu0 %v770, 96
    %v790 = vpop.permute.xlu0 %789
    %791 = vrot.lane.b32.xlu0 %v771, 96
    %v792 = vpop.permute.xlu0 %791
    %793 = vrot.lane.b32.xlu0 %v772, 96
    %v794 = vpop.permute.xlu0 %793
    %795 = vrot.lane.b32.xlu0 %v773, 96
    %v796 = vpop.permute.xlu0 %795
    %797 = vrot.lane.b32.xlu0 %v774, 96
    %v798 = vpop.permute.xlu0 %797
    %v799 = vsel %vm59, %v784, 0
    %v801 = vsel %vm59, %v786, 0
    %v803 = vsel %vm59, %v788, 0
    %v805 = vsel %vm59, %v790, 0
    %v807 = vsel %vm59, %v792, 0
    %v809 = vsel %vm59, %v794, 0
    %v811 = vsel %vm59, %v796, 0
    %v813 = vsel %vm59, %v798, 0
    %815 = vmatprep.subr.mxu0 0.0
    %816 = vmatpush1.msra.mxu0 0.0
    %817 = vmatprep.subr.mxu0 0.0
    %818 = vmatpush1.msra.mxu0 0.0
    %819 = vmatprep.subr.mxu0 0.0
    %820 = vmatpush1.msra.mxu0 0.0
    %821 = vmatprep.subr.mxu0 0.0
    %822 = vmatpush1.msra.mxu0 0.0
    %823 = vmatprep.subr.mxu0 0.0
    %824 = vmatpush1.msra.mxu0 0.0
    %825 = vmatprep.subr.mxu0 0.0
    %826 = vmatpush1.msra.mxu0 0.0
    %827 = vmatprep.subr.mxu0 0.0
    %828 = vmatpush1.msra.mxu0 0.0
    %829 = vmatprep.subr.mxu0 0.0
    %830 = vmatpush1.msra.mxu0 0.0
    %831 = vmatprep.subr.mxu0 0.0
    %832 = vmatpush1.msra.mxu0 0.0
    %833 = vmatprep.subr.mxu0 0.0
    %834 = vmatpush1.msra.mxu0 0.0
    %835 = vmatprep.subr.mxu0 0.0
    %836 = vmatpush1.msra.mxu0 0.0
    %837 = vmatprep.subr.mxu0 0.0
    %838 = vmatpush1.msra.mxu0 0.0
    %839 = vmatprep.subr.mxu0 0.0
    %840 = vmatpush1.msra.mxu0 -0.17677669
    %841 = vmatprep.subr.mxu0 0.0
    %842 = vmatpush1.msra.mxu0 -0.17677669
    %843 = vmatprep.subr.mxu0 0.0
    %844 = vmatpush1.msra.mxu0 -0.17677669
    %845 = vmatprep.subr.mxu0 0.0
    %846 = vmatpush1.msra.mxu0 -0.17677669
    %847 = vmatprep.subr.mxu0 0.0
    %848 = vmatpush2.msra.mxu0 0.0
    %849 = vmatprep.subr.mxu0 0.0
    %850 = vmatpush2.msra.mxu0 0.0
    %851 = vmatprep.subr.mxu0 0.0
    %852 = vmatpush2.msra.mxu0 0.0
    %853 = vmatprep.subr.mxu0 0.0
    %854 = vmatpush2.msra.mxu0 0.0
    %855 = vmatprep.subr.mxu0 0.0
    %856 = vmatpush2.msra.mxu0 0.0
    %857 = vmatprep.subr.mxu0 0.0
    %858 = vmatpush2.msra.mxu0 0.0
    %859 = vmatprep.subr.mxu0 0.0
    %860 = vmatpush2.msra.mxu0 0.0
    %861 = vmatprep.subr.mxu0 0.0
    %862 = vmatpush2.msra.mxu0 0.0
    %863 = vmatprep.subr.mxu0 0.0
    %864 = vmatpush2.msra.mxu0 0.0
    %865 = vmatprep.subr.mxu0 0.0
    %866 = vmatpush2.msra.mxu0 0.0
    %867 = vmatprep.subr.mxu0 0.0
    %868 = vmatpush2.msra.mxu0 0.0
    %869 = vmatprep.subr.mxu0 0.0
    %870 = vmatpush2.msra.mxu0 0.0
    %871 = vmatprep.subr.mxu0 0.0
    %872 = vmatpush2.msra.mxu0 0.0
    %873 = vmatprep.subr.mxu0 0.0
    %874 = vmatpush2.msra.mxu0 0.0
    %875 = vmatprep.subr.mxu0 0.0
    %876 = vmatpush2.msra.mxu0 0.0
    %877 = vmatprep.subr.mxu0 0.0
    %878 = vmatpush2.msra.mxu0 0.0
    %879 = vmatprep.mubr.f32.mxu0 0.0
    %880 = vmatmul.mubr.f32.gmra.mxu0 %v799
    %v881 = vpop.f32.mrf.mxu0
    %v882 = vadd.f32 0.0, %v881
    %v883 = vpop.f32.mrf.mxu0
    %884 = vmatprep.mubr.f32.mxu0 0.0
    %885 = vmatmul.mubr.f32.gmra.mxu0 %v801
    %v886 = vpop.f32.mrf.mxu0
    %v887 = vadd.f32 0.0, %v886
    %v888 = vpop.f32.mrf.mxu0
    %889 = vmatprep.mubr.f32.mxu0 0.0
    %890 = vmatmul.mubr.f32.gmra.mxu0 %v803
    %v891 = vpop.f32.mrf.mxu0
    %v892 = vadd.f32 0.0, %v891
    %v893 = vpop.f32.mrf.mxu0
    %894 = vmatprep.mubr.f32.mxu0 0.0
    %895 = vmatmul.mubr.f32.gmra.mxu0 %v805
    %v896 = vpop.f32.mrf.mxu0
    %v897 = vadd.f32 0.0, %v896
    %v898 = vpop.f32.mrf.mxu0
    %899 = vmatprep.mubr.f32.mxu0 0.0
    %900 = vmatmul.mubr.f32.gmra.mxu0 %v807
    %v901 = vpop.f32.mrf.mxu0
    %v902 = vadd.f32 0.0, %v901
    %v903 = vpop.f32.mrf.mxu0
    %904 = vmatprep.mubr.f32.mxu0 0.0
    %905 = vmatmul.mubr.f32.gmra.mxu0 %v809
    %v906 = vpop.f32.mrf.mxu0
    %v907 = vadd.f32 0.0, %v906
    %v908 = vpop.f32.mrf.mxu0
    %909 = vmatprep.mubr.f32.mxu0 0.0
    %910 = vmatmul.mubr.f32.gmra.mxu0 %v811
    %v911 = vpop.f32.mrf.mxu0
    %v912 = vadd.f32 0.0, %v911
    %v913 = vpop.f32.mrf.mxu0
    %914 = vmatprep.mubr.f32.mxu0 0.0
    %915 = vmatmul.mubr.f32.gmra.mxu0 %v813
    %v916 = vpop.f32.mrf.mxu0
    %v917 = vadd.f32 0.0, %v916
    %v918 = vpop.f32.mrf.mxu0
    %919 = vdwg.mxu0
    %928 = vset.pattern.permute.xlu0 0
    %929 = vperm.xlu0 %928, %v882
    %v930 = vpop.permute.xlu0 %929
    %931 = vset.pattern.permute.xlu0 0
    %932 = vperm.xlu0 %931, %v887
    %v933 = vpop.permute.xlu0 %932
    %934 = vset.pattern.permute.xlu0 0
    %935 = vperm.xlu0 %934, %v892
    %v936 = vpop.permute.xlu0 %935
    %937 = vset.pattern.permute.xlu0 0
    %938 = vperm.xlu0 %937, %v897
    %v939 = vpop.permute.xlu0 %938
    %940 = vset.pattern.permute.xlu0 0
    %941 = vperm.xlu0 %940, %v902
    %v942 = vpop.permute.xlu0 %941
    %943 = vset.pattern.permute.xlu0 0
    %944 = vperm.xlu0 %943, %v907
    %v945 = vpop.permute.xlu0 %944
    %946 = vset.pattern.permute.xlu0 0
    %947 = vperm.xlu0 %946, %v912
    %v948 = vpop.permute.xlu0 %947
    %949 = vset.pattern.permute.xlu0 0
    %950 = vperm.xlu0 %949, %v917
    %v951 = vpop.permute.xlu0 %950
    %v952 = vlaneseq
    %v953 = vshrl.u32 %v952, 7
    %v954 = vsub.s32 %v32, %v953
    %v955 = vrot.slane %v930, %v954
    %v956 = vlaneseq
    %v957 = vshrl.u32 %v956, 7
    %v958 = vsub.s32 %v32, %v957
    %v959 = vrot.slane %v933, %v958
    %v960 = vlaneseq
    %v961 = vshrl.u32 %v960, 7
    %v962 = vsub.s32 %v32, %v961
    %v963 = vrot.slane %v936, %v962
    %v964 = vlaneseq
    %v965 = vshrl.u32 %v964, 7
    %v966 = vsub.s32 %v32, %v965
    %v967 = vrot.slane %v939, %v966
    %v968 = vlaneseq
    %v969 = vshrl.u32 %v968, 7
    %v970 = vsub.s32 %v32, %v969
    %v971 = vrot.slane %v942, %v970
    %v972 = vlaneseq
    %v973 = vshrl.u32 %v972, 7
    %v974 = vsub.s32 %v32, %v973
    %v975 = vrot.slane %v945, %v974
    %v976 = vlaneseq
    %v977 = vshrl.u32 %v976, 7
    %v978 = vsub.s32 %v32, %v977
    %v979 = vrot.slane %v948, %v978
    %v980 = vlaneseq
    %v981 = vshrl.u32 %v980, 7
    %v982 = vsub.s32 %v32, %v981
    %v983 = vrot.slane %v951, %v982
    %v984 = vsel %vm534, %v959, %v955
    %v985 = vsel %vm536, %v963, %v984
    %v986 = vsel %vm538, %v967, %v985
    %v987 = vsel %vm540, %v971, %v986
    %v988 = vsel %vm542, %v975, %v987
    %v989 = vsel %vm544, %v979, %v988
    %v990 = vsel %vm546, %v983, %v989
    %v992 = vsel %vm549, %v990, -inf
    %993 = vmax.xlane.f32.xlu0 %v992
    %v994 = vpop.xlane.xlu0 %993
    %v996 = vlaneseq
    %v997 = vshrl.u32 %v996, 7
    %v998 = vsub.s32 0, %v997
    %v999 = vrot.slane %v994, %v998
    %v1000 = vlaneseq
    %v1001 = vshrl.u32 %v1000, 7
    %v1002 = vsub.s32 1, %v1001
    %v1003 = vrot.slane %v994, %v1002
    %v1004 = vlaneseq
    %v1005 = vshrl.u32 %v1004, 7
    %v1006 = vsub.s32 2, %v1005
    %v1007 = vrot.slane %v994, %v1006
    %v1008 = vlaneseq
    %v1009 = vshrl.u32 %v1008, 7
    %v1010 = vsub.s32 3, %v1009
    %v1011 = vrot.slane %v994, %v1010
    %v1012 = vlaneseq
    %v1013 = vshrl.u32 %v1012, 7
    %v1014 = vsub.s32 4, %v1013
    %v1015 = vrot.slane %v994, %v1014
    %v1016 = vlaneseq
    %v1017 = vshrl.u32 %v1016, 7
    %v1018 = vsub.s32 5, %v1017
    %v1019 = vrot.slane %v994, %v1018
    %v1020 = vlaneseq
    %v1021 = vshrl.u32 %v1020, 7
    %v1022 = vsub.s32 6, %v1021
    %v1023 = vrot.slane %v994, %v1022
    %v1024 = vlaneseq
    %v1025 = vshrl.u32 %v1024, 7
    %v1026 = vsub.s32 7, %v1025
    %v1027 = vrot.slane %v994, %v1026
    %v1036 = vsub.f32 %v882, %v999
    %v1037 = vsub.f32 %v887, %v1003
    %v1038 = vsub.f32 %v892, %v1007
    %v1039 = vsub.f32 %v897, %v1011
    %v1040 = vsub.f32 %v902, %v1015
    %v1041 = vsub.f32 %v907, %v1019
    %v1042 = vsub.f32 %v912, %v1023
    %v1043 = vsub.f32 %v917, %v1027
    %v1044 = vmul.f32 %v1036, 1.442695
    %v1045 = vpow.pop %v1044
    %v1046 = vmul.f32 %v1037, 1.442695
    %v1047 = vpow.pop %v1046
    %v1048 = vmul.f32 %v1038, 1.442695
    %v1049 = vpow.pop %v1048
    %v1050 = vmul.f32 %v1039, 1.442695
    %v1051 = vpow.pop %v1050
    %v1052 = vmul.f32 %v1040, 1.442695
    %v1053 = vpow.pop %v1052
    %v1054 = vmul.f32 %v1041, 1.442695
    %v1055 = vpow.pop %v1054
    %v1056 = vmul.f32 %v1042, 1.442695
    %v1057 = vpow.pop %v1056
    %v1058 = vmul.f32 %v1043, 1.442695
    %v1059 = vpow.pop %v1058
    %1068 = vset.pattern.permute.xlu0 0
    %1069 = vperm.xlu0 %1068, %v1045
    %v1070 = vpop.permute.xlu0 %1069
    %1071 = vset.pattern.permute.xlu0 0
    %1072 = vperm.xlu0 %1071, %v1047
    %v1073 = vpop.permute.xlu0 %1072
    %1074 = vset.pattern.permute.xlu0 0
    %1075 = vperm.xlu0 %1074, %v1049
    %v1076 = vpop.permute.xlu0 %1075
    %1077 = vset.pattern.permute.xlu0 0
    %1078 = vperm.xlu0 %1077, %v1051
    %v1079 = vpop.permute.xlu0 %1078
    %1080 = vset.pattern.permute.xlu0 0
    %1081 = vperm.xlu0 %1080, %v1053
    %v1082 = vpop.permute.xlu0 %1081
    %1083 = vset.pattern.permute.xlu0 0
    %1084 = vperm.xlu0 %1083, %v1055
    %v1085 = vpop.permute.xlu0 %1084
    %1086 = vset.pattern.permute.xlu0 0
    %1087 = vperm.xlu0 %1086, %v1057
    %v1088 = vpop.permute.xlu0 %1087
    %1089 = vset.pattern.permute.xlu0 0
    %1090 = vperm.xlu0 %1089, %v1059
    %v1091 = vpop.permute.xlu0 %1090
    %v1092 = vlaneseq
    %v1093 = vshrl.u32 %v1092, 7
    %v1094 = vsub.s32 %v32, %v1093
    %v1095 = vrot.slane %v1070, %v1094
    %v1096 = vlaneseq
    %v1097 = vshrl.u32 %v1096, 7
    %v1098 = vsub.s32 %v32, %v1097
    %v1099 = vrot.slane %v1073, %v1098
    %v1100 = vlaneseq
    %v1101 = vshrl.u32 %v1100, 7
    %v1102 = vsub.s32 %v32, %v1101
    %v1103 = vrot.slane %v1076, %v1102
    %v1104 = vlaneseq
    %v1105 = vshrl.u32 %v1104, 7
    %v1106 = vsub.s32 %v32, %v1105
    %v1107 = vrot.slane %v1079, %v1106
    %v1108 = vlaneseq
    %v1109 = vshrl.u32 %v1108, 7
    %v1110 = vsub.s32 %v32, %v1109
    %v1111 = vrot.slane %v1082, %v1110
    %v1112 = vlaneseq
    %v1113 = vshrl.u32 %v1112, 7
    %v1114 = vsub.s32 %v32, %v1113
    %v1115 = vrot.slane %v1085, %v1114
    %v1116 = vlaneseq
    %v1117 = vshrl.u32 %v1116, 7
    %v1118 = vsub.s32 %v32, %v1117
    %v1119 = vrot.slane %v1088, %v1118
    %v1120 = vlaneseq
    %v1121 = vshrl.u32 %v1120, 7
    %v1122 = vsub.s32 %v32, %v1121
    %v1123 = vrot.slane %v1091, %v1122
    %v1124 = vsel %vm534, %v1099, %v1095
    %v1125 = vsel %vm536, %v1103, %v1124
    %v1126 = vsel %vm538, %v1107, %v1125
    %v1127 = vsel %vm540, %v1111, %v1126
    %v1128 = vsel %vm542, %v1115, %v1127
    %v1129 = vsel %vm544, %v1119, %v1128
    %v1130 = vsel %vm546, %v1123, %v1129
    %v1132 = vsel %vm549, %v1130, 0.0
    %1133 = vadd.xlane.f32.xlu0 %v1132
    %v1134 = vpop.xlane.xlu0 %1133
    %v1136 = vlaneseq
    %v1137 = vshrl.u32 %v1136, 7
    %v1138 = vsub.s32 0, %v1137
    %v1139 = vrot.slane %v1134, %v1138
    %v1140 = vlaneseq
    %v1141 = vshrl.u32 %v1140, 7
    %v1142 = vsub.s32 1, %v1141
    %v1143 = vrot.slane %v1134, %v1142
    %v1144 = vlaneseq
    %v1145 = vshrl.u32 %v1144, 7
    %v1146 = vsub.s32 2, %v1145
    %v1147 = vrot.slane %v1134, %v1146
    %v1148 = vlaneseq
    %v1149 = vshrl.u32 %v1148, 7
    %v1150 = vsub.s32 3, %v1149
    %v1151 = vrot.slane %v1134, %v1150
    %v1152 = vlaneseq
    %v1153 = vshrl.u32 %v1152, 7
    %v1154 = vsub.s32 4, %v1153
    %v1155 = vrot.slane %v1134, %v1154
    %v1156 = vlaneseq
    %v1157 = vshrl.u32 %v1156, 7
    %v1158 = vsub.s32 5, %v1157
    %v1159 = vrot.slane %v1134, %v1158
    %v1160 = vlaneseq
    %v1161 = vshrl.u32 %v1160, 7
    %v1162 = vsub.s32 6, %v1161
    %v1163 = vrot.slane %v1134, %v1162
    %v1164 = vlaneseq
    %v1165 = vshrl.u32 %v1164, 7
    %v1166 = vsub.s32 7, %v1165
    %v1167 = vrot.slane %v1134, %v1166
    %v1176 = vrcp.pop %v1139
    %v1177 = vmul.f32 %v1045, %v1176
    %v1178 = vrcp.pop %v1143
    %v1179 = vmul.f32 %v1047, %v1178
    %v1180 = vrcp.pop %v1147
    %v1181 = vmul.f32 %v1049, %v1180
    %v1182 = vrcp.pop %v1151
    %v1183 = vmul.f32 %v1051, %v1182
    %v1184 = vrcp.pop %v1155
    %v1185 = vmul.f32 %v1053, %v1184
    %v1186 = vrcp.pop %v1159
    %v1187 = vmul.f32 %v1055, %v1186
    %v1188 = vrcp.pop %v1163
    %v1189 = vmul.f32 %v1057, %v1188
    %v1190 = vrcp.pop %v1167
    %v1191 = vmul.f32 %v1059, %v1190
    %1200 = vset.pattern.permute.xlu0 0
    %1201 = vperm.xlu0 %1200, %v735
    %v1202 = vpop.permute.xlu0 %1201
    %1203 = vset.pattern.permute.xlu0 0
    %1204 = vperm.xlu0 %1203, %v737
    %v1205 = vpop.permute.xlu0 %1204
    %1206 = vset.pattern.permute.xlu0 0
    %1207 = vperm.xlu0 %1206, %v739
    %v1208 = vpop.permute.xlu0 %1207
    %1209 = vset.pattern.permute.xlu0 0
    %1210 = vperm.xlu0 %1209, %v741
    %v1211 = vpop.permute.xlu0 %1210
    %1212 = vset.pattern.permute.xlu0 0
    %1213 = vperm.xlu0 %1212, %v743
    %v1214 = vpop.permute.xlu0 %1213
    %1215 = vset.pattern.permute.xlu0 0
    %1216 = vperm.xlu0 %1215, %v745
    %v1217 = vpop.permute.xlu0 %1216
    %1218 = vset.pattern.permute.xlu0 0
    %1219 = vperm.xlu0 %1218, %v747
    %v1220 = vpop.permute.xlu0 %1219
    %1221 = vset.pattern.permute.xlu0 0
    %1222 = vperm.xlu0 %1221, %v749
    %v1223 = vpop.permute.xlu0 %1222
    %v1224 = vlaneseq
    %v1225 = vshrl.u32 %v1224, 7
    %v1226 = vsub.s32 %v32, %v1225
    %v1227 = vrot.slane %v1202, %v1226
    %v1228 = vlaneseq
    %v1229 = vshrl.u32 %v1228, 7
    %v1230 = vsub.s32 %v32, %v1229
    %v1231 = vrot.slane %v1205, %v1230
    %v1232 = vlaneseq
    %v1233 = vshrl.u32 %v1232, 7
    %v1234 = vsub.s32 %v32, %v1233
    %v1235 = vrot.slane %v1208, %v1234
    %v1236 = vlaneseq
    %v1237 = vshrl.u32 %v1236, 7
    %v1238 = vsub.s32 %v32, %v1237
    %v1239 = vrot.slane %v1211, %v1238
    %v1240 = vlaneseq
    %v1241 = vshrl.u32 %v1240, 7
    %v1242 = vsub.s32 %v32, %v1241
    %v1243 = vrot.slane %v1214, %v1242
    %v1244 = vlaneseq
    %v1245 = vshrl.u32 %v1244, 7
    %v1246 = vsub.s32 %v32, %v1245
    %v1247 = vrot.slane %v1217, %v1246
    %v1248 = vlaneseq
    %v1249 = vshrl.u32 %v1248, 7
    %v1250 = vsub.s32 %v32, %v1249
    %v1251 = vrot.slane %v1220, %v1250
    %v1252 = vlaneseq
    %v1253 = vshrl.u32 %v1252, 7
    %v1254 = vsub.s32 %v32, %v1253
    %v1255 = vrot.slane %v1223, %v1254
    %v1256 = vsel %vm534, %v1231, %v1227
    %v1257 = vsel %vm536, %v1235, %v1256
    %v1258 = vsel %vm538, %v1239, %v1257
    %v1259 = vsel %vm540, %v1243, %v1258
    %v1260 = vsel %vm542, %v1247, %v1259
    %v1261 = vsel %vm544, %v1251, %v1260
    %v1262 = vsel %vm546, %v1255, %v1261
    %1272 = vset.pattern.permute.xlu0 0
    %1273 = vperm.xlu0 %1272, %v1177
    %v1274 = vpop.permute.xlu0 %1273
    %1275 = vset.pattern.permute.xlu0 0
    %1276 = vperm.xlu0 %1275, %v1179
    %v1277 = vpop.permute.xlu0 %1276
    %1278 = vset.pattern.permute.xlu0 0
    %1279 = vperm.xlu0 %1278, %v1181
    %v1280 = vpop.permute.xlu0 %1279
    %1281 = vset.pattern.permute.xlu0 0
    %1282 = vperm.xlu0 %1281, %v1183
    %v1283 = vpop.permute.xlu0 %1282
    %1284 = vset.pattern.permute.xlu0 0
    %1285 = vperm.xlu0 %1284, %v1185
    %v1286 = vpop.permute.xlu0 %1285
    %1287 = vset.pattern.permute.xlu0 0
    %1288 = vperm.xlu0 %1287, %v1187
    %v1289 = vpop.permute.xlu0 %1288
    %1290 = vset.pattern.permute.xlu0 0
    %1291 = vperm.xlu0 %1290, %v1189
    %v1292 = vpop.permute.xlu0 %1291
    %1293 = vset.pattern.permute.xlu0 0
    %1294 = vperm.xlu0 %1293, %v1191
    %v1295 = vpop.permute.xlu0 %1294
    %v1296 = vadd.s32 %v32, 4294967288
    %v1297 = vlaneseq
    %v1298 = vshrl.u32 %v1297, 7
    %v1299 = vsub.s32 %v1296, %v1298
    %v1300 = vrot.slane %v1274, %v1299
    %v1301 = vlaneseq
    %v1302 = vshrl.u32 %v1301, 7
    %v1303 = vsub.s32 %v1296, %v1302
    %v1304 = vrot.slane %v1277, %v1303
    %v1305 = vlaneseq
    %v1306 = vshrl.u32 %v1305, 7
    %v1307 = vsub.s32 %v1296, %v1306
    %v1308 = vrot.slane %v1280, %v1307
    %v1309 = vlaneseq
    %v1310 = vshrl.u32 %v1309, 7
    %v1311 = vsub.s32 %v1296, %v1310
    %v1312 = vrot.slane %v1283, %v1311
    %v1313 = vlaneseq
    %v1314 = vshrl.u32 %v1313, 7
    %v1315 = vsub.s32 %v1296, %v1314
    %v1316 = vrot.slane %v1286, %v1315
    %v1317 = vlaneseq
    %v1318 = vshrl.u32 %v1317, 7
    %v1319 = vsub.s32 %v1296, %v1318
    %v1320 = vrot.slane %v1289, %v1319
    %v1321 = vlaneseq
    %v1322 = vshrl.u32 %v1321, 7
    %v1323 = vsub.s32 %v1296, %v1322
    %v1324 = vrot.slane %v1292, %v1323
    %v1325 = vlaneseq
    %v1326 = vshrl.u32 %v1325, 7
    %v1327 = vsub.s32 %v1296, %v1326
    %v1328 = vrot.slane %v1295, %v1327
    %v1329 = vsel %vm534, %v1304, %v1300
    %v1330 = vsel %vm536, %v1308, %v1329
    %v1331 = vsel %vm538, %v1312, %v1330
    %v1332 = vsel %vm540, %v1316, %v1331
    %v1333 = vsel %vm542, %v1320, %v1332
    %v1334 = vsel %vm544, %v1324, %v1333
    %v1335 = vsel %vm546, %v1328, %v1334
    %v1337 = vsel %vm549, %v1262, %v1335
    %1339 = vrot.lane.b32.xlu0 %v228, 96
    %v1340 = vpop.permute.xlu0 %1339
    %vm1342 = vcmask 130048
    %v1344 = vsel %vm1342, %v1337, 0
    %1346 = vmatprep.subr.mxu0 0.0
    %1347 = vmatpush1.msra.mxu0 0.0
    %1348 = vmatprep.subr.mxu0 0.0
    %1349 = vmatpush1.msra.mxu0 0.0
    %1350 = vmatprep.subr.mxu0 0.0
    %1351 = vmatpush1.msra.mxu0 0.0
    %1352 = vmatprep.subr.mxu0 0.0
    %1353 = vmatpush1.msra.mxu0 0.0
    %1354 = vmatprep.subr.mxu0 0.0
    %1355 = vmatpush1.msra.mxu0 0.0
    %1356 = vmatprep.subr.mxu0 0.0
    %1357 = vmatpush1.msra.mxu0 0.0
    %1358 = vmatprep.subr.mxu0 0.0
    %1359 = vmatpush1.msra.mxu0 0.0
    %1360 = vmatprep.subr.mxu0 0.0
    %1361 = vmatpush1.msra.mxu0 0.0
    %1362 = vmatprep.subr.mxu0 0.0
    %1363 = vmatpush1.msra.mxu0 0.0
    %1364 = vmatprep.subr.mxu0 0.0
    %1365 = vmatpush1.msra.mxu0 0.0
    %1366 = vmatprep.subr.mxu0 0.0
    %1367 = vmatpush1.msra.mxu0 0.0
    %1368 = vmatprep.subr.mxu0 0.0
    %1369 = vmatpush1.msra.mxu0 0.0
    %1370 = vmatprep.subr.mxu0 0.0
    %1371 = vmatpush1.msra.mxu0 0.0
    %1372 = vmatprep.subr.mxu0 0.0
    %1373 = vmatpush1.msra.mxu0 0.0
    %1374 = vmatprep.subr.mxu0 0.0
    %1375 = vmatpush1.msra.mxu0 %v1340
    %1376 = vmatprep.subr.mxu0 0.0
    %1377 = vmatpush1.msra.mxu0 %v228
    %1378 = vmatprep.subr.mxu0 0.0
    %1379 = vmatpush2.msra.mxu0 0.0
    %1380 = vmatprep.subr.mxu0 0.0
    %1381 = vmatpush2.msra.mxu0 0.0
    %1382 = vmatprep.subr.mxu0 0.0
    %1383 = vmatpush2.msra.mxu0 0.0
    %1384 = vmatprep.subr.mxu0 0.0
    %1385 = vmatpush2.msra.mxu0 0.0
    %1386 = vmatprep.subr.mxu0 0.0
    %1387 = vmatpush2.msra.mxu0 0.0
    %1388 = vmatprep.subr.mxu0 0.0
    %1389 = vmatpush2.msra.mxu0 0.0
    %1390 = vmatprep.subr.mxu0 0.0
    %1391 = vmatpush2.msra.mxu0 0.0
    %1392 = vmatprep.subr.mxu0 0.0
    %1393 = vmatpush2.msra.mxu0 0.0
    %1394 = vmatprep.subr.mxu0 0.0
    %1395 = vmatpush2.msra.mxu0 0.0
    %1396 = vmatprep.subr.mxu0 0.0
    %1397 = vmatpush2.msra.mxu0 0.0
    %1398 = vmatprep.subr.mxu0 0.0
    %1399 = vmatpush2.msra.mxu0 0.0
    %1400 = vmatprep.subr.mxu0 0.0
    %1401 = vmatpush2.msra.mxu0 0.0
    %1402 = vmatprep.subr.mxu0 0.0
    %1403 = vmatpush2.msra.mxu0 0.0
    %1404 = vmatprep.subr.mxu0 0.0
    %1405 = vmatpush2.msra.mxu0 0.0
    %1406 = vmatprep.subr.mxu0 0.0
    %1407 = vmatpush2.msra.mxu0 0.0
    %1408 = vmatprep.subr.mxu0 0.0
    %1409 = vmatpush2.msra.mxu0 0.0
    %1410 = vmatprep.mubr.f32.mxu0 0.0
    %1411 = vmatmul.mubr.f32.gmra.mxu0 %v1344
    %v1412 = vpop.f32.mrf.mxu0
    %v1413 = vadd.f32 0.0, %v1412
    %v1414 = vpop.f32.mrf.mxu0
    %1415 = vdwg.mxu0
    %v1416 = vmul.f32 %v40, %v233
    %v1418 = vcombine.high %v138, %v138
    %v1420 = vunpack.c.l.s4 1966171168
    %v1421 = vunpack.c.0.s8 %v1420
    %v1422 = vlaneseq
    %v1423 = vshrl.u32 %v1422, 7
    %v1424 = vsub.s32 %v1421, %v1423
    %v1425 = vrot.slane %v138, %v1424
    %v1427 = vunpack.c.l.s4 1966171168
    %v1428 = vunpack.c.0.s8 %v1427
    %v1429 = vlaneseq
    %v1430 = vshrl.u32 %v1429, 7
    %v1431 = vsub.s32 %v1428, %v1430
    %v1432 = vrot.slane %v1418, %v1431
    %v1433 = vcombine.high %v1425, %v1425
    %v1434 = vcombine.high %v1432, %v1432
    %v1436 = vunpack.c.l.s4 1966171168
    %v1437 = vunpack.c.0.s8 %v1436
    %v1438 = vlaneseq
    %v1439 = vshrl.u32 %v1438, 7
    %v1440 = vsub.s32 %v1437, %v1439
    %v1441 = vrot.slane %v1425, %v1440
    %v1443 = vunpack.c.l.s4 1966171168
    %v1444 = vunpack.c.0.s8 %v1443
    %v1445 = vlaneseq
    %v1446 = vshrl.u32 %v1445, 7
    %v1447 = vsub.s32 %v1444, %v1446
    %v1448 = vrot.slane %v1432, %v1447
    %v1450 = vunpack.c.l.s4 1966171168
    %v1451 = vunpack.c.0.s8 %v1450
    %v1452 = vlaneseq
    %v1453 = vshrl.u32 %v1452, 7
    %v1454 = vsub.s32 %v1451, %v1453
    %v1455 = vrot.slane %v1433, %v1454
    %v1457 = vunpack.c.l.s4 1966171168
    %v1458 = vunpack.c.0.s8 %v1457
    %v1459 = vlaneseq
    %v1460 = vshrl.u32 %v1459, 7
    %v1461 = vsub.s32 %v1458, %v1460
    %v1462 = vrot.slane %v1434, %v1461
    %v1463 = vcombine.high %v1441, %v1441
    %v1464 = vcombine.high %v1448, %v1448
    %v1465 = vcombine.high %v1455, %v1455
    %v1466 = vcombine.high %v1462, %v1462
    %v1467 = vlaneseq
    %v1468 = vshrl.u32 %v1467, 7
    %v1469 = vsub.s32 0, %v1468
    %v1470 = vrot.slane %v1441, %v1469
    %v1471 = vlaneseq
    %v1472 = vshrl.u32 %v1471, 7
    %v1473 = vsub.s32 0, %v1472
    %v1474 = vrot.slane %v1455, %v1473
    %v1475 = vlaneseq
    %v1476 = vshrl.u32 %v1475, 7
    %v1477 = vsub.s32 0, %v1476
    %v1478 = vrot.slane %v1463, %v1477
    %v1479 = vlaneseq
    %v1480 = vshrl.u32 %v1479, 7
    %v1481 = vsub.s32 0, %v1480
    %v1482 = vrot.slane %v1465, %v1481
    %v1483 = vlaneseq
    %v1484 = vshrl.u32 %v1483, 7
    %v1485 = vsub.s32 0, %v1484
    %v1486 = vrot.slane %v1448, %v1485
    %v1487 = vlaneseq
    %v1488 = vshrl.u32 %v1487, 7
    %v1489 = vsub.s32 0, %v1488
    %v1490 = vrot.slane %v1462, %v1489
    %v1491 = vlaneseq
    %v1492 = vshrl.u32 %v1491, 7
    %v1493 = vsub.s32 0, %v1492
    %v1494 = vrot.slane %v1464, %v1493
    %v1495 = vlaneseq
    %v1496 = vshrl.u32 %v1495, 7
    %v1497 = vsub.s32 0, %v1496
    %v1498 = vrot.slane %v1466, %v1497
    %v1507 = vsub.f32 %v1470, %v1416
    %v1508 = vsub.f32 %v1474, %v1416
    %v1509 = vsub.f32 %v1478, %v1416
    %v1510 = vsub.f32 %v1482, %v1416
    %v1511 = vsub.f32 %v1486, %v1416
    %v1512 = vsub.f32 %v1490, %v1416
    %v1513 = vsub.f32 %v1494, %v1416
    %v1514 = vsub.f32 %v1498, %v1416
    %v1515 = vand.u32 2147483647, %v1507
    %v1516 = vand.u32 2147483647, %v1508
    %v1517 = vand.u32 2147483647, %v1509
    %v1518 = vand.u32 2147483647, %v1510
    %v1519 = vand.u32 2147483647, %v1511
    %v1520 = vand.u32 2147483647, %v1512
    %v1521 = vand.u32 2147483647, %v1513
    %v1522 = vand.u32 2147483647, %v1514
    %v1524 = vsel %vm59, %v1515, 0
    %v1527 = vsel %vm59, %v1516, 0
    %v1530 = vsel %vm59, %v1517, 0
    %v1533 = vsel %vm59, %v1518, 0
    %v1536 = vsel %vm59, %v1519, 0
    %v1539 = vsel %vm59, %v1520, 0
    %v1542 = vsel %vm59, %v1521, 0
    %v1545 = vsel %vm59, %v1522, 0
    %1547 = vmatprep.subr.mxu0 0.0
    %1548 = vmatpush1.msra.mxu0 0.0
    %1549 = vmatprep.subr.mxu0 0.0
    %1550 = vmatpush1.msra.mxu0 0.0
    %1551 = vmatprep.subr.mxu0 0.0
    %1552 = vmatpush1.msra.mxu0 0.0
    %1553 = vmatprep.subr.mxu0 0.0
    %1554 = vmatpush1.msra.mxu0 0.0
    %1555 = vmatprep.subr.mxu0 0.0
    %1556 = vmatpush1.msra.mxu0 0.0
    %1557 = vmatprep.subr.mxu0 0.0
    %1558 = vmatpush1.msra.mxu0 0.0
    %1559 = vmatprep.subr.mxu0 0.0
    %1560 = vmatpush1.msra.mxu0 0.0
    %1561 = vmatprep.subr.mxu0 0.0
    %1562 = vmatpush1.msra.mxu0 0.0
    %1563 = vmatprep.subr.mxu0 0.0
    %1564 = vmatpush1.msra.mxu0 0.0
    %1565 = vmatprep.subr.mxu0 0.0
    %1566 = vmatpush1.msra.mxu0 0.0
    %1567 = vmatprep.subr.mxu0 0.0
    %1568 = vmatpush1.msra.mxu0 0.0
    %1569 = vmatprep.subr.mxu0 0.0
    %1570 = vmatpush1.msra.mxu0 0.0
    %1571 = vmatprep.subr.mxu0 0.0
    %1572 = vmatpush1.msra.mxu0 -0.17677669
    %1573 = vmatprep.subr.mxu0 0.0
    %1574 = vmatpush1.msra.mxu0 -0.17677669
    %1575 = vmatprep.subr.mxu0 0.0
    %1576 = vmatpush1.msra.mxu0 -0.17677669
    %1577 = vmatprep.subr.mxu0 0.0
    %1578 = vmatpush1.msra.mxu0 -0.17677669
    %1579 = vmatprep.subr.mxu0 0.0
    %1580 = vmatpush2.msra.mxu0 0.0
    %1581 = vmatprep.subr.mxu0 0.0
    %1582 = vmatpush2.msra.mxu0 0.0
    %1583 = vmatprep.subr.mxu0 0.0
    %1584 = vmatpush2.msra.mxu0 0.0
    %1585 = vmatprep.subr.mxu0 0.0
    %1586 = vmatpush2.msra.mxu0 0.0
    %1587 = vmatprep.subr.mxu0 0.0
    %1588 = vmatpush2.msra.mxu0 0.0
    %1589 = vmatprep.subr.mxu0 0.0
    %1590 = vmatpush2.msra.mxu0 0.0
    %1591 = vmatprep.subr.mxu0 0.0
    %1592 = vmatpush2.msra.mxu0 0.0
    %1593 = vmatprep.subr.mxu0 0.0
    %1594 = vmatpush2.msra.mxu0 0.0
    %1595 = vmatprep.subr.mxu0 0.0
    %1596 = vmatpush2.msra.mxu0 0.0
    %1597 = vmatprep.subr.mxu0 0.0
    %1598 = vmatpush2.msra.mxu0 0.0
    %1599 = vmatprep.subr.mxu0 0.0
    %1600 = vmatpush2.msra.mxu0 0.0
    %1601 = vmatprep.subr.mxu0 0.0
    %1602 = vmatpush2.msra.mxu0 0.0
    %1603 = vmatprep.subr.mxu0 0.0
    %1604 = vmatpush2.msra.mxu0 0.0
    %1605 = vmatprep.subr.mxu0 0.0
    %1606 = vmatpush2.msra.mxu0 0.0
    %1607 = vmatprep.subr.mxu0 0.0
    %1608 = vmatpush2.msra.mxu0 0.0
    %1609 = vmatprep.subr.mxu0 0.0
    %1610 = vmatpush2.msra.mxu0 0.0
    %1611 = vmatprep.mubr.f32.mxu0 0.0
    %1612 = vmatmul.mubr.f32.gmra.mxu0 %v1524
    %v1613 = vpop.f32.mrf.mxu0
    %v1614 = vadd.f32 0.0, %v1613
    %v1615 = vpop.f32.mrf.mxu0
    %1616 = vmatprep.mubr.f32.mxu0 0.0
    %1617 = vmatmul.mubr.f32.gmra.mxu0 %v1527
    %v1618 = vpop.f32.mrf.mxu0
    %v1619 = vadd.f32 0.0, %v1618
    %v1620 = vpop.f32.mrf.mxu0
    %1621 = vmatprep.mubr.f32.mxu0 0.0
    %1622 = vmatmul.mubr.f32.gmra.mxu0 %v1530
    %v1623 = vpop.f32.mrf.mxu0
    %v1624 = vadd.f32 0.0, %v1623
    %v1625 = vpop.f32.mrf.mxu0
    %1626 = vmatprep.mubr.f32.mxu0 0.0
    %1627 = vmatmul.mubr.f32.gmra.mxu0 %v1533
    %v1628 = vpop.f32.mrf.mxu0
    %v1629 = vadd.f32 0.0, %v1628
    %v1630 = vpop.f32.mrf.mxu0
    %1631 = vmatprep.mubr.f32.mxu0 0.0
    %1632 = vmatmul.mubr.f32.gmra.mxu0 %v1536
    %v1633 = vpop.f32.mrf.mxu0
    %v1634 = vadd.f32 0.0, %v1633
    %v1635 = vpop.f32.mrf.mxu0
    %1636 = vmatprep.mubr.f32.mxu0 0.0
    %1637 = vmatmul.mubr.f32.gmra.mxu0 %v1539
    %v1638 = vpop.f32.mrf.mxu0
    %v1639 = vadd.f32 0.0, %v1638
    %v1640 = vpop.f32.mrf.mxu0
    %1641 = vmatprep.mubr.f32.mxu0 0.0
    %1642 = vmatmul.mubr.f32.gmra.mxu0 %v1542
    %v1643 = vpop.f32.mrf.mxu0
    %v1644 = vadd.f32 0.0, %v1643
    %v1645 = vpop.f32.mrf.mxu0
    %1646 = vmatprep.mubr.f32.mxu0 0.0
    %1647 = vmatmul.mubr.f32.gmra.mxu0 %v1545
    %v1648 = vpop.f32.mrf.mxu0
    %v1649 = vadd.f32 0.0, %v1648
    %v1650 = vpop.f32.mrf.mxu0
    %1651 = vdwg.mxu0
    %1660 = vset.pattern.permute.xlu0 0
    %1661 = vperm.xlu0 %1660, %v1614
    %v1662 = vpop.permute.xlu0 %1661
    %1663 = vset.pattern.permute.xlu0 0
    %1664 = vperm.xlu0 %1663, %v1619
    %v1665 = vpop.permute.xlu0 %1664
    %1666 = vset.pattern.permute.xlu0 0
    %1667 = vperm.xlu0 %1666, %v1624
    %v1668 = vpop.permute.xlu0 %1667
    %1669 = vset.pattern.permute.xlu0 0
    %1670 = vperm.xlu0 %1669, %v1629
    %v1671 = vpop.permute.xlu0 %1670
    %1672 = vset.pattern.permute.xlu0 0
    %1673 = vperm.xlu0 %1672, %v1634
    %v1674 = vpop.permute.xlu0 %1673
    %1675 = vset.pattern.permute.xlu0 0
    %1676 = vperm.xlu0 %1675, %v1639
    %v1677 = vpop.permute.xlu0 %1676
    %1678 = vset.pattern.permute.xlu0 0
    %1679 = vperm.xlu0 %1678, %v1644
    %v1680 = vpop.permute.xlu0 %1679
    %1681 = vset.pattern.permute.xlu0 0
    %1682 = vperm.xlu0 %1681, %v1649
    %v1683 = vpop.permute.xlu0 %1682
    %v1684 = vlaneseq
    %v1685 = vshrl.u32 %v1684, 7
    %v1686 = vsub.s32 %v32, %v1685
    %v1687 = vrot.slane %v1662, %v1686
    %v1688 = vlaneseq
    %v1689 = vshrl.u32 %v1688, 7
    %v1690 = vsub.s32 %v32, %v1689
    %v1691 = vrot.slane %v1665, %v1690
    %v1692 = vlaneseq
    %v1693 = vshrl.u32 %v1692, 7
    %v1694 = vsub.s32 %v32, %v1693
    %v1695 = vrot.slane %v1668, %v1694
    %v1696 = vlaneseq
    %v1697 = vshrl.u32 %v1696, 7
    %v1698 = vsub.s32 %v32, %v1697
    %v1699 = vrot.slane %v1671, %v1698
    %v1700 = vlaneseq
    %v1701 = vshrl.u32 %v1700, 7
    %v1702 = vsub.s32 %v32, %v1701
    %v1703 = vrot.slane %v1674, %v1702
    %v1704 = vlaneseq
    %v1705 = vshrl.u32 %v1704, 7
    %v1706 = vsub.s32 %v32, %v1705
    %v1707 = vrot.slane %v1677, %v1706
    %v1708 = vlaneseq
    %v1709 = vshrl.u32 %v1708, 7
    %v1710 = vsub.s32 %v32, %v1709
    %v1711 = vrot.slane %v1680, %v1710
    %v1712 = vlaneseq
    %v1713 = vshrl.u32 %v1712, 7
    %v1714 = vsub.s32 %v32, %v1713
    %v1715 = vrot.slane %v1683, %v1714
    %v1716 = vsel %vm534, %v1691, %v1687
    %v1717 = vsel %vm536, %v1695, %v1716
    %v1718 = vsel %vm538, %v1699, %v1717
    %v1719 = vsel %vm540, %v1703, %v1718
    %v1720 = vsel %vm542, %v1707, %v1719
    %v1721 = vsel %vm544, %v1711, %v1720
    %v1722 = vsel %vm546, %v1715, %v1721
    %v1724 = vsel %vm549, %v1722, -inf
    %1725 = vmax.xlane.f32.xlu0 %v1724
    %v1726 = vpop.xlane.xlu0 %1725
    %v1728 = vlaneseq
    %v1729 = vshrl.u32 %v1728, 7
    %v1730 = vsub.s32 0, %v1729
    %v1731 = vrot.slane %v1726, %v1730
    %v1732 = vlaneseq
    %v1733 = vshrl.u32 %v1732, 7
    %v1734 = vsub.s32 1, %v1733
    %v1735 = vrot.slane %v1726, %v1734
    %v1736 = vlaneseq
    %v1737 = vshrl.u32 %v1736, 7
    %v1738 = vsub.s32 2, %v1737
    %v1739 = vrot.slane %v1726, %v1738
    %v1740 = vlaneseq
    %v1741 = vshrl.u32 %v1740, 7
    %v1742 = vsub.s32 3, %v1741
    %v1743 = vrot.slane %v1726, %v1742
    %v1744 = vlaneseq
    %v1745 = vshrl.u32 %v1744, 7
    %v1746 = vsub.s32 4, %v1745
    %v1747 = vrot.slane %v1726, %v1746
    %v1748 = vlaneseq
    %v1749 = vshrl.u32 %v1748, 7
    %v1750 = vsub.s32 5, %v1749
    %v1751 = vrot.slane %v1726, %v1750
    %v1752 = vlaneseq
    %v1753 = vshrl.u32 %v1752, 7
    %v1754 = vsub.s32 6, %v1753
    %v1755 = vrot.slane %v1726, %v1754
    %v1756 = vlaneseq
    %v1757 = vshrl.u32 %v1756, 7
    %v1758 = vsub.s32 7, %v1757
    %v1759 = vrot.slane %v1726, %v1758
    %v1768 = vsub.f32 %v1614, %v1731
    %v1769 = vsub.f32 %v1619, %v1735
    %v1770 = vsub.f32 %v1624, %v1739
    %v1771 = vsub.f32 %v1629, %v1743
    %v1772 = vsub.f32 %v1634, %v1747
    %v1773 = vsub.f32 %v1639, %v1751
    %v1774 = vsub.f32 %v1644, %v1755
    %v1775 = vsub.f32 %v1649, %v1759
    %v1776 = vmul.f32 %v1768, 1.442695
    %v1777 = vpow.pop %v1776
    %v1778 = vmul.f32 %v1769, 1.442695
    %v1779 = vpow.pop %v1778
    %v1780 = vmul.f32 %v1770, 1.442695
    %v1781 = vpow.pop %v1780
    %v1782 = vmul.f32 %v1771, 1.442695
    %v1783 = vpow.pop %v1782
    %v1784 = vmul.f32 %v1772, 1.442695
    %v1785 = vpow.pop %v1784
    %v1786 = vmul.f32 %v1773, 1.442695
    %v1787 = vpow.pop %v1786
    %v1788 = vmul.f32 %v1774, 1.442695
    %v1789 = vpow.pop %v1788
    %v1790 = vmul.f32 %v1775, 1.442695
    %v1791 = vpow.pop %v1790
    %1800 = vset.pattern.permute.xlu0 0
    %1801 = vperm.xlu0 %1800, %v1777
    %v1802 = vpop.permute.xlu0 %1801
    %1803 = vset.pattern.permute.xlu0 0
    %1804 = vperm.xlu0 %1803, %v1779
    %v1805 = vpop.permute.xlu0 %1804
    %1806 = vset.pattern.permute.xlu0 0
    %1807 = vperm.xlu0 %1806, %v1781
    %v1808 = vpop.permute.xlu0 %1807
    %1809 = vset.pattern.permute.xlu0 0
    %1810 = vperm.xlu0 %1809, %v1783
    %v1811 = vpop.permute.xlu0 %1810
    %1812 = vset.pattern.permute.xlu0 0
    %1813 = vperm.xlu0 %1812, %v1785
    %v1814 = vpop.permute.xlu0 %1813
    %1815 = vset.pattern.permute.xlu0 0
    %1816 = vperm.xlu0 %1815, %v1787
    %v1817 = vpop.permute.xlu0 %1816
    %1818 = vset.pattern.permute.xlu0 0
    %1819 = vperm.xlu0 %1818, %v1789
    %v1820 = vpop.permute.xlu0 %1819
    %1821 = vset.pattern.permute.xlu0 0
    %1822 = vperm.xlu0 %1821, %v1791
    %v1823 = vpop.permute.xlu0 %1822
    %v1824 = vlaneseq
    %v1825 = vshrl.u32 %v1824, 7
    %v1826 = vsub.s32 %v32, %v1825
    %v1827 = vrot.slane %v1802, %v1826
    %v1828 = vlaneseq
    %v1829 = vshrl.u32 %v1828, 7
    %v1830 = vsub.s32 %v32, %v1829
    %v1831 = vrot.slane %v1805, %v1830
    %v1832 = vlaneseq
    %v1833 = vshrl.u32 %v1832, 7
    %v1834 = vsub.s32 %v32, %v1833
    %v1835 = vrot.slane %v1808, %v1834
    %v1836 = vlaneseq
    %v1837 = vshrl.u32 %v1836, 7
    %v1838 = vsub.s32 %v32, %v1837
    %v1839 = vrot.slane %v1811, %v1838
    %v1840 = vlaneseq
    %v1841 = vshrl.u32 %v1840, 7
    %v1842 = vsub.s32 %v32, %v1841
    %v1843 = vrot.slane %v1814, %v1842
    %v1844 = vlaneseq
    %v1845 = vshrl.u32 %v1844, 7
    %v1846 = vsub.s32 %v32, %v1845
    %v1847 = vrot.slane %v1817, %v1846
    %v1848 = vlaneseq
    %v1849 = vshrl.u32 %v1848, 7
    %v1850 = vsub.s32 %v32, %v1849
    %v1851 = vrot.slane %v1820, %v1850
    %v1852 = vlaneseq
    %v1853 = vshrl.u32 %v1852, 7
    %v1854 = vsub.s32 %v32, %v1853
    %v1855 = vrot.slane %v1823, %v1854
    %v1856 = vsel %vm534, %v1831, %v1827
    %v1857 = vsel %vm536, %v1835, %v1856
    %v1858 = vsel %vm538, %v1839, %v1857
    %v1859 = vsel %vm540, %v1843, %v1858
    %v1860 = vsel %vm542, %v1847, %v1859
    %v1861 = vsel %vm544, %v1851, %v1860
    %v1862 = vsel %vm546, %v1855, %v1861
    %v1864 = vsel %vm549, %v1862, 0.0
    %1865 = vadd.xlane.f32.xlu0 %v1864
    %v1866 = vpop.xlane.xlu0 %1865
    %v1868 = vlaneseq
    %v1869 = vshrl.u32 %v1868, 7
    %v1870 = vsub.s32 0, %v1869
    %v1871 = vrot.slane %v1866, %v1870
    %v1872 = vlaneseq
    %v1873 = vshrl.u32 %v1872, 7
    %v1874 = vsub.s32 1, %v1873
    %v1875 = vrot.slane %v1866, %v1874
    %v1876 = vlaneseq
    %v1877 = vshrl.u32 %v1876, 7
    %v1878 = vsub.s32 2, %v1877
    %v1879 = vrot.slane %v1866, %v1878
    %v1880 = vlaneseq
    %v1881 = vshrl.u32 %v1880, 7
    %v1882 = vsub.s32 3, %v1881
    %v1883 = vrot.slane %v1866, %v1882
    %v1884 = vlaneseq
    %v1885 = vshrl.u32 %v1884, 7
    %v1886 = vsub.s32 4, %v1885
    %v1887 = vrot.slane %v1866, %v1886
    %v1888 = vlaneseq
    %v1889 = vshrl.u32 %v1888, 7
    %v1890 = vsub.s32 5, %v1889
    %v1891 = vrot.slane %v1866, %v1890
    %v1892 = vlaneseq
    %v1893 = vshrl.u32 %v1892, 7
    %v1894 = vsub.s32 6, %v1893
    %v1895 = vrot.slane %v1866, %v1894
    %v1896 = vlaneseq
    %v1897 = vshrl.u32 %v1896, 7
    %v1898 = vsub.s32 7, %v1897
    %v1899 = vrot.slane %v1866, %v1898
    %v1908 = vrcp.pop %v1871
    %v1909 = vmul.f32 %v1777, %v1908
    %v1910 = vrcp.pop %v1875
    %v1911 = vmul.f32 %v1779, %v1910
    %v1912 = vrcp.pop %v1879
    %v1913 = vmul.f32 %v1781, %v1912
    %v1914 = vrcp.pop %v1883
    %v1915 = vmul.f32 %v1783, %v1914
    %v1916 = vrcp.pop %v1887
    %v1917 = vmul.f32 %v1785, %v1916
    %v1918 = vrcp.pop %v1891
    %v1919 = vmul.f32 %v1787, %v1918
    %v1920 = vrcp.pop %v1895
    %v1921 = vmul.f32 %v1789, %v1920
    %v1922 = vrcp.pop %v1899
    %v1923 = vmul.f32 %v1791, %v1922
    %v1924 = vmul.f32 %v40, %v753
    %1926 = vrot.lane.b32.xlu0 %v1924, 32
    %v1927 = vpop.permute.xlu0 %1926
    %v1929 = vsub.f32 %v1470, %v1927
    %v1930 = vsub.f32 %v1474, %v1927
    %v1931 = vsub.f32 %v1478, %v1927
    %v1932 = vsub.f32 %v1482, %v1927
    %v1933 = vsub.f32 %v1486, %v1927
    %v1934 = vsub.f32 %v1490, %v1927
    %v1935 = vsub.f32 %v1494, %v1927
    %v1936 = vsub.f32 %v1498, %v1927
    %v1937 = vand.u32 2147483647, %v1929
    %v1938 = vand.u32 2147483647, %v1930
    %v1939 = vand.u32 2147483647, %v1931
    %v1940 = vand.u32 2147483647, %v1932
    %v1941 = vand.u32 2147483647, %v1933
    %v1942 = vand.u32 2147483647, %v1934
    %v1943 = vand.u32 2147483647, %v1935
    %v1944 = vand.u32 2147483647, %v1936
    %1953 = vrot.lane.b32.xlu0 %v1937, 96
    %v1954 = vpop.permute.xlu0 %1953
    %1955 = vrot.lane.b32.xlu0 %v1938, 96
    %v1956 = vpop.permute.xlu0 %1955
    %1957 = vrot.lane.b32.xlu0 %v1939, 96
    %v1958 = vpop.permute.xlu0 %1957
    %1959 = vrot.lane.b32.xlu0 %v1940, 96
    %v1960 = vpop.permute.xlu0 %1959
    %1961 = vrot.lane.b32.xlu0 %v1941, 96
    %v1962 = vpop.permute.xlu0 %1961
    %1963 = vrot.lane.b32.xlu0 %v1942, 96
    %v1964 = vpop.permute.xlu0 %1963
    %1965 = vrot.lane.b32.xlu0 %v1943, 96
    %v1966 = vpop.permute.xlu0 %1965
    %1967 = vrot.lane.b32.xlu0 %v1944, 96
    %v1968 = vpop.permute.xlu0 %1967
    %v1969 = vsel %vm59, %v1954, 0
    %v1971 = vsel %vm59, %v1956, 0
    %v1973 = vsel %vm59, %v1958, 0
    %v1975 = vsel %vm59, %v1960, 0
    %v1977 = vsel %vm59, %v1962, 0
    %v1979 = vsel %vm59, %v1964, 0
    %v1981 = vsel %vm59, %v1966, 0
    %v1983 = vsel %vm59, %v1968, 0
    %1985 = vmatprep.subr.mxu0 0.0
    %1986 = vmatpush1.msra.mxu0 0.0
    %1987 = vmatprep.subr.mxu0 0.0
    %1988 = vmatpush1.msra.mxu0 0.0
    %1989 = vmatprep.subr.mxu0 0.0
    %1990 = vmatpush1.msra.mxu0 0.0
    %1991 = vmatprep.subr.mxu0 0.0
    %1992 = vmatpush1.msra.mxu0 0.0
    %1993 = vmatprep.subr.mxu0 0.0
    %1994 = vmatpush1.msra.mxu0 0.0
    %1995 = vmatprep.subr.mxu0 0.0
    %1996 = vmatpush1.msra.mxu0 0.0
    %1997 = vmatprep.subr.mxu0 0.0
    %1998 = vmatpush1.msra.mxu0 0.0
    %1999 = vmatprep.subr.mxu0 0.0
    %2000 = vmatpush1.msra.mxu0 0.0
    %2001 = vmatprep.subr.mxu0 0.0
    %2002 = vmatpush1.msra.mxu0 0.0
    %2003 = vmatprep.subr.mxu0 0.0
    %2004 = vmatpush1.msra.mxu0 0.0
    %2005 = vmatprep.subr.mxu0 0.0
    %2006 = vmatpush1.msra.mxu0 0.0
    %2007 = vmatprep.subr.mxu0 0.0
    %2008 = vmatpush1.msra.mxu0 0.0
    %2009 = vmatprep.subr.mxu0 0.0
    %2010 = vmatpush1.msra.mxu0 -0.17677669
    %2011 = vmatprep.subr.mxu0 0.0
    %2012 = vmatpush1.msra.mxu0 -0.17677669
    %2013 = vmatprep.subr.mxu0 0.0
    %2014 = vmatpush1.msra.mxu0 -0.17677669
    %2015 = vmatprep.subr.mxu0 0.0
    %2016 = vmatpush1.msra.mxu0 -0.17677669
    %2017 = vmatprep.subr.mxu0 0.0
    %2018 = vmatpush2.msra.mxu0 0.0
    %2019 = vmatprep.subr.mxu0 0.0
    %2020 = vmatpush2.msra.mxu0 0.0
    %2021 = vmatprep.subr.mxu0 0.0
    %2022 = vmatpush2.msra.mxu0 0.0
    %2023 = vmatprep.subr.mxu0 0.0
    %2024 = vmatpush2.msra.mxu0 0.0
    %2025 = vmatprep.subr.mxu0 0.0
    %2026 = vmatpush2.msra.mxu0 0.0
    %2027 = vmatprep.subr.mxu0 0.0
    %2028 = vmatpush2.msra.mxu0 0.0
    %2029 = vmatprep.subr.mxu0 0.0
    %2030 = vmatpush2.msra.mxu0 0.0
    %2031 = vmatprep.subr.mxu0 0.0
    %2032 = vmatpush2.msra.mxu0 0.0
    %2033 = vmatprep.subr.mxu0 0.0
    %2034 = vmatpush2.msra.mxu0 0.0
    %2035 = vmatprep.subr.mxu0 0.0
    %2036 = vmatpush2.msra.mxu0 0.0
    %2037 = vmatprep.subr.mxu0 0.0
    %2038 = vmatpush2.msra.mxu0 0.0
    %2039 = vmatprep.subr.mxu0 0.0
    %2040 = vmatpush2.msra.mxu0 0.0
    %2041 = vmatprep.subr.mxu0 0.0
    %2042 = vmatpush2.msra.mxu0 0.0
    %2043 = vmatprep.subr.mxu0 0.0
    %2044 = vmatpush2.msra.mxu0 0.0
    %2045 = vmatprep.subr.mxu0 0.0
    %2046 = vmatpush2.msra.mxu0 0.0
    %2047 = vmatprep.subr.mxu0 0.0
    %2048 = vmatpush2.msra.mxu0 0.0
    %2049 = vmatprep.mubr.f32.mxu0 0.0
    %2050 = vmatmul.mubr.f32.gmra.mxu0 %v1969
    %v2051 = vpop.f32.mrf.mxu0
    %v2052 = vadd.f32 0.0, %v2051
    %v2053 = vpop.f32.mrf.mxu0
    %2054 = vmatprep.mubr.f32.mxu0 0.0
    %2055 = vmatmul.mubr.f32.gmra.mxu0 %v1971
    %v2056 = vpop.f32.mrf.mxu0
    %v2057 = vadd.f32 0.0, %v2056
    %v2058 = vpop.f32.mrf.mxu0
    %2059 = vmatprep.mubr.f32.mxu0 0.0
    %2060 = vmatmul.mubr.f32.gmra.mxu0 %v1973
    %v2061 = vpop.f32.mrf.mxu0
    %v2062 = vadd.f32 0.0, %v2061
    %v2063 = vpop.f32.mrf.mxu0
    %2064 = vmatprep.mubr.f32.mxu0 0.0
    %2065 = vmatmul.mubr.f32.gmra.mxu0 %v1975
    %v2066 = vpop.f32.mrf.mxu0
    %v2067 = vadd.f32 0.0, %v2066
    %v2068 = vpop.f32.mrf.mxu0
    %2069 = vmatprep.mubr.f32.mxu0 0.0
    %2070 = vmatmul.mubr.f32.gmra.mxu0 %v1977
    %v2071 = vpop.f32.mrf.mxu0
    %v2072 = vadd.f32 0.0, %v2071
    %v2073 = vpop.f32.mrf.mxu0
    %2074 = vmatprep.mubr.f32.mxu0 0.0
    %2075 = vmatmul.mubr.f32.gmra.mxu0 %v1979
    %v2076 = vpop.f32.mrf.mxu0
    %v2077 = vadd.f32 0.0, %v2076
    %v2078 = vpop.f32.mrf.mxu0
    %2079 = vmatprep.mubr.f32.mxu0 0.0
    %2080 = vmatmul.mubr.f32.gmra.mxu0 %v1981
    %v2081 = vpop.f32.mrf.mxu0
    %v2082 = vadd.f32 0.0, %v2081
    %v2083 = vpop.f32.mrf.mxu0
    %2084 = vmatprep.mubr.f32.mxu0 0.0
    %2085 = vmatmul.mubr.f32.gmra.mxu0 %v1983
    %v2086 = vpop.f32.mrf.mxu0
    %v2087 = vadd.f32 0.0, %v2086
    %v2088 = vpop.f32.mrf.mxu0
    %2089 = vdwg.mxu0
    %2098 = vset.pattern.permute.xlu0 0
    %2099 = vperm.xlu0 %2098, %v2052
    %v2100 = vpop.permute.xlu0 %2099
    %2101 = vset.pattern.permute.xlu0 0
    %2102 = vperm.xlu0 %2101, %v2057
    %v2103 = vpop.permute.xlu0 %2102
    %2104 = vset.pattern.permute.xlu0 0
    %2105 = vperm.xlu0 %2104, %v2062
    %v2106 = vpop.permute.xlu0 %2105
    %2107 = vset.pattern.permute.xlu0 0
    %2108 = vperm.xlu0 %2107, %v2067
    %v2109 = vpop.permute.xlu0 %2108
    %2110 = vset.pattern.permute.xlu0 0
    %2111 = vperm.xlu0 %2110, %v2072
    %v2112 = vpop.permute.xlu0 %2111
    %2113 = vset.pattern.permute.xlu0 0
    %2114 = vperm.xlu0 %2113, %v2077
    %v2115 = vpop.permute.xlu0 %2114
    %2116 = vset.pattern.permute.xlu0 0
    %2117 = vperm.xlu0 %2116, %v2082
    %v2118 = vpop.permute.xlu0 %2117
    %2119 = vset.pattern.permute.xlu0 0
    %2120 = vperm.xlu0 %2119, %v2087
    %v2121 = vpop.permute.xlu0 %2120
    %v2122 = vlaneseq
    %v2123 = vshrl.u32 %v2122, 7
    %v2124 = vsub.s32 %v32, %v2123
    %v2125 = vrot.slane %v2100, %v2124
    %v2126 = vlaneseq
    %v2127 = vshrl.u32 %v2126, 7
    %v2128 = vsub.s32 %v32, %v2127
    %v2129 = vrot.slane %v2103, %v2128
    %v2130 = vlaneseq
    %v2131 = vshrl.u32 %v2130, 7
    %v2132 = vsub.s32 %v32, %v2131
    %v2133 = vrot.slane %v2106, %v2132
    %v2134 = vlaneseq
    %v2135 = vshrl.u32 %v2134, 7
    %v2136 = vsub.s32 %v32, %v2135
    %v2137 = vrot.slane %v2109, %v2136
    %v2138 = vlaneseq
    %v2139 = vshrl.u32 %v2138, 7
    %v2140 = vsub.s32 %v32, %v2139
    %v2141 = vrot.slane %v2112, %v2140
    %v2142 = vlaneseq
    %v2143 = vshrl.u32 %v2142, 7
    %v2144 = vsub.s32 %v32, %v2143
    %v2145 = vrot.slane %v2115, %v2144
    %v2146 = vlaneseq
    %v2147 = vshrl.u32 %v2146, 7
    %v2148 = vsub.s32 %v32, %v2147
    %v2149 = vrot.slane %v2118, %v2148
    %v2150 = vlaneseq
    %v2151 = vshrl.u32 %v2150, 7
    %v2152 = vsub.s32 %v32, %v2151
    %v2153 = vrot.slane %v2121, %v2152
    %v2154 = vsel %vm534, %v2129, %v2125
    %v2155 = vsel %vm536, %v2133, %v2154
    %v2156 = vsel %vm538, %v2137, %v2155
    %v2157 = vsel %vm540, %v2141, %v2156
    %v2158 = vsel %vm542, %v2145, %v2157
    %v2159 = vsel %vm544, %v2149, %v2158
    %v2160 = vsel %vm546, %v2153, %v2159
    %v2162 = vsel %vm549, %v2160, -inf
    %2163 = vmax.xlane.f32.xlu0 %v2162
    %v2164 = vpop.xlane.xlu0 %2163
    %v2166 = vlaneseq
    %v2167 = vshrl.u32 %v2166, 7
    %v2168 = vsub.s32 0, %v2167
    %v2169 = vrot.slane %v2164, %v2168
    %v2170 = vlaneseq
    %v2171 = vshrl.u32 %v2170, 7
    %v2172 = vsub.s32 1, %v2171
    %v2173 = vrot.slane %v2164, %v2172
    %v2174 = vlaneseq
    %v2175 = vshrl.u32 %v2174, 7
    %v2176 = vsub.s32 2, %v2175
    %v2177 = vrot.slane %v2164, %v2176
    %v2178 = vlaneseq
    %v2179 = vshrl.u32 %v2178, 7
    %v2180 = vsub.s32 3, %v2179
    %v2181 = vrot.slane %v2164, %v2180
    %v2182 = vlaneseq
    %v2183 = vshrl.u32 %v2182, 7
    %v2184 = vsub.s32 4, %v2183
    %v2185 = vrot.slane %v2164, %v2184
    %v2186 = vlaneseq
    %v2187 = vshrl.u32 %v2186, 7
    %v2188 = vsub.s32 5, %v2187
    %v2189 = vrot.slane %v2164, %v2188
    %v2190 = vlaneseq
    %v2191 = vshrl.u32 %v2190, 7
    %v2192 = vsub.s32 6, %v2191
    %v2193 = vrot.slane %v2164, %v2192
    %v2194 = vlaneseq
    %v2195 = vshrl.u32 %v2194, 7
    %v2196 = vsub.s32 7, %v2195
    %v2197 = vrot.slane %v2164, %v2196
    %v2206 = vsub.f32 %v2052, %v2169
    %v2207 = vsub.f32 %v2057, %v2173
    %v2208 = vsub.f32 %v2062, %v2177
    %v2209 = vsub.f32 %v2067, %v2181
    %v2210 = vsub.f32 %v2072, %v2185
    %v2211 = vsub.f32 %v2077, %v2189
    %v2212 = vsub.f32 %v2082, %v2193
    %v2213 = vsub.f32 %v2087, %v2197
    %v2214 = vmul.f32 %v2206, 1.442695
    %v2215 = vpow.pop %v2214
    %v2216 = vmul.f32 %v2207, 1.442695
    %v2217 = vpow.pop %v2216
    %v2218 = vmul.f32 %v2208, 1.442695
    %v2219 = vpow.pop %v2218
    %v2220 = vmul.f32 %v2209, 1.442695
    %v2221 = vpow.pop %v2220
    %v2222 = vmul.f32 %v2210, 1.442695
    %v2223 = vpow.pop %v2222
    %v2224 = vmul.f32 %v2211, 1.442695
    %v2225 = vpow.pop %v2224
    %v2226 = vmul.f32 %v2212, 1.442695
    %v2227 = vpow.pop %v2226
    %v2228 = vmul.f32 %v2213, 1.442695
    %v2229 = vpow.pop %v2228
    %2238 = vset.pattern.permute.xlu0 0
    %2239 = vperm.xlu0 %2238, %v2215
    %v2240 = vpop.permute.xlu0 %2239
    %2241 = vset.pattern.permute.xlu0 0
    %2242 = vperm.xlu0 %2241, %v2217
    %v2243 = vpop.permute.xlu0 %2242
    %2244 = vset.pattern.permute.xlu0 0
    %2245 = vperm.xlu0 %2244, %v2219
    %v2246 = vpop.permute.xlu0 %2245
    %2247 = vset.pattern.permute.xlu0 0
    %2248 = vperm.xlu0 %2247, %v2221
    %v2249 = vpop.permute.xlu0 %2248
    %2250 = vset.pattern.permute.xlu0 0
    %2251 = vperm.xlu0 %2250, %v2223
    %v2252 = vpop.permute.xlu0 %2251
    %2253 = vset.pattern.permute.xlu0 0
    %2254 = vperm.xlu0 %2253, %v2225
    %v2255 = vpop.permute.xlu0 %2254
    %2256 = vset.pattern.permute.xlu0 0
    %2257 = vperm.xlu0 %2256, %v2227
    %v2258 = vpop.permute.xlu0 %2257
    %2259 = vset.pattern.permute.xlu0 0
    %2260 = vperm.xlu0 %2259, %v2229
    %v2261 = vpop.permute.xlu0 %2260
    %v2262 = vlaneseq
    %v2263 = vshrl.u32 %v2262, 7
    %v2264 = vsub.s32 %v32, %v2263
    %v2265 = vrot.slane %v2240, %v2264
    %v2266 = vlaneseq
    %v2267 = vshrl.u32 %v2266, 7
    %v2268 = vsub.s32 %v32, %v2267
    %v2269 = vrot.slane %v2243, %v2268
    %v2270 = vlaneseq
    %v2271 = vshrl.u32 %v2270, 7
    %v2272 = vsub.s32 %v32, %v2271
    %v2273 = vrot.slane %v2246, %v2272
    %v2274 = vlaneseq
    %v2275 = vshrl.u32 %v2274, 7
    %v2276 = vsub.s32 %v32, %v2275
    %v2277 = vrot.slane %v2249, %v2276
    %v2278 = vlaneseq
    %v2279 = vshrl.u32 %v2278, 7
    %v2280 = vsub.s32 %v32, %v2279
    %v2281 = vrot.slane %v2252, %v2280
    %v2282 = vlaneseq
    %v2283 = vshrl.u32 %v2282, 7
    %v2284 = vsub.s32 %v32, %v2283
    %v2285 = vrot.slane %v2255, %v2284
    %v2286 = vlaneseq
    %v2287 = vshrl.u32 %v2286, 7
    %v2288 = vsub.s32 %v32, %v2287
    %v2289 = vrot.slane %v2258, %v2288
    %v2290 = vlaneseq
    %v2291 = vshrl.u32 %v2290, 7
    %v2292 = vsub.s32 %v32, %v2291
    %v2293 = vrot.slane %v2261, %v2292
    %v2294 = vsel %vm534, %v2269, %v2265
    %v2295 = vsel %vm536, %v2273, %v2294
    %v2296 = vsel %vm538, %v2277, %v2295
    %v2297 = vsel %vm540, %v2281, %v2296
    %v2298 = vsel %vm542, %v2285, %v2297
    %v2299 = vsel %vm544, %v2289, %v2298
    %v2300 = vsel %vm546, %v2293, %v2299
    %v2302 = vsel %vm549, %v2300, 0.0
    %2303 = vadd.xlane.f32.xlu0 %v2302
    %v2304 = vpop.xlane.xlu0 %2303
    %v2306 = vlaneseq
    %v2307 = vshrl.u32 %v2306, 7
    %v2308 = vsub.s32 0, %v2307
    %v2309 = vrot.slane %v2304, %v2308
    %v2310 = vlaneseq
    %v2311 = vshrl.u32 %v2310, 7
    %v2312 = vsub.s32 1, %v2311
    %v2313 = vrot.slane %v2304, %v2312
    %v2314 = vlaneseq
    %v2315 = vshrl.u32 %v2314, 7
    %v2316 = vsub.s32 2, %v2315
    %v2317 = vrot.slane %v2304, %v2316
    %v2318 = vlaneseq
    %v2319 = vshrl.u32 %v2318, 7
    %v2320 = vsub.s32 3, %v2319
    %v2321 = vrot.slane %v2304, %v2320
    %v2322 = vlaneseq
    %v2323 = vshrl.u32 %v2322, 7
    %v2324 = vsub.s32 4, %v2323
    %v2325 = vrot.slane %v2304, %v2324
    %v2326 = vlaneseq
    %v2327 = vshrl.u32 %v2326, 7
    %v2328 = vsub.s32 5, %v2327
    %v2329 = vrot.slane %v2304, %v2328
    %v2330 = vlaneseq
    %v2331 = vshrl.u32 %v2330, 7
    %v2332 = vsub.s32 6, %v2331
    %v2333 = vrot.slane %v2304, %v2332
    %v2334 = vlaneseq
    %v2335 = vshrl.u32 %v2334, 7
    %v2336 = vsub.s32 7, %v2335
    %v2337 = vrot.slane %v2304, %v2336
    %v2346 = vrcp.pop %v2309
    %v2347 = vmul.f32 %v2215, %v2346
    %v2348 = vrcp.pop %v2313
    %v2349 = vmul.f32 %v2217, %v2348
    %v2350 = vrcp.pop %v2317
    %v2351 = vmul.f32 %v2219, %v2350
    %v2352 = vrcp.pop %v2321
    %v2353 = vmul.f32 %v2221, %v2352
    %v2354 = vrcp.pop %v2325
    %v2355 = vmul.f32 %v2223, %v2354
    %v2356 = vrcp.pop %v2329
    %v2357 = vmul.f32 %v2225, %v2356
    %v2358 = vrcp.pop %v2333
    %v2359 = vmul.f32 %v2227, %v2358
    %v2360 = vrcp.pop %v2337
    %v2361 = vmul.f32 %v2229, %v2360
    %2370 = vset.pattern.permute.xlu0 0
    %2371 = vperm.xlu0 %2370, %v1909
    %v2372 = vpop.permute.xlu0 %2371
    %2373 = vset.pattern.permute.xlu0 0
    %2374 = vperm.xlu0 %2373, %v1911
    %v2375 = vpop.permute.xlu0 %2374
    %2376 = vset.pattern.permute.xlu0 0
    %2377 = vperm.xlu0 %2376, %v1913
    %v2378 = vpop.permute.xlu0 %2377
    %2379 = vset.pattern.permute.xlu0 0
    %2380 = vperm.xlu0 %2379, %v1915
    %v2381 = vpop.permute.xlu0 %2380
    %2382 = vset.pattern.permute.xlu0 0
    %2383 = vperm.xlu0 %2382, %v1917
    %v2384 = vpop.permute.xlu0 %2383
    %2385 = vset.pattern.permute.xlu0 0
    %2386 = vperm.xlu0 %2385, %v1919
    %v2387 = vpop.permute.xlu0 %2386
    %2388 = vset.pattern.permute.xlu0 0
    %2389 = vperm.xlu0 %2388, %v1921
    %v2390 = vpop.permute.xlu0 %2389
    %2391 = vset.pattern.permute.xlu0 0
    %2392 = vperm.xlu0 %2391, %v1923
    %v2393 = vpop.permute.xlu0 %2392
    %v2394 = vlaneseq
    %v2395 = vshrl.u32 %v2394, 7
    %v2396 = vsub.s32 %v32, %v2395
    %v2397 = vrot.slane %v2372, %v2396
    %v2398 = vlaneseq
    %v2399 = vshrl.u32 %v2398, 7
    %v2400 = vsub.s32 %v32, %v2399
    %v2401 = vrot.slane %v2375, %v2400
    %v2402 = vlaneseq
    %v2403 = vshrl.u32 %v2402, 7
    %v2404 = vsub.s32 %v32, %v2403
    %v2405 = vrot.slane %v2378, %v2404
    %v2406 = vlaneseq
    %v2407 = vshrl.u32 %v2406, 7
    %v2408 = vsub.s32 %v32, %v2407
    %v2409 = vrot.slane %v2381, %v2408
    %v2410 = vlaneseq
    %v2411 = vshrl.u32 %v2410, 7
    %v2412 = vsub.s32 %v32, %v2411
    %v2413 = vrot.slane %v2384, %v2412
    %v2414 = vlaneseq
    %v2415 = vshrl.u32 %v2414, 7
    %v2416 = vsub.s32 %v32, %v2415
    %v2417 = vrot.slane %v2387, %v2416
    %v2418 = vlaneseq
    %v2419 = vshrl.u32 %v2418, 7
    %v2420 = vsub.s32 %v32, %v2419
    %v2421 = vrot.slane %v2390, %v2420
    %v2422 = vlaneseq
    %v2423 = vshrl.u32 %v2422, 7
    %v2424 = vsub.s32 %v32, %v2423
    %v2425 = vrot.slane %v2393, %v2424
    %v2426 = vsel %vm534, %v2401, %v2397
    %v2427 = vsel %vm536, %v2405, %v2426
    %v2428 = vsel %vm538, %v2409, %v2427
    %v2429 = vsel %vm540, %v2413, %v2428
    %v2430 = vsel %vm542, %v2417, %v2429
    %v2431 = vsel %vm544, %v2421, %v2430
    %v2432 = vsel %vm546, %v2425, %v2431
    %2442 = vset.pattern.permute.xlu0 0
    %2443 = vperm.xlu0 %2442, %v2347
    %v2444 = vpop.permute.xlu0 %2443
    %2445 = vset.pattern.permute.xlu0 0
    %2446 = vperm.xlu0 %2445, %v2349
    %v2447 = vpop.permute.xlu0 %2446
    %2448 = vset.pattern.permute.xlu0 0
    %2449 = vperm.xlu0 %2448, %v2351
    %v2450 = vpop.permute.xlu0 %2449
    %2451 = vset.pattern.permute.xlu0 0
    %2452 = vperm.xlu0 %2451, %v2353
    %v2453 = vpop.permute.xlu0 %2452
    %2454 = vset.pattern.permute.xlu0 0
    %2455 = vperm.xlu0 %2454, %v2355
    %v2456 = vpop.permute.xlu0 %2455
    %2457 = vset.pattern.permute.xlu0 0
    %2458 = vperm.xlu0 %2457, %v2357
    %v2459 = vpop.permute.xlu0 %2458
    %2460 = vset.pattern.permute.xlu0 0
    %2461 = vperm.xlu0 %2460, %v2359
    %v2462 = vpop.permute.xlu0 %2461
    %2463 = vset.pattern.permute.xlu0 0
    %2464 = vperm.xlu0 %2463, %v2361
    %v2465 = vpop.permute.xlu0 %2464
    %v2466 = vlaneseq
    %v2467 = vshrl.u32 %v2466, 7
    %v2468 = vsub.s32 %v1296, %v2467
    %v2469 = vrot.slane %v2444, %v2468
    %v2470 = vlaneseq
    %v2471 = vshrl.u32 %v2470, 7
    %v2472 = vsub.s32 %v1296, %v2471
    %v2473 = vrot.slane %v2447, %v2472
    %v2474 = vlaneseq
    %v2475 = vshrl.u32 %v2474, 7
    %v2476 = vsub.s32 %v1296, %v2475
    %v2477 = vrot.slane %v2450, %v2476
    %v2478 = vlaneseq
    %v2479 = vshrl.u32 %v2478, 7
    %v2480 = vsub.s32 %v1296, %v2479
    %v2481 = vrot.slane %v2453, %v2480
    %v2482 = vlaneseq
    %v2483 = vshrl.u32 %v2482, 7
    %v2484 = vsub.s32 %v1296, %v2483
    %v2485 = vrot.slane %v2456, %v2484
    %v2486 = vlaneseq
    %v2487 = vshrl.u32 %v2486, 7
    %v2488 = vsub.s32 %v1296, %v2487
    %v2489 = vrot.slane %v2459, %v2488
    %v2490 = vlaneseq
    %v2491 = vshrl.u32 %v2490, 7
    %v2492 = vsub.s32 %v1296, %v2491
    %v2493 = vrot.slane %v2462, %v2492
    %v2494 = vlaneseq
    %v2495 = vshrl.u32 %v2494, 7
    %v2496 = vsub.s32 %v1296, %v2495
    %v2497 = vrot.slane %v2465, %v2496
    %v2498 = vsel %vm534, %v2473, %v2469
    %v2499 = vsel %vm536, %v2477, %v2498
    %v2500 = vsel %vm538, %v2481, %v2499
    %v2501 = vsel %vm540, %v2485, %v2500
    %v2502 = vsel %vm542, %v2489, %v2501
    %v2503 = vsel %vm544, %v2493, %v2502
    %v2504 = vsel %vm546, %v2497, %v2503
    %v2506 = vsel %vm549, %v2432, %v2504
    %2508 = vrot.lane.b32.xlu0 %v229, 96
    %v2509 = vpop.permute.xlu0 %2508
    %v2512 = vsel %vm1342, %v2506, 0
    %2514 = vmatprep.subr.mxu0 0.0
    %2515 = vmatpush1.msra.mxu0 0.0
    %2516 = vmatprep.subr.mxu0 0.0
    %2517 = vmatpush1.msra.mxu0 0.0
    %2518 = vmatprep.subr.mxu0 0.0
    %2519 = vmatpush1.msra.mxu0 0.0
    %2520 = vmatprep.subr.mxu0 0.0
    %2521 = vmatpush1.msra.mxu0 0.0
    %2522 = vmatprep.subr.mxu0 0.0
    %2523 = vmatpush1.msra.mxu0 0.0
    %2524 = vmatprep.subr.mxu0 0.0
    %2525 = vmatpush1.msra.mxu0 0.0
    %2526 = vmatprep.subr.mxu0 0.0
    %2527 = vmatpush1.msra.mxu0 0.0
    %2528 = vmatprep.subr.mxu0 0.0
    %2529 = vmatpush1.msra.mxu0 0.0
    %2530 = vmatprep.subr.mxu0 0.0
    %2531 = vmatpush1.msra.mxu0 0.0
    %2532 = vmatprep.subr.mxu0 0.0
    %2533 = vmatpush1.msra.mxu0 0.0
    %2534 = vmatprep.subr.mxu0 0.0
    %2535 = vmatpush1.msra.mxu0 0.0
    %2536 = vmatprep.subr.mxu0 0.0
    %2537 = vmatpush1.msra.mxu0 0.0
    %2538 = vmatprep.subr.mxu0 0.0
    %2539 = vmatpush1.msra.mxu0 0.0
    %2540 = vmatprep.subr.mxu0 0.0
    %2541 = vmatpush1.msra.mxu0 0.0
    %2542 = vmatprep.subr.mxu0 0.0
    %2543 = vmatpush1.msra.mxu0 %v2509
    %2544 = vmatprep.subr.mxu0 0.0
    %2545 = vmatpush1.msra.mxu0 %v229
    %2546 = vmatprep.subr.mxu0 0.0
    %2547 = vmatpush2.msra.mxu0 0.0
    %2548 = vmatprep.subr.mxu0 0.0
    %2549 = vmatpush2.msra.mxu0 0.0
    %2550 = vmatprep.subr.mxu0 0.0
    %2551 = vmatpush2.msra.mxu0 0.0
    %2552 = vmatprep.subr.mxu0 0.0
    %2553 = vmatpush2.msra.mxu0 0.0
    %2554 = vmatprep.subr.mxu0 0.0
    %2555 = vmatpush2.msra.mxu0 0.0
    %2556 = vmatprep.subr.mxu0 0.0
    %2557 = vmatpush2.msra.mxu0 0.0
    %2558 = vmatprep.subr.mxu0 0.0
    %2559 = vmatpush2.msra.mxu0 0.0
    %2560 = vmatprep.subr.mxu0 0.0
    %2561 = vmatpush2.msra.mxu0 0.0
    %2562 = vmatprep.subr.mxu0 0.0
    %2563 = vmatpush2.msra.mxu0 0.0
    %2564 = vmatprep.subr.mxu0 0.0
    %2565 = vmatpush2.msra.mxu0 0.0
    %2566 = vmatprep.subr.mxu0 0.0
    %2567 = vmatpush2.msra.mxu0 0.0
    %2568 = vmatprep.subr.mxu0 0.0
    %2569 = vmatpush2.msra.mxu0 0.0
    %2570 = vmatprep.subr.mxu0 0.0
    %2571 = vmatpush2.msra.mxu0 0.0
    %2572 = vmatprep.subr.mxu0 0.0
    %2573 = vmatpush2.msra.mxu0 0.0
    %2574 = vmatprep.subr.mxu0 0.0
    %2575 = vmatpush2.msra.mxu0 0.0
    %2576 = vmatprep.subr.mxu0 0.0
    %2577 = vmatpush2.msra.mxu0 0.0
    %2578 = vmatprep.mubr.f32.mxu0 0.0
    %2579 = vmatmul.mubr.f32.gmra.mxu0 %v2512
    %v2580 = vpop.f32.mrf.mxu0
    %v2581 = vadd.f32 0.0, %v2580
    %v2582 = vpop.f32.mrf.mxu0
    %2583 = vdwg.mxu0
    %v2584 = vmul.f32 %v1413, 1.702
    %v2585 = vmul.f32 %v2581, 1.702
    %v2586 = vxor.u32 %v2584, 2147483648
    %v2587 = vxor.u32 %v2585, 2147483648
    %v2588 = vmul.f32 %v2586, 1.442695
    %v2589 = vpow.pop %v2588
    %v2590 = vmul.f32 %v2587, 1.442695
    %v2591 = vpow.pop %v2590
    %v2592 = vadd.f32 %v2589, 1.0
    %v2593 = vadd.f32 %v2591, 1.0
    %v2594 = vrcp.pop %v2592
    %v2595 = vmul.f32 1.0, %v2594
    %v2596 = vrcp.pop %v2593
    %v2597 = vmul.f32 1.0, %v2596
    %v2598 = vmul.f32 %v1413, %v2595
    %v2599 = vmul.f32 %v2581, %v2597
    %v2600 = vadd.f32 %v39, %v2598
    %v2601 = vadd.f32 %v40, %v2599
    %s2602 = scalar_lea.vmem %s1, 32
    %v2603 = vld [vmem:[%s2602] sm:$0xff]
    %v2604 = vld [vmem:[%s2602 + $0x8] sm:$0xff]
    %v2605 = vld [vmem:[%s2602 + $0x10] sm:$0xff]
    %v2606 = vld [vmem:[%s2602 + $0x18] sm:$0xff]
    %s2607 = scalar_lea.vmem %s3, 32
    %v2608 = vld [vmem:[%s2607] sm:$0xff]
    %v2609 = vld [vmem:[%s2607 + $0x8] sm:$0xff]
    %v2610 = vld [vmem:[%s2607 + $0x10] sm:$0xff]
    %v2611 = vld [vmem:[%s2607 + $0x18] sm:$0xff]
    %s2612 = scalar_lea.vmem %s2, 1
    %v2613 = vld [vmem:[%s2612] sm:$0x1]
    %s2614 = scalar_lea.vmem %s4, 1
    %v2615 = vld [vmem:[%s2614] sm:$0x1]
    %s2616 = scalar_lea.vmem %s5, 2
    %v2617 = vld [vmem:[%s2616] sm:$0x3]
    %s2618 = scalar_lea.vmem %s6, 1
    %v2619 = vld [vmem:[%s2618] sm:$0x1]
    %v2621 = vlaneseq
    %v2622 = vshrl.u32 %v2621, 7
    %v2623 = vsub.s32 0, %v2622
    %v2624 = vrot.slane %v2613, %v2623
    %v2627 = vsel %vm59, %v2600, 0
    %v2630 = vsel %vm59, %v2601, 0
    %2632 = vmatprep.subr.mxu0 0.0
    %2633 = vmatpush1.msra.mxu0 0.0
    %2634 = vmatprep.subr.mxu0 0.0
    %2635 = vmatpush1.msra.mxu0 0.0
    %2636 = vmatprep.subr.mxu0 0.0
    %2637 = vmatpush1.msra.mxu0 0.0
    %2638 = vmatprep.subr.mxu0 0.0
    %2639 = vmatpush1.msra.mxu0 0.0
    %2640 = vmatprep.subr.mxu0 0.0
    %2641 = vmatpush1.msra.mxu0 0.0
    %2642 = vmatprep.subr.mxu0 0.0
    %2643 = vmatpush1.msra.mxu0 0.0
    %2644 = vmatprep.subr.mxu0 0.0
    %2645 = vmatpush1.msra.mxu0 0.0
    %2646 = vmatprep.subr.mxu0 0.0
    %2647 = vmatpush1.msra.mxu0 0.0
    %2648 = vmatprep.subr.mxu0 0.0
    %2649 = vmatpush1.msra.mxu0 0.0
    %2650 = vmatprep.subr.mxu0 0.0
    %2651 = vmatpush1.msra.mxu0 0.0
    %2652 = vmatprep.subr.mxu0 0.0
    %2653 = vmatpush1.msra.mxu0 0.0
    %2654 = vmatprep.subr.mxu0 0.0
    %2655 = vmatpush1.msra.mxu0 0.0
    %2656 = vmatprep.subr.mxu0 0.0
    %2657 = vmatpush1.msra.mxu0 %v2606
    %2658 = vmatprep.subr.mxu0 0.0
    %2659 = vmatpush1.msra.mxu0 %v2605
    %2660 = vmatprep.subr.mxu0 0.0
    %2661 = vmatpush1.msra.mxu0 %v2604
    %2662 = vmatprep.subr.mxu0 0.0
    %2663 = vmatpush1.msra.mxu0 %v2603
    %2664 = vmatprep.subr.mxu0 0.0
    %2665 = vmatpush2.msra.mxu0 0.0
    %2666 = vmatprep.subr.mxu0 0.0
    %2667 = vmatpush2.msra.mxu0 0.0
    %2668 = vmatprep.subr.mxu0 0.0
    %2669 = vmatpush2.msra.mxu0 0.0
    %2670 = vmatprep.subr.mxu0 0.0
    %2671 = vmatpush2.msra.mxu0 0.0
    %2672 = vmatprep.subr.mxu0 0.0
    %2673 = vmatpush2.msra.mxu0 0.0
    %2674 = vmatprep.subr.mxu0 0.0
    %2675 = vmatpush2.msra.mxu0 0.0
    %2676 = vmatprep.subr.mxu0 0.0
    %2677 = vmatpush2.msra.mxu0 0.0
    %2678 = vmatprep.subr.mxu0 0.0
    %2679 = vmatpush2.msra.mxu0 0.0
    %2680 = vmatprep.subr.mxu0 0.0
    %2681 = vmatpush2.msra.mxu0 0.0
    %2682 = vmatprep.subr.mxu0 0.0
    %2683 = vmatpush2.msra.mxu0 0.0
    %2684 = vmatprep.subr.mxu0 0.0
    %2685 = vmatpush2.msra.mxu0 0.0
    %2686 = vmatprep.subr.mxu0 0.0
    %2687 = vmatpush2.msra.mxu0 0.0
    %2688 = vmatprep.subr.mxu0 0.0
    %2689 = vmatpush2.msra.mxu0 0.0
    %2690 = vmatprep.subr.mxu0 0.0
    %2691 = vmatpush2.msra.mxu0 0.0
    %2692 = vmatprep.subr.mxu0 0.0
    %2693 = vmatpush2.msra.mxu0 0.0
    %2694 = vmatprep.subr.mxu0 0.0
    %2695 = vmatpush2.msra.mxu0 0.0
    %2696 = vmatprep.mubr.f32.mxu0 0.0
    %2697 = vmatmul.mubr.f32.gmra.mxu0 %v2627
    %v2698 = vpop.f32.mrf.mxu0
    %v2699 = vadd.f32 %v2624, %v2698
    %v2700 = vpop.f32.mrf.mxu0
    %2701 = vmatprep.mubr.f32.mxu0 0.0
    %2702 = vmatmul.mubr.f32.gmra.mxu0 %v2630
    %v2703 = vpop.f32.mrf.mxu0
    %v2704 = vadd.f32 %v2624, %v2703
    %v2705 = vpop.f32.mrf.mxu0
    %2706 = vdwg.mxu0
    %v2708 = vlaneseq
    %v2709 = vshrl.u32 %v2708, 7
    %v2710 = vsub.s32 0, %v2709
    %v2711 = vrot.slane %v2615, %v2710
    %2713 = vmatprep.subr.mxu0 0.0
    %2714 = vmatpush1.msra.mxu0 0.0
    %2715 = vmatprep.subr.mxu0 0.0
    %2716 = vmatpush1.msra.mxu0 0.0
    %2717 = vmatprep.subr.mxu0 0.0
    %2718 = vmatpush1.msra.mxu0 0.0
    %2719 = vmatprep.subr.mxu0 0.0
    %2720 = vmatpush1.msra.mxu0 0.0
    %2721 = vmatprep.subr.mxu0 0.0
    %2722 = vmatpush1.msra.mxu0 0.0
    %2723 = vmatprep.subr.mxu0 0.0
    %2724 = vmatpush1.msra.mxu0 0.0
    %2725 = vmatprep.subr.mxu0 0.0
    %2726 = vmatpush1.msra.mxu0 0.0
    %2727 = vmatprep.subr.mxu0 0.0
    %2728 = vmatpush1.msra.mxu0 0.0
    %2729 = vmatprep.subr.mxu0 0.0
    %2730 = vmatpush1.msra.mxu0 0.0
    %2731 = vmatprep.subr.mxu0 0.0
    %2732 = vmatpush1.msra.mxu0 0.0
    %2733 = vmatprep.subr.mxu0 0.0
    %2734 = vmatpush1.msra.mxu0 0.0
    %2735 = vmatprep.subr.mxu0 0.0
    %2736 = vmatpush1.msra.mxu0 0.0
    %2737 = vmatprep.subr.mxu0 0.0
    %2738 = vmatpush1.msra.mxu0 %v2611
    %2739 = vmatprep.subr.mxu0 0.0
    %2740 = vmatpush1.msra.mxu0 %v2610
    %2741 = vmatprep.subr.mxu0 0.0
    %2742 = vmatpush1.msra.mxu0 %v2609
    %2743 = vmatprep.subr.mxu0 0.0
    %2744 = vmatpush1.msra.mxu0 %v2608
    %2745 = vmatprep.subr.mxu0 0.0
    %2746 = vmatpush2.msra.mxu0 0.0
    %2747 = vmatprep.subr.mxu0 0.0
    %2748 = vmatpush2.msra.mxu0 0.0
    %2749 = vmatprep.subr.mxu0 0.0
    %2750 = vmatpush2.msra.mxu0 0.0
    %2751 = vmatprep.subr.mxu0 0.0
    %2752 = vmatpush2.msra.mxu0 0.0
    %2753 = vmatprep.subr.mxu0 0.0
    %2754 = vmatpush2.msra.mxu0 0.0
    %2755 = vmatprep.subr.mxu0 0.0
    %2756 = vmatpush2.msra.mxu0 0.0
    %2757 = vmatprep.subr.mxu0 0.0
    %2758 = vmatpush2.msra.mxu0 0.0
    %2759 = vmatprep.subr.mxu0 0.0
    %2760 = vmatpush2.msra.mxu0 0.0
    %2761 = vmatprep.subr.mxu0 0.0
    %2762 = vmatpush2.msra.mxu0 0.0
    %2763 = vmatprep.subr.mxu0 0.0
    %2764 = vmatpush2.msra.mxu0 0.0
    %2765 = vmatprep.subr.mxu0 0.0
    %2766 = vmatpush2.msra.mxu0 0.0
    %2767 = vmatprep.subr.mxu0 0.0
    %2768 = vmatpush2.msra.mxu0 0.0
    %2769 = vmatprep.subr.mxu0 0.0
    %2770 = vmatpush2.msra.mxu0 0.0
    %2771 = vmatprep.subr.mxu0 0.0
    %2772 = vmatpush2.msra.mxu0 0.0
    %2773 = vmatprep.subr.mxu0 0.0
    %2774 = vmatpush2.msra.mxu0 0.0
    %2775 = vmatprep.subr.mxu0 0.0
    %2776 = vmatpush2.msra.mxu0 0.0
    %2777 = vmatprep.mubr.f32.mxu0 0.0
    %2778 = vmatmul.mubr.f32.gmra.mxu0 %v2627
    %v2779 = vpop.f32.mrf.mxu0
    %v2780 = vadd.f32 %v2711, %v2779
    %v2781 = vpop.f32.mrf.mxu0
    %2782 = vmatprep.mubr.f32.mxu0 0.0
    %2783 = vmatmul.mubr.f32.gmra.mxu0 %v2630
    %v2784 = vpop.f32.mrf.mxu0
    %v2785 = vadd.f32 %v2711, %v2784
    %v2786 = vpop.f32.mrf.mxu0
    %2787 = vdwg.mxu0
    %v2789 = vlaneseq
    %v2790 = vshrl.u32 %v2789, 7
    %v2791 = vsub.s32 0, %v2790
    %v2792 = vrot.slane %v2619, %v2791
    %v2794 = vmul.f32 %v2780, %v2792
    %v2795 = vmul.f32 %v2785, %v2792
    %v2796 = vlaneseq
    %v2797 = vshrl.u32 %v2796, 7
    %v2798 = vsub.s32 0, %v2797
    %v2799 = vrot.slane %v2617, %v2798
    %v2800 = vmul.f32 %v2600, %v2799
    %v2802 = vcombine.high %v2699, %v2699
    %v2804 = vunpack.c.l.s4 1966171168
    %v2805 = vunpack.c.0.s8 %v2804
    %v2806 = vlaneseq
    %v2807 = vshrl.u32 %v2806, 7
    %v2808 = vsub.s32 %v2805, %v2807
    %v2809 = vrot.slane %v2699, %v2808
    %v2811 = vunpack.c.l.s4 1966171168
    %v2812 = vunpack.c.0.s8 %v2811
    %v2813 = vlaneseq
    %v2814 = vshrl.u32 %v2813, 7
    %v2815 = vsub.s32 %v2812, %v2814
    %v2816 = vrot.slane %v2802, %v2815
    %v2817 = vcombine.high %v2809, %v2809
    %v2818 = vcombine.high %v2816, %v2816
    %v2820 = vunpack.c.l.s4 1966171168
    %v2821 = vunpack.c.0.s8 %v2820
    %v2822 = vlaneseq
    %v2823 = vshrl.u32 %v2822, 7
    %v2824 = vsub.s32 %v2821, %v2823
    %v2825 = vrot.slane %v2809, %v2824
    %v2827 = vunpack.c.l.s4 1966171168
    %v2828 = vunpack.c.0.s8 %v2827
    %v2829 = vlaneseq
    %v2830 = vshrl.u32 %v2829, 7
    %v2831 = vsub.s32 %v2828, %v2830
    %v2832 = vrot.slane %v2816, %v2831
    %v2834 = vunpack.c.l.s4 1966171168
    %v2835 = vunpack.c.0.s8 %v2834
    %v2836 = vlaneseq
    %v2837 = vshrl.u32 %v2836, 7
    %v2838 = vsub.s32 %v2835, %v2837
    %v2839 = vrot.slane %v2817, %v2838
    %v2841 = vunpack.c.l.s4 1966171168
    %v2842 = vunpack.c.0.s8 %v2841
    %v2843 = vlaneseq
    %v2844 = vshrl.u32 %v2843, 7
    %v2845 = vsub.s32 %v2842, %v2844
    %v2846 = vrot.slane %v2818, %v2845
    %v2847 = vcombine.high %v2825, %v2825
    %v2848 = vcombine.high %v2832, %v2832
    %v2849 = vcombine.high %v2839, %v2839
    %v2850 = vcombine.high %v2846, %v2846
    %v2851 = vlaneseq
    %v2852 = vshrl.u32 %v2851, 7
    %v2853 = vsub.s32 0, %v2852
    %v2854 = vrot.slane %v2825, %v2853
    %v2855 = vlaneseq
    %v2856 = vshrl.u32 %v2855, 7
    %v2857 = vsub.s32 0, %v2856
    %v2858 = vrot.slane %v2839, %v2857
    %v2859 = vlaneseq
    %v2860 = vshrl.u32 %v2859, 7
    %v2861 = vsub.s32 0, %v2860
    %v2862 = vrot.slane %v2847, %v2861
    %v2863 = vlaneseq
    %v2864 = vshrl.u32 %v2863, 7
    %v2865 = vsub.s32 0, %v2864
    %v2866 = vrot.slane %v2849, %v2865
    %v2867 = vlaneseq
    %v2868 = vshrl.u32 %v2867, 7
    %v2869 = vsub.s32 0, %v2868
    %v2870 = vrot.slane %v2832, %v2869
    %v2871 = vlaneseq
    %v2872 = vshrl.u32 %v2871, 7
    %v2873 = vsub.s32 0, %v2872
    %v2874 = vrot.slane %v2846, %v2873
    %v2875 = vlaneseq
    %v2876 = vshrl.u32 %v2875, 7
    %v2877 = vsub.s32 0, %v2876
    %v2878 = vrot.slane %v2848, %v2877
    %v2879 = vlaneseq
    %v2880 = vshrl.u32 %v2879, 7
    %v2881 = vsub.s32 0, %v2880
    %v2882 = vrot.slane %v2850, %v2881
    %v2891 = vsub.f32 %v2854, %v2800
    %v2892 = vsub.f32 %v2858, %v2800
    %v2893 = vsub.f32 %v2862, %v2800
    %v2894 = vsub.f32 %v2866, %v2800
    %v2895 = vsub.f32 %v2870, %v2800
    %v2896 = vsub.f32 %v2874, %v2800
    %v2897 = vsub.f32 %v2878, %v2800
    %v2898 = vsub.f32 %v2882, %v2800
    %v2899 = vand.u32 2147483647, %v2891
    %v2900 = vand.u32 2147483647, %v2892
    %v2901 = vand.u32 2147483647, %v2893
    %v2902 = vand.u32 2147483647, %v2894
    %v2903 = vand.u32 2147483647, %v2895
    %v2904 = vand.u32 2147483647, %v2896
    %v2905 = vand.u32 2147483647, %v2897
    %v2906 = vand.u32 2147483647, %v2898
    %v2908 = vsel %vm59, %v2899, 0
    %v2911 = vsel %vm59, %v2900, 0
    %v2914 = vsel %vm59, %v2901, 0
    %v2917 = vsel %vm59, %v2902, 0
    %v2920 = vsel %vm59, %v2903, 0
    %v2923 = vsel %vm59, %v2904, 0
    %v2926 = vsel %vm59, %v2905, 0
    %v2929 = vsel %vm59, %v2906, 0
    %2931 = vmatprep.subr.mxu0 0.0
    %2932 = vmatpush1.msra.mxu0 0.0
    %2933 = vmatprep.subr.mxu0 0.0
    %2934 = vmatpush1.msra.mxu0 0.0
    %2935 = vmatprep.subr.mxu0 0.0
    %2936 = vmatpush1.msra.mxu0 0.0
    %2937 = vmatprep.subr.mxu0 0.0
    %2938 = vmatpush1.msra.mxu0 0.0
    %2939 = vmatprep.subr.mxu0 0.0
    %2940 = vmatpush1.msra.mxu0 0.0
    %2941 = vmatprep.subr.mxu0 0.0
    %2942 = vmatpush1.msra.mxu0 0.0
    %2943 = vmatprep.subr.mxu0 0.0
    %2944 = vmatpush1.msra.mxu0 0.0
    %2945 = vmatprep.subr.mxu0 0.0
    %2946 = vmatpush1.msra.mxu0 0.0
    %2947 = vmatprep.subr.mxu0 0.0
    %2948 = vmatpush1.msra.mxu0 0.0
    %2949 = vmatprep.subr.mxu0 0.0
    %2950 = vmatpush1.msra.mxu0 0.0
    %2951 = vmatprep.subr.mxu0 0.0
    %2952 = vmatpush1.msra.mxu0 0.0
    %2953 = vmatprep.subr.mxu0 0.0
    %2954 = vmatpush1.msra.mxu0 0.0
    %2955 = vmatprep.subr.mxu0 0.0
    %2956 = vmatpush1.msra.mxu0 -0.17677669
    %2957 = vmatprep.subr.mxu0 0.0
    %2958 = vmatpush1.msra.mxu0 -0.17677669
    %2959 = vmatprep.subr.mxu0 0.0
    %2960 = vmatpush1.msra.mxu0 -0.17677669
    %2961 = vmatprep.subr.mxu0 0.0
    %2962 = vmatpush1.msra.mxu0 -0.17677669
    %2963 = vmatprep.subr.mxu0 0.0
    %2964 = vmatpush2.msra.mxu0 0.0
    %2965 = vmatprep.subr.mxu0 0.0
    %2966 = vmatpush2.msra.mxu0 0.0
    %2967 = vmatprep.subr.mxu0 0.0
    %2968 = vmatpush2.msra.mxu0 0.0
    %2969 = vmatprep.subr.mxu0 0.0
    %2970 = vmatpush2.msra.mxu0 0.0
    %2971 = vmatprep.subr.mxu0 0.0
    %2972 = vmatpush2.msra.mxu0 0.0
    %2973 = vmatprep.subr.mxu0 0.0
    %2974 = vmatpush2.msra.mxu0 0.0
    %2975 = vmatprep.subr.mxu0 0.0
    %2976 = vmatpush2.msra.mxu0 0.0
    %2977 = vmatprep.subr.mxu0 0.0
    %2978 = vmatpush2.msra.mxu0 0.0
    %2979 = vmatprep.subr.mxu0 0.0
    %2980 = vmatpush2.msra.mxu0 0.0
    %2981 = vmatprep.subr.mxu0 0.0
    %2982 = vmatpush2.msra.mxu0 0.0
    %2983 = vmatprep.subr.mxu0 0.0
    %2984 = vmatpush2.msra.mxu0 0.0
    %2985 = vmatprep.subr.mxu0 0.0
    %2986 = vmatpush2.msra.mxu0 0.0
    %2987 = vmatprep.subr.mxu0 0.0
    %2988 = vmatpush2.msra.mxu0 0.0
    %2989 = vmatprep.subr.mxu0 0.0
    %2990 = vmatpush2.msra.mxu0 0.0
    %2991 = vmatprep.subr.mxu0 0.0
    %2992 = vmatpush2.msra.mxu0 0.0
    %2993 = vmatprep.subr.mxu0 0.0
    %2994 = vmatpush2.msra.mxu0 0.0
    %2995 = vmatprep.mubr.f32.mxu0 0.0
    %2996 = vmatmul.mubr.f32.gmra.mxu0 %v2908
    %v2997 = vpop.f32.mrf.mxu0
    %v2998 = vadd.f32 0.0, %v2997
    %v2999 = vpop.f32.mrf.mxu0
    %3000 = vmatprep.mubr.f32.mxu0 0.0
    %3001 = vmatmul.mubr.f32.gmra.mxu0 %v2911
    %v3002 = vpop.f32.mrf.mxu0
    %v3003 = vadd.f32 0.0, %v3002
    %v3004 = vpop.f32.mrf.mxu0
    %3005 = vmatprep.mubr.f32.mxu0 0.0
    %3006 = vmatmul.mubr.f32.gmra.mxu0 %v2914
    %v3007 = vpop.f32.mrf.mxu0
    %v3008 = vadd.f32 0.0, %v3007
    %v3009 = vpop.f32.mrf.mxu0
    %3010 = vmatprep.mubr.f32.mxu0 0.0
    %3011 = vmatmul.mubr.f32.gmra.mxu0 %v2917
    %v3012 = vpop.f32.mrf.mxu0
    %v3013 = vadd.f32 0.0, %v3012
    %v3014 = vpop.f32.mrf.mxu0
    %3015 = vmatprep.mubr.f32.mxu0 0.0
    %3016 = vmatmul.mubr.f32.gmra.mxu0 %v2920
    %v3017 = vpop.f32.mrf.mxu0
    %v3018 = vadd.f32 0.0, %v3017
    %v3019 = vpop.f32.mrf.mxu0
    %3020 = vmatprep.mubr.f32.mxu0 0.0
    %3021 = vmatmul.mubr.f32.gmra.mxu0 %v2923
    %v3022 = vpop.f32.mrf.mxu0
    %v3023 = vadd.f32 0.0, %v3022
    %v3024 = vpop.f32.mrf.mxu0
    %3025 = vmatprep.mubr.f32.mxu0 0.0
    %3026 = vmatmul.mubr.f32.gmra.mxu0 %v2926
    %v3027 = vpop.f32.mrf.mxu0
    %v3028 = vadd.f32 0.0, %v3027
    %v3029 = vpop.f32.mrf.mxu0
    %3030 = vmatprep.mubr.f32.mxu0 0.0
    %3031 = vmatmul.mubr.f32.gmra.mxu0 %v2929
    %v3032 = vpop.f32.mrf.mxu0
    %v3033 = vadd.f32 0.0, %v3032
    %v3034 = vpop.f32.mrf.mxu0
    %3035 = vdwg.mxu0
    %3044 = vset.pattern.permute.xlu0 0
    %3045 = vperm.xlu0 %3044, %v2998
    %v3046 = vpop.permute.xlu0 %3045
    %3047 = vset.pattern.permute.xlu0 0
    %3048 = vperm.xlu0 %3047, %v3003
    %v3049 = vpop.permute.xlu0 %3048
    %3050 = vset.pattern.permute.xlu0 0
    %3051 = vperm.xlu0 %3050, %v3008
    %v3052 = vpop.permute.xlu0 %3051
    %3053 = vset.pattern.permute.xlu0 0
    %3054 = vperm.xlu0 %3053, %v3013
    %v3055 = vpop.permute.xlu0 %3054
    %3056 = vset.pattern.permute.xlu0 0
    %3057 = vperm.xlu0 %3056, %v3018
    %v3058 = vpop.permute.xlu0 %3057
    %3059 = vset.pattern.permute.xlu0 0
    %3060 = vperm.xlu0 %3059, %v3023
    %v3061 = vpop.permute.xlu0 %3060
    %3062 = vset.pattern.permute.xlu0 0
    %3063 = vperm.xlu0 %3062, %v3028
    %v3064 = vpop.permute.xlu0 %3063
    %3065 = vset.pattern.permute.xlu0 0
    %3066 = vperm.xlu0 %3065, %v3033
    %v3067 = vpop.permute.xlu0 %3066
    %v3068 = vlaneseq
    %v3069 = vshrl.u32 %v3068, 7
    %v3070 = vsub.s32 %v32, %v3069
    %v3071 = vrot.slane %v3046, %v3070
    %v3072 = vlaneseq
    %v3073 = vshrl.u32 %v3072, 7
    %v3074 = vsub.s32 %v32, %v3073
    %v3075 = vrot.slane %v3049, %v3074
    %v3076 = vlaneseq
    %v3077 = vshrl.u32 %v3076, 7
    %v3078 = vsub.s32 %v32, %v3077
    %v3079 = vrot.slane %v3052, %v3078
    %v3080 = vlaneseq
    %v3081 = vshrl.u32 %v3080, 7
    %v3082 = vsub.s32 %v32, %v3081
    %v3083 = vrot.slane %v3055, %v3082
    %v3084 = vlaneseq
    %v3085 = vshrl.u32 %v3084, 7
    %v3086 = vsub.s32 %v32, %v3085
    %v3087 = vrot.slane %v3058, %v3086
    %v3088 = vlaneseq
    %v3089 = vshrl.u32 %v3088, 7
    %v3090 = vsub.s32 %v32, %v3089
    %v3091 = vrot.slane %v3061, %v3090
    %v3092 = vlaneseq
    %v3093 = vshrl.u32 %v3092, 7
    %v3094 = vsub.s32 %v32, %v3093
    %v3095 = vrot.slane %v3064, %v3094
    %v3096 = vlaneseq
    %v3097 = vshrl.u32 %v3096, 7
    %v3098 = vsub.s32 %v32, %v3097
    %v3099 = vrot.slane %v3067, %v3098
    %v3100 = vsel %vm534, %v3075, %v3071
    %v3101 = vsel %vm536, %v3079, %v3100
    %v3102 = vsel %vm538, %v3083, %v3101
    %v3103 = vsel %vm540, %v3087, %v3102
    %v3104 = vsel %vm542, %v3091, %v3103
    %v3105 = vsel %vm544, %v3095, %v3104
    %v3106 = vsel %vm546, %v3099, %v3105
    %v3108 = vsel %vm549, %v3106, -inf
    %3109 = vmax.xlane.f32.xlu0 %v3108
    %v3110 = vpop.xlane.xlu0 %3109
    %v3112 = vlaneseq
    %v3113 = vshrl.u32 %v3112, 7
    %v3114 = vsub.s32 0, %v3113
    %v3115 = vrot.slane %v3110, %v3114
    %v3116 = vlaneseq
    %v3117 = vshrl.u32 %v3116, 7
    %v3118 = vsub.s32 1, %v3117
    %v3119 = vrot.slane %v3110, %v3118
    %v3120 = vlaneseq
    %v3121 = vshrl.u32 %v3120, 7
    %v3122 = vsub.s32 2, %v3121
    %v3123 = vrot.slane %v3110, %v3122
    %v3124 = vlaneseq
    %v3125 = vshrl.u32 %v3124, 7
    %v3126 = vsub.s32 3, %v3125
    %v3127 = vrot.slane %v3110, %v3126
    %v3128 = vlaneseq
    %v3129 = vshrl.u32 %v3128, 7
    %v3130 = vsub.s32 4, %v3129
    %v3131 = vrot.slane %v3110, %v3130
    %v3132 = vlaneseq
    %v3133 = vshrl.u32 %v3132, 7
    %v3134 = vsub.s32 5, %v3133
    %v3135 = vrot.slane %v3110, %v3134
    %v3136 = vlaneseq
    %v3137 = vshrl.u32 %v3136, 7
    %v3138 = vsub.s32 6, %v3137
    %v3139 = vrot.slane %v3110, %v3138
    %v3140 = vlaneseq
    %v3141 = vshrl.u32 %v3140, 7
    %v3142 = vsub.s32 7, %v3141
    %v3143 = vrot.slane %v3110, %v3142
    %v3152 = vsub.f32 %v2998, %v3115
    %v3153 = vsub.f32 %v3003, %v3119
    %v3154 = vsub.f32 %v3008, %v3123
    %v3155 = vsub.f32 %v3013, %v3127
    %v3156 = vsub.f32 %v3018, %v3131
    %v3157 = vsub.f32 %v3023, %v3135
    %v3158 = vsub.f32 %v3028, %v3139
    %v3159 = vsub.f32 %v3033, %v3143
    %v3160 = vmul.f32 %v3152, 1.442695
    %v3161 = vpow.pop %v3160
    %v3162 = vmul.f32 %v3153, 1.442695
    %v3163 = vpow.pop %v3162
    %v3164 = vmul.f32 %v3154, 1.442695
    %v3165 = vpow.pop %v3164
    %v3166 = vmul.f32 %v3155, 1.442695
    %v3167 = vpow.pop %v3166
    %v3168 = vmul.f32 %v3156, 1.442695
    %v3169 = vpow.pop %v3168
    %v3170 = vmul.f32 %v3157, 1.442695
    %v3171 = vpow.pop %v3170
    %v3172 = vmul.f32 %v3158, 1.442695
    %v3173 = vpow.pop %v3172
    %v3174 = vmul.f32 %v3159, 1.442695
    %v3175 = vpow.pop %v3174
    %3184 = vset.pattern.permute.xlu0 0
    %3185 = vperm.xlu0 %3184, %v3161
    %v3186 = vpop.permute.xlu0 %3185
    %3187 = vset.pattern.permute.xlu0 0
    %3188 = vperm.xlu0 %3187, %v3163
    %v3189 = vpop.permute.xlu0 %3188
    %3190 = vset.pattern.permute.xlu0 0
    %3191 = vperm.xlu0 %3190, %v3165
    %v3192 = vpop.permute.xlu0 %3191
    %3193 = vset.pattern.permute.xlu0 0
    %3194 = vperm.xlu0 %3193, %v3167
    %v3195 = vpop.permute.xlu0 %3194
    %3196 = vset.pattern.permute.xlu0 0
    %3197 = vperm.xlu0 %3196, %v3169
    %v3198 = vpop.permute.xlu0 %3197
    %3199 = vset.pattern.permute.xlu0 0
    %3200 = vperm.xlu0 %3199, %v3171
    %v3201 = vpop.permute.xlu0 %3200
    %3202 = vset.pattern.permute.xlu0 0
    %3203 = vperm.xlu0 %3202, %v3173
    %v3204 = vpop.permute.xlu0 %3203
    %3205 = vset.pattern.permute.xlu0 0
    %3206 = vperm.xlu0 %3205, %v3175
    %v3207 = vpop.permute.xlu0 %3206
    %v3208 = vlaneseq
    %v3209 = vshrl.u32 %v3208, 7
    %v3210 = vsub.s32 %v32, %v3209
    %v3211 = vrot.slane %v3186, %v3210
    %v3212 = vlaneseq
    %v3213 = vshrl.u32 %v3212, 7
    %v3214 = vsub.s32 %v32, %v3213
    %v3215 = vrot.slane %v3189, %v3214
    %v3216 = vlaneseq
    %v3217 = vshrl.u32 %v3216, 7
    %v3218 = vsub.s32 %v32, %v3217
    %v3219 = vrot.slane %v3192, %v3218
    %v3220 = vlaneseq
    %v3221 = vshrl.u32 %v3220, 7
    %v3222 = vsub.s32 %v32, %v3221
    %v3223 = vrot.slane %v3195, %v3222
    %v3224 = vlaneseq
    %v3225 = vshrl.u32 %v3224, 7
    %v3226 = vsub.s32 %v32, %v3225
    %v3227 = vrot.slane %v3198, %v3226
    %v3228 = vlaneseq
    %v3229 = vshrl.u32 %v3228, 7
    %v3230 = vsub.s32 %v32, %v3229
    %v3231 = vrot.slane %v3201, %v3230
    %v3232 = vlaneseq
    %v3233 = vshrl.u32 %v3232, 7
    %v3234 = vsub.s32 %v32, %v3233
    %v3235 = vrot.slane %v3204, %v3234
    %v3236 = vlaneseq
    %v3237 = vshrl.u32 %v3236, 7
    %v3238 = vsub.s32 %v32, %v3237
    %v3239 = vrot.slane %v3207, %v3238
    %v3240 = vsel %vm534, %v3215, %v3211
    %v3241 = vsel %vm536, %v3219, %v3240
    %v3242 = vsel %vm538, %v3223, %v3241
    %v3243 = vsel %vm540, %v3227, %v3242
    %v3244 = vsel %vm542, %v3231, %v3243
    %v3245 = vsel %vm544, %v3235, %v3244
    %v3246 = vsel %vm546, %v3239, %v3245
    %v3248 = vsel %vm549, %v3246, 0.0
    %3249 = vadd.xlane.f32.xlu0 %v3248
    %v3250 = vpop.xlane.xlu0 %3249
    %v3252 = vlaneseq
    %v3253 = vshrl.u32 %v3252, 7
    %v3254 = vsub.s32 0, %v3253
    %v3255 = vrot.slane %v3250, %v3254
    %v3256 = vlaneseq
    %v3257 = vshrl.u32 %v3256, 7
    %v3258 = vsub.s32 1, %v3257
    %v3259 = vrot.slane %v3250, %v3258
    %v3260 = vlaneseq
    %v3261 = vshrl.u32 %v3260, 7
    %v3262 = vsub.s32 2, %v3261
    %v3263 = vrot.slane %v3250, %v3262
    %v3264 = vlaneseq
    %v3265 = vshrl.u32 %v3264, 7
    %v3266 = vsub.s32 3, %v3265
    %v3267 = vrot.slane %v3250, %v3266
    %v3268 = vlaneseq
    %v3269 = vshrl.u32 %v3268, 7
    %v3270 = vsub.s32 4, %v3269
    %v3271 = vrot.slane %v3250, %v3270
    %v3272 = vlaneseq
    %v3273 = vshrl.u32 %v3272, 7
    %v3274 = vsub.s32 5, %v3273
    %v3275 = vrot.slane %v3250, %v3274
    %v3276 = vlaneseq
    %v3277 = vshrl.u32 %v3276, 7
    %v3278 = vsub.s32 6, %v3277
    %v3279 = vrot.slane %v3250, %v3278
    %v3280 = vlaneseq
    %v3281 = vshrl.u32 %v3280, 7
    %v3282 = vsub.s32 7, %v3281
    %v3283 = vrot.slane %v3250, %v3282
    %v3292 = vrcp.pop %v3255
    %v3293 = vmul.f32 %v3161, %v3292
    %v3294 = vrcp.pop %v3259
    %v3295 = vmul.f32 %v3163, %v3294
    %v3296 = vrcp.pop %v3263
    %v3297 = vmul.f32 %v3165, %v3296
    %v3298 = vrcp.pop %v3267
    %v3299 = vmul.f32 %v3167, %v3298
    %v3300 = vrcp.pop %v3271
    %v3301 = vmul.f32 %v3169, %v3300
    %v3302 = vrcp.pop %v3275
    %v3303 = vmul.f32 %v3171, %v3302
    %v3304 = vrcp.pop %v3279
    %v3305 = vmul.f32 %v3173, %v3304
    %v3306 = vrcp.pop %v3283
    %v3307 = vmul.f32 %v3175, %v3306
    %v3308 = vlaneseq
    %v3309 = vshrl.u32 %v3308, 7
    %v3310 = vsub.s32 1, %v3309
    %v3311 = vrot.slane %v2617, %v3310
    %v3312 = vmul.f32 %v2600, %v3311
    %3314 = vrot.lane.b32.xlu0 %v3312, 32
    %v3315 = vpop.permute.xlu0 %3314
    %v3317 = vsub.f32 %v2854, %v3315
    %v3318 = vsub.f32 %v2858, %v3315
    %v3319 = vsub.f32 %v2862, %v3315
    %v3320 = vsub.f32 %v2866, %v3315
    %v3321 = vsub.f32 %v2870, %v3315
    %v3322 = vsub.f32 %v2874, %v3315
    %v3323 = vsub.f32 %v2878, %v3315
    %v3324 = vsub.f32 %v2882, %v3315
    %v3325 = vand.u32 2147483647, %v3317
    %v3326 = vand.u32 2147483647, %v3318
    %v3327 = vand.u32 2147483647, %v3319
    %v3328 = vand.u32 2147483647, %v3320
    %v3329 = vand.u32 2147483647, %v3321
    %v3330 = vand.u32 2147483647, %v3322
    %v3331 = vand.u32 2147483647, %v3323
    %v3332 = vand.u32 2147483647, %v3324
    %3341 = vrot.lane.b32.xlu0 %v3325, 96
    %v3342 = vpop.permute.xlu0 %3341
    %3343 = vrot.lane.b32.xlu0 %v3326, 96
    %v3344 = vpop.permute.xlu0 %3343
    %3345 = vrot.lane.b32.xlu0 %v3327, 96
    %v3346 = vpop.permute.xlu0 %3345
    %3347 = vrot.lane.b32.xlu0 %v3328, 96
    %v3348 = vpop.permute.xlu0 %3347
    %3349 = vrot.lane.b32.xlu0 %v3329, 96
    %v3350 = vpop.permute.xlu0 %3349
    %3351 = vrot.lane.b32.xlu0 %v3330, 96
    %v3352 = vpop.permute.xlu0 %3351
    %3353 = vrot.lane.b32.xlu0 %v3331, 96
    %v3354 = vpop.permute.xlu0 %3353
    %3355 = vrot.lane.b32.xlu0 %v3332, 96
    %v3356 = vpop.permute.xlu0 %3355
    %v3357 = vsel %vm59, %v3342, 0
    %v3359 = vsel %vm59, %v3344, 0
    %v3361 = vsel %vm59, %v3346, 0
    %v3363 = vsel %vm59, %v3348, 0
    %v3365 = vsel %vm59, %v3350, 0
    %v3367 = vsel %vm59, %v3352, 0
    %v3369 = vsel %vm59, %v3354, 0
    %v3371 = vsel %vm59, %v3356, 0
    %3373 = vmatprep.subr.mxu0 0.0
    %3374 = vmatpush1.msra.mxu0 0.0
    %3375 = vmatprep.subr.mxu0 0.0
    %3376 = vmatpush1.msra.mxu0 0.0
    %3377 = vmatprep.subr.mxu0 0.0
    %3378 = vmatpush1.msra.mxu0 0.0
    %3379 = vmatprep.subr.mxu0 0.0
    %3380 = vmatpush1.msra.mxu0 0.0
    %3381 = vmatprep.subr.mxu0 0.0
    %3382 = vmatpush1.msra.mxu0 0.0
    %3383 = vmatprep.subr.mxu0 0.0
    %3384 = vmatpush1.msra.mxu0 0.0
    %3385 = vmatprep.subr.mxu0 0.0
    %3386 = vmatpush1.msra.mxu0 0.0
    %3387 = vmatprep.subr.mxu0 0.0
    %3388 = vmatpush1.msra.mxu0 0.0
    %3389 = vmatprep.subr.mxu0 0.0
    %3390 = vmatpush1.msra.mxu0 0.0
    %3391 = vmatprep.subr.mxu0 0.0
    %3392 = vmatpush1.msra.mxu0 0.0
    %3393 = vmatprep.subr.mxu0 0.0
    %3394 = vmatpush1.msra.mxu0 0.0
    %3395 = vmatprep.subr.mxu0 0.0
    %3396 = vmatpush1.msra.mxu0 0.0
    %3397 = vmatprep.subr.mxu0 0.0
    %3398 = vmatpush1.msra.mxu0 -0.17677669
    %3399 = vmatprep.subr.mxu0 0.0
    %3400 = vmatpush1.msra.mxu0 -0.17677669
    %3401 = vmatprep.subr.mxu0 0.0
    %3402 = vmatpush1.msra.mxu0 -0.17677669
    %3403 = vmatprep.subr.mxu0 0.0
    %3404 = vmatpush1.msra.mxu0 -0.17677669
    %3405 = vmatprep.subr.mxu0 0.0
    %3406 = vmatpush2.msra.mxu0 0.0
    %3407 = vmatprep.subr.mxu0 0.0
    %3408 = vmatpush2.msra.mxu0 0.0
    %3409 = vmatprep.subr.mxu0 0.0
    %3410 = vmatpush2.msra.mxu0 0.0
    %3411 = vmatprep.subr.mxu0 0.0
    %3412 = vmatpush2.msra.mxu0 0.0
    %3413 = vmatprep.subr.mxu0 0.0
    %3414 = vmatpush2.msra.mxu0 0.0
    %3415 = vmatprep.subr.mxu0 0.0
    %3416 = vmatpush2.msra.mxu0 0.0
    %3417 = vmatprep.subr.mxu0 0.0
    %3418 = vmatpush2.msra.mxu0 0.0
    %3419 = vmatprep.subr.mxu0 0.0
    %3420 = vmatpush2.msra.mxu0 0.0
    %3421 = vmatprep.subr.mxu0 0.0
    %3422 = vmatpush2.msra.mxu0 0.0
    %3423 = vmatprep.subr.mxu0 0.0
    %3424 = vmatpush2.msra.mxu0 0.0
    %3425 = vmatprep.subr.mxu0 0.0
    %3426 = vmatpush2.msra.mxu0 0.0
    %3427 = vmatprep.subr.mxu0 0.0
    %3428 = vmatpush2.msra.mxu0 0.0
    %3429 = vmatprep.subr.mxu0 0.0
    %3430 = vmatpush2.msra.mxu0 0.0
    %3431 = vmatprep.subr.mxu0 0.0
    %3432 = vmatpush2.msra.mxu0 0.0
    %3433 = vmatprep.subr.mxu0 0.0
    %3434 = vmatpush2.msra.mxu0 0.0
    %3435 = vmatprep.subr.mxu0 0.0
    %3436 = vmatpush2.msra.mxu0 0.0
    %3437 = vmatprep.mubr.f32.mxu0 0.0
    %3438 = vmatmul.mubr.f32.gmra.mxu0 %v3357
    %v3439 = vpop.f32.mrf.mxu0
    %v3440 = vadd.f32 0.0, %v3439
    %v3441 = vpop.f32.mrf.mxu0
    %3442 = vmatprep.mubr.f32.mxu0 0.0
    %3443 = vmatmul.mubr.f32.gmra.mxu0 %v3359
    %v3444 = vpop.f32.mrf.mxu0
    %v3445 = vadd.f32 0.0, %v3444
    %v3446 = vpop.f32.mrf.mxu0
    %3447 = vmatprep.mubr.f32.mxu0 0.0
    %3448 = vmatmul.mubr.f32.gmra.mxu0 %v3361
    %v3449 = vpop.f32.mrf.mxu0
    %v3450 = vadd.f32 0.0, %v3449
    %v3451 = vpop.f32.mrf.mxu0
    %3452 = vmatprep.mubr.f32.mxu0 0.0
    %3453 = vmatmul.mubr.f32.gmra.mxu0 %v3363
    %v3454 = vpop.f32.mrf.mxu0
    %v3455 = vadd.f32 0.0, %v3454
    %v3456 = vpop.f32.mrf.mxu0
    %3457 = vmatprep.mubr.f32.mxu0 0.0
    %3458 = vmatmul.mubr.f32.gmra.mxu0 %v3365
    %v3459 = vpop.f32.mrf.mxu0
    %v3460 = vadd.f32 0.0, %v3459
    %v3461 = vpop.f32.mrf.mxu0
    %3462 = vmatprep.mubr.f32.mxu0 0.0
    %3463 = vmatmul.mubr.f32.gmra.mxu0 %v3367
    %v3464 = vpop.f32.mrf.mxu0
    %v3465 = vadd.f32 0.0, %v3464
    %v3466 = vpop.f32.mrf.mxu0
    %3467 = vmatprep.mubr.f32.mxu0 0.0
    %3468 = vmatmul.mubr.f32.gmra.mxu0 %v3369
    %v3469 = vpop.f32.mrf.mxu0
    %v3470 = vadd.f32 0.0, %v3469
    %v3471 = vpop.f32.mrf.mxu0
    %3472 = vmatprep.mubr.f32.mxu0 0.0
    %3473 = vmatmul.mubr.f32.gmra.mxu0 %v3371
    %v3474 = vpop.f32.mrf.mxu0
    %v3475 = vadd.f32 0.0, %v3474
    %v3476 = vpop.f32.mrf.mxu0
    %3477 = vdwg.mxu0
    %3486 = vset.pattern.permute.xlu0 0
    %3487 = vperm.xlu0 %3486, %v3440
    %v3488 = vpop.permute.xlu0 %3487
    %3489 = vset.pattern.permute.xlu0 0
    %3490 = vperm.xlu0 %3489, %v3445
    %v3491 = vpop.permute.xlu0 %3490
    %3492 = vset.pattern.permute.xlu0 0
    %3493 = vperm.xlu0 %3492, %v3450
    %v3494 = vpop.permute.xlu0 %3493
    %3495 = vset.pattern.permute.xlu0 0
    %3496 = vperm.xlu0 %3495, %v3455
    %v3497 = vpop.permute.xlu0 %3496
    %3498 = vset.pattern.permute.xlu0 0
    %3499 = vperm.xlu0 %3498, %v3460
    %v3500 = vpop.permute.xlu0 %3499
    %3501 = vset.pattern.permute.xlu0 0
    %3502 = vperm.xlu0 %3501, %v3465
    %v3503 = vpop.permute.xlu0 %3502
    %3504 = vset.pattern.permute.xlu0 0
    %3505 = vperm.xlu0 %3504, %v3470
    %v3506 = vpop.permute.xlu0 %3505
    %3507 = vset.pattern.permute.xlu0 0
    %3508 = vperm.xlu0 %3507, %v3475
    %v3509 = vpop.permute.xlu0 %3508
    %v3510 = vlaneseq
    %v3511 = vshrl.u32 %v3510, 7
    %v3512 = vsub.s32 %v32, %v3511
    %v3513 = vrot.slane %v3488, %v3512
    %v3514 = vlaneseq
    %v3515 = vshrl.u32 %v3514, 7
    %v3516 = vsub.s32 %v32, %v3515
    %v3517 = vrot.slane %v3491, %v3516
    %v3518 = vlaneseq
    %v3519 = vshrl.u32 %v3518, 7
    %v3520 = vsub.s32 %v32, %v3519
    %v3521 = vrot.slane %v3494, %v3520
    %v3522 = vlaneseq
    %v3523 = vshrl.u32 %v3522, 7
    %v3524 = vsub.s32 %v32, %v3523
    %v3525 = vrot.slane %v3497, %v3524
    %v3526 = vlaneseq
    %v3527 = vshrl.u32 %v3526, 7
    %v3528 = vsub.s32 %v32, %v3527
    %v3529 = vrot.slane %v3500, %v3528
    %v3530 = vlaneseq
    %v3531 = vshrl.u32 %v3530, 7
    %v3532 = vsub.s32 %v32, %v3531
    %v3533 = vrot.slane %v3503, %v3532
    %v3534 = vlaneseq
    %v3535 = vshrl.u32 %v3534, 7
    %v3536 = vsub.s32 %v32, %v3535
    %v3537 = vrot.slane %v3506, %v3536
    %v3538 = vlaneseq
    %v3539 = vshrl.u32 %v3538, 7
    %v3540 = vsub.s32 %v32, %v3539
    %v3541 = vrot.slane %v3509, %v3540
    %v3542 = vsel %vm534, %v3517, %v3513
    %v3543 = vsel %vm536, %v3521, %v3542
    %v3544 = vsel %vm538, %v3525, %v3543
    %v3545 = vsel %vm540, %v3529, %v3544
    %v3546 = vsel %vm542, %v3533, %v3545
    %v3547 = vsel %vm544, %v3537, %v3546
    %v3548 = vsel %vm546, %v3541, %v3547
    %v3550 = vsel %vm549, %v3548, -inf
    %3551 = vmax.xlane.f32.xlu0 %v3550
    %v3552 = vpop.xlane.xlu0 %3551
    %v3554 = vlaneseq
    %v3555 = vshrl.u32 %v3554, 7
    %v3556 = vsub.s32 0, %v3555
    %v3557 = vrot.slane %v3552, %v3556
    %v3558 = vlaneseq
    %v3559 = vshrl.u32 %v3558, 7
    %v3560 = vsub.s32 1, %v3559
    %v3561 = vrot.slane %v3552, %v3560
    %v3562 = vlaneseq
    %v3563 = vshrl.u32 %v3562, 7
    %v3564 = vsub.s32 2, %v3563
    %v3565 = vrot.slane %v3552, %v3564
    %v3566 = vlaneseq
    %v3567 = vshrl.u32 %v3566, 7
    %v3568 = vsub.s32 3, %v3567
    %v3569 = vrot.slane %v3552, %v3568
    %v3570 = vlaneseq
    %v3571 = vshrl.u32 %v3570, 7
    %v3572 = vsub.s32 4, %v3571
    %v3573 = vrot.slane %v3552, %v3572
    %v3574 = vlaneseq
    %v3575 = vshrl.u32 %v3574, 7
    %v3576 = vsub.s32 5, %v3575
    %v3577 = vrot.slane %v3552, %v3576
    %v3578 = vlaneseq
    %v3579 = vshrl.u32 %v3578, 7
    %v3580 = vsub.s32 6, %v3579
    %v3581 = vrot.slane %v3552, %v3580
    %v3582 = vlaneseq
    %v3583 = vshrl.u32 %v3582, 7
    %v3584 = vsub.s32 7, %v3583
    %v3585 = vrot.slane %v3552, %v3584
    %v3594 = vsub.f32 %v3440, %v3557
    %v3595 = vsub.f32 %v3445, %v3561
    %v3596 = vsub.f32 %v3450, %v3565
    %v3597 = vsub.f32 %v3455, %v3569
    %v3598 = vsub.f32 %v3460, %v3573
    %v3599 = vsub.f32 %v3465, %v3577
    %v3600 = vsub.f32 %v3470, %v3581
    %v3601 = vsub.f32 %v3475, %v3585
    %v3602 = vmul.f32 %v3594, 1.442695
    %v3603 = vpow.pop %v3602
    %v3604 = vmul.f32 %v3595, 1.442695
    %v3605 = vpow.pop %v3604
    %v3606 = vmul.f32 %v3596, 1.442695
    %v3607 = vpow.pop %v3606
    %v3608 = vmul.f32 %v3597, 1.442695
    %v3609 = vpow.pop %v3608
    %v3610 = vmul.f32 %v3598, 1.442695
    %v3611 = vpow.pop %v3610
    %v3612 = vmul.f32 %v3599, 1.442695
    %v3613 = vpow.pop %v3612
    %v3614 = vmul.f32 %v3600, 1.442695
    %v3615 = vpow.pop %v3614
    %v3616 = vmul.f32 %v3601, 1.442695
    %v3617 = vpow.pop %v3616
    %3626 = vset.pattern.permute.xlu0 0
    %3627 = vperm.xlu0 %3626, %v3603
    %v3628 = vpop.permute.xlu0 %3627
    %3629 = vset.pattern.permute.xlu0 0
    %3630 = vperm.xlu0 %3629, %v3605
    %v3631 = vpop.permute.xlu0 %3630
    %3632 = vset.pattern.permute.xlu0 0
    %3633 = vperm.xlu0 %3632, %v3607
    %v3634 = vpop.permute.xlu0 %3633
    %3635 = vset.pattern.permute.xlu0 0
    %3636 = vperm.xlu0 %3635, %v3609
    %v3637 = vpop.permute.xlu0 %3636
    %3638 = vset.pattern.permute.xlu0 0
    %3639 = vperm.xlu0 %3638, %v3611
    %v3640 = vpop.permute.xlu0 %3639
    %3641 = vset.pattern.permute.xlu0 0
    %3642 = vperm.xlu0 %3641, %v3613
    %v3643 = vpop.permute.xlu0 %3642
    %3644 = vset.pattern.permute.xlu0 0
    %3645 = vperm.xlu0 %3644, %v3615
    %v3646 = vpop.permute.xlu0 %3645
    %3647 = vset.pattern.permute.xlu0 0
    %3648 = vperm.xlu0 %3647, %v3617
    %v3649 = vpop.permute.xlu0 %3648
    %v3650 = vlaneseq
    %v3651 = vshrl.u32 %v3650, 7
    %v3652 = vsub.s32 %v32, %v3651
    %v3653 = vrot.slane %v3628, %v3652
    %v3654 = vlaneseq
    %v3655 = vshrl.u32 %v3654, 7
    %v3656 = vsub.s32 %v32, %v3655
    %v3657 = vrot.slane %v3631, %v3656
    %v3658 = vlaneseq
    %v3659 = vshrl.u32 %v3658, 7
    %v3660 = vsub.s32 %v32, %v3659
    %v3661 = vrot.slane %v3634, %v3660
    %v3662 = vlaneseq
    %v3663 = vshrl.u32 %v3662, 7
    %v3664 = vsub.s32 %v32, %v3663
    %v3665 = vrot.slane %v3637, %v3664
    %v3666 = vlaneseq
    %v3667 = vshrl.u32 %v3666, 7
    %v3668 = vsub.s32 %v32, %v3667
    %v3669 = vrot.slane %v3640, %v3668
    %v3670 = vlaneseq
    %v3671 = vshrl.u32 %v3670, 7
    %v3672 = vsub.s32 %v32, %v3671
    %v3673 = vrot.slane %v3643, %v3672
    %v3674 = vlaneseq
    %v3675 = vshrl.u32 %v3674, 7
    %v3676 = vsub.s32 %v32, %v3675
    %v3677 = vrot.slane %v3646, %v3676
    %v3678 = vlaneseq
    %v3679 = vshrl.u32 %v3678, 7
    %v3680 = vsub.s32 %v32, %v3679
    %v3681 = vrot.slane %v3649, %v3680
    %v3682 = vsel %vm534, %v3657, %v3653
    %v3683 = vsel %vm536, %v3661, %v3682
    %v3684 = vsel %vm538, %v3665, %v3683
    %v3685 = vsel %vm540, %v3669, %v3684
    %v3686 = vsel %vm542, %v3673, %v3685
    %v3687 = vsel %vm544, %v3677, %v3686
    %v3688 = vsel %vm546, %v3681, %v3687
    %v3690 = vsel %vm549, %v3688, 0.0
    %3691 = vadd.xlane.f32.xlu0 %v3690
    %v3692 = vpop.xlane.xlu0 %3691
    %v3694 = vlaneseq
    %v3695 = vshrl.u32 %v3694, 7
    %v3696 = vsub.s32 0, %v3695
    %v3697 = vrot.slane %v3692, %v3696
    %v3698 = vlaneseq
    %v3699 = vshrl.u32 %v3698, 7
    %v3700 = vsub.s32 1, %v3699
    %v3701 = vrot.slane %v3692, %v3700
    %v3702 = vlaneseq
    %v3703 = vshrl.u32 %v3702, 7
    %v3704 = vsub.s32 2, %v3703
    %v3705 = vrot.slane %v3692, %v3704
    %v3706 = vlaneseq
    %v3707 = vshrl.u32 %v3706, 7
    %v3708 = vsub.s32 3, %v3707
    %v3709 = vrot.slane %v3692, %v3708
    %v3710 = vlaneseq
    %v3711 = vshrl.u32 %v3710, 7
    %v3712 = vsub.s32 4, %v3711
    %v3713 = vrot.slane %v3692, %v3712
    %v3714 = vlaneseq
    %v3715 = vshrl.u32 %v3714, 7
    %v3716 = vsub.s32 5, %v3715
    %v3717 = vrot.slane %v3692, %v3716
    %v3718 = vlaneseq
    %v3719 = vshrl.u32 %v3718, 7
    %v3720 = vsub.s32 6, %v3719
    %v3721 = vrot.slane %v3692, %v3720
    %v3722 = vlaneseq
    %v3723 = vshrl.u32 %v3722, 7
    %v3724 = vsub.s32 7, %v3723
    %v3725 = vrot.slane %v3692, %v3724
    %v3734 = vrcp.pop %v3697
    %v3735 = vmul.f32 %v3603, %v3734
    %v3736 = vrcp.pop %v3701
    %v3737 = vmul.f32 %v3605, %v3736
    %v3738 = vrcp.pop %v3705
    %v3739 = vmul.f32 %v3607, %v3738
    %v3740 = vrcp.pop %v3709
    %v3741 = vmul.f32 %v3609, %v3740
    %v3742 = vrcp.pop %v3713
    %v3743 = vmul.f32 %v3611, %v3742
    %v3744 = vrcp.pop %v3717
    %v3745 = vmul.f32 %v3613, %v3744
    %v3746 = vrcp.pop %v3721
    %v3747 = vmul.f32 %v3615, %v3746
    %v3748 = vrcp.pop %v3725
    %v3749 = vmul.f32 %v3617, %v3748
    %3758 = vset.pattern.permute.xlu0 0
    %3759 = vperm.xlu0 %3758, %v3293
    %v3760 = vpop.permute.xlu0 %3759
    %3761 = vset.pattern.permute.xlu0 0
    %3762 = vperm.xlu0 %3761, %v3295
    %v3763 = vpop.permute.xlu0 %3762
    %3764 = vset.pattern.permute.xlu0 0
    %3765 = vperm.xlu0 %3764, %v3297
    %v3766 = vpop.permute.xlu0 %3765
    %3767 = vset.pattern.permute.xlu0 0
    %3768 = vperm.xlu0 %3767, %v3299
    %v3769 = vpop.permute.xlu0 %3768
    %3770 = vset.pattern.permute.xlu0 0
    %3771 = vperm.xlu0 %3770, %v3301
    %v3772 = vpop.permute.xlu0 %3771
    %3773 = vset.pattern.permute.xlu0 0
    %3774 = vperm.xlu0 %3773, %v3303
    %v3775 = vpop.permute.xlu0 %3774
    %3776 = vset.pattern.permute.xlu0 0
    %3777 = vperm.xlu0 %3776, %v3305
    %v3778 = vpop.permute.xlu0 %3777
    %3779 = vset.pattern.permute.xlu0 0
    %3780 = vperm.xlu0 %3779, %v3307
    %v3781 = vpop.permute.xlu0 %3780
    %v3782 = vlaneseq
    %v3783 = vshrl.u32 %v3782, 7
    %v3784 = vsub.s32 %v32, %v3783
    %v3785 = vrot.slane %v3760, %v3784
    %v3786 = vlaneseq
    %v3787 = vshrl.u32 %v3786, 7
    %v3788 = vsub.s32 %v32, %v3787
    %v3789 = vrot.slane %v3763, %v3788
    %v3790 = vlaneseq
    %v3791 = vshrl.u32 %v3790, 7
    %v3792 = vsub.s32 %v32, %v3791
    %v3793 = vrot.slane %v3766, %v3792
    %v3794 = vlaneseq
    %v3795 = vshrl.u32 %v3794, 7
    %v3796 = vsub.s32 %v32, %v3795
    %v3797 = vrot.slane %v3769, %v3796
    %v3798 = vlaneseq
    %v3799 = vshrl.u32 %v3798, 7
    %v3800 = vsub.s32 %v32, %v3799
    %v3801 = vrot.slane %v3772, %v3800
    %v3802 = vlaneseq
    %v3803 = vshrl.u32 %v3802, 7
    %v3804 = vsub.s32 %v32, %v3803
    %v3805 = vrot.slane %v3775, %v3804
    %v3806 = vlaneseq
    %v3807 = vshrl.u32 %v3806, 7
    %v3808 = vsub.s32 %v32, %v3807
    %v3809 = vrot.slane %v3778, %v3808
    %v3810 = vlaneseq
    %v3811 = vshrl.u32 %v3810, 7
    %v3812 = vsub.s32 %v32, %v3811
    %v3813 = vrot.slane %v3781, %v3812
    %v3814 = vsel %vm534, %v3789, %v3785
    %v3815 = vsel %vm536, %v3793, %v3814
    %v3816 = vsel %vm538, %v3797, %v3815
    %v3817 = vsel %vm540, %v3801, %v3816
    %v3818 = vsel %vm542, %v3805, %v3817
    %v3819 = vsel %vm544, %v3809, %v3818
    %v3820 = vsel %vm546, %v3813, %v3819
    %3830 = vset.pattern.permute.xlu0 0
    %3831 = vperm.xlu0 %3830, %v3735
    %v3832 = vpop.permute.xlu0 %3831
    %3833 = vset.pattern.permute.xlu0 0
    %3834 = vperm.xlu0 %3833, %v3737
    %v3835 = vpop.permute.xlu0 %3834
    %3836 = vset.pattern.permute.xlu0 0
    %3837 = vperm.xlu0 %3836, %v3739
    %v3838 = vpop.permute.xlu0 %3837
    %3839 = vset.pattern.permute.xlu0 0
    %3840 = vperm.xlu0 %3839, %v3741
    %v3841 = vpop.permute.xlu0 %3840
    %3842 = vset.pattern.permute.xlu0 0
    %3843 = vperm.xlu0 %3842, %v3743
    %v3844 = vpop.permute.xlu0 %3843
    %3845 = vset.pattern.permute.xlu0 0
    %3846 = vperm.xlu0 %3845, %v3745
    %v3847 = vpop.permute.xlu0 %3846
    %3848 = vset.pattern.permute.xlu0 0
    %3849 = vperm.xlu0 %3848, %v3747
    %v3850 = vpop.permute.xlu0 %3849
    %3851 = vset.pattern.permute.xlu0 0
    %3852 = vperm.xlu0 %3851, %v3749
    %v3853 = vpop.permute.xlu0 %3852
    %v3854 = vlaneseq
    %v3855 = vshrl.u32 %v3854, 7
    %v3856 = vsub.s32 %v1296, %v3855
    %v3857 = vrot.slane %v3832, %v3856
    %v3858 = vlaneseq
    %v3859 = vshrl.u32 %v3858, 7
    %v3860 = vsub.s32 %v1296, %v3859
    %v3861 = vrot.slane %v3835, %v3860
    %v3862 = vlaneseq
    %v3863 = vshrl.u32 %v3862, 7
    %v3864 = vsub.s32 %v1296, %v3863
    %v3865 = vrot.slane %v3838, %v3864
    %v3866 = vlaneseq
    %v3867 = vshrl.u32 %v3866, 7
    %v3868 = vsub.s32 %v1296, %v3867
    %v3869 = vrot.slane %v3841, %v3868
    %v3870 = vlaneseq
    %v3871 = vshrl.u32 %v3870, 7
    %v3872 = vsub.s32 %v1296, %v3871
    %v3873 = vrot.slane %v3844, %v3872
    %v3874 = vlaneseq
    %v3875 = vshrl.u32 %v3874, 7
    %v3876 = vsub.s32 %v1296, %v3875
    %v3877 = vrot.slane %v3847, %v3876
    %v3878 = vlaneseq
    %v3879 = vshrl.u32 %v3878, 7
    %v3880 = vsub.s32 %v1296, %v3879
    %v3881 = vrot.slane %v3850, %v3880
    %v3882 = vlaneseq
    %v3883 = vshrl.u32 %v3882, 7
    %v3884 = vsub.s32 %v1296, %v3883
    %v3885 = vrot.slane %v3853, %v3884
    %v3886 = vsel %vm534, %v3861, %v3857
    %v3887 = vsel %vm536, %v3865, %v3886
    %v3888 = vsel %vm538, %v3869, %v3887
    %v3889 = vsel %vm540, %v3873, %v3888
    %v3890 = vsel %vm542, %v3877, %v3889
    %v3891 = vsel %vm544, %v3881, %v3890
    %v3892 = vsel %vm546, %v3885, %v3891
    %v3894 = vsel %vm549, %v3820, %v3892
    %3896 = vrot.lane.b32.xlu0 %v2794, 96
    %v3897 = vpop.permute.xlu0 %3896
    %v3900 = vsel %vm1342, %v3894, 0
    %3902 = vmatprep.subr.mxu0 0.0
    %3903 = vmatpush1.msra.mxu0 0.0
    %3904 = vmatprep.subr.mxu0 0.0
    %3905 = vmatpush1.msra.mxu0 0.0
    %3906 = vmatprep.subr.mxu0 0.0
    %3907 = vmatpush1.msra.mxu0 0.0
    %3908 = vmatprep.subr.mxu0 0.0
    %3909 = vmatpush1.msra.mxu0 0.0
    %3910 = vmatprep.subr.mxu0 0.0
    %3911 = vmatpush1.msra.mxu0 0.0
    %3912 = vmatprep.subr.mxu0 0.0
    %3913 = vmatpush1.msra.mxu0 0.0
    %3914 = vmatprep.subr.mxu0 0.0
    %3915 = vmatpush1.msra.mxu0 0.0
    %3916 = vmatprep.subr.mxu0 0.0
    %3917 = vmatpush1.msra.mxu0 0.0
    %3918 = vmatprep.subr.mxu0 0.0
    %3919 = vmatpush1.msra.mxu0 0.0
    %3920 = vmatprep.subr.mxu0 0.0
    %3921 = vmatpush1.msra.mxu0 0.0
    %3922 = vmatprep.subr.mxu0 0.0
    %3923 = vmatpush1.msra.mxu0 0.0
    %3924 = vmatprep.subr.mxu0 0.0
    %3925 = vmatpush1.msra.mxu0 0.0
    %3926 = vmatprep.subr.mxu0 0.0
    %3927 = vmatpush1.msra.mxu0 0.0
    %3928 = vmatprep.subr.mxu0 0.0
    %3929 = vmatpush1.msra.mxu0 0.0
    %3930 = vmatprep.subr.mxu0 0.0
    %3931 = vmatpush1.msra.mxu0 %v3897
    %3932 = vmatprep.subr.mxu0 0.0
    %3933 = vmatpush1.msra.mxu0 %v2794
    %3934 = vmatprep.subr.mxu0 0.0
    %3935 = vmatpush2.msra.mxu0 0.0
    %3936 = vmatprep.subr.mxu0 0.0
    %3937 = vmatpush2.msra.mxu0 0.0
    %3938 = vmatprep.subr.mxu0 0.0
    %3939 = vmatpush2.msra.mxu0 0.0
    %3940 = vmatprep.subr.mxu0 0.0
    %3941 = vmatpush2.msra.mxu0 0.0
    %3942 = vmatprep.subr.mxu0 0.0
    %3943 = vmatpush2.msra.mxu0 0.0
    %3944 = vmatprep.subr.mxu0 0.0
    %3945 = vmatpush2.msra.mxu0 0.0
    %3946 = vmatprep.subr.mxu0 0.0
    %3947 = vmatpush2.msra.mxu0 0.0
    %3948 = vmatprep.subr.mxu0 0.0
    %3949 = vmatpush2.msra.mxu0 0.0
    %3950 = vmatprep.subr.mxu0 0.0
    %3951 = vmatpush2.msra.mxu0 0.0
    %3952 = vmatprep.subr.mxu0 0.0
    %3953 = vmatpush2.msra.mxu0 0.0
    %3954 = vmatprep.subr.mxu0 0.0
    %3955 = vmatpush2.msra.mxu0 0.0
    %3956 = vmatprep.subr.mxu0 0.0
    %3957 = vmatpush2.msra.mxu0 0.0
    %3958 = vmatprep.subr.mxu0 0.0
    %3959 = vmatpush2.msra.mxu0 0.0
    %3960 = vmatprep.subr.mxu0 0.0
    %3961 = vmatpush2.msra.mxu0 0.0
    %3962 = vmatprep.subr.mxu0 0.0
    %3963 = vmatpush2.msra.mxu0 0.0
    %3964 = vmatprep.subr.mxu0 0.0
    %3965 = vmatpush2.msra.mxu0 0.0
    %3966 = vmatprep.mubr.f32.mxu0 0.0
    %3967 = vmatmul.mubr.f32.gmra.mxu0 %v3900
    %v3968 = vpop.f32.mrf.mxu0
    %v3969 = vadd.f32 0.0, %v3968
    %v3970 = vpop.f32.mrf.mxu0
    %3971 = vdwg.mxu0
    %v3972 = vmul.f32 %v2601, %v2799
    %v3974 = vcombine.high %v2704, %v2704
    %v3976 = vunpack.c.l.s4 1966171168
    %v3977 = vunpack.c.0.s8 %v3976
    %v3978 = vlaneseq
    %v3979 = vshrl.u32 %v3978, 7
    %v3980 = vsub.s32 %v3977, %v3979
    %v3981 = vrot.slane %v2704, %v3980
    %v3983 = vunpack.c.l.s4 1966171168
    %v3984 = vunpack.c.0.s8 %v3983
    %v3985 = vlaneseq
    %v3986 = vshrl.u32 %v3985, 7
    %v3987 = vsub.s32 %v3984, %v3986
    %v3988 = vrot.slane %v3974, %v3987
    %v3989 = vcombine.high %v3981, %v3981
    %v3990 = vcombine.high %v3988, %v3988
    %v3992 = vunpack.c.l.s4 1966171168
    %v3993 = vunpack.c.0.s8 %v3992
    %v3994 = vlaneseq
    %v3995 = vshrl.u32 %v3994, 7
    %v3996 = vsub.s32 %v3993, %v3995
    %v3997 = vrot.slane %v3981, %v3996
    %v3999 = vunpack.c.l.s4 1966171168
    %v4000 = vunpack.c.0.s8 %v3999
    %v4001 = vlaneseq
    %v4002 = vshrl.u32 %v4001, 7
    %v4003 = vsub.s32 %v4000, %v4002
    %v4004 = vrot.slane %v3988, %v4003
    %v4006 = vunpack.c.l.s4 1966171168
    %v4007 = vunpack.c.0.s8 %v4006
    %v4008 = vlaneseq
    %v4009 = vshrl.u32 %v4008, 7
    %v4010 = vsub.s32 %v4007, %v4009
    %v4011 = vrot.slane %v3989, %v4010
    %v4013 = vunpack.c.l.s4 1966171168
    %v4014 = vunpack.c.0.s8 %v4013
    %v4015 = vlaneseq
    %v4016 = vshrl.u32 %v4015, 7
    %v4017 = vsub.s32 %v4014, %v4016
    %v4018 = vrot.slane %v3990, %v4017
    %v4019 = vcombine.high %v3997, %v3997
    %v4020 = vcombine.high %v4004, %v4004
    %v4021 = vcombine.high %v4011, %v4011
    %v4022 = vcombine.high %v4018, %v4018
    %v4023 = vlaneseq
    %v4024 = vshrl.u32 %v4023, 7
    %v4025 = vsub.s32 0, %v4024
    %v4026 = vrot.slane %v3997, %v4025
    %v4027 = vlaneseq
    %v4028 = vshrl.u32 %v4027, 7
    %v4029 = vsub.s32 0, %v4028
    %v4030 = vrot.slane %v4011, %v4029
    %v4031 = vlaneseq
    %v4032 = vshrl.u32 %v4031, 7
    %v4033 = vsub.s32 0, %v4032
    %v4034 = vrot.slane %v4019, %v4033
    %v4035 = vlaneseq
    %v4036 = vshrl.u32 %v4035, 7
    %v4037 = vsub.s32 0, %v4036
    %v4038 = vrot.slane %v4021, %v4037
    %v4039 = vlaneseq
    %v4040 = vshrl.u32 %v4039, 7
    %v4041 = vsub.s32 0, %v4040
    %v4042 = vrot.slane %v4004, %v4041
    %v4043 = vlaneseq
    %v4044 = vshrl.u32 %v4043, 7
    %v4045 = vsub.s32 0, %v4044
    %v4046 = vrot.slane %v4018, %v4045
    %v4047 = vlaneseq
    %v4048 = vshrl.u32 %v4047, 7
    %v4049 = vsub.s32 0, %v4048
    %v4050 = vrot.slane %v4020, %v4049
    %v4051 = vlaneseq
    %v4052 = vshrl.u32 %v4051, 7
    %v4053 = vsub.s32 0, %v4052
    %v4054 = vrot.slane %v4022, %v4053
    %v4063 = vsub.f32 %v4026, %v3972
    %v4064 = vsub.f32 %v4030, %v3972
    %v4065 = vsub.f32 %v4034, %v3972
    %v4066 = vsub.f32 %v4038, %v3972
    %v4067 = vsub.f32 %v4042, %v3972
    %v4068 = vsub.f32 %v4046, %v3972
    %v4069 = vsub.f32 %v4050, %v3972
    %v4070 = vsub.f32 %v4054, %v3972
    %v4071 = vand.u32 2147483647, %v4063
    %v4072 = vand.u32 2147483647, %v4064
    %v4073 = vand.u32 2147483647, %v4065
    %v4074 = vand.u32 2147483647, %v4066
    %v4075 = vand.u32 2147483647, %v4067
    %v4076 = vand.u32 2147483647, %v4068
    %v4077 = vand.u32 2147483647, %v4069
    %v4078 = vand.u32 2147483647, %v4070
    %v4080 = vsel %vm59, %v4071, 0
    %v4083 = vsel %vm59, %v4072, 0
    %v4086 = vsel %vm59, %v4073, 0
    %v4089 = vsel %vm59, %v4074, 0
    %v4092 = vsel %vm59, %v4075, 0
    %v4095 = vsel %vm59, %v4076, 0
    %v4098 = vsel %vm59, %v4077, 0
    %v4101 = vsel %vm59, %v4078, 0
    %4103 = vmatprep.subr.mxu0 0.0
    %4104 = vmatpush1.msra.mxu0 0.0
    %4105 = vmatprep.subr.mxu0 0.0
    %4106 = vmatpush1.msra.mxu0 0.0
    %4107 = vmatprep.subr.mxu0 0.0
    %4108 = vmatpush1.msra.mxu0 0.0
    %4109 = vmatprep.subr.mxu0 0.0
    %4110 = vmatpush1.msra.mxu0 0.0
    %4111 = vmatprep.subr.mxu0 0.0
    %4112 = vmatpush1.msra.mxu0 0.0
    %4113 = vmatprep.subr.mxu0 0.0
    %4114 = vmatpush1.msra.mxu0 0.0
    %4115 = vmatprep.subr.mxu0 0.0
    %4116 = vmatpush1.msra.mxu0 0.0
    %4117 = vmatprep.subr.mxu0 0.0
    %4118 = vmatpush1.msra.mxu0 0.0
    %4119 = vmatprep.subr.mxu0 0.0
    %4120 = vmatpush1.msra.mxu0 0.0
    %4121 = vmatprep.subr.mxu0 0.0
    %4122 = vmatpush1.msra.mxu0 0.0
    %4123 = vmatprep.subr.mxu0 0.0
    %4124 = vmatpush1.msra.mxu0 0.0
    %4125 = vmatprep.subr.mxu0 0.0
    %4126 = vmatpush1.msra.mxu0 0.0
    %4127 = vmatprep.subr.mxu0 0.0
    %4128 = vmatpush1.msra.mxu0 -0.17677669
    %4129 = vmatprep.subr.mxu0 0.0
    %4130 = vmatpush1.msra.mxu0 -0.17677669
    %4131 = vmatprep.subr.mxu0 0.0
    %4132 = vmatpush1.msra.mxu0 -0.17677669
    %4133 = vmatprep.subr.mxu0 0.0
    %4134 = vmatpush1.msra.mxu0 -0.17677669
    %4135 = vmatprep.subr.mxu0 0.0
    %4136 = vmatpush2.msra.mxu0 0.0
    %4137 = vmatprep.subr.mxu0 0.0
    %4138 = vmatpush2.msra.mxu0 0.0
    %4139 = vmatprep.subr.mxu0 0.0
    %4140 = vmatpush2.msra.mxu0 0.0
    %4141 = vmatprep.subr.mxu0 0.0
    %4142 = vmatpush2.msra.mxu0 0.0
    %4143 = vmatprep.subr.mxu0 0.0
    %4144 = vmatpush2.msra.mxu0 0.0
    %4145 = vmatprep.subr.mxu0 0.0
    %4146 = vmatpush2.msra.mxu0 0.0
    %4147 = vmatprep.subr.mxu0 0.0
    %4148 = vmatpush2.msra.mxu0 0.0
    %4149 = vmatprep.subr.mxu0 0.0
    %4150 = vmatpush2.msra.mxu0 0.0
    %4151 = vmatprep.subr.mxu0 0.0
    %4152 = vmatpush2.msra.mxu0 0.0
    %4153 = vmatprep.subr.mxu0 0.0
    %4154 = vmatpush2.msra.mxu0 0.0
    %4155 = vmatprep.subr.mxu0 0.0
    %4156 = vmatpush2.msra.mxu0 0.0
    %4157 = vmatprep.subr.mxu0 0.0
    %4158 = vmatpush2.msra.mxu0 0.0
    %4159 = vmatprep.subr.mxu0 0.0
    %4160 = vmatpush2.msra.mxu0 0.0
    %4161 = vmatprep.subr.mxu0 0.0
    %4162 = vmatpush2.msra.mxu0 0.0
    %4163 = vmatprep.subr.mxu0 0.0
    %4164 = vmatpush2.msra.mxu0 0.0
    %4165 = vmatprep.subr.mxu0 0.0
    %4166 = vmatpush2.msra.mxu0 0.0
    %4167 = vmatprep.mubr.f32.mxu0 0.0
    %4168 = vmatmul.mubr.f32.gmra.mxu0 %v4080
    %v4169 = vpop.f32.mrf.mxu0
    %v4170 = vadd.f32 0.0, %v4169
    %v4171 = vpop.f32.mrf.mxu0
    %4172 = vmatprep.mubr.f32.mxu0 0.0
    %4173 = vmatmul.mubr.f32.gmra.mxu0 %v4083
    %v4174 = vpop.f32.mrf.mxu0
    %v4175 = vadd.f32 0.0, %v4174
    %v4176 = vpop.f32.mrf.mxu0
    %4177 = vmatprep.mubr.f32.mxu0 0.0
    %4178 = vmatmul.mubr.f32.gmra.mxu0 %v4086
    %v4179 = vpop.f32.mrf.mxu0
    %v4180 = vadd.f32 0.0, %v4179
    %v4181 = vpop.f32.mrf.mxu0
    %4182 = vmatprep.mubr.f32.mxu0 0.0
    %4183 = vmatmul.mubr.f32.gmra.mxu0 %v4089
    %v4184 = vpop.f32.mrf.mxu0
    %v4185 = vadd.f32 0.0, %v4184
    %v4186 = vpop.f32.mrf.mxu0
    %4187 = vmatprep.mubr.f32.mxu0 0.0
    %4188 = vmatmul.mubr.f32.gmra.mxu0 %v4092
    %v4189 = vpop.f32.mrf.mxu0
    %v4190 = vadd.f32 0.0, %v4189
    %v4191 = vpop.f32.mrf.mxu0
    %4192 = vmatprep.mubr.f32.mxu0 0.0
    %4193 = vmatmul.mubr.f32.gmra.mxu0 %v4095
    %v4194 = vpop.f32.mrf.mxu0
    %v4195 = vadd.f32 0.0, %v4194
    %v4196 = vpop.f32.mrf.mxu0
    %4197 = vmatprep.mubr.f32.mxu0 0.0
    %4198 = vmatmul.mubr.f32.gmra.mxu0 %v4098
    %v4199 = vpop.f32.mrf.mxu0
    %v4200 = vadd.f32 0.0, %v4199
    %v4201 = vpop.f32.mrf.mxu0
    %4202 = vmatprep.mubr.f32.mxu0 0.0
    %4203 = vmatmul.mubr.f32.gmra.mxu0 %v4101
    %v4204 = vpop.f32.mrf.mxu0
    %v4205 = vadd.f32 0.0, %v4204
    %v4206 = vpop.f32.mrf.mxu0
    %4207 = vdwg.mxu0
    %4216 = vset.pattern.permute.xlu0 0
    %4217 = vperm.xlu0 %4216, %v4170
    %v4218 = vpop.permute.xlu0 %4217
    %4219 = vset.pattern.permute.xlu0 0
    %4220 = vperm.xlu0 %4219, %v4175
    %v4221 = vpop.permute.xlu0 %4220
    %4222 = vset.pattern.permute.xlu0 0
    %4223 = vperm.xlu0 %4222, %v4180
    %v4224 = vpop.permute.xlu0 %4223
    %4225 = vset.pattern.permute.xlu0 0
    %4226 = vperm.xlu0 %4225, %v4185
    %v4227 = vpop.permute.xlu0 %4226
    %4228 = vset.pattern.permute.xlu0 0
    %4229 = vperm.xlu0 %4228, %v4190
    %v4230 = vpop.permute.xlu0 %4229
    %4231 = vset.pattern.permute.xlu0 0
    %4232 = vperm.xlu0 %4231, %v4195
    %v4233 = vpop.permute.xlu0 %4232
    %4234 = vset.pattern.permute.xlu0 0
    %4235 = vperm.xlu0 %4234, %v4200
    %v4236 = vpop.permute.xlu0 %4235
    %4237 = vset.pattern.permute.xlu0 0
    %4238 = vperm.xlu0 %4237, %v4205
    %v4239 = vpop.permute.xlu0 %4238
    %v4240 = vlaneseq
    %v4241 = vshrl.u32 %v4240, 7
    %v4242 = vsub.s32 %v32, %v4241
    %v4243 = vrot.slane %v4218, %v4242
    %v4244 = vlaneseq
    %v4245 = vshrl.u32 %v4244, 7
    %v4246 = vsub.s32 %v32, %v4245
    %v4247 = vrot.slane %v4221, %v4246
    %v4248 = vlaneseq
    %v4249 = vshrl.u32 %v4248, 7
    %v4250 = vsub.s32 %v32, %v4249
    %v4251 = vrot.slane %v4224, %v4250
    %v4252 = vlaneseq
    %v4253 = vshrl.u32 %v4252, 7
    %v4254 = vsub.s32 %v32, %v4253
    %v4255 = vrot.slane %v4227, %v4254
    %v4256 = vlaneseq
    %v4257 = vshrl.u32 %v4256, 7
    %v4258 = vsub.s32 %v32, %v4257
    %v4259 = vrot.slane %v4230, %v4258
    %v4260 = vlaneseq
    %v4261 = vshrl.u32 %v4260, 7
    %v4262 = vsub.s32 %v32, %v4261
    %v4263 = vrot.slane %v4233, %v4262
    %v4264 = vlaneseq
    %v4265 = vshrl.u32 %v4264, 7
    %v4266 = vsub.s32 %v32, %v4265
    %v4267 = vrot.slane %v4236, %v4266
    %v4268 = vlaneseq
    %v4269 = vshrl.u32 %v4268, 7
    %v4270 = vsub.s32 %v32, %v4269
    %v4271 = vrot.slane %v4239, %v4270
    %v4272 = vsel %vm534, %v4247, %v4243
    %v4273 = vsel %vm536, %v4251, %v4272
    %v4274 = vsel %vm538, %v4255, %v4273
    %v4275 = vsel %vm540, %v4259, %v4274
    %v4276 = vsel %vm542, %v4263, %v4275
    %v4277 = vsel %vm544, %v4267, %v4276
    %v4278 = vsel %vm546, %v4271, %v4277
    %v4280 = vsel %vm549, %v4278, -inf
    %4281 = vmax.xlane.f32.xlu0 %v4280
    %v4282 = vpop.xlane.xlu0 %4281
    %v4284 = vlaneseq
    %v4285 = vshrl.u32 %v4284, 7
    %v4286 = vsub.s32 0, %v4285
    %v4287 = vrot.slane %v4282, %v4286
    %v4288 = vlaneseq
    %v4289 = vshrl.u32 %v4288, 7
    %v4290 = vsub.s32 1, %v4289
    %v4291 = vrot.slane %v4282, %v4290
    %v4292 = vlaneseq
    %v4293 = vshrl.u32 %v4292, 7
    %v4294 = vsub.s32 2, %v4293
    %v4295 = vrot.slane %v4282, %v4294
    %v4296 = vlaneseq
    %v4297 = vshrl.u32 %v4296, 7
    %v4298 = vsub.s32 3, %v4297
    %v4299 = vrot.slane %v4282, %v4298
    %v4300 = vlaneseq
    %v4301 = vshrl.u32 %v4300, 7
    %v4302 = vsub.s32 4, %v4301
    %v4303 = vrot.slane %v4282, %v4302
    %v4304 = vlaneseq
    %v4305 = vshrl.u32 %v4304, 7
    %v4306 = vsub.s32 5, %v4305
    %v4307 = vrot.slane %v4282, %v4306
    %v4308 = vlaneseq
    %v4309 = vshrl.u32 %v4308, 7
    %v4310 = vsub.s32 6, %v4309
    %v4311 = vrot.slane %v4282, %v4310
    %v4312 = vlaneseq
    %v4313 = vshrl.u32 %v4312, 7
    %v4314 = vsub.s32 7, %v4313
    %v4315 = vrot.slane %v4282, %v4314
    %v4324 = vsub.f32 %v4170, %v4287
    %v4325 = vsub.f32 %v4175, %v4291
    %v4326 = vsub.f32 %v4180, %v4295
    %v4327 = vsub.f32 %v4185, %v4299
    %v4328 = vsub.f32 %v4190, %v4303
    %v4329 = vsub.f32 %v4195, %v4307
    %v4330 = vsub.f32 %v4200, %v4311
    %v4331 = vsub.f32 %v4205, %v4315
    %v4332 = vmul.f32 %v4324, 1.442695
    %v4333 = vpow.pop %v4332
    %v4334 = vmul.f32 %v4325, 1.442695
    %v4335 = vpow.pop %v4334
    %v4336 = vmul.f32 %v4326, 1.442695
    %v4337 = vpow.pop %v4336
    %v4338 = vmul.f32 %v4327, 1.442695
    %v4339 = vpow.pop %v4338
    %v4340 = vmul.f32 %v4328, 1.442695
    %v4341 = vpow.pop %v4340
    %v4342 = vmul.f32 %v4329, 1.442695
    %v4343 = vpow.pop %v4342
    %v4344 = vmul.f32 %v4330, 1.442695
    %v4345 = vpow.pop %v4344
    %v4346 = vmul.f32 %v4331, 1.442695
    %v4347 = vpow.pop %v4346
    %4356 = vset.pattern.permute.xlu0 0
    %4357 = vperm.xlu0 %4356, %v4333
    %v4358 = vpop.permute.xlu0 %4357
    %4359 = vset.pattern.permute.xlu0 0
    %4360 = vperm.xlu0 %4359, %v4335
    %v4361 = vpop.permute.xlu0 %4360
    %4362 = vset.pattern.permute.xlu0 0
    %4363 = vperm.xlu0 %4362, %v4337
    %v4364 = vpop.permute.xlu0 %4363
    %4365 = vset.pattern.permute.xlu0 0
    %4366 = vperm.xlu0 %4365, %v4339
    %v4367 = vpop.permute.xlu0 %4366
    %4368 = vset.pattern.permute.xlu0 0
    %4369 = vperm.xlu0 %4368, %v4341
    %v4370 = vpop.permute.xlu0 %4369
    %4371 = vset.pattern.permute.xlu0 0
    %4372 = vperm.xlu0 %4371, %v4343
    %v4373 = vpop.permute.xlu0 %4372
    %4374 = vset.pattern.permute.xlu0 0
    %4375 = vperm.xlu0 %4374, %v4345
    %v4376 = vpop.permute.xlu0 %4375
    %4377 = vset.pattern.permute.xlu0 0
    %4378 = vperm.xlu0 %4377, %v4347
    %v4379 = vpop.permute.xlu0 %4378
    %v4380 = vlaneseq
    %v4381 = vshrl.u32 %v4380, 7
    %v4382 = vsub.s32 %v32, %v4381
    %v4383 = vrot.slane %v4358, %v4382
    %v4384 = vlaneseq
    %v4385 = vshrl.u32 %v4384, 7
    %v4386 = vsub.s32 %v32, %v4385
    %v4387 = vrot.slane %v4361, %v4386
    %v4388 = vlaneseq
    %v4389 = vshrl.u32 %v4388, 7
    %v4390 = vsub.s32 %v32, %v4389
    %v4391 = vrot.slane %v4364, %v4390
    %v4392 = vlaneseq
    %v4393 = vshrl.u32 %v4392, 7
    %v4394 = vsub.s32 %v32, %v4393
    %v4395 = vrot.slane %v4367, %v4394
    %v4396 = vlaneseq
    %v4397 = vshrl.u32 %v4396, 7
    %v4398 = vsub.s32 %v32, %v4397
    %v4399 = vrot.slane %v4370, %v4398
    %v4400 = vlaneseq
    %v4401 = vshrl.u32 %v4400, 7
    %v4402 = vsub.s32 %v32, %v4401
    %v4403 = vrot.slane %v4373, %v4402
    %v4404 = vlaneseq
    %v4405 = vshrl.u32 %v4404, 7
    %v4406 = vsub.s32 %v32, %v4405
    %v4407 = vrot.slane %v4376, %v4406
    %v4408 = vlaneseq
    %v4409 = vshrl.u32 %v4408, 7
    %v4410 = vsub.s32 %v32, %v4409
    %v4411 = vrot.slane %v4379, %v4410
    %v4412 = vsel %vm534, %v4387, %v4383
    %v4413 = vsel %vm536, %v4391, %v4412
    %v4414 = vsel %vm538, %v4395, %v4413
    %v4415 = vsel %vm540, %v4399, %v4414
    %v4416 = vsel %vm542, %v4403, %v4415
    %v4417 = vsel %vm544, %v4407, %v4416
    %v4418 = vsel %vm546, %v4411, %v4417
    %v4420 = vsel %vm549, %v4418, 0.0
    %4421 = vadd.xlane.f32.xlu0 %v4420
    %v4422 = vpop.xlane.xlu0 %4421
    %v4424 = vlaneseq
    %v4425 = vshrl.u32 %v4424, 7
    %v4426 = vsub.s32 0, %v4425
    %v4427 = vrot.slane %v4422, %v4426
    %v4428 = vlaneseq
    %v4429 = vshrl.u32 %v4428, 7
    %v4430 = vsub.s32 1, %v4429
    %v4431 = vrot.slane %v4422, %v4430
    %v4432 = vlaneseq
    %v4433 = vshrl.u32 %v4432, 7
    %v4434 = vsub.s32 2, %v4433
    %v4435 = vrot.slane %v4422, %v4434
    %v4436 = vlaneseq
    %v4437 = vshrl.u32 %v4436, 7
    %v4438 = vsub.s32 3, %v4437
    %v4439 = vrot.slane %v4422, %v4438
    %v4440 = vlaneseq
    %v4441 = vshrl.u32 %v4440, 7
    %v4442 = vsub.s32 4, %v4441
    %v4443 = vrot.slane %v4422, %v4442
    %v4444 = vlaneseq
    %v4445 = vshrl.u32 %v4444, 7
    %v4446 = vsub.s32 5, %v4445
    %v4447 = vrot.slane %v4422, %v4446
    %v4448 = vlaneseq
    %v4449 = vshrl.u32 %v4448, 7
    %v4450 = vsub.s32 6, %v4449
    %v4451 = vrot.slane %v4422, %v4450
    %v4452 = vlaneseq
    %v4453 = vshrl.u32 %v4452, 7
    %v4454 = vsub.s32 7, %v4453
    %v4455 = vrot.slane %v4422, %v4454
    %v4464 = vrcp.pop %v4427
    %v4465 = vmul.f32 %v4333, %v4464
    %v4466 = vrcp.pop %v4431
    %v4467 = vmul.f32 %v4335, %v4466
    %v4468 = vrcp.pop %v4435
    %v4469 = vmul.f32 %v4337, %v4468
    %v4470 = vrcp.pop %v4439
    %v4471 = vmul.f32 %v4339, %v4470
    %v4472 = vrcp.pop %v4443
    %v4473 = vmul.f32 %v4341, %v4472
    %v4474 = vrcp.pop %v4447
    %v4475 = vmul.f32 %v4343, %v4474
    %v4476 = vrcp.pop %v4451
    %v4477 = vmul.f32 %v4345, %v4476
    %v4478 = vrcp.pop %v4455
    %v4479 = vmul.f32 %v4347, %v4478
    %v4480 = vmul.f32 %v2601, %v3311
    %4482 = vrot.lane.b32.xlu0 %v4480, 32
    %v4483 = vpop.permute.xlu0 %4482
    %v4485 = vsub.f32 %v4026, %v4483
    %v4486 = vsub.f32 %v4030, %v4483
    %v4487 = vsub.f32 %v4034, %v4483
    %v4488 = vsub.f32 %v4038, %v4483
    %v4489 = vsub.f32 %v4042, %v4483
    %v4490 = vsub.f32 %v4046, %v4483
    %v4491 = vsub.f32 %v4050, %v4483
    %v4492 = vsub.f32 %v4054, %v4483
    %v4493 = vand.u32 2147483647, %v4485
    %v4494 = vand.u32 2147483647, %v4486
    %v4495 = vand.u32 2147483647, %v4487
    %v4496 = vand.u32 2147483647, %v4488
    %v4497 = vand.u32 2147483647, %v4489
    %v4498 = vand.u32 2147483647, %v4490
    %v4499 = vand.u32 2147483647, %v4491
    %v4500 = vand.u32 2147483647, %v4492
    %4509 = vrot.lane.b32.xlu0 %v4493, 96
    %v4510 = vpop.permute.xlu0 %4509
    %4511 = vrot.lane.b32.xlu0 %v4494, 96
    %v4512 = vpop.permute.xlu0 %4511
    %4513 = vrot.lane.b32.xlu0 %v4495, 96
    %v4514 = vpop.permute.xlu0 %4513
    %4515 = vrot.lane.b32.xlu0 %v4496, 96
    %v4516 = vpop.permute.xlu0 %4515
    %4517 = vrot.lane.b32.xlu0 %v4497, 96
    %v4518 = vpop.permute.xlu0 %4517
    %4519 = vrot.lane.b32.xlu0 %v4498, 96
    %v4520 = vpop.permute.xlu0 %4519
    %4521 = vrot.lane.b32.xlu0 %v4499, 96
    %v4522 = vpop.permute.xlu0 %4521
    %4523 = vrot.lane.b32.xlu0 %v4500, 96
    %v4524 = vpop.permute.xlu0 %4523
    %v4525 = vsel %vm59, %v4510, 0
    %v4527 = vsel %vm59, %v4512, 0
    %v4529 = vsel %vm59, %v4514, 0
    %v4531 = vsel %vm59, %v4516, 0
    %v4533 = vsel %vm59, %v4518, 0
    %v4535 = vsel %vm59, %v4520, 0
    %v4537 = vsel %vm59, %v4522, 0
    %v4539 = vsel %vm59, %v4524, 0
    %4541 = vmatprep.subr.mxu0 0.0
    %4542 = vmatpush1.msra.mxu0 0.0
    %4543 = vmatprep.subr.mxu0 0.0
    %4544 = vmatpush1.msra.mxu0 0.0
    %4545 = vmatprep.subr.mxu0 0.0
    %4546 = vmatpush1.msra.mxu0 0.0
    %4547 = vmatprep.subr.mxu0 0.0
    %4548 = vmatpush1.msra.mxu0 0.0
    %4549 = vmatprep.subr.mxu0 0.0
    %4550 = vmatpush1.msra.mxu0 0.0
    %4551 = vmatprep.subr.mxu0 0.0
    %4552 = vmatpush1.msra.mxu0 0.0
    %4553 = vmatprep.subr.mxu0 0.0
    %4554 = vmatpush1.msra.mxu0 0.0
    %4555 = vmatprep.subr.mxu0 0.0
    %4556 = vmatpush1.msra.mxu0 0.0
    %4557 = vmatprep.subr.mxu0 0.0
    %4558 = vmatpush1.msra.mxu0 0.0
    %4559 = vmatprep.subr.mxu0 0.0
    %4560 = vmatpush1.msra.mxu0 0.0
    %4561 = vmatprep.subr.mxu0 0.0
    %4562 = vmatpush1.msra.mxu0 0.0
    %4563 = vmatprep.subr.mxu0 0.0
    %4564 = vmatpush1.msra.mxu0 0.0
    %4565 = vmatprep.subr.mxu0 0.0
    %4566 = vmatpush1.msra.mxu0 -0.17677669
    %4567 = vmatprep.subr.mxu0 0.0
    %4568 = vmatpush1.msra.mxu0 -0.17677669
    %4569 = vmatprep.subr.mxu0 0.0
    %4570 = vmatpush1.msra.mxu0 -0.17677669
    %4571 = vmatprep.subr.mxu0 0.0
    %4572 = vmatpush1.msra.mxu0 -0.17677669
    %4573 = vmatprep.subr.mxu0 0.0
    %4574 = vmatpush2.msra.mxu0 0.0
    %4575 = vmatprep.subr.mxu0 0.0
    %4576 = vmatpush2.msra.mxu0 0.0
    %4577 = vmatprep.subr.mxu0 0.0
    %4578 = vmatpush2.msra.mxu0 0.0
    %4579 = vmatprep.subr.mxu0 0.0
    %4580 = vmatpush2.msra.mxu0 0.0
    %4581 = vmatprep.subr.mxu0 0.0
    %4582 = vmatpush2.msra.mxu0 0.0
    %4583 = vmatprep.subr.mxu0 0.0
    %4584 = vmatpush2.msra.mxu0 0.0
    %4585 = vmatprep.subr.mxu0 0.0
    %4586 = vmatpush2.msra.mxu0 0.0
    %4587 = vmatprep.subr.mxu0 0.0
    %4588 = vmatpush2.msra.mxu0 0.0
    %4589 = vmatprep.subr.mxu0 0.0
    %4590 = vmatpush2.msra.mxu0 0.0
    %4591 = vmatprep.subr.mxu0 0.0
    %4592 = vmatpush2.msra.mxu0 0.0
    %4593 = vmatprep.subr.mxu0 0.0
    %4594 = vmatpush2.msra.mxu0 0.0
    %4595 = vmatprep.subr.mxu0 0.0
    %4596 = vmatpush2.msra.mxu0 0.0
    %4597 = vmatprep.subr.mxu0 0.0
    %4598 = vmatpush2.msra.mxu0 0.0
    %4599 = vmatprep.subr.mxu0 0.0
    %4600 = vmatpush2.msra.mxu0 0.0
    %4601 = vmatprep.subr.mxu0 0.0
    %4602 = vmatpush2.msra.mxu0 0.0
    %4603 = vmatprep.subr.mxu0 0.0
    %4604 = vmatpush2.msra.mxu0 0.0
    %4605 = vmatprep.mubr.f32.mxu0 0.0
    %4606 = vmatmul.mubr.f32.gmra.mxu0 %v4525
    %v4607 = vpop.f32.mrf.mxu0
    %v4608 = vadd.f32 0.0, %v4607
    %v4609 = vpop.f32.mrf.mxu0
    %4610 = vmatprep.mubr.f32.mxu0 0.0
    %4611 = vmatmul.mubr.f32.gmra.mxu0 %v4527
    %v4612 = vpop.f32.mrf.mxu0
    %v4613 = vadd.f32 0.0, %v4612
    %v4614 = vpop.f32.mrf.mxu0
    %4615 = vmatprep.mubr.f32.mxu0 0.0
    %4616 = vmatmul.mubr.f32.gmra.mxu0 %v4529
    %v4617 = vpop.f32.mrf.mxu0
    %v4618 = vadd.f32 0.0, %v4617
    %v4619 = vpop.f32.mrf.mxu0
    %4620 = vmatprep.mubr.f32.mxu0 0.0
    %4621 = vmatmul.mubr.f32.gmra.mxu0 %v4531
    %v4622 = vpop.f32.mrf.mxu0
    %v4623 = vadd.f32 0.0, %v4622
    %v4624 = vpop.f32.mrf.mxu0
    %4625 = vmatprep.mubr.f32.mxu0 0.0
    %4626 = vmatmul.mubr.f32.gmra.mxu0 %v4533
    %v4627 = vpop.f32.mrf.mxu0
    %v4628 = vadd.f32 0.0, %v4627
    %v4629 = vpop.f32.mrf.mxu0
    %4630 = vmatprep.mubr.f32.mxu0 0.0
    %4631 = vmatmul.mubr.f32.gmra.mxu0 %v4535
    %v4632 = vpop.f32.mrf.mxu0
    %v4633 = vadd.f32 0.0, %v4632
    %v4634 = vpop.f32.mrf.mxu0
    %4635 = vmatprep.mubr.f32.mxu0 0.0
    %4636 = vmatmul.mubr.f32.gmra.mxu0 %v4537
    %v4637 = vpop.f32.mrf.mxu0
    %v4638 = vadd.f32 0.0, %v4637
    %v4639 = vpop.f32.mrf.mxu0
    %4640 = vmatprep.mubr.f32.mxu0 0.0
    %4641 = vmatmul.mubr.f32.gmra.mxu0 %v4539
    %v4642 = vpop.f32.mrf.mxu0
    %v4643 = vadd.f32 0.0, %v4642
    %v4644 = vpop.f32.mrf.mxu0
    %4645 = vdwg.mxu0
    %4654 = vset.pattern.permute.xlu0 0
    %4655 = vperm.xlu0 %4654, %v4608
    %v4656 = vpop.permute.xlu0 %4655
    %4657 = vset.pattern.permute.xlu0 0
    %4658 = vperm.xlu0 %4657, %v4613
    %v4659 = vpop.permute.xlu0 %4658
    %4660 = vset.pattern.permute.xlu0 0
    %4661 = vperm.xlu0 %4660, %v4618
    %v4662 = vpop.permute.xlu0 %4661
    %4663 = vset.pattern.permute.xlu0 0
    %4664 = vperm.xlu0 %4663, %v4623
    %v4665 = vpop.permute.xlu0 %4664
    %4666 = vset.pattern.permute.xlu0 0
    %4667 = vperm.xlu0 %4666, %v4628
    %v4668 = vpop.permute.xlu0 %4667
    %4669 = vset.pattern.permute.xlu0 0
    %4670 = vperm.xlu0 %4669, %v4633
    %v4671 = vpop.permute.xlu0 %4670
    %4672 = vset.pattern.permute.xlu0 0
    %4673 = vperm.xlu0 %4672, %v4638
    %v4674 = vpop.permute.xlu0 %4673
    %4675 = vset.pattern.permute.xlu0 0
    %4676 = vperm.xlu0 %4675, %v4643
    %v4677 = vpop.permute.xlu0 %4676
    %v4678 = vlaneseq
    %v4679 = vshrl.u32 %v4678, 7
    %v4680 = vsub.s32 %v32, %v4679
    %v4681 = vrot.slane %v4656, %v4680
    %v4682 = vlaneseq
    %v4683 = vshrl.u32 %v4682, 7
    %v4684 = vsub.s32 %v32, %v4683
    %v4685 = vrot.slane %v4659, %v4684
    %v4686 = vlaneseq
    %v4687 = vshrl.u32 %v4686, 7
    %v4688 = vsub.s32 %v32, %v4687
    %v4689 = vrot.slane %v4662, %v4688
    %v4690 = vlaneseq
    %v4691 = vshrl.u32 %v4690, 7
    %v4692 = vsub.s32 %v32, %v4691
    %v4693 = vrot.slane %v4665, %v4692
    %v4694 = vlaneseq
    %v4695 = vshrl.u32 %v4694, 7
    %v4696 = vsub.s32 %v32, %v4695
    %v4697 = vrot.slane %v4668, %v4696
    %v4698 = vlaneseq
    %v4699 = vshrl.u32 %v4698, 7
    %v4700 = vsub.s32 %v32, %v4699
    %v4701 = vrot.slane %v4671, %v4700
    %v4702 = vlaneseq
    %v4703 = vshrl.u32 %v4702, 7
    %v4704 = vsub.s32 %v32, %v4703
    %v4705 = vrot.slane %v4674, %v4704
    %v4706 = vlaneseq
    %v4707 = vshrl.u32 %v4706, 7
    %v4708 = vsub.s32 %v32, %v4707
    %v4709 = vrot.slane %v4677, %v4708
    %v4710 = vsel %vm534, %v4685, %v4681
    %v4711 = vsel %vm536, %v4689, %v4710
    %v4712 = vsel %vm538, %v4693, %v4711
    %v4713 = vsel %vm540, %v4697, %v4712
    %v4714 = vsel %vm542, %v4701, %v4713
    %v4715 = vsel %vm544, %v4705, %v4714
    %v4716 = vsel %vm546, %v4709, %v4715
    %v4718 = vsel %vm549, %v4716, -inf
    %4719 = vmax.xlane.f32.xlu0 %v4718
    %v4720 = vpop.xlane.xlu0 %4719
    %v4722 = vlaneseq
    %v4723 = vshrl.u32 %v4722, 7
    %v4724 = vsub.s32 0, %v4723
    %v4725 = vrot.slane %v4720, %v4724
    %v4726 = vlaneseq
    %v4727 = vshrl.u32 %v4726, 7
    %v4728 = vsub.s32 1, %v4727
    %v4729 = vrot.slane %v4720, %v4728
    %v4730 = vlaneseq
    %v4731 = vshrl.u32 %v4730, 7
    %v4732 = vsub.s32 2, %v4731
    %v4733 = vrot.slane %v4720, %v4732
    %v4734 = vlaneseq
    %v4735 = vshrl.u32 %v4734, 7
    %v4736 = vsub.s32 3, %v4735
    %v4737 = vrot.slane %v4720, %v4736
    %v4738 = vlaneseq
    %v4739 = vshrl.u32 %v4738, 7
    %v4740 = vsub.s32 4, %v4739
    %v4741 = vrot.slane %v4720, %v4740
    %v4742 = vlaneseq
    %v4743 = vshrl.u32 %v4742, 7
    %v4744 = vsub.s32 5, %v4743
    %v4745 = vrot.slane %v4720, %v4744
    %v4746 = vlaneseq
    %v4747 = vshrl.u32 %v4746, 7
    %v4748 = vsub.s32 6, %v4747
    %v4749 = vrot.slane %v4720, %v4748
    %v4750 = vlaneseq
    %v4751 = vshrl.u32 %v4750, 7
    %v4752 = vsub.s32 7, %v4751
    %v4753 = vrot.slane %v4720, %v4752
    %v4762 = vsub.f32 %v4608, %v4725
    %v4763 = vsub.f32 %v4613, %v4729
    %v4764 = vsub.f32 %v4618, %v4733
    %v4765 = vsub.f32 %v4623, %v4737
    %v4766 = vsub.f32 %v4628, %v4741
    %v4767 = vsub.f32 %v4633, %v4745
    %v4768 = vsub.f32 %v4638, %v4749
    %v4769 = vsub.f32 %v4643, %v4753
    %v4770 = vmul.f32 %v4762, 1.442695
    %v4771 = vpow.pop %v4770
    %v4772 = vmul.f32 %v4763, 1.442695
    %v4773 = vpow.pop %v4772
    %v4774 = vmul.f32 %v4764, 1.442695
    %v4775 = vpow.pop %v4774
    %v4776 = vmul.f32 %v4765, 1.442695
    %v4777 = vpow.pop %v4776
    %v4778 = vmul.f32 %v4766, 1.442695
    %v4779 = vpow.pop %v4778
    %v4780 = vmul.f32 %v4767, 1.442695
    %v4781 = vpow.pop %v4780
    %v4782 = vmul.f32 %v4768, 1.442695
    %v4783 = vpow.pop %v4782
    %v4784 = vmul.f32 %v4769, 1.442695
    %v4785 = vpow.pop %v4784
    %4794 = vset.pattern.permute.xlu0 0
    %4795 = vperm.xlu0 %4794, %v4771
    %v4796 = vpop.permute.xlu0 %4795
    %4797 = vset.pattern.permute.xlu0 0
    %4798 = vperm.xlu0 %4797, %v4773
    %v4799 = vpop.permute.xlu0 %4798
    %4800 = vset.pattern.permute.xlu0 0
    %4801 = vperm.xlu0 %4800, %v4775
    %v4802 = vpop.permute.xlu0 %4801
    %4803 = vset.pattern.permute.xlu0 0
    %4804 = vperm.xlu0 %4803, %v4777
    %v4805 = vpop.permute.xlu0 %4804
    %4806 = vset.pattern.permute.xlu0 0
    %4807 = vperm.xlu0 %4806, %v4779
    %v4808 = vpop.permute.xlu0 %4807
    %4809 = vset.pattern.permute.xlu0 0
    %4810 = vperm.xlu0 %4809, %v4781
    %v4811 = vpop.permute.xlu0 %4810
    %4812 = vset.pattern.permute.xlu0 0
    %4813 = vperm.xlu0 %4812, %v4783
    %v4814 = vpop.permute.xlu0 %4813
    %4815 = vset.pattern.permute.xlu0 0
    %4816 = vperm.xlu0 %4815, %v4785
    %v4817 = vpop.permute.xlu0 %4816
    %v4818 = vlaneseq
    %v4819 = vshrl.u32 %v4818, 7
    %v4820 = vsub.s32 %v32, %v4819
    %v4821 = vrot.slane %v4796, %v4820
    %v4822 = vlaneseq
    %v4823 = vshrl.u32 %v4822, 7
    %v4824 = vsub.s32 %v32, %v4823
    %v4825 = vrot.slane %v4799, %v4824
    %v4826 = vlaneseq
    %v4827 = vshrl.u32 %v4826, 7
    %v4828 = vsub.s32 %v32, %v4827
    %v4829 = vrot.slane %v4802, %v4828
    %v4830 = vlaneseq
    %v4831 = vshrl.u32 %v4830, 7
    %v4832 = vsub.s32 %v32, %v4831
    %v4833 = vrot.slane %v4805, %v4832
    %v4834 = vlaneseq
    %v4835 = vshrl.u32 %v4834, 7
    %v4836 = vsub.s32 %v32, %v4835
    %v4837 = vrot.slane %v4808, %v4836
    %v4838 = vlaneseq
    %v4839 = vshrl.u32 %v4838, 7
    %v4840 = vsub.s32 %v32, %v4839
    %v4841 = vrot.slane %v4811, %v4840
    %v4842 = vlaneseq
    %v4843 = vshrl.u32 %v4842, 7
    %v4844 = vsub.s32 %v32, %v4843
    %v4845 = vrot.slane %v4814, %v4844
    %v4846 = vlaneseq
    %v4847 = vshrl.u32 %v4846, 7
    %v4848 = vsub.s32 %v32, %v4847
    %v4849 = vrot.slane %v4817, %v4848
    %v4850 = vsel %vm534, %v4825, %v4821
    %v4851 = vsel %vm536, %v4829, %v4850
    %v4852 = vsel %vm538, %v4833, %v4851
    %v4853 = vsel %vm540, %v4837, %v4852
    %v4854 = vsel %vm542, %v4841, %v4853
    %v4855 = vsel %vm544, %v4845, %v4854
    %v4856 = vsel %vm546, %v4849, %v4855
    %v4858 = vsel %vm549, %v4856, 0.0
    %4859 = vadd.xlane.f32.xlu0 %v4858
    %v4860 = vpop.xlane.xlu0 %4859
    %v4862 = vlaneseq
    %v4863 = vshrl.u32 %v4862, 7
    %v4864 = vsub.s32 0, %v4863
    %v4865 = vrot.slane %v4860, %v4864
    %v4866 = vlaneseq
    %v4867 = vshrl.u32 %v4866, 7
    %v4868 = vsub.s32 1, %v4867
    %v4869 = vrot.slane %v4860, %v4868
    %v4870 = vlaneseq
    %v4871 = vshrl.u32 %v4870, 7
    %v4872 = vsub.s32 2, %v4871
    %v4873 = vrot.slane %v4860, %v4872
    %v4874 = vlaneseq
    %v4875 = vshrl.u32 %v4874, 7
    %v4876 = vsub.s32 3, %v4875
    %v4877 = vrot.slane %v4860, %v4876
    %v4878 = vlaneseq
    %v4879 = vshrl.u32 %v4878, 7
    %v4880 = vsub.s32 4, %v4879
    %v4881 = vrot.slane %v4860, %v4880
    %v4882 = vlaneseq
    %v4883 = vshrl.u32 %v4882, 7
    %v4884 = vsub.s32 5, %v4883
    %v4885 = vrot.slane %v4860, %v4884
    %v4886 = vlaneseq
    %v4887 = vshrl.u32 %v4886, 7
    %v4888 = vsub.s32 6, %v4887
    %v4889 = vrot.slane %v4860, %v4888
    %v4890 = vlaneseq
    %v4891 = vshrl.u32 %v4890, 7
    %v4892 = vsub.s32 7, %v4891
    %v4893 = vrot.slane %v4860, %v4892
    %v4902 = vrcp.pop %v4865
    %v4903 = vmul.f32 %v4771, %v4902
    %v4904 = vrcp.pop %v4869
    %v4905 = vmul.f32 %v4773, %v4904
    %v4906 = vrcp.pop %v4873
    %v4907 = vmul.f32 %v4775, %v4906
    %v4908 = vrcp.pop %v4877
    %v4909 = vmul.f32 %v4777, %v4908
    %v4910 = vrcp.pop %v4881
    %v4911 = vmul.f32 %v4779, %v4910
    %v4912 = vrcp.pop %v4885
    %v4913 = vmul.f32 %v4781, %v4912
    %v4914 = vrcp.pop %v4889
    %v4915 = vmul.f32 %v4783, %v4914
    %v4916 = vrcp.pop %v4893
    %v4917 = vmul.f32 %v4785, %v4916
    %4926 = vset.pattern.permute.xlu0 0
    %4927 = vperm.xlu0 %4926, %v4465
    %v4928 = vpop.permute.xlu0 %4927
    %4929 = vset.pattern.permute.xlu0 0
    %4930 = vperm.xlu0 %4929, %v4467
    %v4931 = vpop.permute.xlu0 %4930
    %4932 = vset.pattern.permute.xlu0 0
    %4933 = vperm.xlu0 %4932, %v4469
    %v4934 = vpop.permute.xlu0 %4933
    %4935 = vset.pattern.permute.xlu0 0
    %4936 = vperm.xlu0 %4935, %v4471
    %v4937 = vpop.permute.xlu0 %4936
    %4938 = vset.pattern.permute.xlu0 0
    %4939 = vperm.xlu0 %4938, %v4473
    %v4940 = vpop.permute.xlu0 %4939
    %4941 = vset.pattern.permute.xlu0 0
    %4942 = vperm.xlu0 %4941, %v4475
    %v4943 = vpop.permute.xlu0 %4942
    %4944 = vset.pattern.permute.xlu0 0
    %4945 = vperm.xlu0 %4944, %v4477
    %v4946 = vpop.permute.xlu0 %4945
    %4947 = vset.pattern.permute.xlu0 0
    %4948 = vperm.xlu0 %4947, %v4479
    %v4949 = vpop.permute.xlu0 %4948
    %v4950 = vlaneseq
    %v4951 = vshrl.u32 %v4950, 7
    %v4952 = vsub.s32 %v32, %v4951
    %v4953 = vrot.slane %v4928, %v4952
    %v4954 = vlaneseq
    %v4955 = vshrl.u32 %v4954, 7
    %v4956 = vsub.s32 %v32, %v4955
    %v4957 = vrot.slane %v4931, %v4956
    %v4958 = vlaneseq
    %v4959 = vshrl.u32 %v4958, 7
    %v4960 = vsub.s32 %v32, %v4959
    %v4961 = vrot.slane %v4934, %v4960
    %v4962 = vlaneseq
    %v4963 = vshrl.u32 %v4962, 7
    %v4964 = vsub.s32 %v32, %v4963
    %v4965 = vrot.slane %v4937, %v4964
    %v4966 = vlaneseq
    %v4967 = vshrl.u32 %v4966, 7
    %v4968 = vsub.s32 %v32, %v4967
    %v4969 = vrot.slane %v4940, %v4968
    %v4970 = vlaneseq
    %v4971 = vshrl.u32 %v4970, 7
    %v4972 = vsub.s32 %v32, %v4971
    %v4973 = vrot.slane %v4943, %v4972
    %v4974 = vlaneseq
    %v4975 = vshrl.u32 %v4974, 7
    %v4976 = vsub.s32 %v32, %v4975
    %v4977 = vrot.slane %v4946, %v4976
    %v4978 = vlaneseq
    %v4979 = vshrl.u32 %v4978, 7
    %v4980 = vsub.s32 %v32, %v4979
    %v4981 = vrot.slane %v4949, %v4980
    %v4982 = vsel %vm534, %v4957, %v4953
    %v4983 = vsel %vm536, %v4961, %v4982
    %v4984 = vsel %vm538, %v4965, %v4983
    %v4985 = vsel %vm540, %v4969, %v4984
    %v4986 = vsel %vm542, %v4973, %v4985
    %v4987 = vsel %vm544, %v4977, %v4986
    %v4988 = vsel %vm546, %v4981, %v4987
    %4998 = vset.pattern.permute.xlu0 0
    %4999 = vperm.xlu0 %4998, %v4903
    %v5000 = vpop.permute.xlu0 %4999
    %5001 = vset.pattern.permute.xlu0 0
    %5002 = vperm.xlu0 %5001, %v4905
    %v5003 = vpop.permute.xlu0 %5002
    %5004 = vset.pattern.permute.xlu0 0
    %5005 = vperm.xlu0 %5004, %v4907
    %v5006 = vpop.permute.xlu0 %5005
    %5007 = vset.pattern.permute.xlu0 0
    %5008 = vperm.xlu0 %5007, %v4909
    %v5009 = vpop.permute.xlu0 %5008
    %5010 = vset.pattern.permute.xlu0 0
    %5011 = vperm.xlu0 %5010, %v4911
    %v5012 = vpop.permute.xlu0 %5011
    %5013 = vset.pattern.permute.xlu0 0
    %5014 = vperm.xlu0 %5013, %v4913
    %v5015 = vpop.permute.xlu0 %5014
    %5016 = vset.pattern.permute.xlu0 0
    %5017 = vperm.xlu0 %5016, %v4915
    %v5018 = vpop.permute.xlu0 %5017
    %5019 = vset.pattern.permute.xlu0 0
    %5020 = vperm.xlu0 %5019, %v4917
    %v5021 = vpop.permute.xlu0 %5020
    %v5022 = vlaneseq
    %v5023 = vshrl.u32 %v5022, 7
    %v5024 = vsub.s32 %v1296, %v5023
    %v5025 = vrot.slane %v5000, %v5024
    %v5026 = vlaneseq
    %v5027 = vshrl.u32 %v5026, 7
    %v5028 = vsub.s32 %v1296, %v5027
    %v5029 = vrot.slane %v5003, %v5028
    %v5030 = vlaneseq
    %v5031 = vshrl.u32 %v5030, 7
    %v5032 = vsub.s32 %v1296, %v5031
    %v5033 = vrot.slane %v5006, %v5032
    %v5034 = vlaneseq
    %v5035 = vshrl.u32 %v5034, 7
    %v5036 = vsub.s32 %v1296, %v5035
    %v5037 = vrot.slane %v5009, %v5036
    %v5038 = vlaneseq
    %v5039 = vshrl.u32 %v5038, 7
    %v5040 = vsub.s32 %v1296, %v5039
    %v5041 = vrot.slane %v5012, %v5040
    %v5042 = vlaneseq
    %v5043 = vshrl.u32 %v5042, 7
    %v5044 = vsub.s32 %v1296, %v5043
    %v5045 = vrot.slane %v5015, %v5044
    %v5046 = vlaneseq
    %v5047 = vshrl.u32 %v5046, 7
    %v5048 = vsub.s32 %v1296, %v5047
    %v5049 = vrot.slane %v5018, %v5048
    %v5050 = vlaneseq
    %v5051 = vshrl.u32 %v5050, 7
    %v5052 = vsub.s32 %v1296, %v5051
    %v5053 = vrot.slane %v5021, %v5052
    %v5054 = vsel %vm534, %v5029, %v5025
    %v5055 = vsel %vm536, %v5033, %v5054
    %v5056 = vsel %vm538, %v5037, %v5055
    %v5057 = vsel %vm540, %v5041, %v5056
    %v5058 = vsel %vm542, %v5045, %v5057
    %v5059 = vsel %vm544, %v5049, %v5058
    %v5060 = vsel %vm546, %v5053, %v5059
    %v5062 = vsel %vm549, %v4988, %v5060
    %5064 = vrot.lane.b32.xlu0 %v2795, 96
    %v5065 = vpop.permute.xlu0 %5064
    %v5068 = vsel %vm1342, %v5062, 0
    %5070 = vmatprep.subr.mxu0 0.0
    %5071 = vmatpush1.msra.mxu0 0.0
    %5072 = vmatprep.subr.mxu0 0.0
    %5073 = vmatpush1.msra.mxu0 0.0
    %5074 = vmatprep.subr.mxu0 0.0
    %5075 = vmatpush1.msra.mxu0 0.0
    %5076 = vmatprep.subr.mxu0 0.0
    %5077 = vmatpush1.msra.mxu0 0.0
    %5078 = vmatprep.subr.mxu0 0.0
    %5079 = vmatpush1.msra.mxu0 0.0
    %5080 = vmatprep.subr.mxu0 0.0
    %5081 = vmatpush1.msra.mxu0 0.0
    %5082 = vmatprep.subr.mxu0 0.0
    %5083 = vmatpush1.msra.mxu0 0.0
    %5084 = vmatprep.subr.mxu0 0.0
    %5085 = vmatpush1.msra.mxu0 0.0
    %5086 = vmatprep.subr.mxu0 0.0
    %5087 = vmatpush1.msra.mxu0 0.0
    %5088 = vmatprep.subr.mxu0 0.0
    %5089 = vmatpush1.msra.mxu0 0.0
    %5090 = vmatprep.subr.mxu0 0.0
    %5091 = vmatpush1.msra.mxu0 0.0
    %5092 = vmatprep.subr.mxu0 0.0
    %5093 = vmatpush1.msra.mxu0 0.0
    %5094 = vmatprep.subr.mxu0 0.0
    %5095 = vmatpush1.msra.mxu0 0.0
    %5096 = vmatprep.subr.mxu0 0.0
    %5097 = vmatpush1.msra.mxu0 0.0
    %5098 = vmatprep.subr.mxu0 0.0
    %5099 = vmatpush1.msra.mxu0 %v5065
    %5100 = vmatprep.subr.mxu0 0.0
    %5101 = vmatpush1.msra.mxu0 %v2795
    %5102 = vmatprep.subr.mxu0 0.0
    %5103 = vmatpush2.msra.mxu0 0.0
    %5104 = vmatprep.subr.mxu0 0.0
    %5105 = vmatpush2.msra.mxu0 0.0
    %5106 = vmatprep.subr.mxu0 0.0
    %5107 = vmatpush2.msra.mxu0 0.0
    %5108 = vmatprep.subr.mxu0 0.0
    %5109 = vmatpush2.msra.mxu0 0.0
    %5110 = vmatprep.subr.mxu0 0.0
    %5111 = vmatpush2.msra.mxu0 0.0
    %5112 = vmatprep.subr.mxu0 0.0
    %5113 = vmatpush2.msra.mxu0 0.0
    %5114 = vmatprep.subr.mxu0 0.0
    %5115 = vmatpush2.msra.mxu0 0.0
    %5116 = vmatprep.subr.mxu0 0.0
    %5117 = vmatpush2.msra.mxu0 0.0
    %5118 = vmatprep.subr.mxu0 0.0
    %5119 = vmatpush2.msra.mxu0 0.0
    %5120 = vmatprep.subr.mxu0 0.0
    %5121 = vmatpush2.msra.mxu0 0.0
    %5122 = vmatprep.subr.mxu0 0.0
    %5123 = vmatpush2.msra.mxu0 0.0
    %5124 = vmatprep.subr.mxu0 0.0
    %5125 = vmatpush2.msra.mxu0 0.0
    %5126 = vmatprep.subr.mxu0 0.0
    %5127 = vmatpush2.msra.mxu0 0.0
    %5128 = vmatprep.subr.mxu0 0.0
    %5129 = vmatpush2.msra.mxu0 0.0
    %5130 = vmatprep.subr.mxu0 0.0
    %5131 = vmatpush2.msra.mxu0 0.0
    %5132 = vmatprep.subr.mxu0 0.0
    %5133 = vmatpush2.msra.mxu0 0.0
    %5134 = vmatprep.mubr.f32.mxu0 0.0
    %5135 = vmatmul.mubr.f32.gmra.mxu0 %v5068
    %v5136 = vpop.f32.mrf.mxu0
    %v5137 = vadd.f32 0.0, %v5136
    %v5138 = vpop.f32.mrf.mxu0
    %5139 = vdwg.mxu0
    %v5140 = vmul.f32 %v3969, 1.702
    %v5141 = vmul.f32 %v5137, 1.702
    %v5142 = vxor.u32 %v5140, 2147483648
    %v5143 = vxor.u32 %v5141, 2147483648
    %v5144 = vmul.f32 %v5142, 1.442695
    %v5145 = vpow.pop %v5144
    %v5146 = vmul.f32 %v5143, 1.442695
    %v5147 = vpow.pop %v5146
    %v5148 = vadd.f32 %v5145, 1.0
    %v5149 = vadd.f32 %v5147, 1.0
    %v5150 = vrcp.pop %v5148
    %v5151 = vmul.f32 1.0, %v5150
    %v5152 = vrcp.pop %v5149
    %v5153 = vmul.f32 1.0, %v5152
    %v5154 = vmul.f32 %v3969, %v5151
    %v5155 = vmul.f32 %v5137, %v5153
    %v5156 = vadd.f32 %v2600, %v5154
    %v5157 = vadd.f32 %v2601, %v5155
    %v5158 = vsel %vm35, 0.0, %v5156
    %v5159 = vsel %vm35, 0.0, %v5157
    %vm5160 = vcmp.eq.s32.totalorder %v32, 30
    %v5161 = vsel %vm5160, 1.0, %v5158
    %v5162 = vsel %vm5160, 1.0, %v5159
    %v5164 = vsel %vm59, %v5161, 0
    %v5167 = vsel %vm59, %v5162, 0
    %5169 = vmatprep.subr.mxu0 0.0
    %5170 = vmatpush1.msra.mxu0 0.0
    %5171 = vmatprep.subr.mxu0 0.0
    %5172 = vmatpush1.msra.mxu0 0.0
    %5173 = vmatprep.subr.mxu0 0.0
    %5174 = vmatpush1.msra.mxu0 0.0
    %5175 = vmatprep.subr.mxu0 0.0
    %5176 = vmatpush1.msra.mxu0 0.0
    %5177 = vmatprep.subr.mxu0 0.0
    %5178 = vmatpush1.msra.mxu0 0.0
    %5179 = vmatprep.subr.mxu0 0.0
    %5180 = vmatpush1.msra.mxu0 0.0
    %5181 = vmatprep.subr.mxu0 0.0
    %5182 = vmatpush1.msra.mxu0 0.0
    %5183 = vmatprep.subr.mxu0 0.0
    %5184 = vmatpush1.msra.mxu0 0.0
    %5185 = vmatprep.subr.mxu0 0.0
    %5186 = vmatpush1.msra.mxu0 0.0
    %5187 = vmatprep.subr.mxu0 0.0
    %5188 = vmatpush1.msra.mxu0 0.0
    %5189 = vmatprep.subr.mxu0 0.0
    %5190 = vmatpush1.msra.mxu0 0.0
    %5191 = vmatprep.subr.mxu0 0.0
    %5192 = vmatpush1.msra.mxu0 0.0
    %5193 = vmatprep.subr.mxu0 0.0
    %5194 = vmatpush1.msra.mxu0 %v44
    %5195 = vmatprep.subr.mxu0 0.0
    %5196 = vmatpush1.msra.mxu0 %v43
    %5197 = vmatprep.subr.mxu0 0.0
    %5198 = vmatpush1.msra.mxu0 %v42
    %5199 = vmatprep.subr.mxu0 0.0
    %5200 = vmatpush1.msra.mxu0 %v41
    %5201 = vmatprep.subr.mxu0 0.0
    %5202 = vmatpush2.msra.mxu0 0.0
    %5203 = vmatprep.subr.mxu0 0.0
    %5204 = vmatpush2.msra.mxu0 0.0
    %5205 = vmatprep.subr.mxu0 0.0
    %5206 = vmatpush2.msra.mxu0 0.0
    %5207 = vmatprep.subr.mxu0 0.0
    %5208 = vmatpush2.msra.mxu0 0.0
    %5209 = vmatprep.subr.mxu0 0.0
    %5210 = vmatpush2.msra.mxu0 0.0
    %5211 = vmatprep.subr.mxu0 0.0
    %5212 = vmatpush2.msra.mxu0 0.0
    %5213 = vmatprep.subr.mxu0 0.0
    %5214 = vmatpush2.msra.mxu0 0.0
    %5215 = vmatprep.subr.mxu0 0.0
    %5216 = vmatpush2.msra.mxu0 0.0
    %5217 = vmatprep.subr.mxu0 0.0
    %5218 = vmatpush2.msra.mxu0 0.0
    %5219 = vmatprep.subr.mxu0 0.0
    %5220 = vmatpush2.msra.mxu0 0.0
    %5221 = vmatprep.subr.mxu0 0.0
    %5222 = vmatpush2.msra.mxu0 0.0
    %5223 = vmatprep.subr.mxu0 0.0
    %5224 = vmatpush2.msra.mxu0 0.0
    %5225 = vmatprep.subr.mxu0 0.0
    %5226 = vmatpush2.msra.mxu0 0.0
    %5227 = vmatprep.subr.mxu0 0.0
    %5228 = vmatpush2.msra.mxu0 0.0
    %5229 = vmatprep.subr.mxu0 0.0
    %5230 = vmatpush2.msra.mxu0 0.0
    %5231 = vmatprep.subr.mxu0 0.0
    %5232 = vmatpush2.msra.mxu0 0.0
    %5233 = vmatprep.mubr.f32.mxu0 0.0
    %5234 = vmatmul.mubr.f32.gmra.mxu0 %v5164
    %v5235 = vpop.f32.mrf.mxu0
    %v5236 = vadd.f32 %v57, %v5235
    %v5237 = vpop.f32.mrf.mxu0
    %5238 = vmatprep.mubr.f32.mxu0 0.0
    %5239 = vmatmul.mubr.f32.gmra.mxu0 %v5167
    %v5240 = vpop.f32.mrf.mxu0
    %v5241 = vadd.f32 %v57, %v5240
    %v5242 = vpop.f32.mrf.mxu0
    %5243 = vdwg.mxu0
    %5244 = vmatprep.subr.mxu0 0.0
    %5245 = vmatpush1.msra.mxu0 0.0
    %5246 = vmatprep.subr.mxu0 0.0
    %5247 = vmatpush1.msra.mxu0 0.0
    %5248 = vmatprep.subr.mxu0 0.0
    %5249 = vmatpush1.msra.mxu0 0.0
    %5250 = vmatprep.subr.mxu0 0.0
    %5251 = vmatpush1.msra.mxu0 0.0
    %5252 = vmatprep.subr.mxu0 0.0
    %5253 = vmatpush1.msra.mxu0 0.0
    %5254 = vmatprep.subr.mxu0 0.0
    %5255 = vmatpush1.msra.mxu0 0.0
    %5256 = vmatprep.subr.mxu0 0.0
    %5257 = vmatpush1.msra.mxu0 0.0
    %5258 = vmatprep.subr.mxu0 0.0
    %5259 = vmatpush1.msra.mxu0 0.0
    %5260 = vmatprep.subr.mxu0 0.0
    %5261 = vmatpush1.msra.mxu0 0.0
    %5262 = vmatprep.subr.mxu0 0.0
    %5263 = vmatpush1.msra.mxu0 0.0
    %5264 = vmatprep.subr.mxu0 0.0
    %5265 = vmatpush1.msra.mxu0 0.0
    %5266 = vmatprep.subr.mxu0 0.0
    %5267 = vmatpush1.msra.mxu0 0.0
    %5268 = vmatprep.subr.mxu0 0.0
    %5269 = vmatpush1.msra.mxu0 %v48
    %5270 = vmatprep.subr.mxu0 0.0
    %5271 = vmatpush1.msra.mxu0 %v47
    %5272 = vmatprep.subr.mxu0 0.0
    %5273 = vmatpush1.msra.mxu0 %v46
    %5274 = vmatprep.subr.mxu0 0.0
    %5275 = vmatpush1.msra.mxu0 %v45
    %5276 = vmatprep.subr.mxu0 0.0
    %5277 = vmatpush2.msra.mxu0 0.0
    %5278 = vmatprep.subr.mxu0 0.0
    %5279 = vmatpush2.msra.mxu0 0.0
    %5280 = vmatprep.subr.mxu0 0.0
    %5281 = vmatpush2.msra.mxu0 0.0
    %5282 = vmatprep.subr.mxu0 0.0
    %5283 = vmatpush2.msra.mxu0 0.0
    %5284 = vmatprep.subr.mxu0 0.0
    %5285 = vmatpush2.msra.mxu0 0.0
    %5286 = vmatprep.subr.mxu0 0.0
    %5287 = vmatpush2.msra.mxu0 0.0
    %5288 = vmatprep.subr.mxu0 0.0
    %5289 = vmatpush2.msra.mxu0 0.0
    %5290 = vmatprep.subr.mxu0 0.0
    %5291 = vmatpush2.msra.mxu0 0.0
    %5292 = vmatprep.subr.mxu0 0.0
    %5293 = vmatpush2.msra.mxu0 0.0
    %5294 = vmatprep.subr.mxu0 0.0
    %5295 = vmatpush2.msra.mxu0 0.0
    %5296 = vmatprep.subr.mxu0 0.0
    %5297 = vmatpush2.msra.mxu0 0.0
    %5298 = vmatprep.subr.mxu0 0.0
    %5299 = vmatpush2.msra.mxu0 0.0
    %5300 = vmatprep.subr.mxu0 0.0
    %5301 = vmatpush2.msra.mxu0 0.0
    %5302 = vmatprep.subr.mxu0 0.0
    %5303 = vmatpush2.msra.mxu0 0.0
    %5304 = vmatprep.subr.mxu0 0.0
    %5305 = vmatpush2.msra.mxu0 0.0
    %5306 = vmatprep.subr.mxu0 0.0
    %5307 = vmatpush2.msra.mxu0 0.0
    %5308 = vmatprep.mubr.f32.mxu0 0.0
    %5309 = vmatmul.mubr.f32.gmra.mxu0 %v5164
    %v5310 = vpop.f32.mrf.mxu0
    %v5311 = vadd.f32 %v145, %v5310
    %v5312 = vpop.f32.mrf.mxu0
    %5313 = vmatprep.mubr.f32.mxu0 0.0
    %5314 = vmatmul.mubr.f32.gmra.mxu0 %v5167
    %v5315 = vpop.f32.mrf.mxu0
    %v5316 = vadd.f32 %v145, %v5315
    %v5317 = vpop.f32.mrf.mxu0
    %5318 = vdwg.mxu0
    %v5319 = vmul.f32 %v5311, %v226
    %v5320 = vmul.f32 %v5316, %v226
    %v5321 = vmul.f32 %v5161, %v233
    %v5323 = vcombine.high %v5236, %v5236
    %v5325 = vunpack.c.l.s4 1966171168
    %v5326 = vunpack.c.0.s8 %v5325
    %v5327 = vlaneseq
    %v5328 = vshrl.u32 %v5327, 7
    %v5329 = vsub.s32 %v5326, %v5328
    %v5330 = vrot.slane %v5236, %v5329
    %v5332 = vunpack.c.l.s4 1966171168
    %v5333 = vunpack.c.0.s8 %v5332
    %v5334 = vlaneseq
    %v5335 = vshrl.u32 %v5334, 7
    %v5336 = vsub.s32 %v5333, %v5335
    %v5337 = vrot.slane %v5323, %v5336
    %v5338 = vcombine.high %v5330, %v5330
    %v5339 = vcombine.high %v5337, %v5337
    %v5341 = vunpack.c.l.s4 1966171168
    %v5342 = vunpack.c.0.s8 %v5341
    %v5343 = vlaneseq
    %v5344 = vshrl.u32 %v5343, 7
    %v5345 = vsub.s32 %v5342, %v5344
    %v5346 = vrot.slane %v5330, %v5345
    %v5348 = vunpack.c.l.s4 1966171168
    %v5349 = vunpack.c.0.s8 %v5348
    %v5350 = vlaneseq
    %v5351 = vshrl.u32 %v5350, 7
    %v5352 = vsub.s32 %v5349, %v5351
    %v5353 = vrot.slane %v5337, %v5352
    %v5355 = vunpack.c.l.s4 1966171168
    %v5356 = vunpack.c.0.s8 %v5355
    %v5357 = vlaneseq
    %v5358 = vshrl.u32 %v5357, 7
    %v5359 = vsub.s32 %v5356, %v5358
    %v5360 = vrot.slane %v5338, %v5359
    %v5362 = vunpack.c.l.s4 1966171168
    %v5363 = vunpack.c.0.s8 %v5362
    %v5364 = vlaneseq
    %v5365 = vshrl.u32 %v5364, 7
    %v5366 = vsub.s32 %v5363, %v5365
    %v5367 = vrot.slane %v5339, %v5366
    %v5368 = vcombine.high %v5346, %v5346
    %v5369 = vcombine.high %v5353, %v5353
    %v5370 = vcombine.high %v5360, %v5360
    %v5371 = vcombine.high %v5367, %v5367
    %v5372 = vlaneseq
    %v5373 = vshrl.u32 %v5372, 7
    %v5374 = vsub.s32 0, %v5373
    %v5375 = vrot.slane %v5346, %v5374
    %v5376 = vlaneseq
    %v5377 = vshrl.u32 %v5376, 7
    %v5378 = vsub.s32 0, %v5377
    %v5379 = vrot.slane %v5360, %v5378
    %v5380 = vlaneseq
    %v5381 = vshrl.u32 %v5380, 7
    %v5382 = vsub.s32 0, %v5381
    %v5383 = vrot.slane %v5368, %v5382
    %v5384 = vlaneseq
    %v5385 = vshrl.u32 %v5384, 7
    %v5386 = vsub.s32 0, %v5385
    %v5387 = vrot.slane %v5370, %v5386
    %v5388 = vlaneseq
    %v5389 = vshrl.u32 %v5388, 7
    %v5390 = vsub.s32 0, %v5389
    %v5391 = vrot.slane %v5353, %v5390
    %v5392 = vlaneseq
    %v5393 = vshrl.u32 %v5392, 7
    %v5394 = vsub.s32 0, %v5393
    %v5395 = vrot.slane %v5367, %v5394
    %v5396 = vlaneseq
    %v5397 = vshrl.u32 %v5396, 7
    %v5398 = vsub.s32 0, %v5397
    %v5399 = vrot.slane %v5369, %v5398
    %v5400 = vlaneseq
    %v5401 = vshrl.u32 %v5400, 7
    %v5402 = vsub.s32 0, %v5401
    %v5403 = vrot.slane %v5371, %v5402
    %v5412 = vsub.f32 %v5375, %v5321
    %v5413 = vsub.f32 %v5379, %v5321
    %v5414 = vsub.f32 %v5383, %v5321
    %v5415 = vsub.f32 %v5387, %v5321
    %v5416 = vsub.f32 %v5391, %v5321
    %v5417 = vsub.f32 %v5395, %v5321
    %v5418 = vsub.f32 %v5399, %v5321
    %v5419 = vsub.f32 %v5403, %v5321
    %v5420 = vand.u32 2147483647, %v5412
    %v5421 = vand.u32 2147483647, %v5413
    %v5422 = vand.u32 2147483647, %v5414
    %v5423 = vand.u32 2147483647, %v5415
    %v5424 = vand.u32 2147483647, %v5416
    %v5425 = vand.u32 2147483647, %v5417
    %v5426 = vand.u32 2147483647, %v5418
    %v5427 = vand.u32 2147483647, %v5419
    %v5429 = vsel %vm59, %v5420, 0
    %v5432 = vsel %vm59, %v5421, 0
    %v5435 = vsel %vm59, %v5422, 0
    %v5438 = vsel %vm59, %v5423, 0
    %v5441 = vsel %vm59, %v5424, 0
    %v5444 = vsel %vm59, %v5425, 0
    %v5447 = vsel %vm59, %v5426, 0
    %v5450 = vsel %vm59, %v5427, 0
    %5452 = vmatprep.subr.mxu0 0.0
    %5453 = vmatpush1.msra.mxu0 0.0
    %5454 = vmatprep.subr.mxu0 0.0
    %5455 = vmatpush1.msra.mxu0 0.0
    %5456 = vmatprep.subr.mxu0 0.0
    %5457 = vmatpush1.msra.mxu0 0.0
    %5458 = vmatprep.subr.mxu0 0.0
    %5459 = vmatpush1.msra.mxu0 0.0
    %5460 = vmatprep.subr.mxu0 0.0
    %5461 = vmatpush1.msra.mxu0 0.0
    %5462 = vmatprep.subr.mxu0 0.0
    %5463 = vmatpush1.msra.mxu0 0.0
    %5464 = vmatprep.subr.mxu0 0.0
    %5465 = vmatpush1.msra.mxu0 0.0
    %5466 = vmatprep.subr.mxu0 0.0
    %5467 = vmatpush1.msra.mxu0 0.0
    %5468 = vmatprep.subr.mxu0 0.0
    %5469 = vmatpush1.msra.mxu0 0.0
    %5470 = vmatprep.subr.mxu0 0.0
    %5471 = vmatpush1.msra.mxu0 0.0
    %5472 = vmatprep.subr.mxu0 0.0
    %5473 = vmatpush1.msra.mxu0 0.0
    %5474 = vmatprep.subr.mxu0 0.0
    %5475 = vmatpush1.msra.mxu0 0.0
    %5476 = vmatprep.subr.mxu0 0.0
    %5477 = vmatpush1.msra.mxu0 -0.17677669
    %5478 = vmatprep.subr.mxu0 0.0
    %5479 = vmatpush1.msra.mxu0 -0.17677669
    %5480 = vmatprep.subr.mxu0 0.0
    %5481 = vmatpush1.msra.mxu0 -0.17677669
    %5482 = vmatprep.subr.mxu0 0.0
    %5483 = vmatpush1.msra.mxu0 -0.17677669
    %5484 = vmatprep.subr.mxu0 0.0
    %5485 = vmatpush2.msra.mxu0 0.0
    %5486 = vmatprep.subr.mxu0 0.0
    %5487 = vmatpush2.msra.mxu0 0.0
    %5488 = vmatprep.subr.mxu0 0.0
    %5489 = vmatpush2.msra.mxu0 0.0
    %5490 = vmatprep.subr.mxu0 0.0
    %5491 = vmatpush2.msra.mxu0 0.0
    %5492 = vmatprep.subr.mxu0 0.0
    %5493 = vmatpush2.msra.mxu0 0.0
    %5494 = vmatprep.subr.mxu0 0.0
    %5495 = vmatpush2.msra.mxu0 0.0
    %5496 = vmatprep.subr.mxu0 0.0
    %5497 = vmatpush2.msra.mxu0 0.0
    %5498 = vmatprep.subr.mxu0 0.0
    %5499 = vmatpush2.msra.mxu0 0.0
    %5500 = vmatprep.subr.mxu0 0.0
    %5501 = vmatpush2.msra.mxu0 0.0
    %5502 = vmatprep.subr.mxu0 0.0
    %5503 = vmatpush2.msra.mxu0 0.0
    %5504 = vmatprep.subr.mxu0 0.0
    %5505 = vmatpush2.msra.mxu0 0.0
    %5506 = vmatprep.subr.mxu0 0.0
    %5507 = vmatpush2.msra.mxu0 0.0
    %5508 = vmatprep.subr.mxu0 0.0
    %5509 = vmatpush2.msra.mxu0 0.0
    %5510 = vmatprep.subr.mxu0 0.0
    %5511 = vmatpush2.msra.mxu0 0.0
    %5512 = vmatprep.subr.mxu0 0.0
    %5513 = vmatpush2.msra.mxu0 0.0
    %5514 = vmatprep.subr.mxu0 0.0
    %5515 = vmatpush2.msra.mxu0 0.0
    %5516 = vmatprep.mubr.f32.mxu0 0.0
    %5517 = vmatmul.mubr.f32.gmra.mxu0 %v5429
    %v5518 = vpop.f32.mrf.mxu0
    %v5519 = vadd.f32 0.0, %v5518
    %v5520 = vpop.f32.mrf.mxu0
    %5521 = vmatprep.mubr.f32.mxu0 0.0
    %5522 = vmatmul.mubr.f32.gmra.mxu0 %v5432
    %v5523 = vpop.f32.mrf.mxu0
    %v5524 = vadd.f32 0.0, %v5523
    %v5525 = vpop.f32.mrf.mxu0
    %5526 = vmatprep.mubr.f32.mxu0 0.0
    %5527 = vmatmul.mubr.f32.gmra.mxu0 %v5435
    %v5528 = vpop.f32.mrf.mxu0
    %v5529 = vadd.f32 0.0, %v5528
    %v5530 = vpop.f32.mrf.mxu0
    %5531 = vmatprep.mubr.f32.mxu0 0.0
    %5532 = vmatmul.mubr.f32.gmra.mxu0 %v5438
    %v5533 = vpop.f32.mrf.mxu0
    %v5534 = vadd.f32 0.0, %v5533
    %v5535 = vpop.f32.mrf.mxu0
    %5536 = vmatprep.mubr.f32.mxu0 0.0
    %5537 = vmatmul.mubr.f32.gmra.mxu0 %v5441
    %v5538 = vpop.f32.mrf.mxu0
    %v5539 = vadd.f32 0.0, %v5538
    %v5540 = vpop.f32.mrf.mxu0
    %5541 = vmatprep.mubr.f32.mxu0 0.0
    %5542 = vmatmul.mubr.f32.gmra.mxu0 %v5444
    %v5543 = vpop.f32.mrf.mxu0
    %v5544 = vadd.f32 0.0, %v5543
    %v5545 = vpop.f32.mrf.mxu0
    %5546 = vmatprep.mubr.f32.mxu0 0.0
    %5547 = vmatmul.mubr.f32.gmra.mxu0 %v5447
    %v5548 = vpop.f32.mrf.mxu0
    %v5549 = vadd.f32 0.0, %v5548
    %v5550 = vpop.f32.mrf.mxu0
    %5551 = vmatprep.mubr.f32.mxu0 0.0
    %5552 = vmatmul.mubr.f32.gmra.mxu0 %v5450
    %v5553 = vpop.f32.mrf.mxu0
    %v5554 = vadd.f32 0.0, %v5553
    %v5555 = vpop.f32.mrf.mxu0
    %5556 = vdwg.mxu0
    %5565 = vset.pattern.permute.xlu0 0
    %5566 = vperm.xlu0 %5565, %v5519
    %v5567 = vpop.permute.xlu0 %5566
    %5568 = vset.pattern.permute.xlu0 0
    %5569 = vperm.xlu0 %5568, %v5524
    %v5570 = vpop.permute.xlu0 %5569
    %5571 = vset.pattern.permute.xlu0 0
    %5572 = vperm.xlu0 %5571, %v5529
    %v5573 = vpop.permute.xlu0 %5572
    %5574 = vset.pattern.permute.xlu0 0
    %5575 = vperm.xlu0 %5574, %v5534
    %v5576 = vpop.permute.xlu0 %5575
    %5577 = vset.pattern.permute.xlu0 0
    %5578 = vperm.xlu0 %5577, %v5539
    %v5579 = vpop.permute.xlu0 %5578
    %5580 = vset.pattern.permute.xlu0 0
    %5581 = vperm.xlu0 %5580, %v5544
    %v5582 = vpop.permute.xlu0 %5581
    %5583 = vset.pattern.permute.xlu0 0
    %5584 = vperm.xlu0 %5583, %v5549
    %v5585 = vpop.permute.xlu0 %5584
    %5586 = vset.pattern.permute.xlu0 0
    %5587 = vperm.xlu0 %5586, %v5554
    %v5588 = vpop.permute.xlu0 %5587
    %v5589 = vlaneseq
    %v5590 = vshrl.u32 %v5589, 7
    %v5591 = vsub.s32 %v32, %v5590
    %v5592 = vrot.slane %v5567, %v5591
    %v5593 = vlaneseq
    %v5594 = vshrl.u32 %v5593, 7
    %v5595 = vsub.s32 %v32, %v5594
    %v5596 = vrot.slane %v5570, %v5595
    %v5597 = vlaneseq
    %v5598 = vshrl.u32 %v5597, 7
    %v5599 = vsub.s32 %v32, %v5598
    %v5600 = vrot.slane %v5573, %v5599
    %v5601 = vlaneseq
    %v5602 = vshrl.u32 %v5601, 7
    %v5603 = vsub.s32 %v32, %v5602
    %v5604 = vrot.slane %v5576, %v5603
    %v5605 = vlaneseq
    %v5606 = vshrl.u32 %v5605, 7
    %v5607 = vsub.s32 %v32, %v5606
    %v5608 = vrot.slane %v5579, %v5607
    %v5609 = vlaneseq
    %v5610 = vshrl.u32 %v5609, 7
    %v5611 = vsub.s32 %v32, %v5610
    %v5612 = vrot.slane %v5582, %v5611
    %v5613 = vlaneseq
    %v5614 = vshrl.u32 %v5613, 7
    %v5615 = vsub.s32 %v32, %v5614
    %v5616 = vrot.slane %v5585, %v5615
    %v5617 = vlaneseq
    %v5618 = vshrl.u32 %v5617, 7
    %v5619 = vsub.s32 %v32, %v5618
    %v5620 = vrot.slane %v5588, %v5619
    %v5621 = vsel %vm534, %v5596, %v5592
    %v5622 = vsel %vm536, %v5600, %v5621
    %v5623 = vsel %vm538, %v5604, %v5622
    %v5624 = vsel %vm540, %v5608, %v5623
    %v5625 = vsel %vm542, %v5612, %v5624
    %v5626 = vsel %vm544, %v5616, %v5625
    %v5627 = vsel %vm546, %v5620, %v5626
    %v5629 = vsel %vm549, %v5627, -inf
    %5630 = vmax.xlane.f32.xlu0 %v5629
    %v5631 = vpop.xlane.xlu0 %5630
    %v5633 = vlaneseq
    %v5634 = vshrl.u32 %v5633, 7
    %v5635 = vsub.s32 0, %v5634
    %v5636 = vrot.slane %v5631, %v5635
    %v5637 = vlaneseq
    %v5638 = vshrl.u32 %v5637, 7
    %v5639 = vsub.s32 1, %v5638
    %v5640 = vrot.slane %v5631, %v5639
    %v5641 = vlaneseq
    %v5642 = vshrl.u32 %v5641, 7
    %v5643 = vsub.s32 2, %v5642
    %v5644 = vrot.slane %v5631, %v5643
    %v5645 = vlaneseq
    %v5646 = vshrl.u32 %v5645, 7
    %v5647 = vsub.s32 3, %v5646
    %v5648 = vrot.slane %v5631, %v5647
    %v5649 = vlaneseq
    %v5650 = vshrl.u32 %v5649, 7
    %v5651 = vsub.s32 4, %v5650
    %v5652 = vrot.slane %v5631, %v5651
    %v5653 = vlaneseq
    %v5654 = vshrl.u32 %v5653, 7
    %v5655 = vsub.s32 5, %v5654
    %v5656 = vrot.slane %v5631, %v5655
    %v5657 = vlaneseq
    %v5658 = vshrl.u32 %v5657, 7
    %v5659 = vsub.s32 6, %v5658
    %v5660 = vrot.slane %v5631, %v5659
    %v5661 = vlaneseq
    %v5662 = vshrl.u32 %v5661, 7
    %v5663 = vsub.s32 7, %v5662
    %v5664 = vrot.slane %v5631, %v5663
    %v5673 = vsub.f32 %v5519, %v5636
    %v5674 = vsub.f32 %v5524, %v5640
    %v5675 = vsub.f32 %v5529, %v5644
    %v5676 = vsub.f32 %v5534, %v5648
    %v5677 = vsub.f32 %v5539, %v5652
    %v5678 = vsub.f32 %v5544, %v5656
    %v5679 = vsub.f32 %v5549, %v5660
    %v5680 = vsub.f32 %v5554, %v5664
    %v5681 = vmul.f32 %v5673, 1.442695
    %v5682 = vpow.pop %v5681
    %v5683 = vmul.f32 %v5674, 1.442695
    %v5684 = vpow.pop %v5683
    %v5685 = vmul.f32 %v5675, 1.442695
    %v5686 = vpow.pop %v5685
    %v5687 = vmul.f32 %v5676, 1.442695
    %v5688 = vpow.pop %v5687
    %v5689 = vmul.f32 %v5677, 1.442695
    %v5690 = vpow.pop %v5689
    %v5691 = vmul.f32 %v5678, 1.442695
    %v5692 = vpow.pop %v5691
    %v5693 = vmul.f32 %v5679, 1.442695
    %v5694 = vpow.pop %v5693
    %v5695 = vmul.f32 %v5680, 1.442695
    %v5696 = vpow.pop %v5695
    %5705 = vset.pattern.permute.xlu0 0
    %5706 = vperm.xlu0 %5705, %v5682
    %v5707 = vpop.permute.xlu0 %5706
    %5708 = vset.pattern.permute.xlu0 0
    %5709 = vperm.xlu0 %5708, %v5684
    %v5710 = vpop.permute.xlu0 %5709
    %5711 = vset.pattern.permute.xlu0 0
    %5712 = vperm.xlu0 %5711, %v5686
    %v5713 = vpop.permute.xlu0 %5712
    %5714 = vset.pattern.permute.xlu0 0
    %5715 = vperm.xlu0 %5714, %v5688
    %v5716 = vpop.permute.xlu0 %5715
    %5717 = vset.pattern.permute.xlu0 0
    %5718 = vperm.xlu0 %5717, %v5690
    %v5719 = vpop.permute.xlu0 %5718
    %5720 = vset.pattern.permute.xlu0 0
    %5721 = vperm.xlu0 %5720, %v5692
    %v5722 = vpop.permute.xlu0 %5721
    %5723 = vset.pattern.permute.xlu0 0
    %5724 = vperm.xlu0 %5723, %v5694
    %v5725 = vpop.permute.xlu0 %5724
    %5726 = vset.pattern.permute.xlu0 0
    %5727 = vperm.xlu0 %5726, %v5696
    %v5728 = vpop.permute.xlu0 %5727
    %v5729 = vlaneseq
    %v5730 = vshrl.u32 %v5729, 7
    %v5731 = vsub.s32 %v32, %v5730
    %v5732 = vrot.slane %v5707, %v5731
    %v5733 = vlaneseq
    %v5734 = vshrl.u32 %v5733, 7
    %v5735 = vsub.s32 %v32, %v5734
    %v5736 = vrot.slane %v5710, %v5735
    %v5737 = vlaneseq
    %v5738 = vshrl.u32 %v5737, 7
    %v5739 = vsub.s32 %v32, %v5738
    %v5740 = vrot.slane %v5713, %v5739
    %v5741 = vlaneseq
    %v5742 = vshrl.u32 %v5741, 7
    %v5743 = vsub.s32 %v32, %v5742
    %v5744 = vrot.slane %v5716, %v5743
    %v5745 = vlaneseq
    %v5746 = vshrl.u32 %v5745, 7
    %v5747 = vsub.s32 %v32, %v5746
    %v5748 = vrot.slane %v5719, %v5747
    %v5749 = vlaneseq
    %v5750 = vshrl.u32 %v5749, 7
    %v5751 = vsub.s32 %v32, %v5750
    %v5752 = vrot.slane %v5722, %v5751
    %v5753 = vlaneseq
    %v5754 = vshrl.u32 %v5753, 7
    %v5755 = vsub.s32 %v32, %v5754
    %v5756 = vrot.slane %v5725, %v5755
    %v5757 = vlaneseq
    %v5758 = vshrl.u32 %v5757, 7
    %v5759 = vsub.s32 %v32, %v5758
    %v5760 = vrot.slane %v5728, %v5759
    %v5761 = vsel %vm534, %v5736, %v5732
    %v5762 = vsel %vm536, %v5740, %v5761
    %v5763 = vsel %vm538, %v5744, %v5762
    %v5764 = vsel %vm540, %v5748, %v5763
    %v5765 = vsel %vm542, %v5752, %v5764
    %v5766 = vsel %vm544, %v5756, %v5765
    %v5767 = vsel %vm546, %v5760, %v5766
    %v5769 = vsel %vm549, %v5767, 0.0
    %5770 = vadd.xlane.f32.xlu0 %v5769
    %v5771 = vpop.xlane.xlu0 %5770
    %v5773 = vlaneseq
    %v5774 = vshrl.u32 %v5773, 7
    %v5775 = vsub.s32 0, %v5774
    %v5776 = vrot.slane %v5771, %v5775
    %v5777 = vlaneseq
    %v5778 = vshrl.u32 %v5777, 7
    %v5779 = vsub.s32 1, %v5778
    %v5780 = vrot.slane %v5771, %v5779
    %v5781 = vlaneseq
    %v5782 = vshrl.u32 %v5781, 7
    %v5783 = vsub.s32 2, %v5782
    %v5784 = vrot.slane %v5771, %v5783
    %v5785 = vlaneseq
    %v5786 = vshrl.u32 %v5785, 7
    %v5787 = vsub.s32 3, %v5786
    %v5788 = vrot.slane %v5771, %v5787
    %v5789 = vlaneseq
    %v5790 = vshrl.u32 %v5789, 7
    %v5791 = vsub.s32 4, %v5790
    %v5792 = vrot.slane %v5771, %v5791
    %v5793 = vlaneseq
    %v5794 = vshrl.u32 %v5793, 7
    %v5795 = vsub.s32 5, %v5794
    %v5796 = vrot.slane %v5771, %v5795
    %v5797 = vlaneseq
    %v5798 = vshrl.u32 %v5797, 7
    %v5799 = vsub.s32 6, %v5798
    %v5800 = vrot.slane %v5771, %v5799
    %v5801 = vlaneseq
    %v5802 = vshrl.u32 %v5801, 7
    %v5803 = vsub.s32 7, %v5802
    %v5804 = vrot.slane %v5771, %v5803
    %v5813 = vrcp.pop %v5776
    %v5814 = vmul.f32 %v5682, %v5813
    %v5815 = vrcp.pop %v5780
    %v5816 = vmul.f32 %v5684, %v5815
    %v5817 = vrcp.pop %v5784
    %v5818 = vmul.f32 %v5686, %v5817
    %v5819 = vrcp.pop %v5788
    %v5820 = vmul.f32 %v5688, %v5819
    %v5821 = vrcp.pop %v5792
    %v5822 = vmul.f32 %v5690, %v5821
    %v5823 = vrcp.pop %v5796
    %v5824 = vmul.f32 %v5692, %v5823
    %v5825 = vrcp.pop %v5800
    %v5826 = vmul.f32 %v5694, %v5825
    %v5827 = vrcp.pop %v5804
    %v5828 = vmul.f32 %v5696, %v5827
    %v5829 = vmul.f32 %v5161, %v753
    %5831 = vrot.lane.b32.xlu0 %v5829, 32
    %v5832 = vpop.permute.xlu0 %5831
    %v5834 = vsub.f32 %v5375, %v5832
    %v5835 = vsub.f32 %v5379, %v5832
    %v5836 = vsub.f32 %v5383, %v5832
    %v5837 = vsub.f32 %v5387, %v5832
    %v5838 = vsub.f32 %v5391, %v5832
    %v5839 = vsub.f32 %v5395, %v5832
    %v5840 = vsub.f32 %v5399, %v5832
    %v5841 = vsub.f32 %v5403, %v5832
    %v5842 = vand.u32 2147483647, %v5834
    %v5843 = vand.u32 2147483647, %v5835
    %v5844 = vand.u32 2147483647, %v5836
    %v5845 = vand.u32 2147483647, %v5837
    %v5846 = vand.u32 2147483647, %v5838
    %v5847 = vand.u32 2147483647, %v5839
    %v5848 = vand.u32 2147483647, %v5840
    %v5849 = vand.u32 2147483647, %v5841
    %5858 = vrot.lane.b32.xlu0 %v5842, 96
    %v5859 = vpop.permute.xlu0 %5858
    %5860 = vrot.lane.b32.xlu0 %v5843, 96
    %v5861 = vpop.permute.xlu0 %5860
    %5862 = vrot.lane.b32.xlu0 %v5844, 96
    %v5863 = vpop.permute.xlu0 %5862
    %5864 = vrot.lane.b32.xlu0 %v5845, 96
    %v5865 = vpop.permute.xlu0 %5864
    %5866 = vrot.lane.b32.xlu0 %v5846, 96
    %v5867 = vpop.permute.xlu0 %5866
    %5868 = vrot.lane.b32.xlu0 %v5847, 96
    %v5869 = vpop.permute.xlu0 %5868
    %5870 = vrot.lane.b32.xlu0 %v5848, 96
    %v5871 = vpop.permute.xlu0 %5870
    %5872 = vrot.lane.b32.xlu0 %v5849, 96
    %v5873 = vpop.permute.xlu0 %5872
    %v5874 = vsel %vm59, %v5859, 0
    %v5876 = vsel %vm59, %v5861, 0
    %v5878 = vsel %vm59, %v5863, 0
    %v5880 = vsel %vm59, %v5865, 0
    %v5882 = vsel %vm59, %v5867, 0
    %v5884 = vsel %vm59, %v5869, 0
    %v5886 = vsel %vm59, %v5871, 0
    %v5888 = vsel %vm59, %v5873, 0
    %5890 = vmatprep.subr.mxu0 0.0
    %5891 = vmatpush1.msra.mxu0 0.0
    %5892 = vmatprep.subr.mxu0 0.0
    %5893 = vmatpush1.msra.mxu0 0.0
    %5894 = vmatprep.subr.mxu0 0.0
    %5895 = vmatpush1.msra.mxu0 0.0
    %5896 = vmatprep.subr.mxu0 0.0
    %5897 = vmatpush1.msra.mxu0 0.0
    %5898 = vmatprep.subr.mxu0 0.0
    %5899 = vmatpush1.msra.mxu0 0.0
    %5900 = vmatprep.subr.mxu0 0.0
    %5901 = vmatpush1.msra.mxu0 0.0
    %5902 = vmatprep.subr.mxu0 0.0
    %5903 = vmatpush1.msra.mxu0 0.0
    %5904 = vmatprep.subr.mxu0 0.0
    %5905 = vmatpush1.msra.mxu0 0.0
    %5906 = vmatprep.subr.mxu0 0.0
    %5907 = vmatpush1.msra.mxu0 0.0
    %5908 = vmatprep.subr.mxu0 0.0
    %5909 = vmatpush1.msra.mxu0 0.0
    %5910 = vmatprep.subr.mxu0 0.0
    %5911 = vmatpush1.msra.mxu0 0.0
    %5912 = vmatprep.subr.mxu0 0.0
    %5913 = vmatpush1.msra.mxu0 0.0
    %5914 = vmatprep.subr.mxu0 0.0
    %5915 = vmatpush1.msra.mxu0 -0.17677669
    %5916 = vmatprep.subr.mxu0 0.0
    %5917 = vmatpush1.msra.mxu0 -0.17677669
    %5918 = vmatprep.subr.mxu0 0.0
    %5919 = vmatpush1.msra.mxu0 -0.17677669
    %5920 = vmatprep.subr.mxu0 0.0
    %5921 = vmatpush1.msra.mxu0 -0.17677669
    %5922 = vmatprep.subr.mxu0 0.0
    %5923 = vmatpush2.msra.mxu0 0.0
    %5924 = vmatprep.subr.mxu0 0.0
    %5925 = vmatpush2.msra.mxu0 0.0
    %5926 = vmatprep.subr.mxu0 0.0
    %5927 = vmatpush2.msra.mxu0 0.0
    %5928 = vmatprep.subr.mxu0 0.0
    %5929 = vmatpush2.msra.mxu0 0.0
    %5930 = vmatprep.subr.mxu0 0.0
    %5931 = vmatpush2.msra.mxu0 0.0
    %5932 = vmatprep.subr.mxu0 0.0
    %5933 = vmatpush2.msra.mxu0 0.0
    %5934 = vmatprep.subr.mxu0 0.0
    %5935 = vmatpush2.msra.mxu0 0.0
    %5936 = vmatprep.subr.mxu0 0.0
    %5937 = vmatpush2.msra.mxu0 0.0
    %5938 = vmatprep.subr.mxu0 0.0
    %5939 = vmatpush2.msra.mxu0 0.0
    %5940 = vmatprep.subr.mxu0 0.0
    %5941 = vmatpush2.msra.mxu0 0.0
    %5942 = vmatprep.subr.mxu0 0.0
    %5943 = vmatpush2.msra.mxu0 0.0
    %5944 = vmatprep.subr.mxu0 0.0
    %5945 = vmatpush2.msra.mxu0 0.0
    %5946 = vmatprep.subr.mxu0 0.0
    %5947 = vmatpush2.msra.mxu0 0.0
    %5948 = vmatprep.subr.mxu0 0.0
    %5949 = vmatpush2.msra.mxu0 0.0
    %5950 = vmatprep.subr.mxu0 0.0
    %5951 = vmatpush2.msra.mxu0 0.0
    %5952 = vmatprep.subr.mxu0 0.0
    %5953 = vmatpush2.msra.mxu0 0.0
    %5954 = vmatprep.mubr.f32.mxu0 0.0
    %5955 = vmatmul.mubr.f32.gmra.mxu0 %v5874
    %v5956 = vpop.f32.mrf.mxu0
    %v5957 = vadd.f32 0.0, %v5956
    %v5958 = vpop.f32.mrf.mxu0
    %5959 = vmatprep.mubr.f32.mxu0 0.0
    %5960 = vmatmul.mubr.f32.gmra.mxu0 %v5876
    %v5961 = vpop.f32.mrf.mxu0
    %v5962 = vadd.f32 0.0, %v5961
    %v5963 = vpop.f32.mrf.mxu0
    %5964 = vmatprep.mubr.f32.mxu0 0.0
    %5965 = vmatmul.mubr.f32.gmra.mxu0 %v5878
    %v5966 = vpop.f32.mrf.mxu0
    %v5967 = vadd.f32 0.0, %v5966
    %v5968 = vpop.f32.mrf.mxu0
    %5969 = vmatprep.mubr.f32.mxu0 0.0
    %5970 = vmatmul.mubr.f32.gmra.mxu0 %v5880
    %v5971 = vpop.f32.mrf.mxu0
    %v5972 = vadd.f32 0.0, %v5971
    %v5973 = vpop.f32.mrf.mxu0
    %5974 = vmatprep.mubr.f32.mxu0 0.0
    %5975 = vmatmul.mubr.f32.gmra.mxu0 %v5882
    %v5976 = vpop.f32.mrf.mxu0
    %v5977 = vadd.f32 0.0, %v5976
    %v5978 = vpop.f32.mrf.mxu0
    %5979 = vmatprep.mubr.f32.mxu0 0.0
    %5980 = vmatmul.mubr.f32.gmra.mxu0 %v5884
    %v5981 = vpop.f32.mrf.mxu0
    %v5982 = vadd.f32 0.0, %v5981
    %v5983 = vpop.f32.mrf.mxu0
    %5984 = vmatprep.mubr.f32.mxu0 0.0
    %5985 = vmatmul.mubr.f32.gmra.mxu0 %v5886
    %v5986 = vpop.f32.mrf.mxu0
    %v5987 = vadd.f32 0.0, %v5986
    %v5988 = vpop.f32.mrf.mxu0
    %5989 = vmatprep.mubr.f32.mxu0 0.0
    %5990 = vmatmul.mubr.f32.gmra.mxu0 %v5888
    %v5991 = vpop.f32.mrf.mxu0
    %v5992 = vadd.f32 0.0, %v5991
    %v5993 = vpop.f32.mrf.mxu0
    %5994 = vdwg.mxu0
    %6003 = vset.pattern.permute.xlu0 0
    %6004 = vperm.xlu0 %6003, %v5957
    %v6005 = vpop.permute.xlu0 %6004
    %6006 = vset.pattern.permute.xlu0 0
    %6007 = vperm.xlu0 %6006, %v5962
    %v6008 = vpop.permute.xlu0 %6007
    %6009 = vset.pattern.permute.xlu0 0
    %6010 = vperm.xlu0 %6009, %v5967
    %v6011 = vpop.permute.xlu0 %6010
    %6012 = vset.pattern.permute.xlu0 0
    %6013 = vperm.xlu0 %6012, %v5972
    %v6014 = vpop.permute.xlu0 %6013
    %6015 = vset.pattern.permute.xlu0 0
    %6016 = vperm.xlu0 %6015, %v5977
    %v6017 = vpop.permute.xlu0 %6016
    %6018 = vset.pattern.permute.xlu0 0
    %6019 = vperm.xlu0 %6018, %v5982
    %v6020 = vpop.permute.xlu0 %6019
    %6021 = vset.pattern.permute.xlu0 0
    %6022 = vperm.xlu0 %6021, %v5987
    %v6023 = vpop.permute.xlu0 %6022
    %6024 = vset.pattern.permute.xlu0 0
    %6025 = vperm.xlu0 %6024, %v5992
    %v6026 = vpop.permute.xlu0 %6025
    %v6027 = vlaneseq
    %v6028 = vshrl.u32 %v6027, 7
    %v6029 = vsub.s32 %v32, %v6028
    %v6030 = vrot.slane %v6005, %v6029
    %v6031 = vlaneseq
    %v6032 = vshrl.u32 %v6031, 7
    %v6033 = vsub.s32 %v32, %v6032
    %v6034 = vrot.slane %v6008, %v6033
    %v6035 = vlaneseq
    %v6036 = vshrl.u32 %v6035, 7
    %v6037 = vsub.s32 %v32, %v6036
    %v6038 = vrot.slane %v6011, %v6037
    %v6039 = vlaneseq
    %v6040 = vshrl.u32 %v6039, 7
    %v6041 = vsub.s32 %v32, %v6040
    %v6042 = vrot.slane %v6014, %v6041
    %v6043 = vlaneseq
    %v6044 = vshrl.u32 %v6043, 7
    %v6045 = vsub.s32 %v32, %v6044
    %v6046 = vrot.slane %v6017, %v6045
    %v6047 = vlaneseq
    %v6048 = vshrl.u32 %v6047, 7
    %v6049 = vsub.s32 %v32, %v6048
    %v6050 = vrot.slane %v6020, %v6049
    %v6051 = vlaneseq
    %v6052 = vshrl.u32 %v6051, 7
    %v6053 = vsub.s32 %v32, %v6052
    %v6054 = vrot.slane %v6023, %v6053
    %v6055 = vlaneseq
    %v6056 = vshrl.u32 %v6055, 7
    %v6057 = vsub.s32 %v32, %v6056
    %v6058 = vrot.slane %v6026, %v6057
    %v6059 = vsel %vm534, %v6034, %v6030
    %v6060 = vsel %vm536, %v6038, %v6059
    %v6061 = vsel %vm538, %v6042, %v6060
    %v6062 = vsel %vm540, %v6046, %v6061
    %v6063 = vsel %vm542, %v6050, %v6062
    %v6064 = vsel %vm544, %v6054, %v6063
    %v6065 = vsel %vm546, %v6058, %v6064
    %v6067 = vsel %vm549, %v6065, -inf
    %6068 = vmax.xlane.f32.xlu0 %v6067
    %v6069 = vpop.xlane.xlu0 %6068
    %v6071 = vlaneseq
    %v6072 = vshrl.u32 %v6071, 7
    %v6073 = vsub.s32 0, %v6072
    %v6074 = vrot.slane %v6069, %v6073
    %v6075 = vlaneseq
    %v6076 = vshrl.u32 %v6075, 7
    %v6077 = vsub.s32 1, %v6076
    %v6078 = vrot.slane %v6069, %v6077
    %v6079 = vlaneseq
    %v6080 = vshrl.u32 %v6079, 7
    %v6081 = vsub.s32 2, %v6080
    %v6082 = vrot.slane %v6069, %v6081
    %v6083 = vlaneseq
    %v6084 = vshrl.u32 %v6083, 7
    %v6085 = vsub.s32 3, %v6084
    %v6086 = vrot.slane %v6069, %v6085
    %v6087 = vlaneseq
    %v6088 = vshrl.u32 %v6087, 7
    %v6089 = vsub.s32 4, %v6088
    %v6090 = vrot.slane %v6069, %v6089
    %v6091 = vlaneseq
    %v6092 = vshrl.u32 %v6091, 7
    %v6093 = vsub.s32 5, %v6092
    %v6094 = vrot.slane %v6069, %v6093
    %v6095 = vlaneseq
    %v6096 = vshrl.u32 %v6095, 7
    %v6097 = vsub.s32 6, %v6096
    %v6098 = vrot.slane %v6069, %v6097
    %v6099 = vlaneseq
    %v6100 = vshrl.u32 %v6099, 7
    %v6101 = vsub.s32 7, %v6100
    %v6102 = vrot.slane %v6069, %v6101
    %v6111 = vsub.f32 %v5957, %v6074
    %v6112 = vsub.f32 %v5962, %v6078
    %v6113 = vsub.f32 %v5967, %v6082
    %v6114 = vsub.f32 %v5972, %v6086
    %v6115 = vsub.f32 %v5977, %v6090
    %v6116 = vsub.f32 %v5982, %v6094
    %v6117 = vsub.f32 %v5987, %v6098
    %v6118 = vsub.f32 %v5992, %v6102
    %v6119 = vmul.f32 %v6111, 1.442695
    %v6120 = vpow.pop %v6119
    %v6121 = vmul.f32 %v6112, 1.442695
    %v6122 = vpow.pop %v6121
    %v6123 = vmul.f32 %v6113, 1.442695
    %v6124 = vpow.pop %v6123
    %v6125 = vmul.f32 %v6114, 1.442695
    %v6126 = vpow.pop %v6125
    %v6127 = vmul.f32 %v6115, 1.442695
    %v6128 = vpow.pop %v6127
    %v6129 = vmul.f32 %v6116, 1.442695
    %v6130 = vpow.pop %v6129
    %v6131 = vmul.f32 %v6117, 1.442695
    %v6132 = vpow.pop %v6131
    %v6133 = vmul.f32 %v6118, 1.442695
    %v6134 = vpow.pop %v6133
    %6143 = vset.pattern.permute.xlu0 0
    %6144 = vperm.xlu0 %6143, %v6120
    %v6145 = vpop.permute.xlu0 %6144
    %6146 = vset.pattern.permute.xlu0 0
    %6147 = vperm.xlu0 %6146, %v6122
    %v6148 = vpop.permute.xlu0 %6147
    %6149 = vset.pattern.permute.xlu0 0
    %6150 = vperm.xlu0 %6149, %v6124
    %v6151 = vpop.permute.xlu0 %6150
    %6152 = vset.pattern.permute.xlu0 0
    %6153 = vperm.xlu0 %6152, %v6126
    %v6154 = vpop.permute.xlu0 %6153
    %6155 = vset.pattern.permute.xlu0 0
    %6156 = vperm.xlu0 %6155, %v6128
    %v6157 = vpop.permute.xlu0 %6156
    %6158 = vset.pattern.permute.xlu0 0
    %6159 = vperm.xlu0 %6158, %v6130
    %v6160 = vpop.permute.xlu0 %6159
    %6161 = vset.pattern.permute.xlu0 0
    %6162 = vperm.xlu0 %6161, %v6132
    %v6163 = vpop.permute.xlu0 %6162
    %6164 = vset.pattern.permute.xlu0 0
    %6165 = vperm.xlu0 %6164, %v6134
    %v6166 = vpop.permute.xlu0 %6165
    %v6167 = vlaneseq
    %v6168 = vshrl.u32 %v6167, 7
    %v6169 = vsub.s32 %v32, %v6168
    %v6170 = vrot.slane %v6145, %v6169
    %v6171 = vlaneseq
    %v6172 = vshrl.u32 %v6171, 7
    %v6173 = vsub.s32 %v32, %v6172
    %v6174 = vrot.slane %v6148, %v6173
    %v6175 = vlaneseq
    %v6176 = vshrl.u32 %v6175, 7
    %v6177 = vsub.s32 %v32, %v6176
    %v6178 = vrot.slane %v6151, %v6177
    %v6179 = vlaneseq
    %v6180 = vshrl.u32 %v6179, 7
    %v6181 = vsub.s32 %v32, %v6180
    %v6182 = vrot.slane %v6154, %v6181
    %v6183 = vlaneseq
    %v6184 = vshrl.u32 %v6183, 7
    %v6185 = vsub.s32 %v32, %v6184
    %v6186 = vrot.slane %v6157, %v6185
    %v6187 = vlaneseq
    %v6188 = vshrl.u32 %v6187, 7
    %v6189 = vsub.s32 %v32, %v6188
    %v6190 = vrot.slane %v6160, %v6189
    %v6191 = vlaneseq
    %v6192 = vshrl.u32 %v6191, 7
    %v6193 = vsub.s32 %v32, %v6192
    %v6194 = vrot.slane %v6163, %v6193
    %v6195 = vlaneseq
    %v6196 = vshrl.u32 %v6195, 7
    %v6197 = vsub.s32 %v32, %v6196
    %v6198 = vrot.slane %v6166, %v6197
    %v6199 = vsel %vm534, %v6174, %v6170
    %v6200 = vsel %vm536, %v6178, %v6199
    %v6201 = vsel %vm538, %v6182, %v6200
    %v6202 = vsel %vm540, %v6186, %v6201
    %v6203 = vsel %vm542, %v6190, %v6202
    %v6204 = vsel %vm544, %v6194, %v6203
    %v6205 = vsel %vm546, %v6198, %v6204
    %v6207 = vsel %vm549, %v6205, 0.0
    %6208 = vadd.xlane.f32.xlu0 %v6207
    %v6209 = vpop.xlane.xlu0 %6208
    %v6211 = vlaneseq
    %v6212 = vshrl.u32 %v6211, 7
    %v6213 = vsub.s32 0, %v6212
    %v6214 = vrot.slane %v6209, %v6213
    %v6215 = vlaneseq
    %v6216 = vshrl.u32 %v6215, 7
    %v6217 = vsub.s32 1, %v6216
    %v6218 = vrot.slane %v6209, %v6217
    %v6219 = vlaneseq
    %v6220 = vshrl.u32 %v6219, 7
    %v6221 = vsub.s32 2, %v6220
    %v6222 = vrot.slane %v6209, %v6221
    %v6223 = vlaneseq
    %v6224 = vshrl.u32 %v6223, 7
    %v6225 = vsub.s32 3, %v6224
    %v6226 = vrot.slane %v6209, %v6225
    %v6227 = vlaneseq
    %v6228 = vshrl.u32 %v6227, 7
    %v6229 = vsub.s32 4, %v6228
    %v6230 = vrot.slane %v6209, %v6229
    %v6231 = vlaneseq
    %v6232 = vshrl.u32 %v6231, 7
    %v6233 = vsub.s32 5, %v6232
    %v6234 = vrot.slane %v6209, %v6233
    %v6235 = vlaneseq
    %v6236 = vshrl.u32 %v6235, 7
    %v6237 = vsub.s32 6, %v6236
    %v6238 = vrot.slane %v6209, %v6237
    %v6239 = vlaneseq
    %v6240 = vshrl.u32 %v6239, 7
    %v6241 = vsub.s32 7, %v6240
    %v6242 = vrot.slane %v6209, %v6241
    %v6251 = vrcp.pop %v6214
    %v6252 = vmul.f32 %v6120, %v6251
    %v6253 = vrcp.pop %v6218
    %v6254 = vmul.f32 %v6122, %v6253
    %v6255 = vrcp.pop %v6222
    %v6256 = vmul.f32 %v6124, %v6255
    %v6257 = vrcp.pop %v6226
    %v6258 = vmul.f32 %v6126, %v6257
    %v6259 = vrcp.pop %v6230
    %v6260 = vmul.f32 %v6128, %v6259
    %v6261 = vrcp.pop %v6234
    %v6262 = vmul.f32 %v6130, %v6261
    %v6263 = vrcp.pop %v6238
    %v6264 = vmul.f32 %v6132, %v6263
    %v6265 = vrcp.pop %v6242
    %v6266 = vmul.f32 %v6134, %v6265
    %6275 = vset.pattern.permute.xlu0 0
    %6276 = vperm.xlu0 %6275, %v5814
    %v6277 = vpop.permute.xlu0 %6276
    %6278 = vset.pattern.permute.xlu0 0
    %6279 = vperm.xlu0 %6278, %v5816
    %v6280 = vpop.permute.xlu0 %6279
    %6281 = vset.pattern.permute.xlu0 0
    %6282 = vperm.xlu0 %6281, %v5818
    %v6283 = vpop.permute.xlu0 %6282
    %6284 = vset.pattern.permute.xlu0 0
    %6285 = vperm.xlu0 %6284, %v5820
    %v6286 = vpop.permute.xlu0 %6285
    %6287 = vset.pattern.permute.xlu0 0
    %6288 = vperm.xlu0 %6287, %v5822
    %v6289 = vpop.permute.xlu0 %6288
    %6290 = vset.pattern.permute.xlu0 0
    %6291 = vperm.xlu0 %6290, %v5824
    %v6292 = vpop.permute.xlu0 %6291
    %6293 = vset.pattern.permute.xlu0 0
    %6294 = vperm.xlu0 %6293, %v5826
    %v6295 = vpop.permute.xlu0 %6294
    %6296 = vset.pattern.permute.xlu0 0
    %6297 = vperm.xlu0 %6296, %v5828
    %v6298 = vpop.permute.xlu0 %6297
    %v6299 = vlaneseq
    %v6300 = vshrl.u32 %v6299, 7
    %v6301 = vsub.s32 %v32, %v6300
    %v6302 = vrot.slane %v6277, %v6301
    %v6303 = vlaneseq
    %v6304 = vshrl.u32 %v6303, 7
    %v6305 = vsub.s32 %v32, %v6304
    %v6306 = vrot.slane %v6280, %v6305
    %v6307 = vlaneseq
    %v6308 = vshrl.u32 %v6307, 7
    %v6309 = vsub.s32 %v32, %v6308
    %v6310 = vrot.slane %v6283, %v6309
    %v6311 = vlaneseq
    %v6312 = vshrl.u32 %v6311, 7
    %v6313 = vsub.s32 %v32, %v6312
    %v6314 = vrot.slane %v6286, %v6313
    %v6315 = vlaneseq
    %v6316 = vshrl.u32 %v6315, 7
    %v6317 = vsub.s32 %v32, %v6316
    %v6318 = vrot.slane %v6289, %v6317
    %v6319 = vlaneseq
    %v6320 = vshrl.u32 %v6319, 7
    %v6321 = vsub.s32 %v32, %v6320
    %v6322 = vrot.slane %v6292, %v6321
    %v6323 = vlaneseq
    %v6324 = vshrl.u32 %v6323, 7
    %v6325 = vsub.s32 %v32, %v6324
    %v6326 = vrot.slane %v6295, %v6325
    %v6327 = vlaneseq
    %v6328 = vshrl.u32 %v6327, 7
    %v6329 = vsub.s32 %v32, %v6328
    %v6330 = vrot.slane %v6298, %v6329
    %v6331 = vsel %vm534, %v6306, %v6302
    %v6332 = vsel %vm536, %v6310, %v6331
    %v6333 = vsel %vm538, %v6314, %v6332
    %v6334 = vsel %vm540, %v6318, %v6333
    %v6335 = vsel %vm542, %v6322, %v6334
    %v6336 = vsel %vm544, %v6326, %v6335
    %v6337 = vsel %vm546, %v6330, %v6336
    %6347 = vset.pattern.permute.xlu0 0
    %6348 = vperm.xlu0 %6347, %v6252
    %v6349 = vpop.permute.xlu0 %6348
    %6350 = vset.pattern.permute.xlu0 0
    %6351 = vperm.xlu0 %6350, %v6254
    %v6352 = vpop.permute.xlu0 %6351
    %6353 = vset.pattern.permute.xlu0 0
    %6354 = vperm.xlu0 %6353, %v6256
    %v6355 = vpop.permute.xlu0 %6354
    %6356 = vset.pattern.permute.xlu0 0
    %6357 = vperm.xlu0 %6356, %v6258
    %v6358 = vpop.permute.xlu0 %6357
    %6359 = vset.pattern.permute.xlu0 0
    %6360 = vperm.xlu0 %6359, %v6260
    %v6361 = vpop.permute.xlu0 %6360
    %6362 = vset.pattern.permute.xlu0 0
    %6363 = vperm.xlu0 %6362, %v6262
    %v6364 = vpop.permute.xlu0 %6363
    %6365 = vset.pattern.permute.xlu0 0
    %6366 = vperm.xlu0 %6365, %v6264
    %v6367 = vpop.permute.xlu0 %6366
    %6368 = vset.pattern.permute.xlu0 0
    %6369 = vperm.xlu0 %6368, %v6266
    %v6370 = vpop.permute.xlu0 %6369
    %v6371 = vlaneseq
    %v6372 = vshrl.u32 %v6371, 7
    %v6373 = vsub.s32 %v1296, %v6372
    %v6374 = vrot.slane %v6349, %v6373
    %v6375 = vlaneseq
    %v6376 = vshrl.u32 %v6375, 7
    %v6377 = vsub.s32 %v1296, %v6376
    %v6378 = vrot.slane %v6352, %v6377
    %v6379 = vlaneseq
    %v6380 = vshrl.u32 %v6379, 7
    %v6381 = vsub.s32 %v1296, %v6380
    %v6382 = vrot.slane %v6355, %v6381
    %v6383 = vlaneseq
    %v6384 = vshrl.u32 %v6383, 7
    %v6385 = vsub.s32 %v1296, %v6384
    %v6386 = vrot.slane %v6358, %v6385
    %v6387 = vlaneseq
    %v6388 = vshrl.u32 %v6387, 7
    %v6389 = vsub.s32 %v1296, %v6388
    %v6390 = vrot.slane %v6361, %v6389
    %v6391 = vlaneseq
    %v6392 = vshrl.u32 %v6391, 7
    %v6393 = vsub.s32 %v1296, %v6392
    %v6394 = vrot.slane %v6364, %v6393
    %v6395 = vlaneseq
    %v6396 = vshrl.u32 %v6395, 7
    %v6397 = vsub.s32 %v1296, %v6396
    %v6398 = vrot.slane %v6367, %v6397
    %v6399 = vlaneseq
    %v6400 = vshrl.u32 %v6399, 7
    %v6401 = vsub.s32 %v1296, %v6400
    %v6402 = vrot.slane %v6370, %v6401
    %v6403 = vsel %vm534, %v6378, %v6374
    %v6404 = vsel %vm536, %v6382, %v6403
    %v6405 = vsel %vm538, %v6386, %v6404
    %v6406 = vsel %vm540, %v6390, %v6405
    %v6407 = vsel %vm542, %v6394, %v6406
    %v6408 = vsel %vm544, %v6398, %v6407
    %v6409 = vsel %vm546, %v6402, %v6408
    %v6411 = vsel %vm549, %v6337, %v6409
    %6413 = vrot.lane.b32.xlu0 %v5319, 96
    %v6414 = vpop.permute.xlu0 %6413
    %v6417 = vsel %vm1342, %v6411, 0
    %6419 = vmatprep.subr.mxu0 0.0
    %6420 = vmatpush1.msra.mxu0 0.0
    %6421 = vmatprep.subr.mxu0 0.0
    %6422 = vmatpush1.msra.mxu0 0.0
    %6423 = vmatprep.subr.mxu0 0.0
    %6424 = vmatpush1.msra.mxu0 0.0
    %6425 = vmatprep.subr.mxu0 0.0
    %6426 = vmatpush1.msra.mxu0 0.0
    %6427 = vmatprep.subr.mxu0 0.0
    %6428 = vmatpush1.msra.mxu0 0.0
    %6429 = vmatprep.subr.mxu0 0.0
    %6430 = vmatpush1.msra.mxu0 0.0
    %6431 = vmatprep.subr.mxu0 0.0
    %6432 = vmatpush1.msra.mxu0 0.0
    %6433 = vmatprep.subr.mxu0 0.0
    %6434 = vmatpush1.msra.mxu0 0.0
    %6435 = vmatprep.subr.mxu0 0.0
    %6436 = vmatpush1.msra.mxu0 0.0
    %6437 = vmatprep.subr.mxu0 0.0
    %6438 = vmatpush1.msra.mxu0 0.0
    %6439 = vmatprep.subr.mxu0 0.0
    %6440 = vmatpush1.msra.mxu0 0.0
    %6441 = vmatprep.subr.mxu0 0.0
    %6442 = vmatpush1.msra.mxu0 0.0
    %6443 = vmatprep.subr.mxu0 0.0
    %6444 = vmatpush1.msra.mxu0 0.0
    %6445 = vmatprep.subr.mxu0 0.0
    %6446 = vmatpush1.msra.mxu0 0.0
    %6447 = vmatprep.subr.mxu0 0.0
    %6448 = vmatpush1.msra.mxu0 %v6414
    %6449 = vmatprep.subr.mxu0 0.0
    %6450 = vmatpush1.msra.mxu0 %v5319
    %6451 = vmatprep.subr.mxu0 0.0
    %6452 = vmatpush2.msra.mxu0 0.0
    %6453 = vmatprep.subr.mxu0 0.0
    %6454 = vmatpush2.msra.mxu0 0.0
    %6455 = vmatprep.subr.mxu0 0.0
    %6456 = vmatpush2.msra.mxu0 0.0
    %6457 = vmatprep.subr.mxu0 0.0
    %6458 = vmatpush2.msra.mxu0 0.0
    %6459 = vmatprep.subr.mxu0 0.0
    %6460 = vmatpush2.msra.mxu0 0.0
    %6461 = vmatprep.subr.mxu0 0.0
    %6462 = vmatpush2.msra.mxu0 0.0
    %6463 = vmatprep.subr.mxu0 0.0
    %6464 = vmatpush2.msra.mxu0 0.0
    %6465 = vmatprep.subr.mxu0 0.0
    %6466 = vmatpush2.msra.mxu0 0.0
    %6467 = vmatprep.subr.mxu0 0.0
    %6468 = vmatpush2.msra.mxu0 0.0
    %6469 = vmatprep.subr.mxu0 0.0
    %6470 = vmatpush2.msra.mxu0 0.0
    %6471 = vmatprep.subr.mxu0 0.0
    %6472 = vmatpush2.msra.mxu0 0.0
    %6473 = vmatprep.subr.mxu0 0.0
    %6474 = vmatpush2.msra.mxu0 0.0
    %6475 = vmatprep.subr.mxu0 0.0
    %6476 = vmatpush2.msra.mxu0 0.0
    %6477 = vmatprep.subr.mxu0 0.0
    %6478 = vmatpush2.msra.mxu0 0.0
    %6479 = vmatprep.subr.mxu0 0.0
    %6480 = vmatpush2.msra.mxu0 0.0
    %6481 = vmatprep.subr.mxu0 0.0
    %6482 = vmatpush2.msra.mxu0 0.0
    %6483 = vmatprep.mubr.f32.mxu0 0.0
    %6484 = vmatmul.mubr.f32.gmra.mxu0 %v6417
    %v6485 = vpop.f32.mrf.mxu0
    %v6486 = vadd.f32 0.0, %v6485
    %v6487 = vpop.f32.mrf.mxu0
    %6488 = vdwg.mxu0
    %v6489 = vmul.f32 %v5162, %v233
    %v6491 = vcombine.high %v5241, %v5241
    %v6493 = vunpack.c.l.s4 1966171168
    %v6494 = vunpack.c.0.s8 %v6493
    %v6495 = vlaneseq
    %v6496 = vshrl.u32 %v6495, 7
    %v6497 = vsub.s32 %v6494, %v6496
    %v6498 = vrot.slane %v5241, %v6497
    %v6500 = vunpack.c.l.s4 1966171168
    %v6501 = vunpack.c.0.s8 %v6500
    %v6502 = vlaneseq
    %v6503 = vshrl.u32 %v6502, 7
    %v6504 = vsub.s32 %v6501, %v6503
    %v6505 = vrot.slane %v6491, %v6504
    %v6506 = vcombine.high %v6498, %v6498
    %v6507 = vcombine.high %v6505, %v6505
    %v6509 = vunpack.c.l.s4 1966171168
    %v6510 = vunpack.c.0.s8 %v6509
    %v6511 = vlaneseq
    %v6512 = vshrl.u32 %v6511, 7
    %v6513 = vsub.s32 %v6510, %v6512
    %v6514 = vrot.slane %v6498, %v6513
    %v6516 = vunpack.c.l.s4 1966171168
    %v6517 = vunpack.c.0.s8 %v6516
    %v6518 = vlaneseq
    %v6519 = vshrl.u32 %v6518, 7
    %v6520 = vsub.s32 %v6517, %v6519
    %v6521 = vrot.slane %v6505, %v6520
    %v6523 = vunpack.c.l.s4 1966171168
    %v6524 = vunpack.c.0.s8 %v6523
    %v6525 = vlaneseq
    %v6526 = vshrl.u32 %v6525, 7
    %v6527 = vsub.s32 %v6524, %v6526
    %v6528 = vrot.slane %v6506, %v6527
    %v6530 = vunpack.c.l.s4 1966171168
    %v6531 = vunpack.c.0.s8 %v6530
    %v6532 = vlaneseq
    %v6533 = vshrl.u32 %v6532, 7
    %v6534 = vsub.s32 %v6531, %v6533
    %v6535 = vrot.slane %v6507, %v6534
    %v6536 = vcombine.high %v6514, %v6514
    %v6537 = vcombine.high %v6521, %v6521
    %v6538 = vcombine.high %v6528, %v6528
    %v6539 = vcombine.high %v6535, %v6535
    %v6540 = vlaneseq
    %v6541 = vshrl.u32 %v6540, 7
    %v6542 = vsub.s32 0, %v6541
    %v6543 = vrot.slane %v6514, %v6542
    %v6544 = vlaneseq
    %v6545 = vshrl.u32 %v6544, 7
    %v6546 = vsub.s32 0, %v6545
    %v6547 = vrot.slane %v6528, %v6546
    %v6548 = vlaneseq
    %v6549 = vshrl.u32 %v6548, 7
    %v6550 = vsub.s32 0, %v6549
    %v6551 = vrot.slane %v6536, %v6550
    %v6552 = vlaneseq
    %v6553 = vshrl.u32 %v6552, 7
    %v6554 = vsub.s32 0, %v6553
    %v6555 = vrot.slane %v6538, %v6554
    %v6556 = vlaneseq
    %v6557 = vshrl.u32 %v6556, 7
    %v6558 = vsub.s32 0, %v6557
    %v6559 = vrot.slane %v6521, %v6558
    %v6560 = vlaneseq
    %v6561 = vshrl.u32 %v6560, 7
    %v6562 = vsub.s32 0, %v6561
    %v6563 = vrot.slane %v6535, %v6562
    %v6564 = vlaneseq
    %v6565 = vshrl.u32 %v6564, 7
    %v6566 = vsub.s32 0, %v6565
    %v6567 = vrot.slane %v6537, %v6566
    %v6568 = vlaneseq
    %v6569 = vshrl.u32 %v6568, 7
    %v6570 = vsub.s32 0, %v6569
    %v6571 = vrot.slane %v6539, %v6570
    %v6580 = vsub.f32 %v6543, %v6489
    %v6581 = vsub.f32 %v6547, %v6489
    %v6582 = vsub.f32 %v6551, %v6489
    %v6583 = vsub.f32 %v6555, %v6489
    %v6584 = vsub.f32 %v6559, %v6489
    %v6585 = vsub.f32 %v6563, %v6489
    %v6586 = vsub.f32 %v6567, %v6489
    %v6587 = vsub.f32 %v6571, %v6489
    %v6588 = vand.u32 2147483647, %v6580
    %v6589 = vand.u32 2147483647, %v6581
    %v6590 = vand.u32 2147483647, %v6582
    %v6591 = vand.u32 2147483647, %v6583
    %v6592 = vand.u32 2147483647, %v6584
    %v6593 = vand.u32 2147483647, %v6585
    %v6594 = vand.u32 2147483647, %v6586
    %v6595 = vand.u32 2147483647, %v6587
    %v6597 = vsel %vm59, %v6588, 0
    %v6600 = vsel %vm59, %v6589, 0
    %v6603 = vsel %vm59, %v6590, 0
    %v6606 = vsel %vm59, %v6591, 0
    %v6609 = vsel %vm59, %v6592, 0
    %v6612 = vsel %vm59, %v6593, 0
    %v6615 = vsel %vm59, %v6594, 0
    %v6618 = vsel %vm59, %v6595, 0
    %6620 = vmatprep.subr.mxu0 0.0
    %6621 = vmatpush1.msra.mxu0 0.0
    %6622 = vmatprep.subr.mxu0 0.0
    %6623 = vmatpush1.msra.mxu0 0.0
    %6624 = vmatprep.subr.mxu0 0.0
    %6625 = vmatpush1.msra.mxu0 0.0
    %6626 = vmatprep.subr.mxu0 0.0
    %6627 = vmatpush1.msra.mxu0 0.0
    %6628 = vmatprep.subr.mxu0 0.0
    %6629 = vmatpush1.msra.mxu0 0.0
    %6630 = vmatprep.subr.mxu0 0.0
    %6631 = vmatpush1.msra.mxu0 0.0
    %6632 = vmatprep.subr.mxu0 0.0
    %6633 = vmatpush1.msra.mxu0 0.0
    %6634 = vmatprep.subr.mxu0 0.0
    %6635 = vmatpush1.msra.mxu0 0.0
    %6636 = vmatprep.subr.mxu0 0.0
    %6637 = vmatpush1.msra.mxu0 0.0
    %6638 = vmatprep.subr.mxu0 0.0
    %6639 = vmatpush1.msra.mxu0 0.0
    %6640 = vmatprep.subr.mxu0 0.0
    %6641 = vmatpush1.msra.mxu0 0.0
    %6642 = vmatprep.subr.mxu0 0.0
    %6643 = vmatpush1.msra.mxu0 0.0
    %6644 = vmatprep.subr.mxu0 0.0
    %6645 = vmatpush1.msra.mxu0 -0.17677669
    %6646 = vmatprep.subr.mxu0 0.0
    %6647 = vmatpush1.msra.mxu0 -0.17677669
    %6648 = vmatprep.subr.mxu0 0.0
    %6649 = vmatpush1.msra.mxu0 -0.17677669
    %6650 = vmatprep.subr.mxu0 0.0
    %6651 = vmatpush1.msra.mxu0 -0.17677669
    %6652 = vmatprep.subr.mxu0 0.0
    %6653 = vmatpush2.msra.mxu0 0.0
    %6654 = vmatprep.subr.mxu0 0.0
    %6655 = vmatpush2.msra.mxu0 0.0
    %6656 = vmatprep.subr.mxu0 0.0
    %6657 = vmatpush2.msra.mxu0 0.0
    %6658 = vmatprep.subr.mxu0 0.0
    %6659 = vmatpush2.msra.mxu0 0.0
    %6660 = vmatprep.subr.mxu0 0.0
    %6661 = vmatpush2.msra.mxu0 0.0
    %6662 = vmatprep.subr.mxu0 0.0
    %6663 = vmatpush2.msra.mxu0 0.0
    %6664 = vmatprep.subr.mxu0 0.0
    %6665 = vmatpush2.msra.mxu0 0.0
    %6666 = vmatprep.subr.mxu0 0.0
    %6667 = vmatpush2.msra.mxu0 0.0
    %6668 = vmatprep.subr.mxu0 0.0
    %6669 = vmatpush2.msra.mxu0 0.0
    %6670 = vmatprep.subr.mxu0 0.0
    %6671 = vmatpush2.msra.mxu0 0.0
    %6672 = vmatprep.subr.mxu0 0.0
    %6673 = vmatpush2.msra.mxu0 0.0
    %6674 = vmatprep.subr.mxu0 0.0
    %6675 = vmatpush2.msra.mxu0 0.0
    %6676 = vmatprep.subr.mxu0 0.0
    %6677 = vmatpush2.msra.mxu0 0.0
    %6678 = vmatprep.subr.mxu0 0.0
    %6679 = vmatpush2.msra.mxu0 0.0
    %6680 = vmatprep.subr.mxu0 0.0
    %6681 = vmatpush2.msra.mxu0 0.0
    %6682 = vmatprep.subr.mxu0 0.0
    %6683 = vmatpush2.msra.mxu0 0.0
    %6684 = vmatprep.mubr.f32.mxu0 0.0
    %6685 = vmatmul.mubr.f32.gmra.mxu0 %v6597
    %v6686 = vpop.f32.mrf.mxu0
    %v6687 = vadd.f32 0.0, %v6686
    %v6688 = vpop.f32.mrf.mxu0
    %6689 = vmatprep.mubr.f32.mxu0 0.0
    %6690 = vmatmul.mubr.f32.gmra.mxu0 %v6600
    %v6691 = vpop.f32.mrf.mxu0
    %v6692 = vadd.f32 0.0, %v6691
    %v6693 = vpop.f32.mrf.mxu0
    %6694 = vmatprep.mubr.f32.mxu0 0.0
    %6695 = vmatmul.mubr.f32.gmra.mxu0 %v6603
    %v6696 = vpop.f32.mrf.mxu0
    %v6697 = vadd.f32 0.0, %v6696
    %v6698 = vpop.f32.mrf.mxu0
    %6699 = vmatprep.mubr.f32.mxu0 0.0
    %6700 = vmatmul.mubr.f32.gmra.mxu0 %v6606
    %v6701 = vpop.f32.mrf.mxu0
    %v6702 = vadd.f32 0.0, %v6701
    %v6703 = vpop.f32.mrf.mxu0
    %6704 = vmatprep.mubr.f32.mxu0 0.0
    %6705 = vmatmul.mubr.f32.gmra.mxu0 %v6609
    %v6706 = vpop.f32.mrf.mxu0
    %v6707 = vadd.f32 0.0, %v6706
    %v6708 = vpop.f32.mrf.mxu0
    %6709 = vmatprep.mubr.f32.mxu0 0.0
    %6710 = vmatmul.mubr.f32.gmra.mxu0 %v6612
    %v6711 = vpop.f32.mrf.mxu0
    %v6712 = vadd.f32 0.0, %v6711
    %v6713 = vpop.f32.mrf.mxu0
    %6714 = vmatprep.mubr.f32.mxu0 0.0
    %6715 = vmatmul.mubr.f32.gmra.mxu0 %v6615
    %v6716 = vpop.f32.mrf.mxu0
    %v6717 = vadd.f32 0.0, %v6716
    %v6718 = vpop.f32.mrf.mxu0
    %6719 = vmatprep.mubr.f32.mxu0 0.0
    %6720 = vmatmul.mubr.f32.gmra.mxu0 %v6618
    %v6721 = vpop.f32.mrf.mxu0
    %v6722 = vadd.f32 0.0, %v6721
    %v6723 = vpop.f32.mrf.mxu0
    %6724 = vdwg.mxu0
    %6733 = vset.pattern.permute.xlu0 0
    %6734 = vperm.xlu0 %6733, %v6687
    %v6735 = vpop.permute.xlu0 %6734
    %6736 = vset.pattern.permute.xlu0 0
    %6737 = vperm.xlu0 %6736, %v6692
    %v6738 = vpop.permute.xlu0 %6737
    %6739 = vset.pattern.permute.xlu0 0
    %6740 = vperm.xlu0 %6739, %v6697
    %v6741 = vpop.permute.xlu0 %6740
    %6742 = vset.pattern.permute.xlu0 0
    %6743 = vperm.xlu0 %6742, %v6702
    %v6744 = vpop.permute.xlu0 %6743
    %6745 = vset.pattern.permute.xlu0 0
    %6746 = vperm.xlu0 %6745, %v6707
    %v6747 = vpop.permute.xlu0 %6746
    %6748 = vset.pattern.permute.xlu0 0
    %6749 = vperm.xlu0 %6748, %v6712
    %v6750 = vpop.permute.xlu0 %6749
    %6751 = vset.pattern.permute.xlu0 0
    %6752 = vperm.xlu0 %6751, %v6717
    %v6753 = vpop.permute.xlu0 %6752
    %6754 = vset.pattern.permute.xlu0 0
    %6755 = vperm.xlu0 %6754, %v6722
    %v6756 = vpop.permute.xlu0 %6755
    %v6757 = vlaneseq
    %v6758 = vshrl.u32 %v6757, 7
    %v6759 = vsub.s32 %v32, %v6758
    %v6760 = vrot.slane %v6735, %v6759
    %v6761 = vlaneseq
    %v6762 = vshrl.u32 %v6761, 7
    %v6763 = vsub.s32 %v32, %v6762
    %v6764 = vrot.slane %v6738, %v6763
    %v6765 = vlaneseq
    %v6766 = vshrl.u32 %v6765, 7
    %v6767 = vsub.s32 %v32, %v6766
    %v6768 = vrot.slane %v6741, %v6767
    %v6769 = vlaneseq
    %v6770 = vshrl.u32 %v6769, 7
    %v6771 = vsub.s32 %v32, %v6770
    %v6772 = vrot.slane %v6744, %v6771
    %v6773 = vlaneseq
    %v6774 = vshrl.u32 %v6773, 7
    %v6775 = vsub.s32 %v32, %v6774
    %v6776 = vrot.slane %v6747, %v6775
    %v6777 = vlaneseq
    %v6778 = vshrl.u32 %v6777, 7
    %v6779 = vsub.s32 %v32, %v6778
    %v6780 = vrot.slane %v6750, %v6779
    %v6781 = vlaneseq
    %v6782 = vshrl.u32 %v6781, 7
    %v6783 = vsub.s32 %v32, %v6782
    %v6784 = vrot.slane %v6753, %v6783
    %v6785 = vlaneseq
    %v6786 = vshrl.u32 %v6785, 7
    %v6787 = vsub.s32 %v32, %v6786
    %v6788 = vrot.slane %v6756, %v6787
    %v6789 = vsel %vm534, %v6764, %v6760
    %v6790 = vsel %vm536, %v6768, %v6789
    %v6791 = vsel %vm538, %v6772, %v6790
    %v6792 = vsel %vm540, %v6776, %v6791
    %v6793 = vsel %vm542, %v6780, %v6792
    %v6794 = vsel %vm544, %v6784, %v6793
    %v6795 = vsel %vm546, %v6788, %v6794
    %v6797 = vsel %vm549, %v6795, -inf
    %6798 = vmax.xlane.f32.xlu0 %v6797
    %v6799 = vpop.xlane.xlu0 %6798
    %v6801 = vlaneseq
    %v6802 = vshrl.u32 %v6801, 7
    %v6803 = vsub.s32 0, %v6802
    %v6804 = vrot.slane %v6799, %v6803
    %v6805 = vlaneseq
    %v6806 = vshrl.u32 %v6805, 7
    %v6807 = vsub.s32 1, %v6806
    %v6808 = vrot.slane %v6799, %v6807
    %v6809 = vlaneseq
    %v6810 = vshrl.u32 %v6809, 7
    %v6811 = vsub.s32 2, %v6810
    %v6812 = vrot.slane %v6799, %v6811
    %v6813 = vlaneseq
    %v6814 = vshrl.u32 %v6813, 7
    %v6815 = vsub.s32 3, %v6814
    %v6816 = vrot.slane %v6799, %v6815
    %v6817 = vlaneseq
    %v6818 = vshrl.u32 %v6817, 7
    %v6819 = vsub.s32 4, %v6818
    %v6820 = vrot.slane %v6799, %v6819
    %v6821 = vlaneseq
    %v6822 = vshrl.u32 %v6821, 7
    %v6823 = vsub.s32 5, %v6822
    %v6824 = vrot.slane %v6799, %v6823
    %v6825 = vlaneseq
    %v6826 = vshrl.u32 %v6825, 7
    %v6827 = vsub.s32 6, %v6826
    %v6828 = vrot.slane %v6799, %v6827
    %v6829 = vlaneseq
    %v6830 = vshrl.u32 %v6829, 7
    %v6831 = vsub.s32 7, %v6830
    %v6832 = vrot.slane %v6799, %v6831
    %v6841 = vsub.f32 %v6687, %v6804
    %v6842 = vsub.f32 %v6692, %v6808
    %v6843 = vsub.f32 %v6697, %v6812
    %v6844 = vsub.f32 %v6702, %v6816
    %v6845 = vsub.f32 %v6707, %v6820
    %v6846 = vsub.f32 %v6712, %v6824
    %v6847 = vsub.f32 %v6717, %v6828
    %v6848 = vsub.f32 %v6722, %v6832
    %v6849 = vmul.f32 %v6841, 1.442695
    %v6850 = vpow.pop %v6849
    %v6851 = vmul.f32 %v6842, 1.442695
    %v6852 = vpow.pop %v6851
    %v6853 = vmul.f32 %v6843, 1.442695
    %v6854 = vpow.pop %v6853
    %v6855 = vmul.f32 %v6844, 1.442695
    %v6856 = vpow.pop %v6855
    %v6857 = vmul.f32 %v6845, 1.442695
    %v6858 = vpow.pop %v6857
    %v6859 = vmul.f32 %v6846, 1.442695
    %v6860 = vpow.pop %v6859
    %v6861 = vmul.f32 %v6847, 1.442695
    %v6862 = vpow.pop %v6861
    %v6863 = vmul.f32 %v6848, 1.442695
    %v6864 = vpow.pop %v6863
    %6873 = vset.pattern.permute.xlu0 0
    %6874 = vperm.xlu0 %6873, %v6850
    %v6875 = vpop.permute.xlu0 %6874
    %6876 = vset.pattern.permute.xlu0 0
    %6877 = vperm.xlu0 %6876, %v6852
    %v6878 = vpop.permute.xlu0 %6877
    %6879 = vset.pattern.permute.xlu0 0
    %6880 = vperm.xlu0 %6879, %v6854
    %v6881 = vpop.permute.xlu0 %6880
    %6882 = vset.pattern.permute.xlu0 0
    %6883 = vperm.xlu0 %6882, %v6856
    %v6884 = vpop.permute.xlu0 %6883
    %6885 = vset.pattern.permute.xlu0 0
    %6886 = vperm.xlu0 %6885, %v6858
    %v6887 = vpop.permute.xlu0 %6886
    %6888 = vset.pattern.permute.xlu0 0
    %6889 = vperm.xlu0 %6888, %v6860
    %v6890 = vpop.permute.xlu0 %6889
    %6891 = vset.pattern.permute.xlu0 0
    %6892 = vperm.xlu0 %6891, %v6862
    %v6893 = vpop.permute.xlu0 %6892
    %6894 = vset.pattern.permute.xlu0 0
    %6895 = vperm.xlu0 %6894, %v6864
    %v6896 = vpop.permute.xlu0 %6895
    %v6897 = vlaneseq
    %v6898 = vshrl.u32 %v6897, 7
    %v6899 = vsub.s32 %v32, %v6898
    %v6900 = vrot.slane %v6875, %v6899
    %v6901 = vlaneseq
    %v6902 = vshrl.u32 %v6901, 7
    %v6903 = vsub.s32 %v32, %v6902
    %v6904 = vrot.slane %v6878, %v6903
    %v6905 = vlaneseq
    %v6906 = vshrl.u32 %v6905, 7
    %v6907 = vsub.s32 %v32, %v6906
    %v6908 = vrot.slane %v6881, %v6907
    %v6909 = vlaneseq
    %v6910 = vshrl.u32 %v6909, 7
    %v6911 = vsub.s32 %v32, %v6910
    %v6912 = vrot.slane %v6884, %v6911
    %v6913 = vlaneseq
    %v6914 = vshrl.u32 %v6913, 7
    %v6915 = vsub.s32 %v32, %v6914
    %v6916 = vrot.slane %v6887, %v6915
    %v6917 = vlaneseq
    %v6918 = vshrl.u32 %v6917, 7
    %v6919 = vsub.s32 %v32, %v6918
    %v6920 = vrot.slane %v6890, %v6919
    %v6921 = vlaneseq
    %v6922 = vshrl.u32 %v6921, 7
    %v6923 = vsub.s32 %v32, %v6922
    %v6924 = vrot.slane %v6893, %v6923
    %v6925 = vlaneseq
    %v6926 = vshrl.u32 %v6925, 7
    %v6927 = vsub.s32 %v32, %v6926
    %v6928 = vrot.slane %v6896, %v6927
    %v6929 = vsel %vm534, %v6904, %v6900
    %v6930 = vsel %vm536, %v6908, %v6929
    %v6931 = vsel %vm538, %v6912, %v6930
    %v6932 = vsel %vm540, %v6916, %v6931
    %v6933 = vsel %vm542, %v6920, %v6932
    %v6934 = vsel %vm544, %v6924, %v6933
    %v6935 = vsel %vm546, %v6928, %v6934
    %v6937 = vsel %vm549, %v6935, 0.0
    %6938 = vadd.xlane.f32.xlu0 %v6937
    %v6939 = vpop.xlane.xlu0 %6938
    %v6941 = vlaneseq
    %v6942 = vshrl.u32 %v6941, 7
    %v6943 = vsub.s32 0, %v6942
    %v6944 = vrot.slane %v6939, %v6943
    %v6945 = vlaneseq
    %v6946 = vshrl.u32 %v6945, 7
    %v6947 = vsub.s32 1, %v6946
    %v6948 = vrot.slane %v6939, %v6947
    %v6949 = vlaneseq
    %v6950 = vshrl.u32 %v6949, 7
    %v6951 = vsub.s32 2, %v6950
    %v6952 = vrot.slane %v6939, %v6951
    %v6953 = vlaneseq
    %v6954 = vshrl.u32 %v6953, 7
    %v6955 = vsub.s32 3, %v6954
    %v6956 = vrot.slane %v6939, %v6955
    %v6957 = vlaneseq
    %v6958 = vshrl.u32 %v6957, 7
    %v6959 = vsub.s32 4, %v6958
    %v6960 = vrot.slane %v6939, %v6959
    %v6961 = vlaneseq
    %v6962 = vshrl.u32 %v6961, 7
    %v6963 = vsub.s32 5, %v6962
    %v6964 = vrot.slane %v6939, %v6963
    %v6965 = vlaneseq
    %v6966 = vshrl.u32 %v6965, 7
    %v6967 = vsub.s32 6, %v6966
    %v6968 = vrot.slane %v6939, %v6967
    %v6969 = vlaneseq
    %v6970 = vshrl.u32 %v6969, 7
    %v6971 = vsub.s32 7, %v6970
    %v6972 = vrot.slane %v6939, %v6971
    %v6981 = vrcp.pop %v6944
    %v6982 = vmul.f32 %v6850, %v6981
    %v6983 = vrcp.pop %v6948
    %v6984 = vmul.f32 %v6852, %v6983
    %v6985 = vrcp.pop %v6952
    %v6986 = vmul.f32 %v6854, %v6985
    %v6987 = vrcp.pop %v6956
    %v6988 = vmul.f32 %v6856, %v6987
    %v6989 = vrcp.pop %v6960
    %v6990 = vmul.f32 %v6858, %v6989
    %v6991 = vrcp.pop %v6964
    %v6992 = vmul.f32 %v6860, %v6991
    %v6993 = vrcp.pop %v6968
    %v6994 = vmul.f32 %v6862, %v6993
    %v6995 = vrcp.pop %v6972
    %v6996 = vmul.f32 %v6864, %v6995
    %v6997 = vmul.f32 %v5162, %v753
    %6999 = vrot.lane.b32.xlu0 %v6997, 32
    %v7000 = vpop.permute.xlu0 %6999
    %v7002 = vsub.f32 %v6543, %v7000
    %v7003 = vsub.f32 %v6547, %v7000
    %v7004 = vsub.f32 %v6551, %v7000
    %v7005 = vsub.f32 %v6555, %v7000
    %v7006 = vsub.f32 %v6559, %v7000
    %v7007 = vsub.f32 %v6563, %v7000
    %v7008 = vsub.f32 %v6567, %v7000
    %v7009 = vsub.f32 %v6571, %v7000
    %v7010 = vand.u32 2147483647, %v7002
    %v7011 = vand.u32 2147483647, %v7003
    %v7012 = vand.u32 2147483647, %v7004
    %v7013 = vand.u32 2147483647, %v7005
    %v7014 = vand.u32 2147483647, %v7006
    %v7015 = vand.u32 2147483647, %v7007
    %v7016 = vand.u32 2147483647, %v7008
    %v7017 = vand.u32 2147483647, %v7009
    %7026 = vrot.lane.b32.xlu0 %v7010, 96
    %v7027 = vpop.permute.xlu0 %7026
    %7028 = vrot.lane.b32.xlu0 %v7011, 96
    %v7029 = vpop.permute.xlu0 %7028
    %7030 = vrot.lane.b32.xlu0 %v7012, 96
    %v7031 = vpop.permute.xlu0 %7030
    %7032 = vrot.lane.b32.xlu0 %v7013, 96
    %v7033 = vpop.permute.xlu0 %7032
    %7034 = vrot.lane.b32.xlu0 %v7014, 96
    %v7035 = vpop.permute.xlu0 %7034
    %7036 = vrot.lane.b32.xlu0 %v7015, 96
    %v7037 = vpop.permute.xlu0 %7036
    %7038 = vrot.lane.b32.xlu0 %v7016, 96
    %v7039 = vpop.permute.xlu0 %7038
    %7040 = vrot.lane.b32.xlu0 %v7017, 96
    %v7041 = vpop.permute.xlu0 %7040
    %v7042 = vsel %vm59, %v7027, 0
    %v7044 = vsel %vm59, %v7029, 0
    %v7046 = vsel %vm59, %v7031, 0
    %v7048 = vsel %vm59, %v7033, 0
    %v7050 = vsel %vm59, %v7035, 0
    %v7052 = vsel %vm59, %v7037, 0
    %v7054 = vsel %vm59, %v7039, 0
    %v7056 = vsel %vm59, %v7041, 0
    %7058 = vmatprep.subr.mxu0 0.0
    %7059 = vmatpush1.msra.mxu0 0.0
    %7060 = vmatprep.subr.mxu0 0.0
    %7061 = vmatpush1.msra.mxu0 0.0
    %7062 = vmatprep.subr.mxu0 0.0
    %7063 = vmatpush1.msra.mxu0 0.0
    %7064 = vmatprep.subr.mxu0 0.0
    %7065 = vmatpush1.msra.mxu0 0.0
    %7066 = vmatprep.subr.mxu0 0.0
    %7067 = vmatpush1.msra.mxu0 0.0
    %7068 = vmatprep.subr.mxu0 0.0
    %7069 = vmatpush1.msra.mxu0 0.0
    %7070 = vmatprep.subr.mxu0 0.0
    %7071 = vmatpush1.msra.mxu0 0.0
    %7072 = vmatprep.subr.mxu0 0.0
    %7073 = vmatpush1.msra.mxu0 0.0
    %7074 = vmatprep.subr.mxu0 0.0
    %7075 = vmatpush1.msra.mxu0 0.0
    %7076 = vmatprep.subr.mxu0 0.0
    %7077 = vmatpush1.msra.mxu0 0.0
    %7078 = vmatprep.subr.mxu0 0.0
    %7079 = vmatpush1.msra.mxu0 0.0
    %7080 = vmatprep.subr.mxu0 0.0
    %7081 = vmatpush1.msra.mxu0 0.0
    %7082 = vmatprep.subr.mxu0 0.0
    %7083 = vmatpush1.msra.mxu0 -0.17677669
    %7084 = vmatprep.subr.mxu0 0.0
    %7085 = vmatpush1.msra.mxu0 -0.17677669
    %7086 = vmatprep.subr.mxu0 0.0
    %7087 = vmatpush1.msra.mxu0 -0.17677669
    %7088 = vmatprep.subr.mxu0 0.0
    %7089 = vmatpush1.msra.mxu0 -0.17677669
    %7090 = vmatprep.subr.mxu0 0.0
    %7091 = vmatpush2.msra.mxu0 0.0
    %7092 = vmatprep.subr.mxu0 0.0
    %7093 = vmatpush2.msra.mxu0 0.0
    %7094 = vmatprep.subr.mxu0 0.0
    %7095 = vmatpush2.msra.mxu0 0.0
    %7096 = vmatprep.subr.mxu0 0.0
    %7097 = vmatpush2.msra.mxu0 0.0
    %7098 = vmatprep.subr.mxu0 0.0
    %7099 = vmatpush2.msra.mxu0 0.0
    %7100 = vmatprep.subr.mxu0 0.0
    %7101 = vmatpush2.msra.mxu0 0.0
    %7102 = vmatprep.subr.mxu0 0.0
    %7103 = vmatpush2.msra.mxu0 0.0
    %7104 = vmatprep.subr.mxu0 0.0
    %7105 = vmatpush2.msra.mxu0 0.0
    %7106 = vmatprep.subr.mxu0 0.0
    %7107 = vmatpush2.msra.mxu0 0.0
    %7108 = vmatprep.subr.mxu0 0.0
    %7109 = vmatpush2.msra.mxu0 0.0
    %7110 = vmatprep.subr.mxu0 0.0
    %7111 = vmatpush2.msra.mxu0 0.0
    %7112 = vmatprep.subr.mxu0 0.0
    %7113 = vmatpush2.msra.mxu0 0.0
    %7114 = vmatprep.subr.mxu0 0.0
    %7115 = vmatpush2.msra.mxu0 0.0
    %7116 = vmatprep.subr.mxu0 0.0
    %7117 = vmatpush2.msra.mxu0 0.0
    %7118 = vmatprep.subr.mxu0 0.0
    %7119 = vmatpush2.msra.mxu0 0.0
    %7120 = vmatprep.subr.mxu0 0.0
    %7121 = vmatpush2.msra.mxu0 0.0
    %7122 = vmatprep.mubr.f32.mxu0 0.0
    %7123 = vmatmul.mubr.f32.gmra.mxu0 %v7042
    %v7124 = vpop.f32.mrf.mxu0
    %v7125 = vadd.f32 0.0, %v7124
    %v7126 = vpop.f32.mrf.mxu0
    %7127 = vmatprep.mubr.f32.mxu0 0.0
    %7128 = vmatmul.mubr.f32.gmra.mxu0 %v7044
    %v7129 = vpop.f32.mrf.mxu0
    %v7130 = vadd.f32 0.0, %v7129
    %v7131 = vpop.f32.mrf.mxu0
    %7132 = vmatprep.mubr.f32.mxu0 0.0
    %7133 = vmatmul.mubr.f32.gmra.mxu0 %v7046
    %v7134 = vpop.f32.mrf.mxu0
    %v7135 = vadd.f32 0.0, %v7134
    %v7136 = vpop.f32.mrf.mxu0
    %7137 = vmatprep.mubr.f32.mxu0 0.0
    %7138 = vmatmul.mubr.f32.gmra.mxu0 %v7048
    %v7139 = vpop.f32.mrf.mxu0
    %v7140 = vadd.f32 0.0, %v7139
    %v7141 = vpop.f32.mrf.mxu0
    %7142 = vmatprep.mubr.f32.mxu0 0.0
    %7143 = vmatmul.mubr.f32.gmra.mxu0 %v7050
    %v7144 = vpop.f32.mrf.mxu0
    %v7145 = vadd.f32 0.0, %v7144
    %v7146 = vpop.f32.mrf.mxu0
    %7147 = vmatprep.mubr.f32.mxu0 0.0
    %7148 = vmatmul.mubr.f32.gmra.mxu0 %v7052
    %v7149 = vpop.f32.mrf.mxu0
    %v7150 = vadd.f32 0.0, %v7149
    %v7151 = vpop.f32.mrf.mxu0
    %7152 = vmatprep.mubr.f32.mxu0 0.0
    %7153 = vmatmul.mubr.f32.gmra.mxu0 %v7054
    %v7154 = vpop.f32.mrf.mxu0
    %v7155 = vadd.f32 0.0, %v7154
    %v7156 = vpop.f32.mrf.mxu0
    %7157 = vmatprep.mubr.f32.mxu0 0.0
    %7158 = vmatmul.mubr.f32.gmra.mxu0 %v7056
    %v7159 = vpop.f32.mrf.mxu0
    %v7160 = vadd.f32 0.0, %v7159
    %v7161 = vpop.f32.mrf.mxu0
    %7162 = vdwg.mxu0
    %7171 = vset.pattern.permute.xlu0 0
    %7172 = vperm.xlu0 %7171, %v7125
    %v7173 = vpop.permute.xlu0 %7172
    %7174 = vset.pattern.permute.xlu0 0
    %7175 = vperm.xlu0 %7174, %v7130
    %v7176 = vpop.permute.xlu0 %7175
    %7177 = vset.pattern.permute.xlu0 0
    %7178 = vperm.xlu0 %7177, %v7135
    %v7179 = vpop.permute.xlu0 %7178
    %7180 = vset.pattern.permute.xlu0 0
    %7181 = vperm.xlu0 %7180, %v7140
    %v7182 = vpop.permute.xlu0 %7181
    %7183 = vset.pattern.permute.xlu0 0
    %7184 = vperm.xlu0 %7183, %v7145
    %v7185 = vpop.permute.xlu0 %7184
    %7186 = vset.pattern.permute.xlu0 0
    %7187 = vperm.xlu0 %7186, %v7150
    %v7188 = vpop.permute.xlu0 %7187
    %7189 = vset.pattern.permute.xlu0 0
    %7190 = vperm.xlu0 %7189, %v7155
    %v7191 = vpop.permute.xlu0 %7190
    %7192 = vset.pattern.permute.xlu0 0
    %7193 = vperm.xlu0 %7192, %v7160
    %v7194 = vpop.permute.xlu0 %7193
    %v7195 = vlaneseq
    %v7196 = vshrl.u32 %v7195, 7
    %v7197 = vsub.s32 %v32, %v7196
    %v7198 = vrot.slane %v7173, %v7197
    %v7199 = vlaneseq
    %v7200 = vshrl.u32 %v7199, 7
    %v7201 = vsub.s32 %v32, %v7200
    %v7202 = vrot.slane %v7176, %v7201
    %v7203 = vlaneseq
    %v7204 = vshrl.u32 %v7203, 7
    %v7205 = vsub.s32 %v32, %v7204
    %v7206 = vrot.slane %v7179, %v7205
    %v7207 = vlaneseq
    %v7208 = vshrl.u32 %v7207, 7
    %v7209 = vsub.s32 %v32, %v7208
    %v7210 = vrot.slane %v7182, %v7209
    %v7211 = vlaneseq
    %v7212 = vshrl.u32 %v7211, 7
    %v7213 = vsub.s32 %v32, %v7212
    %v7214 = vrot.slane %v7185, %v7213
    %v7215 = vlaneseq
    %v7216 = vshrl.u32 %v7215, 7
    %v7217 = vsub.s32 %v32, %v7216
    %v7218 = vrot.slane %v7188, %v7217
    %v7219 = vlaneseq
    %v7220 = vshrl.u32 %v7219, 7
    %v7221 = vsub.s32 %v32, %v7220
    %v7222 = vrot.slane %v7191, %v7221
    %v7223 = vlaneseq
    %v7224 = vshrl.u32 %v7223, 7
    %v7225 = vsub.s32 %v32, %v7224
    %v7226 = vrot.slane %v7194, %v7225
    %v7227 = vsel %vm534, %v7202, %v7198
    %v7228 = vsel %vm536, %v7206, %v7227
    %v7229 = vsel %vm538, %v7210, %v7228
    %v7230 = vsel %vm540, %v7214, %v7229
    %v7231 = vsel %vm542, %v7218, %v7230
    %v7232 = vsel %vm544, %v7222, %v7231
    %v7233 = vsel %vm546, %v7226, %v7232
    %v7235 = vsel %vm549, %v7233, -inf
    %7236 = vmax.xlane.f32.xlu0 %v7235
    %v7237 = vpop.xlane.xlu0 %7236
    %v7239 = vlaneseq
    %v7240 = vshrl.u32 %v7239, 7
    %v7241 = vsub.s32 0, %v7240
    %v7242 = vrot.slane %v7237, %v7241
    %v7243 = vlaneseq
    %v7244 = vshrl.u32 %v7243, 7
    %v7245 = vsub.s32 1, %v7244
    %v7246 = vrot.slane %v7237, %v7245
    %v7247 = vlaneseq
    %v7248 = vshrl.u32 %v7247, 7
    %v7249 = vsub.s32 2, %v7248
    %v7250 = vrot.slane %v7237, %v7249
    %v7251 = vlaneseq
    %v7252 = vshrl.u32 %v7251, 7
    %v7253 = vsub.s32 3, %v7252
    %v7254 = vrot.slane %v7237, %v7253
    %v7255 = vlaneseq
    %v7256 = vshrl.u32 %v7255, 7
    %v7257 = vsub.s32 4, %v7256
    %v7258 = vrot.slane %v7237, %v7257
    %v7259 = vlaneseq
    %v7260 = vshrl.u32 %v7259, 7
    %v7261 = vsub.s32 5, %v7260
    %v7262 = vrot.slane %v7237, %v7261
    %v7263 = vlaneseq
    %v7264 = vshrl.u32 %v7263, 7
    %v7265 = vsub.s32 6, %v7264
    %v7266 = vrot.slane %v7237, %v7265
    %v7267 = vlaneseq
    %v7268 = vshrl.u32 %v7267, 7
    %v7269 = vsub.s32 7, %v7268
    %v7270 = vrot.slane %v7237, %v7269
    %v7279 = vsub.f32 %v7125, %v7242
    %v7280 = vsub.f32 %v7130, %v7246
    %v7281 = vsub.f32 %v7135, %v7250
    %v7282 = vsub.f32 %v7140, %v7254
    %v7283 = vsub.f32 %v7145, %v7258
    %v7284 = vsub.f32 %v7150, %v7262
    %v7285 = vsub.f32 %v7155, %v7266
    %v7286 = vsub.f32 %v7160, %v7270
    %v7287 = vmul.f32 %v7279, 1.442695
    %v7288 = vpow.pop %v7287
    %v7289 = vmul.f32 %v7280, 1.442695
    %v7290 = vpow.pop %v7289
    %v7291 = vmul.f32 %v7281, 1.442695
    %v7292 = vpow.pop %v7291
    %v7293 = vmul.f32 %v7282, 1.442695
    %v7294 = vpow.pop %v7293
    %v7295 = vmul.f32 %v7283, 1.442695
    %v7296 = vpow.pop %v7295
    %v7297 = vmul.f32 %v7284, 1.442695
    %v7298 = vpow.pop %v7297
    %v7299 = vmul.f32 %v7285, 1.442695
    %v7300 = vpow.pop %v7299
    %v7301 = vmul.f32 %v7286, 1.442695
    %v7302 = vpow.pop %v7301
    %7311 = vset.pattern.permute.xlu0 0
    %7312 = vperm.xlu0 %7311, %v7288
    %v7313 = vpop.permute.xlu0 %7312
    %7314 = vset.pattern.permute.xlu0 0
    %7315 = vperm.xlu0 %7314, %v7290
    %v7316 = vpop.permute.xlu0 %7315
    %7317 = vset.pattern.permute.xlu0 0
    %7318 = vperm.xlu0 %7317, %v7292
    %v7319 = vpop.permute.xlu0 %7318
    %7320 = vset.pattern.permute.xlu0 0
    %7321 = vperm.xlu0 %7320, %v7294
    %v7322 = vpop.permute.xlu0 %7321
    %7323 = vset.pattern.permute.xlu0 0
    %7324 = vperm.xlu0 %7323, %v7296
    %v7325 = vpop.permute.xlu0 %7324
    %7326 = vset.pattern.permute.xlu0 0
    %7327 = vperm.xlu0 %7326, %v7298
    %v7328 = vpop.permute.xlu0 %7327
    %7329 = vset.pattern.permute.xlu0 0
    %7330 = vperm.xlu0 %7329, %v7300
    %v7331 = vpop.permute.xlu0 %7330
    %7332 = vset.pattern.permute.xlu0 0
    %7333 = vperm.xlu0 %7332, %v7302
    %v7334 = vpop.permute.xlu0 %7333
    %v7335 = vlaneseq
    %v7336 = vshrl.u32 %v7335, 7
    %v7337 = vsub.s32 %v32, %v7336
    %v7338 = vrot.slane %v7313, %v7337
    %v7339 = vlaneseq
    %v7340 = vshrl.u32 %v7339, 7
    %v7341 = vsub.s32 %v32, %v7340
    %v7342 = vrot.slane %v7316, %v7341
    %v7343 = vlaneseq
    %v7344 = vshrl.u32 %v7343, 7
    %v7345 = vsub.s32 %v32, %v7344
    %v7346 = vrot.slane %v7319, %v7345
    %v7347 = vlaneseq
    %v7348 = vshrl.u32 %v7347, 7
    %v7349 = vsub.s32 %v32, %v7348
    %v7350 = vrot.slane %v7322, %v7349
    %v7351 = vlaneseq
    %v7352 = vshrl.u32 %v7351, 7
    %v7353 = vsub.s32 %v32, %v7352
    %v7354 = vrot.slane %v7325, %v7353
    %v7355 = vlaneseq
    %v7356 = vshrl.u32 %v7355, 7
    %v7357 = vsub.s32 %v32, %v7356
    %v7358 = vrot.slane %v7328, %v7357
    %v7359 = vlaneseq
    %v7360 = vshrl.u32 %v7359, 7
    %v7361 = vsub.s32 %v32, %v7360
    %v7362 = vrot.slane %v7331, %v7361
    %v7363 = vlaneseq
    %v7364 = vshrl.u32 %v7363, 7
    %v7365 = vsub.s32 %v32, %v7364
    %v7366 = vrot.slane %v7334, %v7365
    %v7367 = vsel %vm534, %v7342, %v7338
    %v7368 = vsel %vm536, %v7346, %v7367
    %v7369 = vsel %vm538, %v7350, %v7368
    %v7370 = vsel %vm540, %v7354, %v7369
    %v7371 = vsel %vm542, %v7358, %v7370
    %v7372 = vsel %vm544, %v7362, %v7371
    %v7373 = vsel %vm546, %v7366, %v7372
    %v7375 = vsel %vm549, %v7373, 0.0
    %7376 = vadd.xlane.f32.xlu0 %v7375
    %v7377 = vpop.xlane.xlu0 %7376
    %v7379 = vlaneseq
    %v7380 = vshrl.u32 %v7379, 7
    %v7381 = vsub.s32 0, %v7380
    %v7382 = vrot.slane %v7377, %v7381
    %v7383 = vlaneseq
    %v7384 = vshrl.u32 %v7383, 7
    %v7385 = vsub.s32 1, %v7384
    %v7386 = vrot.slane %v7377, %v7385
    %v7387 = vlaneseq
    %v7388 = vshrl.u32 %v7387, 7
    %v7389 = vsub.s32 2, %v7388
    %v7390 = vrot.slane %v7377, %v7389
    %v7391 = vlaneseq
    %v7392 = vshrl.u32 %v7391, 7
    %v7393 = vsub.s32 3, %v7392
    %v7394 = vrot.slane %v7377, %v7393
    %v7395 = vlaneseq
    %v7396 = vshrl.u32 %v7395, 7
    %v7397 = vsub.s32 4, %v7396
    %v7398 = vrot.slane %v7377, %v7397
    %v7399 = vlaneseq
    %v7400 = vshrl.u32 %v7399, 7
    %v7401 = vsub.s32 5, %v7400
    %v7402 = vrot.slane %v7377, %v7401
    %v7403 = vlaneseq
    %v7404 = vshrl.u32 %v7403, 7
    %v7405 = vsub.s32 6, %v7404
    %v7406 = vrot.slane %v7377, %v7405
    %v7407 = vlaneseq
    %v7408 = vshrl.u32 %v7407, 7
    %v7409 = vsub.s32 7, %v7408
    %v7410 = vrot.slane %v7377, %v7409
    %v7419 = vrcp.pop %v7382
    %v7420 = vmul.f32 %v7288, %v7419
    %v7421 = vrcp.pop %v7386
    %v7422 = vmul.f32 %v7290, %v7421
    %v7423 = vrcp.pop %v7390
    %v7424 = vmul.f32 %v7292, %v7423
    %v7425 = vrcp.pop %v7394
    %v7426 = vmul.f32 %v7294, %v7425
    %v7427 = vrcp.pop %v7398
    %v7428 = vmul.f32 %v7296, %v7427
    %v7429 = vrcp.pop %v7402
    %v7430 = vmul.f32 %v7298, %v7429
    %v7431 = vrcp.pop %v7406
    %v7432 = vmul.f32 %v7300, %v7431
    %v7433 = vrcp.pop %v7410
    %v7434 = vmul.f32 %v7302, %v7433
    %7443 = vset.pattern.permute.xlu0 0
    %7444 = vperm.xlu0 %7443, %v6982
    %v7445 = vpop.permute.xlu0 %7444
    %7446 = vset.pattern.permute.xlu0 0
    %7447 = vperm.xlu0 %7446, %v6984
    %v7448 = vpop.permute.xlu0 %7447
    %7449 = vset.pattern.permute.xlu0 0
    %7450 = vperm.xlu0 %7449, %v6986
    %v7451 = vpop.permute.xlu0 %7450
    %7452 = vset.pattern.permute.xlu0 0
    %7453 = vperm.xlu0 %7452, %v6988
    %v7454 = vpop.permute.xlu0 %7453
    %7455 = vset.pattern.permute.xlu0 0
    %7456 = vperm.xlu0 %7455, %v6990
    %v7457 = vpop.permute.xlu0 %7456
    %7458 = vset.pattern.permute.xlu0 0
    %7459 = vperm.xlu0 %7458, %v6992
    %v7460 = vpop.permute.xlu0 %7459
    %7461 = vset.pattern.permute.xlu0 0
    %7462 = vperm.xlu0 %7461, %v6994
    %v7463 = vpop.permute.xlu0 %7462
    %7464 = vset.pattern.permute.xlu0 0
    %7465 = vperm.xlu0 %7464, %v6996
    %v7466 = vpop.permute.xlu0 %7465
    %v7467 = vlaneseq
    %v7468 = vshrl.u32 %v7467, 7
    %v7469 = vsub.s32 %v32, %v7468
    %v7470 = vrot.slane %v7445, %v7469
    %v7471 = vlaneseq
    %v7472 = vshrl.u32 %v7471, 7
    %v7473 = vsub.s32 %v32, %v7472
    %v7474 = vrot.slane %v7448, %v7473
    %v7475 = vlaneseq
    %v7476 = vshrl.u32 %v7475, 7
    %v7477 = vsub.s32 %v32, %v7476
    %v7478 = vrot.slane %v7451, %v7477
    %v7479 = vlaneseq
    %v7480 = vshrl.u32 %v7479, 7
    %v7481 = vsub.s32 %v32, %v7480
    %v7482 = vrot.slane %v7454, %v7481
    %v7483 = vlaneseq
    %v7484 = vshrl.u32 %v7483, 7
    %v7485 = vsub.s32 %v32, %v7484
    %v7486 = vrot.slane %v7457, %v7485
    %v7487 = vlaneseq
    %v7488 = vshrl.u32 %v7487, 7
    %v7489 = vsub.s32 %v32, %v7488
    %v7490 = vrot.slane %v7460, %v7489
    %v7491 = vlaneseq
    %v7492 = vshrl.u32 %v7491, 7
    %v7493 = vsub.s32 %v32, %v7492
    %v7494 = vrot.slane %v7463, %v7493
    %v7495 = vlaneseq
    %v7496 = vshrl.u32 %v7495, 7
    %v7497 = vsub.s32 %v32, %v7496
    %v7498 = vrot.slane %v7466, %v7497
    %v7499 = vsel %vm534, %v7474, %v7470
    %v7500 = vsel %vm536, %v7478, %v7499
    %v7501 = vsel %vm538, %v7482, %v7500
    %v7502 = vsel %vm540, %v7486, %v7501
    %v7503 = vsel %vm542, %v7490, %v7502
    %v7504 = vsel %vm544, %v7494, %v7503
    %v7505 = vsel %vm546, %v7498, %v7504
    %7515 = vset.pattern.permute.xlu0 0
    %7516 = vperm.xlu0 %7515, %v7420
    %v7517 = vpop.permute.xlu0 %7516
    %7518 = vset.pattern.permute.xlu0 0
    %7519 = vperm.xlu0 %7518, %v7422
    %v7520 = vpop.permute.xlu0 %7519
    %7521 = vset.pattern.permute.xlu0 0
    %7522 = vperm.xlu0 %7521, %v7424
    %v7523 = vpop.permute.xlu0 %7522
    %7524 = vset.pattern.permute.xlu0 0
    %7525 = vperm.xlu0 %7524, %v7426
    %v7526 = vpop.permute.xlu0 %7525
    %7527 = vset.pattern.permute.xlu0 0
    %7528 = vperm.xlu0 %7527, %v7428
    %v7529 = vpop.permute.xlu0 %7528
    %7530 = vset.pattern.permute.xlu0 0
    %7531 = vperm.xlu0 %7530, %v7430
    %v7532 = vpop.permute.xlu0 %7531
    %7533 = vset.pattern.permute.xlu0 0
    %7534 = vperm.xlu0 %7533, %v7432
    %v7535 = vpop.permute.xlu0 %7534
    %7536 = vset.pattern.permute.xlu0 0
    %7537 = vperm.xlu0 %7536, %v7434
    %v7538 = vpop.permute.xlu0 %7537
    %v7539 = vlaneseq
    %v7540 = vshrl.u32 %v7539, 7
    %v7541 = vsub.s32 %v1296, %v7540
    %v7542 = vrot.slane %v7517, %v7541
    %v7543 = vlaneseq
    %v7544 = vshrl.u32 %v7543, 7
    %v7545 = vsub.s32 %v1296, %v7544
    %v7546 = vrot.slane %v7520, %v7545
    %v7547 = vlaneseq
    %v7548 = vshrl.u32 %v7547, 7
    %v7549 = vsub.s32 %v1296, %v7548
    %v7550 = vrot.slane %v7523, %v7549
    %v7551 = vlaneseq
    %v7552 = vshrl.u32 %v7551, 7
    %v7553 = vsub.s32 %v1296, %v7552
    %v7554 = vrot.slane %v7526, %v7553
    %v7555 = vlaneseq
    %v7556 = vshrl.u32 %v7555, 7
    %v7557 = vsub.s32 %v1296, %v7556
    %v7558 = vrot.slane %v7529, %v7557
    %v7559 = vlaneseq
    %v7560 = vshrl.u32 %v7559, 7
    %v7561 = vsub.s32 %v1296, %v7560
    %v7562 = vrot.slane %v7532, %v7561
    %v7563 = vlaneseq
    %v7564 = vshrl.u32 %v7563, 7
    %v7565 = vsub.s32 %v1296, %v7564
    %v7566 = vrot.slane %v7535, %v7565
    %v7567 = vlaneseq
    %v7568 = vshrl.u32 %v7567, 7
    %v7569 = vsub.s32 %v1296, %v7568
    %v7570 = vrot.slane %v7538, %v7569
    %v7571 = vsel %vm534, %v7546, %v7542
    %v7572 = vsel %vm536, %v7550, %v7571
    %v7573 = vsel %vm538, %v7554, %v7572
    %v7574 = vsel %vm540, %v7558, %v7573
    %v7575 = vsel %vm542, %v7562, %v7574
    %v7576 = vsel %vm544, %v7566, %v7575
    %v7577 = vsel %vm546, %v7570, %v7576
    %v7579 = vsel %vm549, %v7505, %v7577
    %7581 = vrot.lane.b32.xlu0 %v5320, 96
    %v7582 = vpop.permute.xlu0 %7581
    %v7585 = vsel %vm1342, %v7579, 0
    %7587 = vmatprep.subr.mxu0 0.0
    %7588 = vmatpush1.msra.mxu0 0.0
    %7589 = vmatprep.subr.mxu0 0.0
    %7590 = vmatpush1.msra.mxu0 0.0
    %7591 = vmatprep.subr.mxu0 0.0
    %7592 = vmatpush1.msra.mxu0 0.0
    %7593 = vmatprep.subr.mxu0 0.0
    %7594 = vmatpush1.msra.mxu0 0.0
    %7595 = vmatprep.subr.mxu0 0.0
    %7596 = vmatpush1.msra.mxu0 0.0
    %7597 = vmatprep.subr.mxu0 0.0
    %7598 = vmatpush1.msra.mxu0 0.0
    %7599 = vmatprep.subr.mxu0 0.0
    %7600 = vmatpush1.msra.mxu0 0.0
    %7601 = vmatprep.subr.mxu0 0.0
    %7602 = vmatpush1.msra.mxu0 0.0
    %7603 = vmatprep.subr.mxu0 0.0
    %7604 = vmatpush1.msra.mxu0 0.0
    %7605 = vmatprep.subr.mxu0 0.0
    %7606 = vmatpush1.msra.mxu0 0.0
    %7607 = vmatprep.subr.mxu0 0.0
    %7608 = vmatpush1.msra.mxu0 0.0
    %7609 = vmatprep.subr.mxu0 0.0
    %7610 = vmatpush1.msra.mxu0 0.0
    %7611 = vmatprep.subr.mxu0 0.0
    %7612 = vmatpush1.msra.mxu0 0.0
    %7613 = vmatprep.subr.mxu0 0.0
    %7614 = vmatpush1.msra.mxu0 0.0
    %7615 = vmatprep.subr.mxu0 0.0
    %7616 = vmatpush1.msra.mxu0 %v7582
    %7617 = vmatprep.subr.mxu0 0.0
    %7618 = vmatpush1.msra.mxu0 %v5320
    %7619 = vmatprep.subr.mxu0 0.0
    %7620 = vmatpush2.msra.mxu0 0.0
    %7621 = vmatprep.subr.mxu0 0.0
    %7622 = vmatpush2.msra.mxu0 0.0
    %7623 = vmatprep.subr.mxu0 0.0
    %7624 = vmatpush2.msra.mxu0 0.0
    %7625 = vmatprep.subr.mxu0 0.0
    %7626 = vmatpush2.msra.mxu0 0.0
    %7627 = vmatprep.subr.mxu0 0.0
    %7628 = vmatpush2.msra.mxu0 0.0
    %7629 = vmatprep.subr.mxu0 0.0
    %7630 = vmatpush2.msra.mxu0 0.0
    %7631 = vmatprep.subr.mxu0 0.0
    %7632 = vmatpush2.msra.mxu0 0.0
    %7633 = vmatprep.subr.mxu0 0.0
    %7634 = vmatpush2.msra.mxu0 0.0
    %7635 = vmatprep.subr.mxu0 0.0
    %7636 = vmatpush2.msra.mxu0 0.0
    %7637 = vmatprep.subr.mxu0 0.0
    %7638 = vmatpush2.msra.mxu0 0.0
    %7639 = vmatprep.subr.mxu0 0.0
    %7640 = vmatpush2.msra.mxu0 0.0
    %7641 = vmatprep.subr.mxu0 0.0
    %7642 = vmatpush2.msra.mxu0 0.0
    %7643 = vmatprep.subr.mxu0 0.0
    %7644 = vmatpush2.msra.mxu0 0.0
    %7645 = vmatprep.subr.mxu0 0.0
    %7646 = vmatpush2.msra.mxu0 0.0
    %7647 = vmatprep.subr.mxu0 0.0
    %7648 = vmatpush2.msra.mxu0 0.0
    %7649 = vmatprep.subr.mxu0 0.0
    %7650 = vmatpush2.msra.mxu0 0.0
    %7651 = vmatprep.mubr.f32.mxu0 0.0
    %7652 = vmatmul.mubr.f32.gmra.mxu0 %v7585
    %v7653 = vpop.f32.mrf.mxu0
    %v7654 = vadd.f32 0.0, %v7653
    %v7655 = vpop.f32.mrf.mxu0
    %7656 = vdwg.mxu0
    %v7657 = vmul.f32 %v6486, 1.702
    %v7658 = vmul.f32 %v7654, 1.702
    %v7659 = vxor.u32 %v7657, 2147483648
    %v7660 = vxor.u32 %v7658, 2147483648
    %v7661 = vmul.f32 %v7659, 1.442695
    %v7662 = vpow.pop %v7661
    %v7663 = vmul.f32 %v7660, 1.442695
    %v7664 = vpow.pop %v7663
    %v7665 = vadd.f32 %v7662, 1.0
    %v7666 = vadd.f32 %v7664, 1.0
    %v7667 = vrcp.pop %v7665
    %v7668 = vmul.f32 1.0, %v7667
    %v7669 = vrcp.pop %v7666
    %v7670 = vmul.f32 1.0, %v7669
    %v7671 = vmul.f32 %v6486, %v7668
    %v7672 = vmul.f32 %v7654, %v7670
    %v7673 = vadd.f32 %v5161, %v7671
    %v7674 = vadd.f32 %v5162, %v7672
    %v7676 = vsel %vm59, %v7673, 0
    %v7679 = vsel %vm59, %v7674, 0
    %7681 = vmatprep.subr.mxu0 0.0
    %7682 = vmatpush1.msra.mxu0 0.0
    %7683 = vmatprep.subr.mxu0 0.0
    %7684 = vmatpush1.msra.mxu0 0.0
    %7685 = vmatprep.subr.mxu0 0.0
    %7686 = vmatpush1.msra.mxu0 0.0
    %7687 = vmatprep.subr.mxu0 0.0
    %7688 = vmatpush1.msra.mxu0 0.0
    %7689 = vmatprep.subr.mxu0 0.0
    %7690 = vmatpush1.msra.mxu0 0.0
    %7691 = vmatprep.subr.mxu0 0.0
    %7692 = vmatpush1.msra.mxu0 0.0
    %7693 = vmatprep.subr.mxu0 0.0
    %7694 = vmatpush1.msra.mxu0 0.0
    %7695 = vmatprep.subr.mxu0 0.0
    %7696 = vmatpush1.msra.mxu0 0.0
    %7697 = vmatprep.subr.mxu0 0.0
    %7698 = vmatpush1.msra.mxu0 0.0
    %7699 = vmatprep.subr.mxu0 0.0
    %7700 = vmatpush1.msra.mxu0 0.0
    %7701 = vmatprep.subr.mxu0 0.0
    %7702 = vmatpush1.msra.mxu0 0.0
    %7703 = vmatprep.subr.mxu0 0.0
    %7704 = vmatpush1.msra.mxu0 0.0
    %7705 = vmatprep.subr.mxu0 0.0
    %7706 = vmatpush1.msra.mxu0 %v2606
    %7707 = vmatprep.subr.mxu0 0.0
    %7708 = vmatpush1.msra.mxu0 %v2605
    %7709 = vmatprep.subr.mxu0 0.0
    %7710 = vmatpush1.msra.mxu0 %v2604
    %7711 = vmatprep.subr.mxu0 0.0
    %7712 = vmatpush1.msra.mxu0 %v2603
    %7713 = vmatprep.subr.mxu0 0.0
    %7714 = vmatpush2.msra.mxu0 0.0
    %7715 = vmatprep.subr.mxu0 0.0
    %7716 = vmatpush2.msra.mxu0 0.0
    %7717 = vmatprep.subr.mxu0 0.0
    %7718 = vmatpush2.msra.mxu0 0.0
    %7719 = vmatprep.subr.mxu0 0.0
    %7720 = vmatpush2.msra.mxu0 0.0
    %7721 = vmatprep.subr.mxu0 0.0
    %7722 = vmatpush2.msra.mxu0 0.0
    %7723 = vmatprep.subr.mxu0 0.0
    %7724 = vmatpush2.msra.mxu0 0.0
    %7725 = vmatprep.subr.mxu0 0.0
    %7726 = vmatpush2.msra.mxu0 0.0
    %7727 = vmatprep.subr.mxu0 0.0
    %7728 = vmatpush2.msra.mxu0 0.0
    %7729 = vmatprep.subr.mxu0 0.0
    %7730 = vmatpush2.msra.mxu0 0.0
    %7731 = vmatprep.subr.mxu0 0.0
    %7732 = vmatpush2.msra.mxu0 0.0
    %7733 = vmatprep.subr.mxu0 0.0
    %7734 = vmatpush2.msra.mxu0 0.0
    %7735 = vmatprep.subr.mxu0 0.0
    %7736 = vmatpush2.msra.mxu0 0.0
    %7737 = vmatprep.subr.mxu0 0.0
    %7738 = vmatpush2.msra.mxu0 0.0
    %7739 = vmatprep.subr.mxu0 0.0
    %7740 = vmatpush2.msra.mxu0 0.0
    %7741 = vmatprep.subr.mxu0 0.0
    %7742 = vmatpush2.msra.mxu0 0.0
    %7743 = vmatprep.subr.mxu0 0.0
    %7744 = vmatpush2.msra.mxu0 0.0
    %7745 = vmatprep.mubr.f32.mxu0 0.0
    %7746 = vmatmul.mubr.f32.gmra.mxu0 %v7676
    %v7747 = vpop.f32.mrf.mxu0
    %v7748 = vadd.f32 %v2624, %v7747
    %v7749 = vpop.f32.mrf.mxu0
    %7750 = vmatprep.mubr.f32.mxu0 0.0
    %7751 = vmatmul.mubr.f32.gmra.mxu0 %v7679
    %v7752 = vpop.f32.mrf.mxu0
    %v7753 = vadd.f32 %v2624, %v7752
    %v7754 = vpop.f32.mrf.mxu0
    %7755 = vdwg.mxu0
    %7756 = vmatprep.subr.mxu0 0.0
    %7757 = vmatpush1.msra.mxu0 0.0
    %7758 = vmatprep.subr.mxu0 0.0
    %7759 = vmatpush1.msra.mxu0 0.0
    %7760 = vmatprep.subr.mxu0 0.0
    %7761 = vmatpush1.msra.mxu0 0.0
    %7762 = vmatprep.subr.mxu0 0.0
    %7763 = vmatpush1.msra.mxu0 0.0
    %7764 = vmatprep.subr.mxu0 0.0
    %7765 = vmatpush1.msra.mxu0 0.0
    %7766 = vmatprep.subr.mxu0 0.0
    %7767 = vmatpush1.msra.mxu0 0.0
    %7768 = vmatprep.subr.mxu0 0.0
    %7769 = vmatpush1.msra.mxu0 0.0
    %7770 = vmatprep.subr.mxu0 0.0
    %7771 = vmatpush1.msra.mxu0 0.0
    %7772 = vmatprep.subr.mxu0 0.0
    %7773 = vmatpush1.msra.mxu0 0.0
    %7774 = vmatprep.subr.mxu0 0.0
    %7775 = vmatpush1.msra.mxu0 0.0
    %7776 = vmatprep.subr.mxu0 0.0
    %7777 = vmatpush1.msra.mxu0 0.0
    %7778 = vmatprep.subr.mxu0 0.0
    %7779 = vmatpush1.msra.mxu0 0.0
    %7780 = vmatprep.subr.mxu0 0.0
    %7781 = vmatpush1.msra.mxu0 %v2611
    %7782 = vmatprep.subr.mxu0 0.0
    %7783 = vmatpush1.msra.mxu0 %v2610
    %7784 = vmatprep.subr.mxu0 0.0
    %7785 = vmatpush1.msra.mxu0 %v2609
    %7786 = vmatprep.subr.mxu0 0.0
    %7787 = vmatpush1.msra.mxu0 %v2608
    %7788 = vmatprep.subr.mxu0 0.0
    %7789 = vmatpush2.msra.mxu0 0.0
    %7790 = vmatprep.subr.mxu0 0.0
    %7791 = vmatpush2.msra.mxu0 0.0
    %7792 = vmatprep.subr.mxu0 0.0
    %7793 = vmatpush2.msra.mxu0 0.0
    %7794 = vmatprep.subr.mxu0 0.0
    %7795 = vmatpush2.msra.mxu0 0.0
    %7796 = vmatprep.subr.mxu0 0.0
    %7797 = vmatpush2.msra.mxu0 0.0
    %7798 = vmatprep.subr.mxu0 0.0
    %7799 = vmatpush2.msra.mxu0 0.0
    %7800 = vmatprep.subr.mxu0 0.0
    %7801 = vmatpush2.msra.mxu0 0.0
    %7802 = vmatprep.subr.mxu0 0.0
    %7803 = vmatpush2.msra.mxu0 0.0
    %7804 = vmatprep.subr.mxu0 0.0
    %7805 = vmatpush2.msra.mxu0 0.0
    %7806 = vmatprep.subr.mxu0 0.0
    %7807 = vmatpush2.msra.mxu0 0.0
    %7808 = vmatprep.subr.mxu0 0.0
    %7809 = vmatpush2.msra.mxu0 0.0
    %7810 = vmatprep.subr.mxu0 0.0
    %7811 = vmatpush2.msra.mxu0 0.0
    %7812 = vmatprep.subr.mxu0 0.0
    %7813 = vmatpush2.msra.mxu0 0.0
    %7814 = vmatprep.subr.mxu0 0.0
    %7815 = vmatpush2.msra.mxu0 0.0
    %7816 = vmatprep.subr.mxu0 0.0
    %7817 = vmatpush2.msra.mxu0 0.0
    %7818 = vmatprep.subr.mxu0 0.0
    %7819 = vmatpush2.msra.mxu0 0.0
    %7820 = vmatprep.mubr.f32.mxu0 0.0
    %7821 = vmatmul.mubr.f32.gmra.mxu0 %v7676
    %v7822 = vpop.f32.mrf.mxu0
    %v7823 = vadd.f32 %v2711, %v7822
    %v7824 = vpop.f32.mrf.mxu0
    %7825 = vmatprep.mubr.f32.mxu0 0.0
    %7826 = vmatmul.mubr.f32.gmra.mxu0 %v7679
    %v7827 = vpop.f32.mrf.mxu0
    %v7828 = vadd.f32 %v2711, %v7827
    %v7829 = vpop.f32.mrf.mxu0
    %7830 = vdwg.mxu0
    %v7831 = vmul.f32 %v7823, %v2792
    %v7832 = vmul.f32 %v7828, %v2792
    %v7833 = vmul.f32 %v7673, %v2799
    %v7835 = vcombine.high %v7748, %v7748
    %v7837 = vunpack.c.l.s4 1966171168
    %v7838 = vunpack.c.0.s8 %v7837
    %v7839 = vlaneseq
    %v7840 = vshrl.u32 %v7839, 7
    %v7841 = vsub.s32 %v7838, %v7840
    %v7842 = vrot.slane %v7748, %v7841
    %v7844 = vunpack.c.l.s4 1966171168
    %v7845 = vunpack.c.0.s8 %v7844
    %v7846 = vlaneseq
    %v7847 = vshrl.u32 %v7846, 7
    %v7848 = vsub.s32 %v7845, %v7847
    %v7849 = vrot.slane %v7835, %v7848
    %v7850 = vcombine.high %v7842, %v7842
    %v7851 = vcombine.high %v7849, %v7849
    %v7853 = vunpack.c.l.s4 1966171168
    %v7854 = vunpack.c.0.s8 %v7853
    %v7855 = vlaneseq
    %v7856 = vshrl.u32 %v7855, 7
    %v7857 = vsub.s32 %v7854, %v7856
    %v7858 = vrot.slane %v7842, %v7857
    %v7860 = vunpack.c.l.s4 1966171168
    %v7861 = vunpack.c.0.s8 %v7860
    %v7862 = vlaneseq
    %v7863 = vshrl.u32 %v7862, 7
    %v7864 = vsub.s32 %v7861, %v7863
    %v7865 = vrot.slane %v7849, %v7864
    %v7867 = vunpack.c.l.s4 1966171168
    %v7868 = vunpack.c.0.s8 %v7867
    %v7869 = vlaneseq
    %v7870 = vshrl.u32 %v7869, 7
    %v7871 = vsub.s32 %v7868, %v7870
    %v7872 = vrot.slane %v7850, %v7871
    %v7874 = vunpack.c.l.s4 1966171168
    %v7875 = vunpack.c.0.s8 %v7874
    %v7876 = vlaneseq
    %v7877 = vshrl.u32 %v7876, 7
    %v7878 = vsub.s32 %v7875, %v7877
    %v7879 = vrot.slane %v7851, %v7878
    %v7880 = vcombine.high %v7858, %v7858
    %v7881 = vcombine.high %v7865, %v7865
    %v7882 = vcombine.high %v7872, %v7872
    %v7883 = vcombine.high %v7879, %v7879
    %v7884 = vlaneseq
    %v7885 = vshrl.u32 %v7884, 7
    %v7886 = vsub.s32 0, %v7885
    %v7887 = vrot.slane %v7858, %v7886
    %v7888 = vlaneseq
    %v7889 = vshrl.u32 %v7888, 7
    %v7890 = vsub.s32 0, %v7889
    %v7891 = vrot.slane %v7872, %v7890
    %v7892 = vlaneseq
    %v7893 = vshrl.u32 %v7892, 7
    %v7894 = vsub.s32 0, %v7893
    %v7895 = vrot.slane %v7880, %v7894
    %v7896 = vlaneseq
    %v7897 = vshrl.u32 %v7896, 7
    %v7898 = vsub.s32 0, %v7897
    %v7899 = vrot.slane %v7882, %v7898
    %v7900 = vlaneseq
    %v7901 = vshrl.u32 %v7900, 7
    %v7902 = vsub.s32 0, %v7901
    %v7903 = vrot.slane %v7865, %v7902
    %v7904 = vlaneseq
    %v7905 = vshrl.u32 %v7904, 7
    %v7906 = vsub.s32 0, %v7905
    %v7907 = vrot.slane %v7879, %v7906
    %v7908 = vlaneseq
    %v7909 = vshrl.u32 %v7908, 7
    %v7910 = vsub.s32 0, %v7909
    %v7911 = vrot.slane %v7881, %v7910
    %v7912 = vlaneseq
    %v7913 = vshrl.u32 %v7912, 7
    %v7914 = vsub.s32 0, %v7913
    %v7915 = vrot.slane %v7883, %v7914
    %v7924 = vsub.f32 %v7887, %v7833
    %v7925 = vsub.f32 %v7891, %v7833
    %v7926 = vsub.f32 %v7895, %v7833
    %v7927 = vsub.f32 %v7899, %v7833
    %v7928 = vsub.f32 %v7903, %v7833
    %v7929 = vsub.f32 %v7907, %v7833
    %v7930 = vsub.f32 %v7911, %v7833
    %v7931 = vsub.f32 %v7915, %v7833
    %v7932 = vand.u32 2147483647, %v7924
    %v7933 = vand.u32 2147483647, %v7925
    %v7934 = vand.u32 2147483647, %v7926
    %v7935 = vand.u32 2147483647, %v7927
    %v7936 = vand.u32 2147483647, %v7928
    %v7937 = vand.u32 2147483647, %v7929
    %v7938 = vand.u32 2147483647, %v7930
    %v7939 = vand.u32 2147483647, %v7931
    %v7941 = vsel %vm59, %v7932, 0
    %v7944 = vsel %vm59, %v7933, 0
    %v7947 = vsel %vm59, %v7934, 0
    %v7950 = vsel %vm59, %v7935, 0
    %v7953 = vsel %vm59, %v7936, 0
    %v7956 = vsel %vm59, %v7937, 0
    %v7959 = vsel %vm59, %v7938, 0
    %v7962 = vsel %vm59, %v7939, 0
    %7964 = vmatprep.subr.mxu0 0.0
    %7965 = vmatpush1.msra.mxu0 0.0
    %7966 = vmatprep.subr.mxu0 0.0
    %7967 = vmatpush1.msra.mxu0 0.0
    %7968 = vmatprep.subr.mxu0 0.0
    %7969 = vmatpush1.msra.mxu0 0.0
    %7970 = vmatprep.subr.mxu0 0.0
    %7971 = vmatpush1.msra.mxu0 0.0
    %7972 = vmatprep.subr.mxu0 0.0
    %7973 = vmatpush1.msra.mxu0 0.0
    %7974 = vmatprep.subr.mxu0 0.0
    %7975 = vmatpush1.msra.mxu0 0.0
    %7976 = vmatprep.subr.mxu0 0.0
    %7977 = vmatpush1.msra.mxu0 0.0
    %7978 = vmatprep.subr.mxu0 0.0
    %7979 = vmatpush1.msra.mxu0 0.0
    %7980 = vmatprep.subr.mxu0 0.0
    %7981 = vmatpush1.msra.mxu0 0.0
    %7982 = vmatprep.subr.mxu0 0.0
    %7983 = vmatpush1.msra.mxu0 0.0
    %7984 = vmatprep.subr.mxu0 0.0
    %7985 = vmatpush1.msra.mxu0 0.0
    %7986 = vmatprep.subr.mxu0 0.0
    %7987 = vmatpush1.msra.mxu0 0.0
    %7988 = vmatprep.subr.mxu0 0.0
    %7989 = vmatpush1.msra.mxu0 -0.17677669
    %7990 = vmatprep.subr.mxu0 0.0
    %7991 = vmatpush1.msra.mxu0 -0.17677669
    %7992 = vmatprep.subr.mxu0 0.0
    %7993 = vmatpush1.msra.mxu0 -0.17677669
    %7994 = vmatprep.subr.mxu0 0.0
    %7995 = vmatpush1.msra.mxu0 -0.17677669
    %7996 = vmatprep.subr.mxu0 0.0
    %7997 = vmatpush2.msra.mxu0 0.0
    %7998 = vmatprep.subr.mxu0 0.0
    %7999 = vmatpush2.msra.mxu0 0.0
    %8000 = vmatprep.subr.mxu0 0.0
    %8001 = vmatpush2.msra.mxu0 0.0
    %8002 = vmatprep.subr.mxu0 0.0
    %8003 = vmatpush2.msra.mxu0 0.0
    %8004 = vmatprep.subr.mxu0 0.0
    %8005 = vmatpush2.msra.mxu0 0.0
    %8006 = vmatprep.subr.mxu0 0.0
    %8007 = vmatpush2.msra.mxu0 0.0
    %8008 = vmatprep.subr.mxu0 0.0
    %8009 = vmatpush2.msra.mxu0 0.0
    %8010 = vmatprep.subr.mxu0 0.0
    %8011 = vmatpush2.msra.mxu0 0.0
    %8012 = vmatprep.subr.mxu0 0.0
    %8013 = vmatpush2.msra.mxu0 0.0
    %8014 = vmatprep.subr.mxu0 0.0
    %8015 = vmatpush2.msra.mxu0 0.0
    %8016 = vmatprep.subr.mxu0 0.0
    %8017 = vmatpush2.msra.mxu0 0.0
    %8018 = vmatprep.subr.mxu0 0.0
    %8019 = vmatpush2.msra.mxu0 0.0
    %8020 = vmatprep.subr.mxu0 0.0
    %8021 = vmatpush2.msra.mxu0 0.0
    %8022 = vmatprep.subr.mxu0 0.0
    %8023 = vmatpush2.msra.mxu0 0.0
    %8024 = vmatprep.subr.mxu0 0.0
    %8025 = vmatpush2.msra.mxu0 0.0
    %8026 = vmatprep.subr.mxu0 0.0
    %8027 = vmatpush2.msra.mxu0 0.0
    %8028 = vmatprep.mubr.f32.mxu0 0.0
    %8029 = vmatmul.mubr.f32.gmra.mxu0 %v7941
    %v8030 = vpop.f32.mrf.mxu0
    %v8031 = vadd.f32 0.0, %v8030
    %v8032 = vpop.f32.mrf.mxu0
    %8033 = vmatprep.mubr.f32.mxu0 0.0
    %8034 = vmatmul.mubr.f32.gmra.mxu0 %v7944
    %v8035 = vpop.f32.mrf.mxu0
    %v8036 = vadd.f32 0.0, %v8035
    %v8037 = vpop.f32.mrf.mxu0
    %8038 = vmatprep.mubr.f32.mxu0 0.0
    %8039 = vmatmul.mubr.f32.gmra.mxu0 %v7947
    %v8040 = vpop.f32.mrf.mxu0
    %v8041 = vadd.f32 0.0, %v8040
    %v8042 = vpop.f32.mrf.mxu0
    %8043 = vmatprep.mubr.f32.mxu0 0.0
    %8044 = vmatmul.mubr.f32.gmra.mxu0 %v7950
    %v8045 = vpop.f32.mrf.mxu0
    %v8046 = vadd.f32 0.0, %v8045
    %v8047 = vpop.f32.mrf.mxu0
    %8048 = vmatprep.mubr.f32.mxu0 0.0
    %8049 = vmatmul.mubr.f32.gmra.mxu0 %v7953
    %v8050 = vpop.f32.mrf.mxu0
    %v8051 = vadd.f32 0.0, %v8050
    %v8052 = vpop.f32.mrf.mxu0
    %8053 = vmatprep.mubr.f32.mxu0 0.0
    %8054 = vmatmul.mubr.f32.gmra.mxu0 %v7956
    %v8055 = vpop.f32.mrf.mxu0
    %v8056 = vadd.f32 0.0, %v8055
    %v8057 = vpop.f32.mrf.mxu0
    %8058 = vmatprep.mubr.f32.mxu0 0.0
    %8059 = vmatmul.mubr.f32.gmra.mxu0 %v7959
    %v8060 = vpop.f32.mrf.mxu0
    %v8061 = vadd.f32 0.0, %v8060
    %v8062 = vpop.f32.mrf.mxu0
    %8063 = vmatprep.mubr.f32.mxu0 0.0
    %8064 = vmatmul.mubr.f32.gmra.mxu0 %v7962
    %v8065 = vpop.f32.mrf.mxu0
    %v8066 = vadd.f32 0.0, %v8065
    %v8067 = vpop.f32.mrf.mxu0
    %8068 = vdwg.mxu0
    %8077 = vset.pattern.permute.xlu0 0
    %8078 = vperm.xlu0 %8077, %v8031
    %v8079 = vpop.permute.xlu0 %8078
    %8080 = vset.pattern.permute.xlu0 0
    %8081 = vperm.xlu0 %8080, %v8036
    %v8082 = vpop.permute.xlu0 %8081
    %8083 = vset.pattern.permute.xlu0 0
    %8084 = vperm.xlu0 %8083, %v8041
    %v8085 = vpop.permute.xlu0 %8084
    %8086 = vset.pattern.permute.xlu0 0
    %8087 = vperm.xlu0 %8086, %v8046
    %v8088 = vpop.permute.xlu0 %8087
    %8089 = vset.pattern.permute.xlu0 0
    %8090 = vperm.xlu0 %8089, %v8051
    %v8091 = vpop.permute.xlu0 %8090
    %8092 = vset.pattern.permute.xlu0 0
    %8093 = vperm.xlu0 %8092, %v8056
    %v8094 = vpop.permute.xlu0 %8093
    %8095 = vset.pattern.permute.xlu0 0
    %8096 = vperm.xlu0 %8095, %v8061
    %v8097 = vpop.permute.xlu0 %8096
    %8098 = vset.pattern.permute.xlu0 0
    %8099 = vperm.xlu0 %8098, %v8066
    %v8100 = vpop.permute.xlu0 %8099
    %v8101 = vlaneseq
    %v8102 = vshrl.u32 %v8101, 7
    %v8103 = vsub.s32 %v32, %v8102
    %v8104 = vrot.slane %v8079, %v8103
    %v8105 = vlaneseq
    %v8106 = vshrl.u32 %v8105, 7
    %v8107 = vsub.s32 %v32, %v8106
    %v8108 = vrot.slane %v8082, %v8107
    %v8109 = vlaneseq
    %v8110 = vshrl.u32 %v8109, 7
    %v8111 = vsub.s32 %v32, %v8110
    %v8112 = vrot.slane %v8085, %v8111
    %v8113 = vlaneseq
    %v8114 = vshrl.u32 %v8113, 7
    %v8115 = vsub.s32 %v32, %v8114
    %v8116 = vrot.slane %v8088, %v8115
    %v8117 = vlaneseq
    %v8118 = vshrl.u32 %v8117, 7
    %v8119 = vsub.s32 %v32, %v8118
    %v8120 = vrot.slane %v8091, %v8119
    %v8121 = vlaneseq
    %v8122 = vshrl.u32 %v8121, 7
    %v8123 = vsub.s32 %v32, %v8122
    %v8124 = vrot.slane %v8094, %v8123
    %v8125 = vlaneseq
    %v8126 = vshrl.u32 %v8125, 7
    %v8127 = vsub.s32 %v32, %v8126
    %v8128 = vrot.slane %v8097, %v8127
    %v8129 = vlaneseq
    %v8130 = vshrl.u32 %v8129, 7
    %v8131 = vsub.s32 %v32, %v8130
    %v8132 = vrot.slane %v8100, %v8131
    %v8133 = vsel %vm534, %v8108, %v8104
    %v8134 = vsel %vm536, %v8112, %v8133
    %v8135 = vsel %vm538, %v8116, %v8134
    %v8136 = vsel %vm540, %v8120, %v8135
    %v8137 = vsel %vm542, %v8124, %v8136
    %v8138 = vsel %vm544, %v8128, %v8137
    %v8139 = vsel %vm546, %v8132, %v8138
    %v8141 = vsel %vm549, %v8139, -inf
    %8142 = vmax.xlane.f32.xlu0 %v8141
    %v8143 = vpop.xlane.xlu0 %8142
    %v8145 = vlaneseq
    %v8146 = vshrl.u32 %v8145, 7
    %v8147 = vsub.s32 0, %v8146
    %v8148 = vrot.slane %v8143, %v8147
    %v8149 = vlaneseq
    %v8150 = vshrl.u32 %v8149, 7
    %v8151 = vsub.s32 1, %v8150
    %v8152 = vrot.slane %v8143, %v8151
    %v8153 = vlaneseq
    %v8154 = vshrl.u32 %v8153, 7
    %v8155 = vsub.s32 2, %v8154
    %v8156 = vrot.slane %v8143, %v8155
    %v8157 = vlaneseq
    %v8158 = vshrl.u32 %v8157, 7
    %v8159 = vsub.s32 3, %v8158
    %v8160 = vrot.slane %v8143, %v8159
    %v8161 = vlaneseq
    %v8162 = vshrl.u32 %v8161, 7
    %v8163 = vsub.s32 4, %v8162
    %v8164 = vrot.slane %v8143, %v8163
    %v8165 = vlaneseq
    %v8166 = vshrl.u32 %v8165, 7
    %v8167 = vsub.s32 5, %v8166
    %v8168 = vrot.slane %v8143, %v8167
    %v8169 = vlaneseq
    %v8170 = vshrl.u32 %v8169, 7
    %v8171 = vsub.s32 6, %v8170
    %v8172 = vrot.slane %v8143, %v8171
    %v8173 = vlaneseq
    %v8174 = vshrl.u32 %v8173, 7
    %v8175 = vsub.s32 7, %v8174
    %v8176 = vrot.slane %v8143, %v8175
    %v8185 = vsub.f32 %v8031, %v8148
    %v8186 = vsub.f32 %v8036, %v8152
    %v8187 = vsub.f32 %v8041, %v8156
    %v8188 = vsub.f32 %v8046, %v8160
    %v8189 = vsub.f32 %v8051, %v8164
    %v8190 = vsub.f32 %v8056, %v8168
    %v8191 = vsub.f32 %v8061, %v8172
    %v8192 = vsub.f32 %v8066, %v8176
    %v8193 = vmul.f32 %v8185, 1.442695
    %v8194 = vpow.pop %v8193
    %v8195 = vmul.f32 %v8186, 1.442695
    %v8196 = vpow.pop %v8195
    %v8197 = vmul.f32 %v8187, 1.442695
    %v8198 = vpow.pop %v8197
    %v8199 = vmul.f32 %v8188, 1.442695
    %v8200 = vpow.pop %v8199
    %v8201 = vmul.f32 %v8189, 1.442695
    %v8202 = vpow.pop %v8201
    %v8203 = vmul.f32 %v8190, 1.442695
    %v8204 = vpow.pop %v8203
    %v8205 = vmul.f32 %v8191, 1.442695
    %v8206 = vpow.pop %v8205
    %v8207 = vmul.f32 %v8192, 1.442695
    %v8208 = vpow.pop %v8207
    %8217 = vset.pattern.permute.xlu0 0
    %8218 = vperm.xlu0 %8217, %v8194
    %v8219 = vpop.permute.xlu0 %8218
    %8220 = vset.pattern.permute.xlu0 0
    %8221 = vperm.xlu0 %8220, %v8196
    %v8222 = vpop.permute.xlu0 %8221
    %8223 = vset.pattern.permute.xlu0 0
    %8224 = vperm.xlu0 %8223, %v8198
    %v8225 = vpop.permute.xlu0 %8224
    %8226 = vset.pattern.permute.xlu0 0
    %8227 = vperm.xlu0 %8226, %v8200
    %v8228 = vpop.permute.xlu0 %8227
    %8229 = vset.pattern.permute.xlu0 0
    %8230 = vperm.xlu0 %8229, %v8202
    %v8231 = vpop.permute.xlu0 %8230
    %8232 = vset.pattern.permute.xlu0 0
    %8233 = vperm.xlu0 %8232, %v8204
    %v8234 = vpop.permute.xlu0 %8233
    %8235 = vset.pattern.permute.xlu0 0
    %8236 = vperm.xlu0 %8235, %v8206
    %v8237 = vpop.permute.xlu0 %8236
    %8238 = vset.pattern.permute.xlu0 0
    %8239 = vperm.xlu0 %8238, %v8208
    %v8240 = vpop.permute.xlu0 %8239
    %v8241 = vlaneseq
    %v8242 = vshrl.u32 %v8241, 7
    %v8243 = vsub.s32 %v32, %v8242
    %v8244 = vrot.slane %v8219, %v8243
    %v8245 = vlaneseq
    %v8246 = vshrl.u32 %v8245, 7
    %v8247 = vsub.s32 %v32, %v8246
    %v8248 = vrot.slane %v8222, %v8247
    %v8249 = vlaneseq
    %v8250 = vshrl.u32 %v8249, 7
    %v8251 = vsub.s32 %v32, %v8250
    %v8252 = vrot.slane %v8225, %v8251
    %v8253 = vlaneseq
    %v8254 = vshrl.u32 %v8253, 7
    %v8255 = vsub.s32 %v32, %v8254
    %v8256 = vrot.slane %v8228, %v8255
    %v8257 = vlaneseq
    %v8258 = vshrl.u32 %v8257, 7
    %v8259 = vsub.s32 %v32, %v8258
    %v8260 = vrot.slane %v8231, %v8259
    %v8261 = vlaneseq
    %v8262 = vshrl.u32 %v8261, 7
    %v8263 = vsub.s32 %v32, %v8262
    %v8264 = vrot.slane %v8234, %v8263
    %v8265 = vlaneseq
    %v8266 = vshrl.u32 %v8265, 7
    %v8267 = vsub.s32 %v32, %v8266
    %v8268 = vrot.slane %v8237, %v8267
    %v8269 = vlaneseq
    %v8270 = vshrl.u32 %v8269, 7
    %v8271 = vsub.s32 %v32, %v8270
    %v8272 = vrot.slane %v8240, %v8271
    %v8273 = vsel %vm534, %v8248, %v8244
    %v8274 = vsel %vm536, %v8252, %v8273
    %v8275 = vsel %vm538, %v8256, %v8274
    %v8276 = vsel %vm540, %v8260, %v8275
    %v8277 = vsel %vm542, %v8264, %v8276
    %v8278 = vsel %vm544, %v8268, %v8277
    %v8279 = vsel %vm546, %v8272, %v8278
    %v8281 = vsel %vm549, %v8279, 0.0
    %8282 = vadd.xlane.f32.xlu0 %v8281
    %v8283 = vpop.xlane.xlu0 %8282
    %v8285 = vlaneseq
    %v8286 = vshrl.u32 %v8285, 7
    %v8287 = vsub.s32 0, %v8286
    %v8288 = vrot.slane %v8283, %v8287
    %v8289 = vlaneseq
    %v8290 = vshrl.u32 %v8289, 7
    %v8291 = vsub.s32 1, %v8290
    %v8292 = vrot.slane %v8283, %v8291
    %v8293 = vlaneseq
    %v8294 = vshrl.u32 %v8293, 7
    %v8295 = vsub.s32 2, %v8294
    %v8296 = vrot.slane %v8283, %v8295
    %v8297 = vlaneseq
    %v8298 = vshrl.u32 %v8297, 7
    %v8299 = vsub.s32 3, %v8298
    %v8300 = vrot.slane %v8283, %v8299
    %v8301 = vlaneseq
    %v8302 = vshrl.u32 %v8301, 7
    %v8303 = vsub.s32 4, %v8302
    %v8304 = vrot.slane %v8283, %v8303
    %v8305 = vlaneseq
    %v8306 = vshrl.u32 %v8305, 7
    %v8307 = vsub.s32 5, %v8306
    %v8308 = vrot.slane %v8283, %v8307
    %v8309 = vlaneseq
    %v8310 = vshrl.u32 %v8309, 7
    %v8311 = vsub.s32 6, %v8310
    %v8312 = vrot.slane %v8283, %v8311
    %v8313 = vlaneseq
    %v8314 = vshrl.u32 %v8313, 7
    %v8315 = vsub.s32 7, %v8314
    %v8316 = vrot.slane %v8283, %v8315
    %v8325 = vrcp.pop %v8288
    %v8326 = vmul.f32 %v8194, %v8325
    %v8327 = vrcp.pop %v8292
    %v8328 = vmul.f32 %v8196, %v8327
    %v8329 = vrcp.pop %v8296
    %v8330 = vmul.f32 %v8198, %v8329
    %v8331 = vrcp.pop %v8300
    %v8332 = vmul.f32 %v8200, %v8331
    %v8333 = vrcp.pop %v8304
    %v8334 = vmul.f32 %v8202, %v8333
    %v8335 = vrcp.pop %v8308
    %v8336 = vmul.f32 %v8204, %v8335
    %v8337 = vrcp.pop %v8312
    %v8338 = vmul.f32 %v8206, %v8337
    %v8339 = vrcp.pop %v8316
    %v8340 = vmul.f32 %v8208, %v8339
    %v8341 = vmul.f32 %v7673, %v3311
    %8343 = vrot.lane.b32.xlu0 %v8341, 32
    %v8344 = vpop.permute.xlu0 %8343
    %v8346 = vsub.f32 %v7887, %v8344
    %v8347 = vsub.f32 %v7891, %v8344
    %v8348 = vsub.f32 %v7895, %v8344
    %v8349 = vsub.f32 %v7899, %v8344
    %v8350 = vsub.f32 %v7903, %v8344
    %v8351 = vsub.f32 %v7907, %v8344
    %v8352 = vsub.f32 %v7911, %v8344
    %v8353 = vsub.f32 %v7915, %v8344
    %v8354 = vand.u32 2147483647, %v8346
    %v8355 = vand.u32 2147483647, %v8347
    %v8356 = vand.u32 2147483647, %v8348
    %v8357 = vand.u32 2147483647, %v8349
    %v8358 = vand.u32 2147483647, %v8350
    %v8359 = vand.u32 2147483647, %v8351
    %v8360 = vand.u32 2147483647, %v8352
    %v8361 = vand.u32 2147483647, %v8353
    %8370 = vrot.lane.b32.xlu0 %v8354, 96
    %v8371 = vpop.permute.xlu0 %8370
    %8372 = vrot.lane.b32.xlu0 %v8355, 96
    %v8373 = vpop.permute.xlu0 %8372
    %8374 = vrot.lane.b32.xlu0 %v8356, 96
    %v8375 = vpop.permute.xlu0 %8374
    %8376 = vrot.lane.b32.xlu0 %v8357, 96
    %v8377 = vpop.permute.xlu0 %8376
    %8378 = vrot.lane.b32.xlu0 %v8358, 96
    %v8379 = vpop.permute.xlu0 %8378
    %8380 = vrot.lane.b32.xlu0 %v8359, 96
    %v8381 = vpop.permute.xlu0 %8380
    %8382 = vrot.lane.b32.xlu0 %v8360, 96
    %v8383 = vpop.permute.xlu0 %8382
    %8384 = vrot.lane.b32.xlu0 %v8361, 96
    %v8385 = vpop.permute.xlu0 %8384
    %v8386 = vsel %vm59, %v8371, 0
    %v8388 = vsel %vm59, %v8373, 0
    %v8390 = vsel %vm59, %v8375, 0
    %v8392 = vsel %vm59, %v8377, 0
    %v8394 = vsel %vm59, %v8379, 0
    %v8396 = vsel %vm59, %v8381, 0
    %v8398 = vsel %vm59, %v8383, 0
    %v8400 = vsel %vm59, %v8385, 0
    %8402 = vmatprep.subr.mxu0 0.0
    %8403 = vmatpush1.msra.mxu0 0.0
    %8404 = vmatprep.subr.mxu0 0.0
    %8405 = vmatpush1.msra.mxu0 0.0
    %8406 = vmatprep.subr.mxu0 0.0
    %8407 = vmatpush1.msra.mxu0 0.0
    %8408 = vmatprep.subr.mxu0 0.0
    %8409 = vmatpush1.msra.mxu0 0.0
    %8410 = vmatprep.subr.mxu0 0.0
    %8411 = vmatpush1.msra.mxu0 0.0
    %8412 = vmatprep.subr.mxu0 0.0
    %8413 = vmatpush1.msra.mxu0 0.0
    %8414 = vmatprep.subr.mxu0 0.0
    %8415 = vmatpush1.msra.mxu0 0.0
    %8416 = vmatprep.subr.mxu0 0.0
    %8417 = vmatpush1.msra.mxu0 0.0
    %8418 = vmatprep.subr.mxu0 0.0
    %8419 = vmatpush1.msra.mxu0 0.0
    %8420 = vmatprep.subr.mxu0 0.0
    %8421 = vmatpush1.msra.mxu0 0.0
    %8422 = vmatprep.subr.mxu0 0.0
    %8423 = vmatpush1.msra.mxu0 0.0
    %8424 = vmatprep.subr.mxu0 0.0
    %8425 = vmatpush1.msra.mxu0 0.0
    %8426 = vmatprep.subr.mxu0 0.0
    %8427 = vmatpush1.msra.mxu0 -0.17677669
    %8428 = vmatprep.subr.mxu0 0.0
    %8429 = vmatpush1.msra.mxu0 -0.17677669
    %8430 = vmatprep.subr.mxu0 0.0
    %8431 = vmatpush1.msra.mxu0 -0.17677669
    %8432 = vmatprep.subr.mxu0 0.0
    %8433 = vmatpush1.msra.mxu0 -0.17677669
    %8434 = vmatprep.subr.mxu0 0.0
    %8435 = vmatpush2.msra.mxu0 0.0
    %8436 = vmatprep.subr.mxu0 0.0
    %8437 = vmatpush2.msra.mxu0 0.0
    %8438 = vmatprep.subr.mxu0 0.0
    %8439 = vmatpush2.msra.mxu0 0.0
    %8440 = vmatprep.subr.mxu0 0.0
    %8441 = vmatpush2.msra.mxu0 0.0
    %8442 = vmatprep.subr.mxu0 0.0
    %8443 = vmatpush2.msra.mxu0 0.0
    %8444 = vmatprep.subr.mxu0 0.0
    %8445 = vmatpush2.msra.mxu0 0.0
    %8446 = vmatprep.subr.mxu0 0.0
    %8447 = vmatpush2.msra.mxu0 0.0
    %8448 = vmatprep.subr.mxu0 0.0
    %8449 = vmatpush2.msra.mxu0 0.0
    %8450 = vmatprep.subr.mxu0 0.0
    %8451 = vmatpush2.msra.mxu0 0.0
    %8452 = vmatprep.subr.mxu0 0.0
    %8453 = vmatpush2.msra.mxu0 0.0
    %8454 = vmatprep.subr.mxu0 0.0
    %8455 = vmatpush2.msra.mxu0 0.0
    %8456 = vmatprep.subr.mxu0 0.0
    %8457 = vmatpush2.msra.mxu0 0.0
    %8458 = vmatprep.subr.mxu0 0.0
    %8459 = vmatpush2.msra.mxu0 0.0
    %8460 = vmatprep.subr.mxu0 0.0
    %8461 = vmatpush2.msra.mxu0 0.0
    %8462 = vmatprep.subr.mxu0 0.0
    %8463 = vmatpush2.msra.mxu0 0.0
    %8464 = vmatprep.subr.mxu0 0.0
    %8465 = vmatpush2.msra.mxu0 0.0
    %8466 = vmatprep.mubr.f32.mxu0 0.0
    %8467 = vmatmul.mubr.f32.gmra.mxu0 %v8386
    %v8468 = vpop.f32.mrf.mxu0
    %v8469 = vadd.f32 0.0, %v8468
    %v8470 = vpop.f32.mrf.mxu0
    %8471 = vmatprep.mubr.f32.mxu0 0.0
    %8472 = vmatmul.mubr.f32.gmra.mxu0 %v8388
    %v8473 = vpop.f32.mrf.mxu0
    %v8474 = vadd.f32 0.0, %v8473
    %v8475 = vpop.f32.mrf.mxu0
    %8476 = vmatprep.mubr.f32.mxu0 0.0
    %8477 = vmatmul.mubr.f32.gmra.mxu0 %v8390
    %v8478 = vpop.f32.mrf.mxu0
    %v8479 = vadd.f32 0.0, %v8478
    %v8480 = vpop.f32.mrf.mxu0
    %8481 = vmatprep.mubr.f32.mxu0 0.0
    %8482 = vmatmul.mubr.f32.gmra.mxu0 %v8392
    %v8483 = vpop.f32.mrf.mxu0
    %v8484 = vadd.f32 0.0, %v8483
    %v8485 = vpop.f32.mrf.mxu0
    %8486 = vmatprep.mubr.f32.mxu0 0.0
    %8487 = vmatmul.mubr.f32.gmra.mxu0 %v8394
    %v8488 = vpop.f32.mrf.mxu0
    %v8489 = vadd.f32 0.0, %v8488
    %v8490 = vpop.f32.mrf.mxu0
    %8491 = vmatprep.mubr.f32.mxu0 0.0
    %8492 = vmatmul.mubr.f32.gmra.mxu0 %v8396
    %v8493 = vpop.f32.mrf.mxu0
    %v8494 = vadd.f32 0.0, %v8493
    %v8495 = vpop.f32.mrf.mxu0
    %8496 = vmatprep.mubr.f32.mxu0 0.0
    %8497 = vmatmul.mubr.f32.gmra.mxu0 %v8398
    %v8498 = vpop.f32.mrf.mxu0
    %v8499 = vadd.f32 0.0, %v8498
    %v8500 = vpop.f32.mrf.mxu0
    %8501 = vmatprep.mubr.f32.mxu0 0.0
    %8502 = vmatmul.mubr.f32.gmra.mxu0 %v8400
    %v8503 = vpop.f32.mrf.mxu0
    %v8504 = vadd.f32 0.0, %v8503
    %v8505 = vpop.f32.mrf.mxu0
    %8506 = vdwg.mxu0
    %8515 = vset.pattern.permute.xlu0 0
    %8516 = vperm.xlu0 %8515, %v8469
    %v8517 = vpop.permute.xlu0 %8516
    %8518 = vset.pattern.permute.xlu0 0
    %8519 = vperm.xlu0 %8518, %v8474
    %v8520 = vpop.permute.xlu0 %8519
    %8521 = vset.pattern.permute.xlu0 0
    %8522 = vperm.xlu0 %8521, %v8479
    %v8523 = vpop.permute.xlu0 %8522
    %8524 = vset.pattern.permute.xlu0 0
    %8525 = vperm.xlu0 %8524, %v8484
    %v8526 = vpop.permute.xlu0 %8525
    %8527 = vset.pattern.permute.xlu0 0
    %8528 = vperm.xlu0 %8527, %v8489
    %v8529 = vpop.permute.xlu0 %8528
    %8530 = vset.pattern.permute.xlu0 0
    %8531 = vperm.xlu0 %8530, %v8494
    %v8532 = vpop.permute.xlu0 %8531
    %8533 = vset.pattern.permute.xlu0 0
    %8534 = vperm.xlu0 %8533, %v8499
    %v8535 = vpop.permute.xlu0 %8534
    %8536 = vset.pattern.permute.xlu0 0
    %8537 = vperm.xlu0 %8536, %v8504
    %v8538 = vpop.permute.xlu0 %8537
    %v8539 = vlaneseq
    %v8540 = vshrl.u32 %v8539, 7
    %v8541 = vsub.s32 %v32, %v8540
    %v8542 = vrot.slane %v8517, %v8541
    %v8543 = vlaneseq
    %v8544 = vshrl.u32 %v8543, 7
    %v8545 = vsub.s32 %v32, %v8544
    %v8546 = vrot.slane %v8520, %v8545
    %v8547 = vlaneseq
    %v8548 = vshrl.u32 %v8547, 7
    %v8549 = vsub.s32 %v32, %v8548
    %v8550 = vrot.slane %v8523, %v8549
    %v8551 = vlaneseq
    %v8552 = vshrl.u32 %v8551, 7
    %v8553 = vsub.s32 %v32, %v8552
    %v8554 = vrot.slane %v8526, %v8553
    %v8555 = vlaneseq
    %v8556 = vshrl.u32 %v8555, 7
    %v8557 = vsub.s32 %v32, %v8556
    %v8558 = vrot.slane %v8529, %v8557
    %v8559 = vlaneseq
    %v8560 = vshrl.u32 %v8559, 7
    %v8561 = vsub.s32 %v32, %v8560
    %v8562 = vrot.slane %v8532, %v8561
    %v8563 = vlaneseq
    %v8564 = vshrl.u32 %v8563, 7
    %v8565 = vsub.s32 %v32, %v8564
    %v8566 = vrot.slane %v8535, %v8565
    %v8567 = vlaneseq
    %v8568 = vshrl.u32 %v8567, 7
    %v8569 = vsub.s32 %v32, %v8568
    %v8570 = vrot.slane %v8538, %v8569
    %v8571 = vsel %vm534, %v8546, %v8542
    %v8572 = vsel %vm536, %v8550, %v8571
    %v8573 = vsel %vm538, %v8554, %v8572
    %v8574 = vsel %vm540, %v8558, %v8573
    %v8575 = vsel %vm542, %v8562, %v8574
    %v8576 = vsel %vm544, %v8566, %v8575
    %v8577 = vsel %vm546, %v8570, %v8576
    %v8579 = vsel %vm549, %v8577, -inf
    %8580 = vmax.xlane.f32.xlu0 %v8579
    %v8581 = vpop.xlane.xlu0 %8580
    %v8583 = vlaneseq
    %v8584 = vshrl.u32 %v8583, 7
    %v8585 = vsub.s32 0, %v8584
    %v8586 = vrot.slane %v8581, %v8585
    %v8587 = vlaneseq
    %v8588 = vshrl.u32 %v8587, 7
    %v8589 = vsub.s32 1, %v8588
    %v8590 = vrot.slane %v8581, %v8589
    %v8591 = vlaneseq
    %v8592 = vshrl.u32 %v8591, 7
    %v8593 = vsub.s32 2, %v8592
    %v8594 = vrot.slane %v8581, %v8593
    %v8595 = vlaneseq
    %v8596 = vshrl.u32 %v8595, 7
    %v8597 = vsub.s32 3, %v8596
    %v8598 = vrot.slane %v8581, %v8597
    %v8599 = vlaneseq
    %v8600 = vshrl.u32 %v8599, 7
    %v8601 = vsub.s32 4, %v8600
    %v8602 = vrot.slane %v8581, %v8601
    %v8603 = vlaneseq
    %v8604 = vshrl.u32 %v8603, 7
    %v8605 = vsub.s32 5, %v8604
    %v8606 = vrot.slane %v8581, %v8605
    %v8607 = vlaneseq
    %v8608 = vshrl.u32 %v8607, 7
    %v8609 = vsub.s32 6, %v8608
    %v8610 = vrot.slane %v8581, %v8609
    %v8611 = vlaneseq
    %v8612 = vshrl.u32 %v8611, 7
    %v8613 = vsub.s32 7, %v8612
    %v8614 = vrot.slane %v8581, %v8613
    %v8623 = vsub.f32 %v8469, %v8586
    %v8624 = vsub.f32 %v8474, %v8590
    %v8625 = vsub.f32 %v8479, %v8594
    %v8626 = vsub.f32 %v8484, %v8598
    %v8627 = vsub.f32 %v8489, %v8602
    %v8628 = vsub.f32 %v8494, %v8606
    %v8629 = vsub.f32 %v8499, %v8610
    %v8630 = vsub.f32 %v8504, %v8614
    %v8631 = vmul.f32 %v8623, 1.442695
    %v8632 = vpow.pop %v8631
    %v8633 = vmul.f32 %v8624, 1.442695
    %v8634 = vpow.pop %v8633
    %v8635 = vmul.f32 %v8625, 1.442695
    %v8636 = vpow.pop %v8635
    %v8637 = vmul.f32 %v8626, 1.442695
    %v8638 = vpow.pop %v8637
    %v8639 = vmul.f32 %v8627, 1.442695
    %v8640 = vpow.pop %v8639
    %v8641 = vmul.f32 %v8628, 1.442695
    %v8642 = vpow.pop %v8641
    %v8643 = vmul.f32 %v8629, 1.442695
    %v8644 = vpow.pop %v8643
    %v8645 = vmul.f32 %v8630, 1.442695
    %v8646 = vpow.pop %v8645
    %8655 = vset.pattern.permute.xlu0 0
    %8656 = vperm.xlu0 %8655, %v8632
    %v8657 = vpop.permute.xlu0 %8656
    %8658 = vset.pattern.permute.xlu0 0
    %8659 = vperm.xlu0 %8658, %v8634
    %v8660 = vpop.permute.xlu0 %8659
    %8661 = vset.pattern.permute.xlu0 0
    %8662 = vperm.xlu0 %8661, %v8636
    %v8663 = vpop.permute.xlu0 %8662
    %8664 = vset.pattern.permute.xlu0 0
    %8665 = vperm.xlu0 %8664, %v8638
    %v8666 = vpop.permute.xlu0 %8665
    %8667 = vset.pattern.permute.xlu0 0
    %8668 = vperm.xlu0 %8667, %v8640
    %v8669 = vpop.permute.xlu0 %8668
    %8670 = vset.pattern.permute.xlu0 0
    %8671 = vperm.xlu0 %8670, %v8642
    %v8672 = vpop.permute.xlu0 %8671
    %8673 = vset.pattern.permute.xlu0 0
    %8674 = vperm.xlu0 %8673, %v8644
    %v8675 = vpop.permute.xlu0 %8674
    %8676 = vset.pattern.permute.xlu0 0
    %8677 = vperm.xlu0 %8676, %v8646
    %v8678 = vpop.permute.xlu0 %8677
    %v8679 = vlaneseq
    %v8680 = vshrl.u32 %v8679, 7
    %v8681 = vsub.s32 %v32, %v8680
    %v8682 = vrot.slane %v8657, %v8681
    %v8683 = vlaneseq
    %v8684 = vshrl.u32 %v8683, 7
    %v8685 = vsub.s32 %v32, %v8684
    %v8686 = vrot.slane %v8660, %v8685
    %v8687 = vlaneseq
    %v8688 = vshrl.u32 %v8687, 7
    %v8689 = vsub.s32 %v32, %v8688
    %v8690 = vrot.slane %v8663, %v8689
    %v8691 = vlaneseq
    %v8692 = vshrl.u32 %v8691, 7
    %v8693 = vsub.s32 %v32, %v8692
    %v8694 = vrot.slane %v8666, %v8693
    %v8695 = vlaneseq
    %v8696 = vshrl.u32 %v8695, 7
    %v8697 = vsub.s32 %v32, %v8696
    %v8698 = vrot.slane %v8669, %v8697
    %v8699 = vlaneseq
    %v8700 = vshrl.u32 %v8699, 7
    %v8701 = vsub.s32 %v32, %v8700
    %v8702 = vrot.slane %v8672, %v8701
    %v8703 = vlaneseq
    %v8704 = vshrl.u32 %v8703, 7
    %v8705 = vsub.s32 %v32, %v8704
    %v8706 = vrot.slane %v8675, %v8705
    %v8707 = vlaneseq
    %v8708 = vshrl.u32 %v8707, 7
    %v8709 = vsub.s32 %v32, %v8708
    %v8710 = vrot.slane %v8678, %v8709
    %v8711 = vsel %vm534, %v8686, %v8682
    %v8712 = vsel %vm536, %v8690, %v8711
    %v8713 = vsel %vm538, %v8694, %v8712
    %v8714 = vsel %vm540, %v8698, %v8713
    %v8715 = vsel %vm542, %v8702, %v8714
    %v8716 = vsel %vm544, %v8706, %v8715
    %v8717 = vsel %vm546, %v8710, %v8716
    %v8719 = vsel %vm549, %v8717, 0.0
    %8720 = vadd.xlane.f32.xlu0 %v8719
    %v8721 = vpop.xlane.xlu0 %8720
    %v8723 = vlaneseq
    %v8724 = vshrl.u32 %v8723, 7
    %v8725 = vsub.s32 0, %v8724
    %v8726 = vrot.slane %v8721, %v8725
    %v8727 = vlaneseq
    %v8728 = vshrl.u32 %v8727, 7
    %v8729 = vsub.s32 1, %v8728
    %v8730 = vrot.slane %v8721, %v8729
    %v8731 = vlaneseq
    %v8732 = vshrl.u32 %v8731, 7
    %v8733 = vsub.s32 2, %v8732
    %v8734 = vrot.slane %v8721, %v8733
    %v8735 = vlaneseq
    %v8736 = vshrl.u32 %v8735, 7
    %v8737 = vsub.s32 3, %v8736
    %v8738 = vrot.slane %v8721, %v8737
    %v8739 = vlaneseq
    %v8740 = vshrl.u32 %v8739, 7
    %v8741 = vsub.s32 4, %v8740
    %v8742 = vrot.slane %v8721, %v8741
    %v8743 = vlaneseq
    %v8744 = vshrl.u32 %v8743, 7
    %v8745 = vsub.s32 5, %v8744
    %v8746 = vrot.slane %v8721, %v8745
    %v8747 = vlaneseq
    %v8748 = vshrl.u32 %v8747, 7
    %v8749 = vsub.s32 6, %v8748
    %v8750 = vrot.slane %v8721, %v8749
    %v8751 = vlaneseq
    %v8752 = vshrl.u32 %v8751, 7
    %v8753 = vsub.s32 7, %v8752
    %v8754 = vrot.slane %v8721, %v8753
    %v8763 = vrcp.pop %v8726
    %v8764 = vmul.f32 %v8632, %v8763
    %v8765 = vrcp.pop %v8730
    %v8766 = vmul.f32 %v8634, %v8765
    %v8767 = vrcp.pop %v8734
    %v8768 = vmul.f32 %v8636, %v8767
    %v8769 = vrcp.pop %v8738
    %v8770 = vmul.f32 %v8638, %v8769
    %v8771 = vrcp.pop %v8742
    %v8772 = vmul.f32 %v8640, %v8771
    %v8773 = vrcp.pop %v8746
    %v8774 = vmul.f32 %v8642, %v8773
    %v8775 = vrcp.pop %v8750
    %v8776 = vmul.f32 %v8644, %v8775
    %v8777 = vrcp.pop %v8754
    %v8778 = vmul.f32 %v8646, %v8777
    %8787 = vset.pattern.permute.xlu0 0
    %8788 = vperm.xlu0 %8787, %v8326
    %v8789 = vpop.permute.xlu0 %8788
    %8790 = vset.pattern.permute.xlu0 0
    %8791 = vperm.xlu0 %8790, %v8328
    %v8792 = vpop.permute.xlu0 %8791
    %8793 = vset.pattern.permute.xlu0 0
    %8794 = vperm.xlu0 %8793, %v8330
    %v8795 = vpop.permute.xlu0 %8794
    %8796 = vset.pattern.permute.xlu0 0
    %8797 = vperm.xlu0 %8796, %v8332
    %v8798 = vpop.permute.xlu0 %8797
    %8799 = vset.pattern.permute.xlu0 0
    %8800 = vperm.xlu0 %8799, %v8334
    %v8801 = vpop.permute.xlu0 %8800
    %8802 = vset.pattern.permute.xlu0 0
    %8803 = vperm.xlu0 %8802, %v8336
    %v8804 = vpop.permute.xlu0 %8803
    %8805 = vset.pattern.permute.xlu0 0
    %8806 = vperm.xlu0 %8805, %v8338
    %v8807 = vpop.permute.xlu0 %8806
    %8808 = vset.pattern.permute.xlu0 0
    %8809 = vperm.xlu0 %8808, %v8340
    %v8810 = vpop.permute.xlu0 %8809
    %v8811 = vlaneseq
    %v8812 = vshrl.u32 %v8811, 7
    %v8813 = vsub.s32 %v32, %v8812
    %v8814 = vrot.slane %v8789, %v8813
    %v8815 = vlaneseq
    %v8816 = vshrl.u32 %v8815, 7
    %v8817 = vsub.s32 %v32, %v8816
    %v8818 = vrot.slane %v8792, %v8817
    %v8819 = vlaneseq
    %v8820 = vshrl.u32 %v8819, 7
    %v8821 = vsub.s32 %v32, %v8820
    %v8822 = vrot.slane %v8795, %v8821
    %v8823 = vlaneseq
    %v8824 = vshrl.u32 %v8823, 7
    %v8825 = vsub.s32 %v32, %v8824
    %v8826 = vrot.slane %v8798, %v8825
    %v8827 = vlaneseq
    %v8828 = vshrl.u32 %v8827, 7
    %v8829 = vsub.s32 %v32, %v8828
    %v8830 = vrot.slane %v8801, %v8829
    %v8831 = vlaneseq
    %v8832 = vshrl.u32 %v8831, 7
    %v8833 = vsub.s32 %v32, %v8832
    %v8834 = vrot.slane %v8804, %v8833
    %v8835 = vlaneseq
    %v8836 = vshrl.u32 %v8835, 7
    %v8837 = vsub.s32 %v32, %v8836
    %v8838 = vrot.slane %v8807, %v8837
    %v8839 = vlaneseq
    %v8840 = vshrl.u32 %v8839, 7
    %v8841 = vsub.s32 %v32, %v8840
    %v8842 = vrot.slane %v8810, %v8841
    %v8843 = vsel %vm534, %v8818, %v8814
    %v8844 = vsel %vm536, %v8822, %v8843
    %v8845 = vsel %vm538, %v8826, %v8844
    %v8846 = vsel %vm540, %v8830, %v8845
    %v8847 = vsel %vm542, %v8834, %v8846
    %v8848 = vsel %vm544, %v8838, %v8847
    %v8849 = vsel %vm546, %v8842, %v8848
    %8859 = vset.pattern.permute.xlu0 0
    %8860 = vperm.xlu0 %8859, %v8764
    %v8861 = vpop.permute.xlu0 %8860
    %8862 = vset.pattern.permute.xlu0 0
    %8863 = vperm.xlu0 %8862, %v8766
    %v8864 = vpop.permute.xlu0 %8863
    %8865 = vset.pattern.permute.xlu0 0
    %8866 = vperm.xlu0 %8865, %v8768
    %v8867 = vpop.permute.xlu0 %8866
    %8868 = vset.pattern.permute.xlu0 0
    %8869 = vperm.xlu0 %8868, %v8770
    %v8870 = vpop.permute.xlu0 %8869
    %8871 = vset.pattern.permute.xlu0 0
    %8872 = vperm.xlu0 %8871, %v8772
    %v8873 = vpop.permute.xlu0 %8872
    %8874 = vset.pattern.permute.xlu0 0
    %8875 = vperm.xlu0 %8874, %v8774
    %v8876 = vpop.permute.xlu0 %8875
    %8877 = vset.pattern.permute.xlu0 0
    %8878 = vperm.xlu0 %8877, %v8776
    %v8879 = vpop.permute.xlu0 %8878
    %8880 = vset.pattern.permute.xlu0 0
    %8881 = vperm.xlu0 %8880, %v8778
    %v8882 = vpop.permute.xlu0 %8881
    %v8883 = vlaneseq
    %v8884 = vshrl.u32 %v8883, 7
    %v8885 = vsub.s32 %v1296, %v8884
    %v8886 = vrot.slane %v8861, %v8885
    %v8887 = vlaneseq
    %v8888 = vshrl.u32 %v8887, 7
    %v8889 = vsub.s32 %v1296, %v8888
    %v8890 = vrot.slane %v8864, %v8889
    %v8891 = vlaneseq
    %v8892 = vshrl.u32 %v8891, 7
    %v8893 = vsub.s32 %v1296, %v8892
    %v8894 = vrot.slane %v8867, %v8893
    %v8895 = vlaneseq
    %v8896 = vshrl.u32 %v8895, 7
    %v8897 = vsub.s32 %v1296, %v8896
    %v8898 = vrot.slane %v8870, %v8897
    %v8899 = vlaneseq
    %v8900 = vshrl.u32 %v8899, 7
    %v8901 = vsub.s32 %v1296, %v8900
    %v8902 = vrot.slane %v8873, %v8901
    %v8903 = vlaneseq
    %v8904 = vshrl.u32 %v8903, 7
    %v8905 = vsub.s32 %v1296, %v8904
    %v8906 = vrot.slane %v8876, %v8905
    %v8907 = vlaneseq
    %v8908 = vshrl.u32 %v8907, 7
    %v8909 = vsub.s32 %v1296, %v8908
    %v8910 = vrot.slane %v8879, %v8909
    %v8911 = vlaneseq
    %v8912 = vshrl.u32 %v8911, 7
    %v8913 = vsub.s32 %v1296, %v8912
    %v8914 = vrot.slane %v8882, %v8913
    %v8915 = vsel %vm534, %v8890, %v8886
    %v8916 = vsel %vm536, %v8894, %v8915
    %v8917 = vsel %vm538, %v8898, %v8916
    %v8918 = vsel %vm540, %v8902, %v8917
    %v8919 = vsel %vm542, %v8906, %v8918
    %v8920 = vsel %vm544, %v8910, %v8919
    %v8921 = vsel %vm546, %v8914, %v8920
    %v8923 = vsel %vm549, %v8849, %v8921
    %8925 = vrot.lane.b32.xlu0 %v7831, 96
    %v8926 = vpop.permute.xlu0 %8925
    %v8929 = vsel %vm1342, %v8923, 0
    %8931 = vmatprep.subr.mxu0 0.0
    %8932 = vmatpush1.msra.mxu0 0.0
    %8933 = vmatprep.subr.mxu0 0.0
    %8934 = vmatpush1.msra.mxu0 0.0
    %8935 = vmatprep.subr.mxu0 0.0
    %8936 = vmatpush1.msra.mxu0 0.0
    %8937 = vmatprep.subr.mxu0 0.0
    %8938 = vmatpush1.msra.mxu0 0.0
    %8939 = vmatprep.subr.mxu0 0.0
    %8940 = vmatpush1.msra.mxu0 0.0
    %8941 = vmatprep.subr.mxu0 0.0
    %8942 = vmatpush1.msra.mxu0 0.0
    %8943 = vmatprep.subr.mxu0 0.0
    %8944 = vmatpush1.msra.mxu0 0.0
    %8945 = vmatprep.subr.mxu0 0.0
    %8946 = vmatpush1.msra.mxu0 0.0
    %8947 = vmatprep.subr.mxu0 0.0
    %8948 = vmatpush1.msra.mxu0 0.0
    %8949 = vmatprep.subr.mxu0 0.0
    %8950 = vmatpush1.msra.mxu0 0.0
    %8951 = vmatprep.subr.mxu0 0.0
    %8952 = vmatpush1.msra.mxu0 0.0
    %8953 = vmatprep.subr.mxu0 0.0
    %8954 = vmatpush1.msra.mxu0 0.0
    %8955 = vmatprep.subr.mxu0 0.0
    %8956 = vmatpush1.msra.mxu0 0.0
    %8957 = vmatprep.subr.mxu0 0.0
    %8958 = vmatpush1.msra.mxu0 0.0
    %8959 = vmatprep.subr.mxu0 0.0
    %8960 = vmatpush1.msra.mxu0 %v8926
    %8961 = vmatprep.subr.mxu0 0.0
    %8962 = vmatpush1.msra.mxu0 %v7831
    %8963 = vmatprep.subr.mxu0 0.0
    %8964 = vmatpush2.msra.mxu0 0.0
    %8965 = vmatprep.subr.mxu0 0.0
    %8966 = vmatpush2.msra.mxu0 0.0
    %8967 = vmatprep.subr.mxu0 0.0
    %8968 = vmatpush2.msra.mxu0 0.0
    %8969 = vmatprep.subr.mxu0 0.0
    %8970 = vmatpush2.msra.mxu0 0.0
    %8971 = vmatprep.subr.mxu0 0.0
    %8972 = vmatpush2.msra.mxu0 0.0
    %8973 = vmatprep.subr.mxu0 0.0
    %8974 = vmatpush2.msra.mxu0 0.0
    %8975 = vmatprep.subr.mxu0 0.0
    %8976 = vmatpush2.msra.mxu0 0.0
    %8977 = vmatprep.subr.mxu0 0.0
    %8978 = vmatpush2.msra.mxu0 0.0
    %8979 = vmatprep.subr.mxu0 0.0
    %8980 = vmatpush2.msra.mxu0 0.0
    %8981 = vmatprep.subr.mxu0 0.0
    %8982 = vmatpush2.msra.mxu0 0.0
    %8983 = vmatprep.subr.mxu0 0.0
    %8984 = vmatpush2.msra.mxu0 0.0
    %8985 = vmatprep.subr.mxu0 0.0
    %8986 = vmatpush2.msra.mxu0 0.0
    %8987 = vmatprep.subr.mxu0 0.0
    %8988 = vmatpush2.msra.mxu0 0.0
    %8989 = vmatprep.subr.mxu0 0.0
    %8990 = vmatpush2.msra.mxu0 0.0
    %8991 = vmatprep.subr.mxu0 0.0
    %8992 = vmatpush2.msra.mxu0 0.0
    %8993 = vmatprep.subr.mxu0 0.0
    %8994 = vmatpush2.msra.mxu0 0.0
    %8995 = vmatprep.mubr.f32.mxu0 0.0
    %8996 = vmatmul.mubr.f32.gmra.mxu0 %v8929
    %v8997 = vpop.f32.mrf.mxu0
    %v8998 = vadd.f32 0.0, %v8997
    %v8999 = vpop.f32.mrf.mxu0
    %9000 = vdwg.mxu0
    %v9001 = vmul.f32 %v7674, %v2799
    %v9003 = vcombine.high %v7753, %v7753
    %v9005 = vunpack.c.l.s4 1966171168
    %v9006 = vunpack.c.0.s8 %v9005
    %v9007 = vlaneseq
    %v9008 = vshrl.u32 %v9007, 7
    %v9009 = vsub.s32 %v9006, %v9008
    %v9010 = vrot.slane %v7753, %v9009
    %v9012 = vunpack.c.l.s4 1966171168
    %v9013 = vunpack.c.0.s8 %v9012
    %v9014 = vlaneseq
    %v9015 = vshrl.u32 %v9014, 7
    %v9016 = vsub.s32 %v9013, %v9015
    %v9017 = vrot.slane %v9003, %v9016
    %v9018 = vcombine.high %v9010, %v9010
    %v9019 = vcombine.high %v9017, %v9017
    %v9021 = vunpack.c.l.s4 1966171168
    %v9022 = vunpack.c.0.s8 %v9021
    %v9023 = vlaneseq
    %v9024 = vshrl.u32 %v9023, 7
    %v9025 = vsub.s32 %v9022, %v9024
    %v9026 = vrot.slane %v9010, %v9025
    %v9028 = vunpack.c.l.s4 1966171168
    %v9029 = vunpack.c.0.s8 %v9028
    %v9030 = vlaneseq
    %v9031 = vshrl.u32 %v9030, 7
    %v9032 = vsub.s32 %v9029, %v9031
    %v9033 = vrot.slane %v9017, %v9032
    %v9035 = vunpack.c.l.s4 1966171168
    %v9036 = vunpack.c.0.s8 %v9035
    %v9037 = vlaneseq
    %v9038 = vshrl.u32 %v9037, 7
    %v9039 = vsub.s32 %v9036, %v9038
    %v9040 = vrot.slane %v9018, %v9039
    %v9042 = vunpack.c.l.s4 1966171168
    %v9043 = vunpack.c.0.s8 %v9042
    %v9044 = vlaneseq
    %v9045 = vshrl.u32 %v9044, 7
    %v9046 = vsub.s32 %v9043, %v9045
    %v9047 = vrot.slane %v9019, %v9046
    %v9048 = vcombine.high %v9026, %v9026
    %v9049 = vcombine.high %v9033, %v9033
    %v9050 = vcombine.high %v9040, %v9040
    %v9051 = vcombine.high %v9047, %v9047
    %v9052 = vlaneseq
    %v9053 = vshrl.u32 %v9052, 7
    %v9054 = vsub.s32 0, %v9053
    %v9055 = vrot.slane %v9026, %v9054
    %v9056 = vlaneseq
    %v9057 = vshrl.u32 %v9056, 7
    %v9058 = vsub.s32 0, %v9057
    %v9059 = vrot.slane %v9040, %v9058
    %v9060 = vlaneseq
    %v9061 = vshrl.u32 %v9060, 7
    %v9062 = vsub.s32 0, %v9061
    %v9063 = vrot.slane %v9048, %v9062
    %v9064 = vlaneseq
    %v9065 = vshrl.u32 %v9064, 7
    %v9066 = vsub.s32 0, %v9065
    %v9067 = vrot.slane %v9050, %v9066
    %v9068 = vlaneseq
    %v9069 = vshrl.u32 %v9068, 7
    %v9070 = vsub.s32 0, %v9069
    %v9071 = vrot.slane %v9033, %v9070
    %v9072 = vlaneseq
    %v9073 = vshrl.u32 %v9072, 7
    %v9074 = vsub.s32 0, %v9073
    %v9075 = vrot.slane %v9047, %v9074
    %v9076 = vlaneseq
    %v9077 = vshrl.u32 %v9076, 7
    %v9078 = vsub.s32 0, %v9077
    %v9079 = vrot.slane %v9049, %v9078
    %v9080 = vlaneseq
    %v9081 = vshrl.u32 %v9080, 7
    %v9082 = vsub.s32 0, %v9081
    %v9083 = vrot.slane %v9051, %v9082
    %v9092 = vsub.f32 %v9055, %v9001
    %v9093 = vsub.f32 %v9059, %v9001
    %v9094 = vsub.f32 %v9063, %v9001
    %v9095 = vsub.f32 %v9067, %v9001
    %v9096 = vsub.f32 %v9071, %v9001
    %v9097 = vsub.f32 %v9075, %v9001
    %v9098 = vsub.f32 %v9079, %v9001
    %v9099 = vsub.f32 %v9083, %v9001
    %v9100 = vand.u32 2147483647, %v9092
    %v9101 = vand.u32 2147483647, %v9093
    %v9102 = vand.u32 2147483647, %v9094
    %v9103 = vand.u32 2147483647, %v9095
    %v9104 = vand.u32 2147483647, %v9096
    %v9105 = vand.u32 2147483647, %v9097
    %v9106 = vand.u32 2147483647, %v9098
    %v9107 = vand.u32 2147483647, %v9099
    %v9109 = vsel %vm59, %v9100, 0
    %v9112 = vsel %vm59, %v9101, 0
    %v9115 = vsel %vm59, %v9102, 0
    %v9118 = vsel %vm59, %v9103, 0
    %v9121 = vsel %vm59, %v9104, 0
    %v9124 = vsel %vm59, %v9105, 0
    %v9127 = vsel %vm59, %v9106, 0
    %v9130 = vsel %vm59, %v9107, 0
    %9132 = vmatprep.subr.mxu0 0.0
    %9133 = vmatpush1.msra.mxu0 0.0
    %9134 = vmatprep.subr.mxu0 0.0
    %9135 = vmatpush1.msra.mxu0 0.0
    %9136 = vmatprep.subr.mxu0 0.0
    %9137 = vmatpush1.msra.mxu0 0.0
    %9138 = vmatprep.subr.mxu0 0.0
    %9139 = vmatpush1.msra.mxu0 0.0
    %9140 = vmatprep.subr.mxu0 0.0
    %9141 = vmatpush1.msra.mxu0 0.0
    %9142 = vmatprep.subr.mxu0 0.0
    %9143 = vmatpush1.msra.mxu0 0.0
    %9144 = vmatprep.subr.mxu0 0.0
    %9145 = vmatpush1.msra.mxu0 0.0
    %9146 = vmatprep.subr.mxu0 0.0
    %9147 = vmatpush1.msra.mxu0 0.0
    %9148 = vmatprep.subr.mxu0 0.0
    %9149 = vmatpush1.msra.mxu0 0.0
    %9150 = vmatprep.subr.mxu0 0.0
    %9151 = vmatpush1.msra.mxu0 0.0
    %9152 = vmatprep.subr.mxu0 0.0
    %9153 = vmatpush1.msra.mxu0 0.0
    %9154 = vmatprep.subr.mxu0 0.0
    %9155 = vmatpush1.msra.mxu0 0.0
    %9156 = vmatprep.subr.mxu0 0.0
    %9157 = vmatpush1.msra.mxu0 -0.17677669
    %9158 = vmatprep.subr.mxu0 0.0
    %9159 = vmatpush1.msra.mxu0 -0.17677669
    %9160 = vmatprep.subr.mxu0 0.0
    %9161 = vmatpush1.msra.mxu0 -0.17677669
    %9162 = vmatprep.subr.mxu0 0.0
    %9163 = vmatpush1.msra.mxu0 -0.17677669
    %9164 = vmatprep.subr.mxu0 0.0
    %9165 = vmatpush2.msra.mxu0 0.0
    %9166 = vmatprep.subr.mxu0 0.0
    %9167 = vmatpush2.msra.mxu0 0.0
    %9168 = vmatprep.subr.mxu0 0.0
    %9169 = vmatpush2.msra.mxu0 0.0
    %9170 = vmatprep.subr.mxu0 0.0
    %9171 = vmatpush2.msra.mxu0 0.0
    %9172 = vmatprep.subr.mxu0 0.0
    %9173 = vmatpush2.msra.mxu0 0.0
    %9174 = vmatprep.subr.mxu0 0.0
    %9175 = vmatpush2.msra.mxu0 0.0
    %9176 = vmatprep.subr.mxu0 0.0
    %9177 = vmatpush2.msra.mxu0 0.0
    %9178 = vmatprep.subr.mxu0 0.0
    %9179 = vmatpush2.msra.mxu0 0.0
    %9180 = vmatprep.subr.mxu0 0.0
    %9181 = vmatpush2.msra.mxu0 0.0
    %9182 = vmatprep.subr.mxu0 0.0
    %9183 = vmatpush2.msra.mxu0 0.0
    %9184 = vmatprep.subr.mxu0 0.0
    %9185 = vmatpush2.msra.mxu0 0.0
    %9186 = vmatprep.subr.mxu0 0.0
    %9187 = vmatpush2.msra.mxu0 0.0
    %9188 = vmatprep.subr.mxu0 0.0
    %9189 = vmatpush2.msra.mxu0 0.0
    %9190 = vmatprep.subr.mxu0 0.0
    %9191 = vmatpush2.msra.mxu0 0.0
    %9192 = vmatprep.subr.mxu0 0.0
    %9193 = vmatpush2.msra.mxu0 0.0
    %9194 = vmatprep.subr.mxu0 0.0
    %9195 = vmatpush2.msra.mxu0 0.0
    %9196 = vmatprep.mubr.f32.mxu0 0.0
    %9197 = vmatmul.mubr.f32.gmra.mxu0 %v9109
    %v9198 = vpop.f32.mrf.mxu0
    %v9199 = vadd.f32 0.0, %v9198
    %v9200 = vpop.f32.mrf.mxu0
    %9201 = vmatprep.mubr.f32.mxu0 0.0
    %9202 = vmatmul.mubr.f32.gmra.mxu0 %v9112
    %v9203 = vpop.f32.mrf.mxu0
    %v9204 = vadd.f32 0.0, %v9203
    %v9205 = vpop.f32.mrf.mxu0
    %9206 = vmatprep.mubr.f32.mxu0 0.0
    %9207 = vmatmul.mubr.f32.gmra.mxu0 %v9115
    %v9208 = vpop.f32.mrf.mxu0
    %v9209 = vadd.f32 0.0, %v9208
    %v9210 = vpop.f32.mrf.mxu0
    %9211 = vmatprep.mubr.f32.mxu0 0.0
    %9212 = vmatmul.mubr.f32.gmra.mxu0 %v9118
    %v9213 = vpop.f32.mrf.mxu0
    %v9214 = vadd.f32 0.0, %v9213
    %v9215 = vpop.f32.mrf.mxu0
    %9216 = vmatprep.mubr.f32.mxu0 0.0
    %9217 = vmatmul.mubr.f32.gmra.mxu0 %v9121
    %v9218 = vpop.f32.mrf.mxu0
    %v9219 = vadd.f32 0.0, %v9218
    %v9220 = vpop.f32.mrf.mxu0
    %9221 = vmatprep.mubr.f32.mxu0 0.0
    %9222 = vmatmul.mubr.f32.gmra.mxu0 %v9124
    %v9223 = vpop.f32.mrf.mxu0
    %v9224 = vadd.f32 0.0, %v9223
    %v9225 = vpop.f32.mrf.mxu0
    %9226 = vmatprep.mubr.f32.mxu0 0.0
    %9227 = vmatmul.mubr.f32.gmra.mxu0 %v9127
    %v9228 = vpop.f32.mrf.mxu0
    %v9229 = vadd.f32 0.0, %v9228
    %v9230 = vpop.f32.mrf.mxu0
    %9231 = vmatprep.mubr.f32.mxu0 0.0
    %9232 = vmatmul.mubr.f32.gmra.mxu0 %v9130
    %v9233 = vpop.f32.mrf.mxu0
    %v9234 = vadd.f32 0.0, %v9233
    %v9235 = vpop.f32.mrf.mxu0
    %9236 = vdwg.mxu0
    %9245 = vset.pattern.permute.xlu0 0
    %9246 = vperm.xlu0 %9245, %v9199
    %v9247 = vpop.permute.xlu0 %9246
    %9248 = vset.pattern.permute.xlu0 0
    %9249 = vperm.xlu0 %9248, %v9204
    %v9250 = vpop.permute.xlu0 %9249
    %9251 = vset.pattern.permute.xlu0 0
    %9252 = vperm.xlu0 %9251, %v9209
    %v9253 = vpop.permute.xlu0 %9252
    %9254 = vset.pattern.permute.xlu0 0
    %9255 = vperm.xlu0 %9254, %v9214
    %v9256 = vpop.permute.xlu0 %9255
    %9257 = vset.pattern.permute.xlu0 0
    %9258 = vperm.xlu0 %9257, %v9219
    %v9259 = vpop.permute.xlu0 %9258
    %9260 = vset.pattern.permute.xlu0 0
    %9261 = vperm.xlu0 %9260, %v9224
    %v9262 = vpop.permute.xlu0 %9261
    %9263 = vset.pattern.permute.xlu0 0
    %9264 = vperm.xlu0 %9263, %v9229
    %v9265 = vpop.permute.xlu0 %9264
    %9266 = vset.pattern.permute.xlu0 0
    %9267 = vperm.xlu0 %9266, %v9234
    %v9268 = vpop.permute.xlu0 %9267
    %v9269 = vlaneseq
    %v9270 = vshrl.u32 %v9269, 7
    %v9271 = vsub.s32 %v32, %v9270
    %v9272 = vrot.slane %v9247, %v9271
    %v9273 = vlaneseq
    %v9274 = vshrl.u32 %v9273, 7
    %v9275 = vsub.s32 %v32, %v9274
    %v9276 = vrot.slane %v9250, %v9275
    %v9277 = vlaneseq
    %v9278 = vshrl.u32 %v9277, 7
    %v9279 = vsub.s32 %v32, %v9278
    %v9280 = vrot.slane %v9253, %v9279
    %v9281 = vlaneseq
    %v9282 = vshrl.u32 %v9281, 7
    %v9283 = vsub.s32 %v32, %v9282
    %v9284 = vrot.slane %v9256, %v9283
    %v9285 = vlaneseq
    %v9286 = vshrl.u32 %v9285, 7
    %v9287 = vsub.s32 %v32, %v9286
    %v9288 = vrot.slane %v9259, %v9287
    %v9289 = vlaneseq
    %v9290 = vshrl.u32 %v9289, 7
    %v9291 = vsub.s32 %v32, %v9290
    %v9292 = vrot.slane %v9262, %v9291
    %v9293 = vlaneseq
    %v9294 = vshrl.u32 %v9293, 7
    %v9295 = vsub.s32 %v32, %v9294
    %v9296 = vrot.slane %v9265, %v9295
    %v9297 = vlaneseq
    %v9298 = vshrl.u32 %v9297, 7
    %v9299 = vsub.s32 %v32, %v9298
    %v9300 = vrot.slane %v9268, %v9299
    %v9301 = vsel %vm534, %v9276, %v9272
    %v9302 = vsel %vm536, %v9280, %v9301
    %v9303 = vsel %vm538, %v9284, %v9302
    %v9304 = vsel %vm540, %v9288, %v9303
    %v9305 = vsel %vm542, %v9292, %v9304
    %v9306 = vsel %vm544, %v9296, %v9305
    %v9307 = vsel %vm546, %v9300, %v9306
    %v9309 = vsel %vm549, %v9307, -inf
    %9310 = vmax.xlane.f32.xlu0 %v9309
    %v9311 = vpop.xlane.xlu0 %9310
    %v9313 = vlaneseq
    %v9314 = vshrl.u32 %v9313, 7
    %v9315 = vsub.s32 0, %v9314
    %v9316 = vrot.slane %v9311, %v9315
    %v9317 = vlaneseq
    %v9318 = vshrl.u32 %v9317, 7
    %v9319 = vsub.s32 1, %v9318
    %v9320 = vrot.slane %v9311, %v9319
    %v9321 = vlaneseq
    %v9322 = vshrl.u32 %v9321, 7
    %v9323 = vsub.s32 2, %v9322
    %v9324 = vrot.slane %v9311, %v9323
    %v9325 = vlaneseq
    %v9326 = vshrl.u32 %v9325, 7
    %v9327 = vsub.s32 3, %v9326
    %v9328 = vrot.slane %v9311, %v9327
    %v9329 = vlaneseq
    %v9330 = vshrl.u32 %v9329, 7
    %v9331 = vsub.s32 4, %v9330
    %v9332 = vrot.slane %v9311, %v9331
    %v9333 = vlaneseq
    %v9334 = vshrl.u32 %v9333, 7
    %v9335 = vsub.s32 5, %v9334
    %v9336 = vrot.slane %v9311, %v9335
    %v9337 = vlaneseq
    %v9338 = vshrl.u32 %v9337, 7
    %v9339 = vsub.s32 6, %v9338
    %v9340 = vrot.slane %v9311, %v9339
    %v9341 = vlaneseq
    %v9342 = vshrl.u32 %v9341, 7
    %v9343 = vsub.s32 7, %v9342
    %v9344 = vrot.slane %v9311, %v9343
    %v9353 = vsub.f32 %v9199, %v9316
    %v9354 = vsub.f32 %v9204, %v9320
    %v9355 = vsub.f32 %v9209, %v9324
    %v9356 = vsub.f32 %v9214, %v9328
    %v9357 = vsub.f32 %v9219, %v9332
    %v9358 = vsub.f32 %v9224, %v9336
    %v9359 = vsub.f32 %v9229, %v9340
    %v9360 = vsub.f32 %v9234, %v9344
    %v9361 = vmul.f32 %v9353, 1.442695
    %v9362 = vpow.pop %v9361
    %v9363 = vmul.f32 %v9354, 1.442695
    %v9364 = vpow.pop %v9363
    %v9365 = vmul.f32 %v9355, 1.442695
    %v9366 = vpow.pop %v9365
    %v9367 = vmul.f32 %v9356, 1.442695
    %v9368 = vpow.pop %v9367
    %v9369 = vmul.f32 %v9357, 1.442695
    %v9370 = vpow.pop %v9369
    %v9371 = vmul.f32 %v9358, 1.442695
    %v9372 = vpow.pop %v9371
    %v9373 = vmul.f32 %v9359, 1.442695
    %v9374 = vpow.pop %v9373
    %v9375 = vmul.f32 %v9360, 1.442695
    %v9376 = vpow.pop %v9375
    %9385 = vset.pattern.permute.xlu0 0
    %9386 = vperm.xlu0 %9385, %v9362
    %v9387 = vpop.permute.xlu0 %9386
    %9388 = vset.pattern.permute.xlu0 0
    %9389 = vperm.xlu0 %9388, %v9364
    %v9390 = vpop.permute.xlu0 %9389
    %9391 = vset.pattern.permute.xlu0 0
    %9392 = vperm.xlu0 %9391, %v9366
    %v9393 = vpop.permute.xlu0 %9392
    %9394 = vset.pattern.permute.xlu0 0
    %9395 = vperm.xlu0 %9394, %v9368
    %v9396 = vpop.permute.xlu0 %9395
    %9397 = vset.pattern.permute.xlu0 0
    %9398 = vperm.xlu0 %9397, %v9370
    %v9399 = vpop.permute.xlu0 %9398
    %9400 = vset.pattern.permute.xlu0 0
    %9401 = vperm.xlu0 %9400, %v9372
    %v9402 = vpop.permute.xlu0 %9401
    %9403 = vset.pattern.permute.xlu0 0
    %9404 = vperm.xlu0 %9403, %v9374
    %v9405 = vpop.permute.xlu0 %9404
    %9406 = vset.pattern.permute.xlu0 0
    %9407 = vperm.xlu0 %9406, %v9376
    %v9408 = vpop.permute.xlu0 %9407
    %v9409 = vlaneseq
    %v9410 = vshrl.u32 %v9409, 7
    %v9411 = vsub.s32 %v32, %v9410
    %v9412 = vrot.slane %v9387, %v9411
    %v9413 = vlaneseq
    %v9414 = vshrl.u32 %v9413, 7
    %v9415 = vsub.s32 %v32, %v9414
    %v9416 = vrot.slane %v9390, %v9415
    %v9417 = vlaneseq
    %v9418 = vshrl.u32 %v9417, 7
    %v9419 = vsub.s32 %v32, %v9418
    %v9420 = vrot.slane %v9393, %v9419
    %v9421 = vlaneseq
    %v9422 = vshrl.u32 %v9421, 7
    %v9423 = vsub.s32 %v32, %v9422
    %v9424 = vrot.slane %v9396, %v9423
    %v9425 = vlaneseq
    %v9426 = vshrl.u32 %v9425, 7
    %v9427 = vsub.s32 %v32, %v9426
    %v9428 = vrot.slane %v9399, %v9427
    %v9429 = vlaneseq
    %v9430 = vshrl.u32 %v9429, 7
    %v9431 = vsub.s32 %v32, %v9430
    %v9432 = vrot.slane %v9402, %v9431
    %v9433 = vlaneseq
    %v9434 = vshrl.u32 %v9433, 7
    %v9435 = vsub.s32 %v32, %v9434
    %v9436 = vrot.slane %v9405, %v9435
    %v9437 = vlaneseq
    %v9438 = vshrl.u32 %v9437, 7
    %v9439 = vsub.s32 %v32, %v9438
    %v9440 = vrot.slane %v9408, %v9439
    %v9441 = vsel %vm534, %v9416, %v9412
    %v9442 = vsel %vm536, %v9420, %v9441
    %v9443 = vsel %vm538, %v9424, %v9442
    %v9444 = vsel %vm540, %v9428, %v9443
    %v9445 = vsel %vm542, %v9432, %v9444
    %v9446 = vsel %vm544, %v9436, %v9445
    %v9447 = vsel %vm546, %v9440, %v9446
    %v9449 = vsel %vm549, %v9447, 0.0
    %9450 = vadd.xlane.f32.xlu0 %v9449
    %v9451 = vpop.xlane.xlu0 %9450
    %v9453 = vlaneseq
    %v9454 = vshrl.u32 %v9453, 7
    %v9455 = vsub.s32 0, %v9454
    %v9456 = vrot.slane %v9451, %v9455
    %v9457 = vlaneseq
    %v9458 = vshrl.u32 %v9457, 7
    %v9459 = vsub.s32 1, %v9458
    %v9460 = vrot.slane %v9451, %v9459
    %v9461 = vlaneseq
    %v9462 = vshrl.u32 %v9461, 7
    %v9463 = vsub.s32 2, %v9462
    %v9464 = vrot.slane %v9451, %v9463
    %v9465 = vlaneseq
    %v9466 = vshrl.u32 %v9465, 7
    %v9467 = vsub.s32 3, %v9466
    %v9468 = vrot.slane %v9451, %v9467
    %v9469 = vlaneseq
    %v9470 = vshrl.u32 %v9469, 7
    %v9471 = vsub.s32 4, %v9470
    %v9472 = vrot.slane %v9451, %v9471
    %v9473 = vlaneseq
    %v9474 = vshrl.u32 %v9473, 7
    %v9475 = vsub.s32 5, %v9474
    %v9476 = vrot.slane %v9451, %v9475
    %v9477 = vlaneseq
    %v9478 = vshrl.u32 %v9477, 7
    %v9479 = vsub.s32 6, %v9478
    %v9480 = vrot.slane %v9451, %v9479
    %v9481 = vlaneseq
    %v9482 = vshrl.u32 %v9481, 7
    %v9483 = vsub.s32 7, %v9482
    %v9484 = vrot.slane %v9451, %v9483
    %v9493 = vrcp.pop %v9456
    %v9494 = vmul.f32 %v9362, %v9493
    %v9495 = vrcp.pop %v9460
    %v9496 = vmul.f32 %v9364, %v9495
    %v9497 = vrcp.pop %v9464
    %v9498 = vmul.f32 %v9366, %v9497
    %v9499 = vrcp.pop %v9468
    %v9500 = vmul.f32 %v9368, %v9499
    %v9501 = vrcp.pop %v9472
    %v9502 = vmul.f32 %v9370, %v9501
    %v9503 = vrcp.pop %v9476
    %v9504 = vmul.f32 %v9372, %v9503
    %v9505 = vrcp.pop %v9480
    %v9506 = vmul.f32 %v9374, %v9505
    %v9507 = vrcp.pop %v9484
    %v9508 = vmul.f32 %v9376, %v9507
    %v9509 = vmul.f32 %v7674, %v3311
    %9511 = vrot.lane.b32.xlu0 %v9509, 32
    %v9512 = vpop.permute.xlu0 %9511
    %v9514 = vsub.f32 %v9055, %v9512
    %v9515 = vsub.f32 %v9059, %v9512
    %v9516 = vsub.f32 %v9063, %v9512
    %v9517 = vsub.f32 %v9067, %v9512
    %v9518 = vsub.f32 %v9071, %v9512
    %v9519 = vsub.f32 %v9075, %v9512
    %v9520 = vsub.f32 %v9079, %v9512
    %v9521 = vsub.f32 %v9083, %v9512
    %v9522 = vand.u32 2147483647, %v9514
    %v9523 = vand.u32 2147483647, %v9515
    %v9524 = vand.u32 2147483647, %v9516
    %v9525 = vand.u32 2147483647, %v9517
    %v9526 = vand.u32 2147483647, %v9518
    %v9527 = vand.u32 2147483647, %v9519
    %v9528 = vand.u32 2147483647, %v9520
    %v9529 = vand.u32 2147483647, %v9521
    %9538 = vrot.lane.b32.xlu0 %v9522, 96
    %v9539 = vpop.permute.xlu0 %9538
    %9540 = vrot.lane.b32.xlu0 %v9523, 96
    %v9541 = vpop.permute.xlu0 %9540
    %9542 = vrot.lane.b32.xlu0 %v9524, 96
    %v9543 = vpop.permute.xlu0 %9542
    %9544 = vrot.lane.b32.xlu0 %v9525, 96
    %v9545 = vpop.permute.xlu0 %9544
    %9546 = vrot.lane.b32.xlu0 %v9526, 96
    %v9547 = vpop.permute.xlu0 %9546
    %9548 = vrot.lane.b32.xlu0 %v9527, 96
    %v9549 = vpop.permute.xlu0 %9548
    %9550 = vrot.lane.b32.xlu0 %v9528, 96
    %v9551 = vpop.permute.xlu0 %9550
    %9552 = vrot.lane.b32.xlu0 %v9529, 96
    %v9553 = vpop.permute.xlu0 %9552
    %v9554 = vsel %vm59, %v9539, 0
    %v9556 = vsel %vm59, %v9541, 0
    %v9558 = vsel %vm59, %v9543, 0
    %v9560 = vsel %vm59, %v9545, 0
    %v9562 = vsel %vm59, %v9547, 0
    %v9564 = vsel %vm59, %v9549, 0
    %v9566 = vsel %vm59, %v9551, 0
    %v9568 = vsel %vm59, %v9553, 0
    %9570 = vmatprep.subr.mxu0 0.0
    %9571 = vmatpush1.msra.mxu0 0.0
    %9572 = vmatprep.subr.mxu0 0.0
    %9573 = vmatpush1.msra.mxu0 0.0
    %9574 = vmatprep.subr.mxu0 0.0
    %9575 = vmatpush1.msra.mxu0 0.0
    %9576 = vmatprep.subr.mxu0 0.0
    %9577 = vmatpush1.msra.mxu0 0.0
    %9578 = vmatprep.subr.mxu0 0.0
    %9579 = vmatpush1.msra.mxu0 0.0
    %9580 = vmatprep.subr.mxu0 0.0
    %9581 = vmatpush1.msra.mxu0 0.0
    %9582 = vmatprep.subr.mxu0 0.0
    %9583 = vmatpush1.msra.mxu0 0.0
    %9584 = vmatprep.subr.mxu0 0.0
    %9585 = vmatpush1.msra.mxu0 0.0
    %9586 = vmatprep.subr.mxu0 0.0
    %9587 = vmatpush1.msra.mxu0 0.0
    %9588 = vmatprep.subr.mxu0 0.0
    %9589 = vmatpush1.msra.mxu0 0.0
    %9590 = vmatprep.subr.mxu0 0.0
    %9591 = vmatpush1.msra.mxu0 0.0
    %9592 = vmatprep.subr.mxu0 0.0
    %9593 = vmatpush1.msra.mxu0 0.0
    %9594 = vmatprep.subr.mxu0 0.0
    %9595 = vmatpush1.msra.mxu0 -0.17677669
    %9596 = vmatprep.subr.mxu0 0.0
    %9597 = vmatpush1.msra.mxu0 -0.17677669
    %9598 = vmatprep.subr.mxu0 0.0
    %9599 = vmatpush1.msra.mxu0 -0.17677669
    %9600 = vmatprep.subr.mxu0 0.0
    %9601 = vmatpush1.msra.mxu0 -0.17677669
    %9602 = vmatprep.subr.mxu0 0.0
    %9603 = vmatpush2.msra.mxu0 0.0
    %9604 = vmatprep.subr.mxu0 0.0
    %9605 = vmatpush2.msra.mxu0 0.0
    %9606 = vmatprep.subr.mxu0 0.0
    %9607 = vmatpush2.msra.mxu0 0.0
    %9608 = vmatprep.subr.mxu0 0.0
    %9609 = vmatpush2.msra.mxu0 0.0
    %9610 = vmatprep.subr.mxu0 0.0
    %9611 = vmatpush2.msra.mxu0 0.0
    %9612 = vmatprep.subr.mxu0 0.0
    %9613 = vmatpush2.msra.mxu0 0.0
    %9614 = vmatprep.subr.mxu0 0.0
    %9615 = vmatpush2.msra.mxu0 0.0
    %9616 = vmatprep.subr.mxu0 0.0
    %9617 = vmatpush2.msra.mxu0 0.0
    %9618 = vmatprep.subr.mxu0 0.0
    %9619 = vmatpush2.msra.mxu0 0.0
    %9620 = vmatprep.subr.mxu0 0.0
    %9621 = vmatpush2.msra.mxu0 0.0
    %9622 = vmatprep.subr.mxu0 0.0
    %9623 = vmatpush2.msra.mxu0 0.0
    %9624 = vmatprep.subr.mxu0 0.0
    %9625 = vmatpush2.msra.mxu0 0.0
    %9626 = vmatprep.subr.mxu0 0.0
    %9627 = vmatpush2.msra.mxu0 0.0
    %9628 = vmatprep.subr.mxu0 0.0
    %9629 = vmatpush2.msra.mxu0 0.0
    %9630 = vmatprep.subr.mxu0 0.0
    %9631 = vmatpush2.msra.mxu0 0.0
    %9632 = vmatprep.subr.mxu0 0.0
    %9633 = vmatpush2.msra.mxu0 0.0
    %9634 = vmatprep.mubr.f32.mxu0 0.0
    %9635 = vmatmul.mubr.f32.gmra.mxu0 %v9554
    %v9636 = vpop.f32.mrf.mxu0
    %v9637 = vadd.f32 0.0, %v9636
    %v9638 = vpop.f32.mrf.mxu0
    %9639 = vmatprep.mubr.f32.mxu0 0.0
    %9640 = vmatmul.mubr.f32.gmra.mxu0 %v9556
    %v9641 = vpop.f32.mrf.mxu0
    %v9642 = vadd.f32 0.0, %v9641
    %v9643 = vpop.f32.mrf.mxu0
    %9644 = vmatprep.mubr.f32.mxu0 0.0
    %9645 = vmatmul.mubr.f32.gmra.mxu0 %v9558
    %v9646 = vpop.f32.mrf.mxu0
    %v9647 = vadd.f32 0.0, %v9646
    %v9648 = vpop.f32.mrf.mxu0
    %9649 = vmatprep.mubr.f32.mxu0 0.0
    %9650 = vmatmul.mubr.f32.gmra.mxu0 %v9560
    %v9651 = vpop.f32.mrf.mxu0
    %v9652 = vadd.f32 0.0, %v9651
    %v9653 = vpop.f32.mrf.mxu0
    %9654 = vmatprep.mubr.f32.mxu0 0.0
    %9655 = vmatmul.mubr.f32.gmra.mxu0 %v9562
    %v9656 = vpop.f32.mrf.mxu0
    %v9657 = vadd.f32 0.0, %v9656
    %v9658 = vpop.f32.mrf.mxu0
    %9659 = vmatprep.mubr.f32.mxu0 0.0
    %9660 = vmatmul.mubr.f32.gmra.mxu0 %v9564
    %v9661 = vpop.f32.mrf.mxu0
    %v9662 = vadd.f32 0.0, %v9661
    %v9663 = vpop.f32.mrf.mxu0
    %9664 = vmatprep.mubr.f32.mxu0 0.0
    %9665 = vmatmul.mubr.f32.gmra.mxu0 %v9566
    %v9666 = vpop.f32.mrf.mxu0
    %v9667 = vadd.f32 0.0, %v9666
    %v9668 = vpop.f32.mrf.mxu0
    %9669 = vmatprep.mubr.f32.mxu0 0.0
    %9670 = vmatmul.mubr.f32.gmra.mxu0 %v9568
    %v9671 = vpop.f32.mrf.mxu0
    %v9672 = vadd.f32 0.0, %v9671
    %v9673 = vpop.f32.mrf.mxu0
    %9674 = vdwg.mxu0
    %9683 = vset.pattern.permute.xlu0 0
    %9684 = vperm.xlu0 %9683, %v9637
    %v9685 = vpop.permute.xlu0 %9684
    %9686 = vset.pattern.permute.xlu0 0
    %9687 = vperm.xlu0 %9686, %v9642
    %v9688 = vpop.permute.xlu0 %9687
    %9689 = vset.pattern.permute.xlu0 0
    %9690 = vperm.xlu0 %9689, %v9647
    %v9691 = vpop.permute.xlu0 %9690
    %9692 = vset.pattern.permute.xlu0 0
    %9693 = vperm.xlu0 %9692, %v9652
    %v9694 = vpop.permute.xlu0 %9693
    %9695 = vset.pattern.permute.xlu0 0
    %9696 = vperm.xlu0 %9695, %v9657
    %v9697 = vpop.permute.xlu0 %9696
    %9698 = vset.pattern.permute.xlu0 0
    %9699 = vperm.xlu0 %9698, %v9662
    %v9700 = vpop.permute.xlu0 %9699
    %9701 = vset.pattern.permute.xlu0 0
    %9702 = vperm.xlu0 %9701, %v9667
    %v9703 = vpop.permute.xlu0 %9702
    %9704 = vset.pattern.permute.xlu0 0
    %9705 = vperm.xlu0 %9704, %v9672
    %v9706 = vpop.permute.xlu0 %9705
    %v9707 = vlaneseq
    %v9708 = vshrl.u32 %v9707, 7
    %v9709 = vsub.s32 %v32, %v9708
    %v9710 = vrot.slane %v9685, %v9709
    %v9711 = vlaneseq
    %v9712 = vshrl.u32 %v9711, 7
    %v9713 = vsub.s32 %v32, %v9712
    %v9714 = vrot.slane %v9688, %v9713
    %v9715 = vlaneseq
    %v9716 = vshrl.u32 %v9715, 7
    %v9717 = vsub.s32 %v32, %v9716
    %v9718 = vrot.slane %v9691, %v9717
    %v9719 = vlaneseq
    %v9720 = vshrl.u32 %v9719, 7
    %v9721 = vsub.s32 %v32, %v9720
    %v9722 = vrot.slane %v9694, %v9721
    %v9723 = vlaneseq
    %v9724 = vshrl.u32 %v9723, 7
    %v9725 = vsub.s32 %v32, %v9724
    %v9726 = vrot.slane %v9697, %v9725
    %v9727 = vlaneseq
    %v9728 = vshrl.u32 %v9727, 7
    %v9729 = vsub.s32 %v32, %v9728
    %v9730 = vrot.slane %v9700, %v9729
    %v9731 = vlaneseq
    %v9732 = vshrl.u32 %v9731, 7
    %v9733 = vsub.s32 %v32, %v9732
    %v9734 = vrot.slane %v9703, %v9733
    %v9735 = vlaneseq
    %v9736 = vshrl.u32 %v9735, 7
    %v9737 = vsub.s32 %v32, %v9736
    %v9738 = vrot.slane %v9706, %v9737
    %v9739 = vsel %vm534, %v9714, %v9710
    %v9740 = vsel %vm536, %v9718, %v9739
    %v9741 = vsel %vm538, %v9722, %v9740
    %v9742 = vsel %vm540, %v9726, %v9741
    %v9743 = vsel %vm542, %v9730, %v9742
    %v9744 = vsel %vm544, %v9734, %v9743
    %v9745 = vsel %vm546, %v9738, %v9744
    %v9747 = vsel %vm549, %v9745, -inf
    %9748 = vmax.xlane.f32.xlu0 %v9747
    %v9749 = vpop.xlane.xlu0 %9748
    %v9751 = vlaneseq
    %v9752 = vshrl.u32 %v9751, 7
    %v9753 = vsub.s32 0, %v9752
    %v9754 = vrot.slane %v9749, %v9753
    %v9755 = vlaneseq
    %v9756 = vshrl.u32 %v9755, 7
    %v9757 = vsub.s32 1, %v9756
    %v9758 = vrot.slane %v9749, %v9757
    %v9759 = vlaneseq
    %v9760 = vshrl.u32 %v9759, 7
    %v9761 = vsub.s32 2, %v9760
    %v9762 = vrot.slane %v9749, %v9761
    %v9763 = vlaneseq
    %v9764 = vshrl.u32 %v9763, 7
    %v9765 = vsub.s32 3, %v9764
    %v9766 = vrot.slane %v9749, %v9765
    %v9767 = vlaneseq
    %v9768 = vshrl.u32 %v9767, 7
    %v9769 = vsub.s32 4, %v9768
    %v9770 = vrot.slane %v9749, %v9769
    %v9771 = vlaneseq
    %v9772 = vshrl.u32 %v9771, 7
    %v9773 = vsub.s32 5, %v9772
    %v9774 = vrot.slane %v9749, %v9773
    %v9775 = vlaneseq
    %v9776 = vshrl.u32 %v9775, 7
    %v9777 = vsub.s32 6, %v9776
    %v9778 = vrot.slane %v9749, %v9777
    %v9779 = vlaneseq
    %v9780 = vshrl.u32 %v9779, 7
    %v9781 = vsub.s32 7, %v9780
    %v9782 = vrot.slane %v9749, %v9781
    %v9791 = vsub.f32 %v9637, %v9754
    %v9792 = vsub.f32 %v9642, %v9758
    %v9793 = vsub.f32 %v9647, %v9762
    %v9794 = vsub.f32 %v9652, %v9766
    %v9795 = vsub.f32 %v9657, %v9770
    %v9796 = vsub.f32 %v9662, %v9774
    %v9797 = vsub.f32 %v9667, %v9778
    %v9798 = vsub.f32 %v9672, %v9782
    %v9799 = vmul.f32 %v9791, 1.442695
    %v9800 = vpow.pop %v9799
    %v9801 = vmul.f32 %v9792, 1.442695
    %v9802 = vpow.pop %v9801
    %v9803 = vmul.f32 %v9793, 1.442695
    %v9804 = vpow.pop %v9803
    %v9805 = vmul.f32 %v9794, 1.442695
    %v9806 = vpow.pop %v9805
    %v9807 = vmul.f32 %v9795, 1.442695
    %v9808 = vpow.pop %v9807
    %v9809 = vmul.f32 %v9796, 1.442695
    %v9810 = vpow.pop %v9809
    %v9811 = vmul.f32 %v9797, 1.442695
    %v9812 = vpow.pop %v9811
    %v9813 = vmul.f32 %v9798, 1.442695
    %v9814 = vpow.pop %v9813
    %9823 = vset.pattern.permute.xlu0 0
    %9824 = vperm.xlu0 %9823, %v9800
    %v9825 = vpop.permute.xlu0 %9824
    %9826 = vset.pattern.permute.xlu0 0
    %9827 = vperm.xlu0 %9826, %v9802
    %v9828 = vpop.permute.xlu0 %9827
    %9829 = vset.pattern.permute.xlu0 0
    %9830 = vperm.xlu0 %9829, %v9804
    %v9831 = vpop.permute.xlu0 %9830
    %9832 = vset.pattern.permute.xlu0 0
    %9833 = vperm.xlu0 %9832, %v9806
    %v9834 = vpop.permute.xlu0 %9833
    %9835 = vset.pattern.permute.xlu0 0
    %9836 = vperm.xlu0 %9835, %v9808
    %v9837 = vpop.permute.xlu0 %9836
    %9838 = vset.pattern.permute.xlu0 0
    %9839 = vperm.xlu0 %9838, %v9810
    %v9840 = vpop.permute.xlu0 %9839
    %9841 = vset.pattern.permute.xlu0 0
    %9842 = vperm.xlu0 %9841, %v9812
    %v9843 = vpop.permute.xlu0 %9842
    %9844 = vset.pattern.permute.xlu0 0
    %9845 = vperm.xlu0 %9844, %v9814
    %v9846 = vpop.permute.xlu0 %9845
    %v9847 = vlaneseq
    %v9848 = vshrl.u32 %v9847, 7
    %v9849 = vsub.s32 %v32, %v9848
    %v9850 = vrot.slane %v9825, %v9849
    %v9851 = vlaneseq
    %v9852 = vshrl.u32 %v9851, 7
    %v9853 = vsub.s32 %v32, %v9852
    %v9854 = vrot.slane %v9828, %v9853
    %v9855 = vlaneseq
    %v9856 = vshrl.u32 %v9855, 7
    %v9857 = vsub.s32 %v32, %v9856
    %v9858 = vrot.slane %v9831, %v9857
    %v9859 = vlaneseq
    %v9860 = vshrl.u32 %v9859, 7
    %v9861 = vsub.s32 %v32, %v9860
    %v9862 = vrot.slane %v9834, %v9861
    %v9863 = vlaneseq
    %v9864 = vshrl.u32 %v9863, 7
    %v9865 = vsub.s32 %v32, %v9864
    %v9866 = vrot.slane %v9837, %v9865
    %v9867 = vlaneseq
    %v9868 = vshrl.u32 %v9867, 7
    %v9869 = vsub.s32 %v32, %v9868
    %v9870 = vrot.slane %v9840, %v9869
    %v9871 = vlaneseq
    %v9872 = vshrl.u32 %v9871, 7
    %v9873 = vsub.s32 %v32, %v9872
    %v9874 = vrot.slane %v9843, %v9873
    %v9875 = vlaneseq
    %v9876 = vshrl.u32 %v9875, 7
    %v9877 = vsub.s32 %v32, %v9876
    %v9878 = vrot.slane %v9846, %v9877
    %v9879 = vsel %vm534, %v9854, %v9850
    %v9880 = vsel %vm536, %v9858, %v9879
    %v9881 = vsel %vm538, %v9862, %v9880
    %v9882 = vsel %vm540, %v9866, %v9881
    %v9883 = vsel %vm542, %v9870, %v9882
    %v9884 = vsel %vm544, %v9874, %v9883
    %v9885 = vsel %vm546, %v9878, %v9884
    %v9887 = vsel %vm549, %v9885, 0.0
    %9888 = vadd.xlane.f32.xlu0 %v9887
    %v9889 = vpop.xlane.xlu0 %9888
    %v9891 = vlaneseq
    %v9892 = vshrl.u32 %v9891, 7
    %v9893 = vsub.s32 0, %v9892
    %v9894 = vrot.slane %v9889, %v9893
    %v9895 = vlaneseq
    %v9896 = vshrl.u32 %v9895, 7
    %v9897 = vsub.s32 1, %v9896
    %v9898 = vrot.slane %v9889, %v9897
    %v9899 = vlaneseq
    %v9900 = vshrl.u32 %v9899, 7
    %v9901 = vsub.s32 2, %v9900
    %v9902 = vrot.slane %v9889, %v9901
    %v9903 = vlaneseq
    %v9904 = vshrl.u32 %v9903, 7
    %v9905 = vsub.s32 3, %v9904
    %v9906 = vrot.slane %v9889, %v9905
    %v9907 = vlaneseq
    %v9908 = vshrl.u32 %v9907, 7
    %v9909 = vsub.s32 4, %v9908
    %v9910 = vrot.slane %v9889, %v9909
    %v9911 = vlaneseq
    %v9912 = vshrl.u32 %v9911, 7
    %v9913 = vsub.s32 5, %v9912
    %v9914 = vrot.slane %v9889, %v9913
    %v9915 = vlaneseq
    %v9916 = vshrl.u32 %v9915, 7
    %v9917 = vsub.s32 6, %v9916
    %v9918 = vrot.slane %v9889, %v9917
    %v9919 = vlaneseq
    %v9920 = vshrl.u32 %v9919, 7
    %v9921 = vsub.s32 7, %v9920
    %v9922 = vrot.slane %v9889, %v9921
    %v9931 = vrcp.pop %v9894
    %v9932 = vmul.f32 %v9800, %v9931
    %v9933 = vrcp.pop %v9898
    %v9934 = vmul.f32 %v9802, %v9933
    %v9935 = vrcp.pop %v9902
    %v9936 = vmul.f32 %v9804, %v9935
    %v9937 = vrcp.pop %v9906
    %v9938 = vmul.f32 %v9806, %v9937
    %v9939 = vrcp.pop %v9910
    %v9940 = vmul.f32 %v9808, %v9939
    %v9941 = vrcp.pop %v9914
    %v9942 = vmul.f32 %v9810, %v9941
    %v9943 = vrcp.pop %v9918
    %v9944 = vmul.f32 %v9812, %v9943
    %v9945 = vrcp.pop %v9922
    %v9946 = vmul.f32 %v9814, %v9945
    %9955 = vset.pattern.permute.xlu0 0
    %9956 = vperm.xlu0 %9955, %v9494
    %v9957 = vpop.permute.xlu0 %9956
    %9958 = vset.pattern.permute.xlu0 0
    %9959 = vperm.xlu0 %9958, %v9496
    %v9960 = vpop.permute.xlu0 %9959
    %9961 = vset.pattern.permute.xlu0 0
    %9962 = vperm.xlu0 %9961, %v9498
    %v9963 = vpop.permute.xlu0 %9962
    %9964 = vset.pattern.permute.xlu0 0
    %9965 = vperm.xlu0 %9964, %v9500
    %v9966 = vpop.permute.xlu0 %9965
    %9967 = vset.pattern.permute.xlu0 0
    %9968 = vperm.xlu0 %9967, %v9502
    %v9969 = vpop.permute.xlu0 %9968
    %9970 = vset.pattern.permute.xlu0 0
    %9971 = vperm.xlu0 %9970, %v9504
    %v9972 = vpop.permute.xlu0 %9971
    %9973 = vset.pattern.permute.xlu0 0
    %9974 = vperm.xlu0 %9973, %v9506
    %v9975 = vpop.permute.xlu0 %9974
    %9976 = vset.pattern.permute.xlu0 0
    %9977 = vperm.xlu0 %9976, %v9508
    %v9978 = vpop.permute.xlu0 %9977
    %v9979 = vlaneseq
    %v9980 = vshrl.u32 %v9979, 7
    %v9981 = vsub.s32 %v32, %v9980
    %v9982 = vrot.slane %v9957, %v9981
    %v9983 = vlaneseq
    %v9984 = vshrl.u32 %v9983, 7
    %v9985 = vsub.s32 %v32, %v9984
    %v9986 = vrot.slane %v9960, %v9985
    %v9987 = vlaneseq
    %v9988 = vshrl.u32 %v9987, 7
    %v9989 = vsub.s32 %v32, %v9988
    %v9990 = vrot.slane %v9963, %v9989
    %v9991 = vlaneseq
    %v9992 = vshrl.u32 %v9991, 7
    %v9993 = vsub.s32 %v32, %v9992
    %v9994 = vrot.slane %v9966, %v9993
    %v9995 = vlaneseq
    %v9996 = vshrl.u32 %v9995, 7
    %v9997 = vsub.s32 %v32, %v9996
    %v9998 = vrot.slane %v9969, %v9997
    %v9999 = vlaneseq
    %v10000 = vshrl.u32 %v9999, 7
    %v10001 = vsub.s32 %v32, %v10000
    %v10002 = vrot.slane %v9972, %v10001
    %v10003 = vlaneseq
    %v10004 = vshrl.u32 %v10003, 7
    %v10005 = vsub.s32 %v32, %v10004
    %v10006 = vrot.slane %v9975, %v10005
    %v10007 = vlaneseq
    %v10008 = vshrl.u32 %v10007, 7
    %v10009 = vsub.s32 %v32, %v10008
    %v10010 = vrot.slane %v9978, %v10009
    %v10011 = vsel %vm534, %v9986, %v9982
    %v10012 = vsel %vm536, %v9990, %v10011
    %v10013 = vsel %vm538, %v9994, %v10012
    %v10014 = vsel %vm540, %v9998, %v10013
    %v10015 = vsel %vm542, %v10002, %v10014
    %v10016 = vsel %vm544, %v10006, %v10015
    %v10017 = vsel %vm546, %v10010, %v10016
    %10027 = vset.pattern.permute.xlu0 0
    %10028 = vperm.xlu0 %10027, %v9932
    %v10029 = vpop.permute.xlu0 %10028
    %10030 = vset.pattern.permute.xlu0 0
    %10031 = vperm.xlu0 %10030, %v9934
    %v10032 = vpop.permute.xlu0 %10031
    %10033 = vset.pattern.permute.xlu0 0
    %10034 = vperm.xlu0 %10033, %v9936
    %v10035 = vpop.permute.xlu0 %10034
    %10036 = vset.pattern.permute.xlu0 0
    %10037 = vperm.xlu0 %10036, %v9938
    %v10038 = vpop.permute.xlu0 %10037
    %10039 = vset.pattern.permute.xlu0 0
    %10040 = vperm.xlu0 %10039, %v9940
    %v10041 = vpop.permute.xlu0 %10040
    %10042 = vset.pattern.permute.xlu0 0
    %10043 = vperm.xlu0 %10042, %v9942
    %v10044 = vpop.permute.xlu0 %10043
    %10045 = vset.pattern.permute.xlu0 0
    %10046 = vperm.xlu0 %10045, %v9944
    %v10047 = vpop.permute.xlu0 %10046
    %10048 = vset.pattern.permute.xlu0 0
    %10049 = vperm.xlu0 %10048, %v9946
    %v10050 = vpop.permute.xlu0 %10049
    %v10051 = vlaneseq
    %v10052 = vshrl.u32 %v10051, 7
    %v10053 = vsub.s32 %v1296, %v10052
    %v10054 = vrot.slane %v10029, %v10053
    %v10055 = vlaneseq
    %v10056 = vshrl.u32 %v10055, 7
    %v10057 = vsub.s32 %v1296, %v10056
    %v10058 = vrot.slane %v10032, %v10057
    %v10059 = vlaneseq
    %v10060 = vshrl.u32 %v10059, 7
    %v10061 = vsub.s32 %v1296, %v10060
    %v10062 = vrot.slane %v10035, %v10061
    %v10063 = vlaneseq
    %v10064 = vshrl.u32 %v10063, 7
    %v10065 = vsub.s32 %v1296, %v10064
    %v10066 = vrot.slane %v10038, %v10065
    %v10067 = vlaneseq
    %v10068 = vshrl.u32 %v10067, 7
    %v10069 = vsub.s32 %v1296, %v10068
    %v10070 = vrot.slane %v10041, %v10069
    %v10071 = vlaneseq
    %v10072 = vshrl.u32 %v10071, 7
    %v10073 = vsub.s32 %v1296, %v10072
    %v10074 = vrot.slane %v10044, %v10073
    %v10075 = vlaneseq
    %v10076 = vshrl.u32 %v10075, 7
    %v10077 = vsub.s32 %v1296, %v10076
    %v10078 = vrot.slane %v10047, %v10077
    %v10079 = vlaneseq
    %v10080 = vshrl.u32 %v10079, 7
    %v10081 = vsub.s32 %v1296, %v10080
    %v10082 = vrot.slane %v10050, %v10081
    %v10083 = vsel %vm534, %v10058, %v10054
    %v10084 = vsel %vm536, %v10062, %v10083
    %v10085 = vsel %vm538, %v10066, %v10084
    %v10086 = vsel %vm540, %v10070, %v10085
    %v10087 = vsel %vm542, %v10074, %v10086
    %v10088 = vsel %vm544, %v10078, %v10087
    %v10089 = vsel %vm546, %v10082, %v10088
    %v10091 = vsel %vm549, %v10017, %v10089
    %10093 = vrot.lane.b32.xlu0 %v7832, 96
    %v10094 = vpop.permute.xlu0 %10093
    %v10097 = vsel %vm1342, %v10091, 0
    %10099 = vmatprep.subr.mxu0 0.0
    %10100 = vmatpush1.msra.mxu0 0.0
    %10101 = vmatprep.subr.mxu0 0.0
    %10102 = vmatpush1.msra.mxu0 0.0
    %10103 = vmatprep.subr.mxu0 0.0
    %10104 = vmatpush1.msra.mxu0 0.0
    %10105 = vmatprep.subr.mxu0 0.0
    %10106 = vmatpush1.msra.mxu0 0.0
    %10107 = vmatprep.subr.mxu0 0.0
    %10108 = vmatpush1.msra.mxu0 0.0
    %10109 = vmatprep.subr.mxu0 0.0
    %10110 = vmatpush1.msra.mxu0 0.0
    %10111 = vmatprep.subr.mxu0 0.0
    %10112 = vmatpush1.msra.mxu0 0.0
    %10113 = vmatprep.subr.mxu0 0.0
    %10114 = vmatpush1.msra.mxu0 0.0
    %10115 = vmatprep.subr.mxu0 0.0
    %10116 = vmatpush1.msra.mxu0 0.0
    %10117 = vmatprep.subr.mxu0 0.0
    %10118 = vmatpush1.msra.mxu0 0.0
    %10119 = vmatprep.subr.mxu0 0.0
    %10120 = vmatpush1.msra.mxu0 0.0
    %10121 = vmatprep.subr.mxu0 0.0
    %10122 = vmatpush1.msra.mxu0 0.0
    %10123 = vmatprep.subr.mxu0 0.0
    %10124 = vmatpush1.msra.mxu0 0.0
    %10125 = vmatprep.subr.mxu0 0.0
    %10126 = vmatpush1.msra.mxu0 0.0
    %10127 = vmatprep.subr.mxu0 0.0
    %10128 = vmatpush1.msra.mxu0 %v10094
    %10129 = vmatprep.subr.mxu0 0.0
    %10130 = vmatpush1.msra.mxu0 %v7832
    %10131 = vmatprep.subr.mxu0 0.0
    %10132 = vmatpush2.msra.mxu0 0.0
    %10133 = vmatprep.subr.mxu0 0.0
    %10134 = vmatpush2.msra.mxu0 0.0
    %10135 = vmatprep.subr.mxu0 0.0
    %10136 = vmatpush2.msra.mxu0 0.0
    %10137 = vmatprep.subr.mxu0 0.0
    %10138 = vmatpush2.msra.mxu0 0.0
    %10139 = vmatprep.subr.mxu0 0.0
    %10140 = vmatpush2.msra.mxu0 0.0
    %10141 = vmatprep.subr.mxu0 0.0
    %10142 = vmatpush2.msra.mxu0 0.0
    %10143 = vmatprep.subr.mxu0 0.0
    %10144 = vmatpush2.msra.mxu0 0.0
    %10145 = vmatprep.subr.mxu0 0.0
    %10146 = vmatpush2.msra.mxu0 0.0
    %10147 = vmatprep.subr.mxu0 0.0
    %10148 = vmatpush2.msra.mxu0 0.0
    %10149 = vmatprep.subr.mxu0 0.0
    %10150 = vmatpush2.msra.mxu0 0.0
    %10151 = vmatprep.subr.mxu0 0.0
    %10152 = vmatpush2.msra.mxu0 0.0
    %10153 = vmatprep.subr.mxu0 0.0
    %10154 = vmatpush2.msra.mxu0 0.0
    %10155 = vmatprep.subr.mxu0 0.0
    %10156 = vmatpush2.msra.mxu0 0.0
    %10157 = vmatprep.subr.mxu0 0.0
    %10158 = vmatpush2.msra.mxu0 0.0
    %10159 = vmatprep.subr.mxu0 0.0
    %10160 = vmatpush2.msra.mxu0 0.0
    %10161 = vmatprep.subr.mxu0 0.0
    %10162 = vmatpush2.msra.mxu0 0.0
    %10163 = vmatprep.mubr.f32.mxu0 0.0
    %10164 = vmatmul.mubr.f32.gmra.mxu0 %v10097
    %v10165 = vpop.f32.mrf.mxu0
    %v10166 = vadd.f32 0.0, %v10165
    %v10167 = vpop.f32.mrf.mxu0
    %10168 = vdwg.mxu0
    %v10169 = vmul.f32 %v8998, 1.702
    %v10170 = vmul.f32 %v10166, 1.702
    %v10171 = vxor.u32 %v10169, 2147483648
    %v10172 = vxor.u32 %v10170, 2147483648
    %v10173 = vmul.f32 %v10171, 1.442695
    %v10174 = vpow.pop %v10173
    %v10175 = vmul.f32 %v10172, 1.442695
    %v10176 = vpow.pop %v10175
    %v10177 = vadd.f32 %v10174, 1.0
    %v10178 = vadd.f32 %v10176, 1.0
    %v10179 = vrcp.pop %v10177
    %v10180 = vmul.f32 1.0, %v10179
    %v10181 = vrcp.pop %v10178
    %v10182 = vmul.f32 1.0, %v10181
    %v10183 = vmul.f32 %v8998, %v10180
    %v10184 = vmul.f32 %v10166, %v10182
    %v10185 = vadd.f32 %v7673, %v10183
    %v10186 = vadd.f32 %v7674, %v10184
    %10187 = vst.msk [vmem:[#allocation2] sm:$0xff] %vm59, %v10185
    %10188 = vst.msk [vmem:[#allocation2 + $0x8] sm:$0xff] %vm59, %v10186
    %10189 = vst.msk [vmem:[#allocation4] sm:$0xff] %vm549, %v6337
    %10190 = vst.msk [vmem:[#allocation6] sm:$0xff] %vm549, %v8849
    %v10191 = vlaneseq
    %v10192 = vshrl.u32 %v10191, 7
    %v10193 = vsub.s32 %v32, %v10192
    %v10194 = vrot.slane %v6349, %v10193
    %v10195 = vlaneseq
    %v10196 = vshrl.u32 %v10195, 7
    %v10197 = vsub.s32 %v32, %v10196
    %v10198 = vrot.slane %v6352, %v10197
    %v10199 = vlaneseq
    %v10200 = vshrl.u32 %v10199, 7
    %v10201 = vsub.s32 %v32, %v10200
    %v10202 = vrot.slane %v6355, %v10201
    %v10203 = vlaneseq
    %v10204 = vshrl.u32 %v10203, 7
    %v10205 = vsub.s32 %v32, %v10204
    %v10206 = vrot.slane %v6358, %v10205
    %v10207 = vlaneseq
    %v10208 = vshrl.u32 %v10207, 7
    %v10209 = vsub.s32 %v32, %v10208
    %v10210 = vrot.slane %v6361, %v10209
    %v10211 = vlaneseq
    %v10212 = vshrl.u32 %v10211, 7
    %v10213 = vsub.s32 %v32, %v10212
    %v10214 = vrot.slane %v6364, %v10213
    %v10215 = vlaneseq
    %v10216 = vshrl.u32 %v10215, 7
    %v10217 = vsub.s32 %v32, %v10216
    %v10218 = vrot.slane %v6367, %v10217
    %v10219 = vlaneseq
    %v10220 = vshrl.u32 %v10219, 7
    %v10221 = vsub.s32 %v32, %v10220
    %v10222 = vrot.slane %v6370, %v10221
    %v10223 = vsel %vm534, %v10198, %v10194
    %v10224 = vsel %vm536, %v10202, %v10223
    %v10225 = vsel %vm538, %v10206, %v10224
    %v10226 = vsel %vm540, %v10210, %v10225
    %v10227 = vsel %vm542, %v10214, %v10226
    %v10228 = vsel %vm544, %v10218, %v10227
    %v10229 = vsel %vm546, %v10222, %v10228
    %s10231 = scalar_lea.vmem [#allocation4], 8
    %10232 = vst.msk [vmem:[%s10231] sm:$0xff] %vm549, %v10229
    %v10233 = vlaneseq
    %v10234 = vshrl.u32 %v10233, 7
    %v10235 = vsub.s32 %v32, %v10234
    %v10236 = vrot.slane %v8861, %v10235
    %v10237 = vlaneseq
    %v10238 = vshrl.u32 %v10237, 7
    %v10239 = vsub.s32 %v32, %v10238
    %v10240 = vrot.slane %v8864, %v10239
    %v10241 = vlaneseq
    %v10242 = vshrl.u32 %v10241, 7
    %v10243 = vsub.s32 %v32, %v10242
    %v10244 = vrot.slane %v8867, %v10243
    %v10245 = vlaneseq
    %v10246 = vshrl.u32 %v10245, 7
    %v10247 = vsub.s32 %v32, %v10246
    %v10248 = vrot.slane %v8870, %v10247
    %v10249 = vlaneseq
    %v10250 = vshrl.u32 %v10249, 7
    %v10251 = vsub.s32 %v32, %v10250
    %v10252 = vrot.slane %v8873, %v10251
    %v10253 = vlaneseq
    %v10254 = vshrl.u32 %v10253, 7
    %v10255 = vsub.s32 %v32, %v10254
    %v10256 = vrot.slane %v8876, %v10255
    %v10257 = vlaneseq
    %v10258 = vshrl.u32 %v10257, 7
    %v10259 = vsub.s32 %v32, %v10258
    %v10260 = vrot.slane %v8879, %v10259
    %v10261 = vlaneseq
    %v10262 = vshrl.u32 %v10261, 7
    %v10263 = vsub.s32 %v32, %v10262
    %v10264 = vrot.slane %v8882, %v10263
    %v10265 = vsel %vm534, %v10240, %v10236
    %v10266 = vsel %vm536, %v10244, %v10265
    %v10267 = vsel %vm538, %v10248, %v10266
    %v10268 = vsel %vm540, %v10252, %v10267
    %v10269 = vsel %vm542, %v10256, %v10268
    %v10270 = vsel %vm544, %v10260, %v10269
    %v10271 = vsel %vm546, %v10264, %v10270
    %s10273 = scalar_lea.vmem [#allocation6], 8
    %10274 = vst.msk [vmem:[%s10273] sm:$0xff] %vm549, %v10271
    // Predicated region
    $region30: #{transformer_forward.1} parent=1 // pred_check
      _
    $region31: #{transformer_forward.1} parent=1 // pred_check_branch
      %10276 = sbr.rel (0) target = $region33
    $region32: #{transformer_forward.1} parent=1 // pred_region
      %s10278 = ssub.s32 256, 256
      %10279 = vsyncadd [#allocation3], %s10278
      %s10280 = sshll.u32 [#allocation2], 4
      %s10281 = int_to_ptr.vmem [resolvable:$true] %s10280
      %10286 = dma.vmem_to_hbm [thread:$0]  %s10281, 256, %s7, [#allocation3], 128, 128, 8
    $region33: #{transformer_forward.1} parent=1 // pred_fallthru
      _
    // Predicated region
    $region34: #{transformer_forward.1} parent=1 // pred_check
      _
    $region35: #{transformer_forward.1} parent=1 // pred_check_branch
      %10288 = sbr.rel (0) target = $region37
    $region36: #{transformer_forward.1} parent=1 // pred_region
      %s10290 = ssub.s32 256, 256
      %10291 = vsyncadd [#allocation5], %s10290
      %s10292 = sshll.u32 [#allocation4], 4
      %s10293 = int_to_ptr.vmem [resolvable:$true] %s10292
      %10298 = dma.vmem_to_hbm [thread:$0]  %s10293, 256, %s8, [#allocation5], 128, 128, 8
    $region37: #{transformer_forward.1} parent=1 // pred_fallthru
      _
    // Predicated region
    $region38: #{transformer_forward.1} parent=1 // pred_check
      _
    $region39: #{transformer_forward.1} parent=1 // pred_check_branch
      %10300 = sbr.rel (0) target = $region41
    $region40: #{transformer_forward.1} parent=1 // pred_region
      %s10302 = ssub.s32 256, 256
      %10303 = vsyncadd [#allocation5], %s10302
      %s10304 = sshll.u32 [#allocation6], 4
      %s10305 = int_to_ptr.vmem [resolvable:$true] %s10304
      %10310 = dma.vmem_to_hbm [thread:$0]  %s10305, 256, %s9, [#allocation5], 128, 128, 8
    $region41: #{transformer_forward.1} parent=1 // pred_fallthru
      _
    // Predicated region
    $region42: #{transformer_forward.1} parent=1 // pred_check
      _
    $region43: #{transformer_forward.1} parent=1 // pred_check_branch
      %10312 = sbr.rel (0) target = $region45
    $region44: #{transformer_forward.1} parent=1 // pred_region
      %10313 = dma.done [#allocation3], 256
    $region45: #{transformer_forward.1} parent=1 // pred_fallthru
      _
    // Predicated region
    $region46: #{transformer_forward.1} parent=1 // pred_check
      _
    $region47: #{transformer_forward.1} parent=1 // pred_check_branch
      %10315 = sbr.rel (0) target = $region49
    $region48: #{transformer_forward.1} parent=1 // pred_region
      %10316 = dma.done [#allocation5], 256
    $region49: #{transformer_forward.1} parent=1 // pred_fallthru
      _
    // Predicated region
    $region50: #{transformer_forward.1} parent=1 // pred_check
      _
    $region51: #{transformer_forward.1} parent=1 // pred_check_branch
      %10318 = sbr.rel (0) target = $region53
    $region52: #{transformer_forward.1} parent=1 // pred_region
      %10319 = dma.done [#allocation5], 256
    $region53: #{transformer_forward.1} parent=1 // pred_fallthru
      _
    %10320 = vsyncpa [#allocation3], 1
    %10321 = vsyncpa [#allocation5], 1

</llo_original>
